<compile_context>
chip_gen: v5e
topology: v5e:2x2
jax: 0.10.0
libtpu: 0.0.40
codegen_flags: <defaults>
</compile_context>

<pallas_src>
import functools
import math

import jax
import jax.numpy as jnp
from jax.experimental import pallas as pl
from jax.experimental.pallas import tpu as pltpu

_EPS = 1e-6
_NUM_GROUPS = 16


# ------------------------------ kernel helpers ------------------------------ #

def _silu(v):
    return v * jax.nn.sigmoid(v)


def _group_norm_silu(x2, gmask_ref, gamma_ref, beta_ref):
    """x2: (M, C) f32 (flat spatial x channels).  gmask_ref: (C, C) f32 group-averaging
    matrix (1/(M*Cg) within a group, 0 elsewhere).  Returns silu(GroupNorm(x2)) in f32."""
    gm = gmask_ref[...]
    s1 = jnp.sum(x2, axis=0, keepdims=True)                        # (1, C)
    s2 = jnp.sum(x2 * x2, axis=0, keepdims=True)                   # (1, C)
    mean_c = jnp.dot(s1, gm, preferred_element_type=jnp.float32)   # per-channel group mean
    ex2_c = jnp.dot(s2, gm, preferred_element_type=jnp.float32)
    var_c = ex2_c - mean_c * mean_c
    inv_c = jax.lax.rsqrt(var_c + _EPS)
    xn = (x2 - mean_c) * inv_c * gamma_ref[...] + beta_ref[...]
    return _silu(xn)


def _conv3x3_from_scratch(hpad_ref, w_ref, H, W, Cout):
    """hpad_ref: (H+2, W+2, Cin) f32 VMEM scratch (zero border, activation inside).
    w_ref: (9, Cin, Cout) bf16 per-tap weights.  Returns (H*W, Cout) f32."""
    acc = jnp.zeros((H * W, Cout), jnp.float32)
    for t in range(9):                       # unrolled: 9 bf16 MXU matmuls, f32 accumulate
        ky, kx = t // 3, t % 3
        patch = hpad_ref[ky:ky + H, kx:kx + W, :].astype(jnp.bfloat16)
        acc = acc + jnp.dot(patch.reshape(H * W, -1), w_ref[t],
                            preferred_element_type=jnp.float32)
    return acc


def _resnet_core(x_ref, temb_ref,
                 gm1_ref, ga1_ref, be1_ref, w1_ref, b1_ref, wt_ref, bt_ref,
                 gm2_ref, ga2_ref, be2_ref, w2_ref, b2_ref,
                 o_ref, hpad1_ref, hpad2_ref,
                 H, W, Cin, Cout, shortcut_fn):
    # ---- norm1 + SiLU (f32); x is read from HBM exactly once -----------------
    x2 = x_ref[...].reshape(H * W, Cin)
    h = _group_norm_silu(x2, gm1_ref, ga1_ref, be1_ref)

    # ---- conv1 (3x3, pad 1): stage zero-bordered activation, 9 tap matmuls ---
    hpad1_ref[...] = jnp.zeros_like(hpad1_ref)
    hpad1_ref[1:H + 1, 1:W + 1, :] = h.reshape(H, W, Cin)
    h1 = _conv3x3_from_scratch(hpad1_ref, w1_ref, H, W, Cout)

    # ---- + conv1 bias + temb projection (hoisted, added once per tile) -------
    t = _silu(temb_ref[...].reshape(1, -1))                               # (1, Tc) f32
    tproj = jnp.dot(t.astype(jnp.bfloat16), wt_ref[...],
                    preferred_element_type=jnp.float32) + bt_ref[...]     # (1, Cout)
    h1 = h1 + b1_ref[...] + tproj                                         # (H*W, Cout)

    # ---- norm2 + SiLU + dropout(identity) + conv2 ----------------------------
    # TODO(synk): dropout is the identity here (inference); no RNG mask applied.
    g = _group_norm_silu(h1, gm2_ref, ga2_ref, be2_ref)
    hpad2_ref[...] = jnp.zeros_like(hpad2_ref)
    hpad2_ref[1:H + 1, 1:W + 1, :] = g.reshape(H, W, Cout)
    h2 = _conv3x3_from_scratch(hpad2_ref, w2_ref, H, W, Cout) + b2_ref[...]

    # ---- shortcut + residual add ----------------------------------------------
    out = h2 + shortcut_fn(x2)
    o_ref[...] = out.reshape(1, H, W, Cout).astype(o_ref.dtype)


def _resnet_kernel_identity(x_ref, temb_ref, gm1_ref, ga1_ref, be1_ref, w1_ref,
                            b1_ref, wt_ref, bt_ref, gm2_ref, ga2_ref, be2_ref,
                            w2_ref, b2_ref, o_ref, hpad1_ref, hpad2_ref,
                            *, H, W, C):
    _resnet_core(x_ref, temb_ref, gm1_ref, ga1_ref, be1_ref, w1_ref, b1_ref,
                 wt_ref, bt_ref, gm2_ref, ga2_ref, be2_ref, w2_ref, b2_ref,
                 o_ref, hpad1_ref, hpad2_ref, H, W, C, C,
                 shortcut_fn=lambda x2: x2)


def _resnet_kernel_nin(x_ref, temb_ref, gm1_ref, ga1_ref, be1_ref, w1_ref,
                       b1_ref, wt_ref, bt_ref, gm2_ref, ga2_ref, be2_ref,
                       w2_ref, b2_ref, wn_ref, bn_ref, o_ref, hpad1_ref,
                       hpad2_ref, *, H, W, Cin, Cout):
    def nin(x2):  # 1x1 conv shortcut fused as one extra matmul
        return jnp.dot(x2.astype(jnp.bfloat16), wn_ref[...],
                       preferred_element_type=jnp.float32) + bn_ref[...]
    _resnet_core(x_ref, temb_ref, gm1_ref, ga1_ref, be1_ref, w1_ref, b1_ref,
                 wt_ref, bt_ref, gm2_ref, ga2_ref, be2_ref, w2_ref, b2_ref,
                 o_ref, hpad1_ref, hpad2_ref, H, W, Cin, Cout, shortcut_fn=nin)


# --------------------------------- wrapper ---------------------------------- #

def _group_avg_mask(C, num_groups, spatial):
    cg = C // num_groups
    gid = jnp.arange(C, dtype=jnp.int32) // cg
    mask = (gid[:, None] == gid[None, :]).astype(jnp.float32)
    return mask / float(spatial * cg)


def _row(v):
    return v.reshape(1, -1).astype(jnp.float32)


@functools.partial(jax.jit, static_argnames=("num_groups",))
def resnet_block_forward(x_nchw, temb, params, *, num_groups=_NUM_GROUPS):
    """ResnetBlock.forward(x, temb).  x_nchw: (N, Cin, H, W), temb: (N, Tc)."""
    N, Cin, H, W = x_nchw.shape
    Cout = params["conv1_w"].shape[0]
    Tc = temb.shape[1]

    x_nhwc = jnp.transpose(x_nchw, (0, 2, 3, 1)).astype(jnp.float32)    # (N, H, W, Cin)
    temb3 = temb.reshape(N, 1, Tc).astype(jnp.float32)

    # conv weights (OIHW) -> per-tap (ky*3+kx, Cin, Cout) bf16 matrices
    w1_taps = jnp.transpose(params["conv1_w"], (2, 3, 1, 0)) \
        .reshape(9, Cin, Cout).astype(jnp.bfloat16)
    w2_taps = jnp.transpose(params["conv2_w"], (2, 3, 1, 0)) \
        .reshape(9, Cout, Cout).astype(jnp.bfloat16)
    wt = jnp.transpose(params["temb_w"]).astype(jnp.bfloat16)           # (Tc, Cout)

    gmask1 = _group_avg_mask(Cin, num_groups, H * W)
    gmask2 = _group_avg_mask(Cout, num_groups, H * W)

    const2 = lambda n: (0, 0)
    const3 = lambda n: (0, 0, 0)

    in_specs = [
        pl.BlockSpec((1, H, W, Cin), lambda n: (n, 0, 0, 0)),   # x
        pl.BlockSpec((1, 1, Tc), lambda n: (n, 0, 0)),          # temb
        pl.BlockSpec((Cin, Cin), const2),                       # group-avg mask 1
        pl.BlockSpec((1, Cin), const2),                         # gn1 gamma
        pl.BlockSpec((1, Cin), const2),                         # gn1 beta
        pl.BlockSpec((9, Cin, Cout), const3),                   # conv1 taps (bf16)
        pl.BlockSpec((1, Cout), const2),                        # conv1 bias
        pl.BlockSpec((Tc, Cout), const2),                       # temb_proj W^T (bf16)
        pl.BlockSpec((1, Cout), const2),                        # temb_proj bias
        pl.BlockSpec((Cout, Cout), const2),                     # group-avg mask 2
        pl.BlockSpec((1, Cout), const2),                        # gn2 gamma
        pl.BlockSpec((1, Cout), const2),                        # gn2 beta
        pl.BlockSpec((9, Cout, Cout), const3),                  # conv2 taps (bf16)
        pl.BlockSpec((1, Cout), const2),                        # conv2 bias
    ]
    args = [x_nhwc, temb3, gmask1, _row(params["gn1_g"]), _row(params["gn1_b"]),
            w1_taps, _row(params["conv1_b"]), wt, _row(params["temb_b"]),
            gmask2, _row(params["gn2_g"]), _row(params["gn2_b"]),
            w2_taps, _row(params["conv2_b"])]

    if Cin == Cout:
        kernel = functools.partial(_resnet_kernel_identity, H=H, W=W, C=Cout)
    else:
        # TODO(synk): conv_shortcut=True (3x3 shortcut conv) is not implemented; only the
        # default nin_shortcut (1x1 conv) path is fused here.
        kernel = functools.partial(_resnet_kernel_nin, H=H, W=W, Cin=Cin, Cout=Cout)
        wn = jnp.transpose(params["nin_w"][:, :, 0, 0]).astype(jnp.bfloat16)  # (Cin, Cout)
        in_specs += [pl.BlockSpec((Cin, Cout), const2),
                     pl.BlockSpec((1, Cout), const2)]
        args += [wn, _row(params["nin_b"])]

    out_nhwc = pl.pallas_call(
        kernel,
        out_shape=jax.ShapeDtypeStruct((N, H, W, Cout), jnp.float32),
        grid_spec=pltpu.PrefetchScalarGridSpec(
            num_scalar_prefetch=0,
            grid=(N,),                                 # one batch element per step
            in_specs=in_specs,
            out_specs=pl.BlockSpec((1, H, W, Cout), lambda n: (n, 0, 0, 0)),
            scratch_shapes=[pltpu.VMEM((H + 2, W + 2, Cin), jnp.float32),
                            pltpu.VMEM((H + 2, W + 2, Cout), jnp.float32)],
        ),
        compiler_params=pltpu.CompilerParams(
            dimension_semantics=("parallel",)),        # >=2 steps -> both v7x TCs busy
    )(*args)

    return jnp.transpose(out_nhwc, (0, 3, 1, 2))       # back to NCHW


# --------------------------- parameters & reference -------------------------- #

def init_resnet_block_params(key, in_channels, out_channels, temb_channels):
    """Mimics the module init: orthogonal(gain=sqrt(2)) + zero bias for the
    _layer_init'd layers, default-style init for conv2, GroupNorm affine params."""
    ks = jax.random.split(key, 9)
    gain = math.sqrt(2.0)
    cin, cout, tc = in_channels, out_channels, temb_channels

    def orth(k, rows, cols):
        big, small = max(rows, cols), min(rows, cols)
        a = jax.random.normal(k, (big, small), dtype=jnp.float32)
        q, _ = jnp.linalg.qr(a)
        w = q if rows >= cols else q.T
        return gain * w

    params = {
        "gn1_g": 1.0 + 0.1 * jax.random.normal(ks[0], (cin,), jnp.float32),
        "gn1_b": 0.1 * jax.random.normal(ks[1], (cin,), jnp.float32),
        "conv1_w": orth(ks[2], cout, cin * 9).reshape(cout, cin, 3, 3),
        "conv1_b": jnp.zeros((cout,), jnp.float32),
        "temb_w": orth(ks[3], cout, tc),                       # (Cout, Tc) like nn.Linear
        "temb_b": jnp.zeros((cout,), jnp.float32),
        "gn2_g": 1.0 + 0.1 * jax.random.normal(ks[4], (cout,), jnp.float32),
        "gn2_b": 0.1 * jax.random.normal(ks[5], (cout,), jnp.float32),
        "conv2_w": jax.random.normal(ks[6], (cout, cout, 3, 3), jnp.float32)
                   / math.sqrt(9.0 * cout),
        "conv2_b": 0.02 * jax.random.normal(ks[7], (cout,), jnp.float32),
    }
    if cin != cout:
        params["nin_w"] = orth(ks[8], cout, cin).reshape(cout, cin, 1, 1)
        params["nin_b"] = jnp.zeros((cout,), jnp.float32)
    return params


def _reference(x, temb, params, num_groups=_NUM_GROUPS):
    """Pure-jnp reference (same bf16 casts at the matmul inputs, f32 accumulation)."""
    def gn(h, g, b):
        n, c, hh, ww = h.shape
        hg = h.reshape(n, num_groups, c // num_groups, hh, ww)
        m = hg.mean(axis=(2, 3, 4), keepdims=True)
        v = (hg * hg).mean(axis=(2, 3, 4), keepdims=True) - m * m
        hn = ((hg - m) * jax.lax.rsqrt(v + _EPS)).reshape(n, c, hh, ww)
        return hn * g.reshape(1, c, 1, 1) + b.reshape(1, c, 1, 1)

    def silu(v):
        return v * jax.nn.sigmoid(v)

    def conv3(h, w, b):
        out = jax.lax.conv_general_dilated(
            h.astype(jnp.bfloat16), w.astype(jnp.bfloat16), window_strides=(1, 1),
            padding=((1, 1), (1, 1)), dimension_numbers=("NCHW", "OIHW", "NCHW"),
            preferred_element_type=jnp.float32)
        return out + b.reshape(1, -1, 1, 1)

    cout, cin = params["conv1_w"].shape[:2]
    h = conv3(silu(gn(x, params["gn1_g"], params["gn1_b"])),
              params["conv1_w"], params["conv1_b"])
    tp = jnp.dot(silu(temb).astype(jnp.bfloat16),
                 params["temb_w"].T.astype(jnp.bfloat16),
                 preferred_element_type=jnp.float32) + params["temb_b"]
    h = h + tp[:, :, None, None]
    h = conv3(silu(gn(h, params["gn2_g"], params["gn2_b"])),
              params["conv2_w"], params["conv2_b"])
    if cin != cout:
        xs = jax.lax.conv_general_dilated(
            x.astype(jnp.bfloat16), params["nin_w"].astype(jnp.bfloat16),
            window_strides=(1, 1), padding="VALID",
            dimension_numbers=("NCHW", "OIHW", "NCHW"),
            preferred_element_type=jnp.float32) + params["nin_b"].reshape(1, -1, 1, 1)
    else:
        xs = x
    return xs + h


# ----------------------------------- main ------------------------------------ #

if __name__ == "__main__":
    root = jax.random.PRNGKey(0)
    k_p1, k_x1, k_t1, k_p2, k_x2, k_t2 = jax.random.split(root, 6)

    # ---- config 1: in_channels == out_channels (identity shortcut), lane-dense C ----
    N, C, H, W, Tc = 2, 128, 16, 16, 64
    params = init_resnet_block_params(k_p1, C, C, Tc)
    x = jax.random.normal(k_x1, (N, C, H, W), jnp.float32)
    temb = jax.random.normal(k_t1, (N, Tc), jnp.float32)

    y = jax.block_until_ready(resnet_block_forward(x, temb, params))
    assert y.shape == (N, C, H, W)
    y_ref = _reference(x, temb, params)
    assert jnp.allclose(y, y_ref, atol=2e-2, rtol=2e-2), "resnet block (identity) mismatch"

    # ---- config 2: channel-changing block (1x1 nin_shortcut fused in-kernel) ----
    N2, Ci, Co, H2, W2, Tc2 = 2, 32, 64, 8, 8, 32
    params2 = init_resnet_block_params(k_p2, Ci, Co, Tc2)
    x2 = jax.random.normal(k_x2, (N2, Ci, H2, W2), jnp.float32)
    temb2 = jax.random.normal(k_t2, (N2, Tc2), jnp.float32)

    y2 = jax.block_until_ready(resnet_block_forward(x2, temb2, params2))
    assert y2.shape == (N2, Co, H2, W2)
    y2_ref = _reference(x2, temb2, params2)
    assert jnp.allclose(y2, y2_ref, atol=2e-2, rtol=2e-2), "resnet block (nin) mismatch"

    print("KERNEL_OK")
</pallas_src>

<mosaic_0001>
module attributes {stable_mosaic.version = 11 : i64} {
  func.func @_resnet_kernel_identity(%arg0: i32, %arg1: memref<1x16x16x128xf32, #tpu.memory_space<vmem>>, %arg2: memref<1x1x64xf32, #tpu.memory_space<vmem>>, %arg3: memref<128x128xf32, #tpu.memory_space<vmem>>, %arg4: memref<1x128xf32, #tpu.memory_space<vmem>>, %arg5: memref<1x128xf32, #tpu.memory_space<vmem>>, %arg6: memref<9x128x128xbf16, #tpu.memory_space<vmem>>, %arg7: memref<1x128xf32, #tpu.memory_space<vmem>>, %arg8: memref<64x128xbf16, #tpu.memory_space<vmem>>, %arg9: memref<1x128xf32, #tpu.memory_space<vmem>>, %arg10: memref<128x128xf32, #tpu.memory_space<vmem>>, %arg11: memref<1x128xf32, #tpu.memory_space<vmem>>, %arg12: memref<1x128xf32, #tpu.memory_space<vmem>>, %arg13: memref<9x128x128xbf16, #tpu.memory_space<vmem>>, %arg14: memref<1x128xf32, #tpu.memory_space<vmem>>, %arg15: memref<1x16x16x128xf32, #tpu.memory_space<vmem>>, %arg16: memref<18x18x128xf32, #tpu.memory_space<vmem>>, %arg17: memref<18x18x128xf32, #tpu.memory_space<vmem>>) attributes {dimension_semantics = [#tpu.dimension_semantics<parallel>], iteration_bounds = array<i64: 2>, scalar_prefetch = 0 : i64, scratch_operands = 2 : i64, tpu.core_type = #tpu.core_type<tc>, window_params = [{transform_indices = @transform_0, window_bounds = array<i64: 1, 16, 16, 128>}, {transform_indices = @transform_1, window_bounds = array<i64: 1, 1, 64>}, {pipeline_mode = #tpu.pipeline_mode<synchronous>, transform_indices = @transform_2, window_bounds = array<i64: 128, 128>}, {pipeline_mode = #tpu.pipeline_mode<synchronous>, transform_indices = @transform_3, window_bounds = array<i64: 1, 128>}, {pipeline_mode = #tpu.pipeline_mode<synchronous>, transform_indices = @transform_4, window_bounds = array<i64: 1, 128>}, {pipeline_mode = #tpu.pipeline_mode<synchronous>, transform_indices = @transform_5, window_bounds = array<i64: 9, 128, 128>}, {pipeline_mode = #tpu.pipeline_mode<synchronous>, transform_indices = @transform_6, window_bounds = array<i64: 1, 128>}, {pipeline_mode = #tpu.pipeline_mode<synchronous>, transform_indices = @transform_7, window_bounds = array<i64: 64, 128>}, {pipeline_mode = #tpu.pipeline_mode<synchronous>, transform_indices = @transform_8, window_bounds = array<i64: 1, 128>}, {pipeline_mode = #tpu.pipeline_mode<synchronous>, transform_indices = @transform_9, window_bounds = array<i64: 128, 128>}, {pipeline_mode = #tpu.pipeline_mode<synchronous>, transform_indices = @transform_10, window_bounds = array<i64: 1, 128>}, {pipeline_mode = #tpu.pipeline_mode<synchronous>, transform_indices = @transform_11, window_bounds = array<i64: 1, 128>}, {pipeline_mode = #tpu.pipeline_mode<synchronous>, transform_indices = @transform_12, window_bounds = array<i64: 9, 128, 128>}, {pipeline_mode = #tpu.pipeline_mode<synchronous>, transform_indices = @transform_13, window_bounds = array<i64: 1, 128>}, {transform_indices = @transform_14, window_bounds = array<i64: 1, 16, 16, 128>}]} {
    %c0 = arith.constant 0 : index
    %c0_0 = arith.constant 0 : index
    %c0_1 = arith.constant 0 : index
    %c0_2 = arith.constant 0 : index
    %0 = vector.load %arg1[%c0, %c0_0, %c0_1, %c0_2] : memref<1x16x16x128xf32, #tpu.memory_space<vmem>>, vector<1x16x16x128xf32>
    %1 = vector.shape_cast %0 : vector<1x16x16x128xf32> to vector<256x128xf32>
    %c0_3 = arith.constant 0 : index
    %c0_4 = arith.constant 0 : index
    %2 = vector.load %arg3[%c0_3, %c0_4] : memref<128x128xf32, #tpu.memory_space<vmem>>, vector<128x128xf32>
    %cst = arith.constant dense<0.000000e+00> : vector<128xf32>
    %3 = vector.multi_reduction <add>, %1, %cst [0] : vector<256x128xf32> to vector<128xf32>
    %4 = vector.shape_cast %3 : vector<128xf32> to vector<1x128xf32>
    %5 = arith.mulf %1, %1 : vector<256x128xf32>
    %cst_5 = arith.constant dense<0.000000e+00> : vector<128xf32>
    %6 = vector.multi_reduction <add>, %5, %cst_5 [0] : vector<256x128xf32> to vector<128xf32>
    %7 = vector.shape_cast %6 : vector<128xf32> to vector<1x128xf32>
    %cst_6 = arith.constant dense<0.000000e+00> : vector<1x128xf32>
    %8 = tpu.matmul %4, %2, %cst_6 {dimension_numbers = #tpu.dot_dimension_numbers<[1], [0], [0], [1], [0, 0, 1, 1], [], []>} : vector<1x128xf32>, vector<128x128xf32>, vector<1x128xf32> -> vector<1x128xf32>
    %cst_7 = arith.constant dense<0.000000e+00> : vector<1x128xf32>
    %9 = tpu.matmul %7, %2, %cst_7 {dimension_numbers = #tpu.dot_dimension_numbers<[1], [0], [0], [1], [0, 0, 1, 1], [], []>} : vector<1x128xf32>, vector<128x128xf32>, vector<1x128xf32> -> vector<1x128xf32>
    %10 = arith.mulf %8, %8 : vector<1x128xf32>
    %11 = arith.subf %9, %10 : vector<1x128xf32>
    %cst_8 = arith.constant 9.99999997E-7 : f32
    %12 = vector.broadcast %cst_8 : f32 to vector<1x128xf32>
    %13 = arith.addf %11, %12 : vector<1x128xf32>
    %14 = math.rsqrt %13 : vector<1x128xf32>
    %15 = vector.broadcast %8 : vector<1x128xf32> to vector<256x128xf32>
    %16 = arith.subf %1, %15 : vector<256x128xf32>
    %17 = vector.broadcast %14 : vector<1x128xf32> to vector<256x128xf32>
    %18 = arith.mulf %16, %17 : vector<256x128xf32>
    %c0_9 = arith.constant 0 : index
    %c0_10 = arith.constant 0 : index
    %19 = vector.load %arg4[%c0_9, %c0_10] : memref<1x128xf32, #tpu.memory_space<vmem>>, vector<1x128xf32>
    %20 = vector.broadcast %19 : vector<1x128xf32> to vector<256x128xf32>
    %21 = arith.mulf %18, %20 : vector<256x128xf32>
    %c0_11 = arith.constant 0 : index
    %c0_12 = arith.constant 0 : index
    %22 = vector.load %arg5[%c0_11, %c0_12] : memref<1x128xf32, #tpu.memory_space<vmem>>, vector<1x128xf32>
    %23 = vector.broadcast %22 : vector<1x128xf32> to vector<256x128xf32>
    %24 = arith.addf %21, %23 : vector<256x128xf32>
    %25 = arith.negf %24 : vector<256x128xf32>
    %26 = math.exp %25 : vector<256x128xf32>
    %cst_13 = arith.constant 1.000000e+00 : f32
    %27 = vector.broadcast %cst_13 : f32 to vector<256x128xf32>
    %28 = arith.addf %27, %26 : vector<256x128xf32>
    %29 = arith.divf %27, %28 : vector<256x128xf32>
    %30 = arith.mulf %24, %29 : vector<256x128xf32>
    %cst_14 = arith.constant 0.000000e+00 : f32
    %31 = vector.broadcast %cst_14 : f32 to vector<18x18x128xf32>
    %c0_15 = arith.constant 0 : index
    %c0_16 = arith.constant 0 : index
    %c0_17 = arith.constant 0 : index
    %32 = vector.load %arg16[%c0_15, %c0_16, %c0_17] : memref<18x18x128xf32, #tpu.memory_space<vmem>>, vector<18x18x128xf32>
    tpu.vector_store %arg16[%c0_15, %c0_16, %c0_17], %31 {strides = array<i32>} : memref<18x18x128xf32, #tpu.memory_space<vmem>>, vector<18x18x128xf32>,
    %33 = vector.shape_cast %30 : vector<256x128xf32> to vector<16x16x128xf32>
    %c1 = arith.constant 1 : index
    %c1_18 = arith.constant 1 : index
    %c0_19 = arith.constant 0 : index
    %34 = vector.load %arg16[%c1, %c1_18, %c0_19] : memref<18x18x128xf32, #tpu.memory_space<vmem>>, vector<16x16x128xf32>
    tpu.vector_store %arg16[%c1, %c1_18, %c0_19], %33 {strides = array<i32>} : memref<18x18x128xf32, #tpu.memory_space<vmem>>, vector<16x16x128xf32>,
    %cst_20 = arith.constant 0.000000e+00 : f32
    %35 = vector.broadcast %cst_20 : f32 to vector<256x128xf32>
    %c0_21 = arith.constant 0 : index
    %c0_22 = arith.constant 0 : index
    %c0_23 = arith.constant 0 : index
    %36 = vector.load %arg16[%c0_21, %c0_22, %c0_23] : memref<18x18x128xf32, #tpu.memory_space<vmem>>, vector<16x16x128xf32>
    %37 = arith.truncf %36 : vector<16x16x128xf32> to vector<16x16x128xbf16>
    %38 = vector.shape_cast %37 : vector<16x16x128xbf16> to vector<256x128xbf16>
    %c0_24 = arith.constant 0 : index
    %c0_25 = arith.constant 0 : index
    %c0_26 = arith.constant 0 : index
    %39 = vector.load %arg6[%c0_24, %c0_25, %c0_26] : memref<9x128x128xbf16, #tpu.memory_space<vmem>>, vector<1x128x128xbf16>
    %40 = vector.shape_cast %39 : vector<1x128x128xbf16> to vector<128x128xbf16>
    %cst_27 = arith.constant dense<0.000000e+00> : vector<256x128xf32>
    %41 = tpu.matmul %38, %40, %cst_27 {dimension_numbers = #tpu.dot_dimension_numbers<[1], [0], [0], [1], [0, 0, 1, 1], [], []>} : vector<256x128xbf16>, vector<128x128xbf16>, vector<256x128xf32> -> vector<256x128xf32>
    %42 = arith.addf %35, %41 : vector<256x128xf32>
    %c0_28 = arith.constant 0 : index
    %c1_29 = arith.constant 1 : index
    %c0_30 = arith.constant 0 : index
    %43 = vector.load %arg16[%c0_28, %c1_29, %c0_30] : memref<18x18x128xf32, #tpu.memory_space<vmem>>, vector<16x16x128xf32>
    %44 = arith.truncf %43 : vector<16x16x128xf32> to vector<16x16x128xbf16>
    %45 = vector.shape_cast %44 : vector<16x16x128xbf16> to vector<256x128xbf16>
    %c1_31 = arith.constant 1 : index
    %c0_32 = arith.constant 0 : index
    %c0_33 = arith.constant 0 : index
    %46 = vector.load %arg6[%c1_31, %c0_32, %c0_33] : memref<9x128x128xbf16, #tpu.memory_space<vmem>>, vector<1x128x128xbf16>
    %47 = vector.shape_cast %46 : vector<1x128x128xbf16> to vector<128x128xbf16>
    %cst_34 = arith.constant dense<0.000000e+00> : vector<256x128xf32>
    %48 = tpu.matmul %45, %47, %cst_34 {dimension_numbers = #tpu.dot_dimension_numbers<[1], [0], [0], [1], [0, 0, 1, 1], [], []>} : vector<256x128xbf16>, vector<128x128xbf16>, vector<256x128xf32> -> vector<256x128xf32>
    %49 = arith.addf %42, %48 : vector<256x128xf32>
    %c0_35 = arith.constant 0 : index
    %c2 = arith.constant 2 : index
    %c0_36 = arith.constant 0 : index
    %50 = vector.load %arg16[%c0_35, %c2, %c0_36] : memref<18x18x128xf32, #tpu.memory_space<vmem>>, vector<16x16x128xf32>
    %51 = arith.truncf %50 : vector<16x16x128xf32> to vector<16x16x128xbf16>
    %52 = vector.shape_cast %51 : vector<16x16x128xbf16> to vector<256x128xbf16>
    %c2_37 = arith.constant 2 : index
    %c0_38 = arith.constant 0 : index
    %c0_39 = arith.constant 0 : index
    %53 = vector.load %arg6[%c2_37, %c0_38, %c0_39] : memref<9x128x128xbf16, #tpu.memory_space<vmem>>, vector<1x128x128xbf16>
    %54 = vector.shape_cast %53 : vector<1x128x128xbf16> to vector<128x128xbf16>
    %cst_40 = arith.constant dense<0.000000e+00> : vector<256x128xf32>
    %55 = tpu.matmul %52, %54, %cst_40 {dimension_numbers = #tpu.dot_dimension_numbers<[1], [0], [0], [1], [0, 0, 1, 1], [], []>} : vector<256x128xbf16>, vector<128x128xbf16>, vector<256x128xf32> -> vector<256x128xf32>
    %56 = arith.addf %49, %55 : vector<256x128xf32>
    %c1_41 = arith.constant 1 : index
    %c0_42 = arith.constant 0 : index
    %c0_43 = arith.constant 0 : index
    %57 = vector.load %arg16[%c1_41, %c0_42, %c0_43] : memref<18x18x128xf32, #tpu.memory_space<vmem>>, vector<16x16x128xf32>
    %58 = arith.truncf %57 : vector<16x16x128xf32> to vector<16x16x128xbf16>
    %59 = vector.shape_cast %58 : vector<16x16x128xbf16> to vector<256x128xbf16>
    %c3 = arith.constant 3 : index
    %c0_44 = arith.constant 0 : index
    %c0_45 = arith.constant 0 : index
    %60 = vector.load %arg6[%c3, %c0_44, %c0_45] : memref<9x128x128xbf16, #tpu.memory_space<vmem>>, vector<1x128x128xbf16>
    %61 = vector.shape_cast %60 : vector<1x128x128xbf16> to vector<128x128xbf16>
    %cst_46 = arith.constant dense<0.000000e+00> : vector<256x128xf32>
    %62 = tpu.matmul %59, %61, %cst_46 {dimension_numbers = #tpu.dot_dimension_numbers<[1], [0], [0], [1], [0, 0, 1, 1], [], []>} : vector<256x128xbf16>, vector<128x128xbf16>, vector<256x128xf32> -> vector<256x128xf32>
    %63 = arith.addf %56, %62 : vector<256x128xf32>
    %c1_47 = arith.constant 1 : index
    %c1_48 = arith.constant 1 : index
    %c0_49 = arith.constant 0 : index
    %64 = vector.load %arg16[%c1_47, %c1_48, %c0_49] : memref<18x18x128xf32, #tpu.memory_space<vmem>>, vector<16x16x128xf32>
    %65 = arith.truncf %64 : vector<16x16x128xf32> to vector<16x16x128xbf16>
    %66 = vector.shape_cast %65 : vector<16x16x128xbf16> to vector<256x128xbf16>
    %c4 = arith.constant 4 : index
    %c0_50 = arith.constant 0 : index
    %c0_51 = arith.constant 0 : index
    %67 = vector.load %arg6[%c4, %c0_50, %c0_51] : memref<9x128x128xbf16, #tpu.memory_space<vmem>>, vector<1x128x128xbf16>
    %68 = vector.shape_cast %67 : vector<1x128x128xbf16> to vector<128x128xbf16>
    %cst_52 = arith.constant dense<0.000000e+00> : vector<256x128xf32>
    %69 = tpu.matmul %66, %68, %cst_52 {dimension_numbers = #tpu.dot_dimension_numbers<[1], [0], [0], [1], [0, 0, 1, 1], [], []>} : vector<256x128xbf16>, vector<128x128xbf16>, vector<256x128xf32> -> vector<256x128xf32>
    %70 = arith.addf %63, %69 : vector<256x128xf32>
    %c1_53 = arith.constant 1 : index
    %c2_54 = arith.constant 2 : index
    %c0_55 = arith.constant 0 : index
    %71 = vector.load %arg16[%c1_53, %c2_54, %c0_55] : memref<18x18x128xf32, #tpu.memory_space<vmem>>, vector<16x16x128xf32>
    %72 = arith.truncf %71 : vector<16x16x128xf32> to vector<16x16x128xbf16>
    %73 = vector.shape_cast %72 : vector<16x16x128xbf16> to vector<256x128xbf16>
    %c5 = arith.constant 5 : index
    %c0_56 = arith.constant 0 : index
    %c0_57 = arith.constant 0 : index
    %74 = vector.load %arg6[%c5, %c0_56, %c0_57] : memref<9x128x128xbf16, #tpu.memory_space<vmem>>, vector<1x128x128xbf16>
    %75 = vector.shape_cast %74 : vector<1x128x128xbf16> to vector<128x128xbf16>
    %cst_58 = arith.constant dense<0.000000e+00> : vector<256x128xf32>
    %76 = tpu.matmul %73, %75, %cst_58 {dimension_numbers = #tpu.dot_dimension_numbers<[1], [0], [0], [1], [0, 0, 1, 1], [], []>} : vector<256x128xbf16>, vector<128x128xbf16>, vector<256x128xf32> -> vector<256x128xf32>
    %77 = arith.addf %70, %76 : vector<256x128xf32>
    %c2_59 = arith.constant 2 : index
    %c0_60 = arith.constant 0 : index
    %c0_61 = arith.constant 0 : index
    %78 = vector.load %arg16[%c2_59, %c0_60, %c0_61] : memref<18x18x128xf32, #tpu.memory_space<vmem>>, vector<16x16x128xf32>
    %79 = arith.truncf %78 : vector<16x16x128xf32> to vector<16x16x128xbf16>
    %80 = vector.shape_cast %79 : vector<16x16x128xbf16> to vector<256x128xbf16>
    %c6 = arith.constant 6 : index
    %c0_62 = arith.constant 0 : index
    %c0_63 = arith.constant 0 : index
    %81 = vector.load %arg6[%c6, %c0_62, %c0_63] : memref<9x128x128xbf16, #tpu.memory_space<vmem>>, vector<1x128x128xbf16>
    %82 = vector.shape_cast %81 : vector<1x128x128xbf16> to vector<128x128xbf16>
    %cst_64 = arith.constant dense<0.000000e+00> : vector<256x128xf32>
    %83 = tpu.matmul %80, %82, %cst_64 {dimension_numbers = #tpu.dot_dimension_numbers<[1], [0], [0], [1], [0, 0, 1, 1], [], []>} : vector<256x128xbf16>, vector<128x128xbf16>, vector<256x128xf32> -> vector<256x128xf32>
    %84 = arith.addf %77, %83 : vector<256x128xf32>
    %c2_65 = arith.constant 2 : index
    %c1_66 = arith.constant 1 : index
    %c0_67 = arith.constant 0 : index
    %85 = vector.load %arg16[%c2_65, %c1_66, %c0_67] : memref<18x18x128xf32, #tpu.memory_space<vmem>>, vector<16x16x128xf32>
    %86 = arith.truncf %85 : vector<16x16x128xf32> to vector<16x16x128xbf16>
    %87 = vector.shape_cast %86 : vector<16x16x128xbf16> to vector<256x128xbf16>
    %c7 = arith.constant 7 : index
    %c0_68 = arith.constant 0 : index
    %c0_69 = arith.constant 0 : index
    %88 = vector.load %arg6[%c7, %c0_68, %c0_69] : memref<9x128x128xbf16, #tpu.memory_space<vmem>>, vector<1x128x128xbf16>
    %89 = vector.shape_cast %88 : vector<1x128x128xbf16> to vector<128x128xbf16>
    %cst_70 = arith.constant dense<0.000000e+00> : vector<256x128xf32>
    %90 = tpu.matmul %87, %89, %cst_70 {dimension_numbers = #tpu.dot_dimension_numbers<[1], [0], [0], [1], [0, 0, 1, 1], [], []>} : vector<256x128xbf16>, vector<128x128xbf16>, vector<256x128xf32> -> vector<256x128xf32>
    %91 = arith.addf %84, %90 : vector<256x128xf32>
    %c2_71 = arith.constant 2 : index
    %c2_72 = arith.constant 2 : index
    %c0_73 = arith.constant 0 : index
    %92 = vector.load %arg16[%c2_71, %c2_72, %c0_73] : memref<18x18x128xf32, #tpu.memory_space<vmem>>, vector<16x16x128xf32>
    %93 = arith.truncf %92 : vector<16x16x128xf32> to vector<16x16x128xbf16>
    %94 = vector.shape_cast %93 : vector<16x16x128xbf16> to vector<256x128xbf16>
    %c8 = arith.constant 8 : index
    %c0_74 = arith.constant 0 : index
    %c0_75 = arith.constant 0 : index
    %95 = vector.load %arg6[%c8, %c0_74, %c0_75] : memref<9x128x128xbf16, #tpu.memory_space<vmem>>, vector<1x128x128xbf16>
    %96 = vector.shape_cast %95 : vector<1x128x128xbf16> to vector<128x128xbf16>
    %cst_76 = arith.constant dense<0.000000e+00> : vector<256x128xf32>
    %97 = tpu.matmul %94, %96, %cst_76 {dimension_numbers = #tpu.dot_dimension_numbers<[1], [0], [0], [1], [0, 0, 1, 1], [], []>} : vector<256x128xbf16>, vector<128x128xbf16>, vector<256x128xf32> -> vector<256x128xf32>
    %98 = arith.addf %91, %97 : vector<256x128xf32>
    %c0_77 = arith.constant 0 : index
    %c0_78 = arith.constant 0 : index
    %c0_79 = arith.constant 0 : index
    %99 = vector.load %arg2[%c0_77, %c0_78, %c0_79] : memref<1x1x64xf32, #tpu.memory_space<vmem>>, vector<1x1x64xf32>
    %100 = vector.shape_cast %99 : vector<1x1x64xf32> to vector<1x64xf32>
    %101 = arith.negf %100 : vector<1x64xf32>
    %102 = math.exp %101 : vector<1x64xf32>
    %cst_80 = arith.constant 1.000000e+00 : f32
    %103 = vector.broadcast %cst_80 : f32 to vector<1x64xf32>
    %104 = arith.addf %103, %102 : vector<1x64xf32>
    %105 = arith.divf %103, %104 : vector<1x64xf32>
    %106 = arith.mulf %100, %105 : vector<1x64xf32>
    %107 = arith.truncf %106 : vector<1x64xf32> to vector<1x64xbf16>
    %c0_81 = arith.constant 0 : index
    %c0_82 = arith.constant 0 : index
    %108 = vector.load %arg8[%c0_81, %c0_82] : memref<64x128xbf16, #tpu.memory_space<vmem>>, vector<64x128xbf16>
    %cst_83 = arith.constant dense<0.000000e+00> : vector<1x128xf32>
    %109 = tpu.matmul %107, %108, %cst_83 {dimension_numbers = #tpu.dot_dimension_numbers<[1], [0], [0], [1], [0, 0, 1, 1], [], []>} : vector<1x64xbf16>, vector<64x128xbf16>, vector<1x128xf32> -> vector<1x128xf32>
    %c0_84 = arith.constant 0 : index
    %c0_85 = arith.constant 0 : index
    %110 = vector.load %arg9[%c0_84, %c0_85] : memref<1x128xf32, #tpu.memory_space<vmem>>, vector<1x128xf32>
    %111 = arith.addf %109, %110 : vector<1x128xf32>
    %c0_86 = arith.constant 0 : index
    %c0_87 = arith.constant 0 : index
    %112 = vector.load %arg7[%c0_86, %c0_87] : memref<1x128xf32, #tpu.memory_space<vmem>>, vector<1x128xf32>
    %113 = vector.broadcast %112 : vector<1x128xf32> to vector<256x128xf32>
    %114 = arith.addf %98, %113 : vector<256x128xf32>
    %115 = vector.broadcast %111 : vector<1x128xf32> to vector<256x128xf32>
    %116 = arith.addf %114, %115 : vector<256x128xf32>
    %c0_88 = arith.constant 0 : index
    %c0_89 = arith.constant 0 : index
    %117 = vector.load %arg10[%c0_88, %c0_89] : memref<128x128xf32, #tpu.memory_space<vmem>>, vector<128x128xf32>
    %cst_90 = arith.constant dense<0.000000e+00> : vector<128xf32>
    %118 = vector.multi_reduction <add>, %116, %cst_90 [0] : vector<256x128xf32> to vector<128xf32>
    %119 = vector.shape_cast %118 : vector<128xf32> to vector<1x128xf32>
    %120 = arith.mulf %116, %116 : vector<256x128xf32>
    %cst_91 = arith.constant dense<0.000000e+00> : vector<128xf32>
    %121 = vector.multi_reduction <add>, %120, %cst_91 [0] : vector<256x128xf32> to vector<128xf32>
    %122 = vector.shape_cast %121 : vector<128xf32> to vector<1x128xf32>
    %cst_92 = arith.constant dense<0.000000e+00> : vector<1x128xf32>
    %123 = tpu.matmul %119, %117, %cst_92 {dimension_numbers = #tpu.dot_dimension_numbers<[1], [0], [0], [1], [0, 0, 1, 1], [], []>} : vector<1x128xf32>, vector<128x128xf32>, vector<1x128xf32> -> vector<1x128xf32>
    %cst_93 = arith.constant dense<0.000000e+00> : vector<1x128xf32>
    %124 = tpu.matmul %122, %117, %cst_93 {dimension_numbers = #tpu.dot_dimension_numbers<[1], [0], [0], [1], [0, 0, 1, 1], [], []>} : vector<1x128xf32>, vector<128x128xf32>, vector<1x128xf32> -> vector<1x128xf32>
    %125 = arith.mulf %123, %123 : vector<1x128xf32>
    %126 = arith.subf %124, %125 : vector<1x128xf32>
    %cst_94 = arith.constant 9.99999997E-7 : f32
    %127 = vector.broadcast %cst_94 : f32 to vector<1x128xf32>
    %128 = arith.addf %126, %127 : vector<1x128xf32>
    %129 = math.rsqrt %128 : vector<1x128xf32>
    %130 = vector.broadcast %123 : vector<1x128xf32> to vector<256x128xf32>
    %131 = arith.subf %116, %130 : vector<256x128xf32>
    %132 = vector.broadcast %129 : vector<1x128xf32> to vector<256x128xf32>
    %133 = arith.mulf %131, %132 : vector<256x128xf32>
    %c0_95 = arith.constant 0 : index
    %c0_96 = arith.constant 0 : index
    %134 = vector.load %arg11[%c0_95, %c0_96] : memref<1x128xf32, #tpu.memory_space<vmem>>, vector<1x128xf32>
    %135 = vector.broadcast %134 : vector<1x128xf32> to vector<256x128xf32>
    %136 = arith.mulf %133, %135 : vector<256x128xf32>
    %c0_97 = arith.constant 0 : index
    %c0_98 = arith.constant 0 : index
    %137 = vector.load %arg12[%c0_97, %c0_98] : memref<1x128xf32, #tpu.memory_space<vmem>>, vector<1x128xf32>
    %138 = vector.broadcast %137 : vector<1x128xf32> to vector<256x128xf32>
    %139 = arith.addf %136, %138 : vector<256x128xf32>
    %140 = arith.negf %139 : vector<256x128xf32>
    %141 = math.exp %140 : vector<256x128xf32>
    %cst_99 = arith.constant 1.000000e+00 : f32
    %142 = vector.broadcast %cst_99 : f32 to vector<256x128xf32>
    %143 = arith.addf %142, %141 : vector<256x128xf32>
    %144 = arith.divf %142, %143 : vector<256x128xf32>
    %145 = arith.mulf %139, %144 : vector<256x128xf32>
    %cst_100 = arith.constant 0.000000e+00 : f32
    %146 = vector.broadcast %cst_100 : f32 to vector<18x18x128xf32>
    %c0_101 = arith.constant 0 : index
    %c0_102 = arith.constant 0 : index
    %c0_103 = arith.constant 0 : index
    %147 = vector.load %arg17[%c0_101, %c0_102, %c0_103] : memref<18x18x128xf32, #tpu.memory_space<vmem>>, vector<18x18x128xf32>
    tpu.vector_store %arg17[%c0_101, %c0_102, %c0_103], %146 {strides = array<i32>} : memref<18x18x128xf32, #tpu.memory_space<vmem>>, vector<18x18x128xf32>,
    %148 = vector.shape_cast %145 : vector<256x128xf32> to vector<16x16x128xf32>
    %c1_104 = arith.constant 1 : index
    %c1_105 = arith.constant 1 : index
    %c0_106 = arith.constant 0 : index
    %149 = vector.load %arg17[%c1_104, %c1_105, %c0_106] : memref<18x18x128xf32, #tpu.memory_space<vmem>>, vector<16x16x128xf32>
    tpu.vector_store %arg17[%c1_104, %c1_105, %c0_106], %148 {strides = array<i32>} : memref<18x18x128xf32, #tpu.memory_space<vmem>>, vector<16x16x128xf32>,
    %cst_107 = arith.constant 0.000000e+00 : f32
    %150 = vector.broadcast %cst_107 : f32 to vector<256x128xf32>
    %c0_108 = arith.constant 0 : index
    %c0_109 = arith.constant 0 : index
    %c0_110 = arith.constant 0 : index
    %151 = vector.load %arg17[%c0_108, %c0_109, %c0_110] : memref<18x18x128xf32, #tpu.memory_space<vmem>>, vector<16x16x128xf32>
    %152 = arith.truncf %151 : vector<16x16x128xf32> to vector<16x16x128xbf16>
    %153 = vector.shape_cast %152 : vector<16x16x128xbf16> to vector<256x128xbf16>
    %c0_111 = arith.constant 0 : index
    %c0_112 = arith.constant 0 : index
    %c0_113 = arith.constant 0 : index
    %154 = vector.load %arg13[%c0_111, %c0_112, %c0_113] : memref<9x128x128xbf16, #tpu.memory_space<vmem>>, vector<1x128x128xbf16>
    %155 = vector.shape_cast %154 : vector<1x128x128xbf16> to vector<128x128xbf16>
    %cst_114 = arith.constant dense<0.000000e+00> : vector<256x128xf32>
    %156 = tpu.matmul %153, %155, %cst_114 {dimension_numbers = #tpu.dot_dimension_numbers<[1], [0], [0], [1], [0, 0, 1, 1], [], []>} : vector<256x128xbf16>, vector<128x128xbf16>, vector<256x128xf32> -> vector<256x128xf32>
    %157 = arith.addf %150, %156 : vector<256x128xf32>
    %c0_115 = arith.constant 0 : index
    %c1_116 = arith.constant 1 : index
    %c0_117 = arith.constant 0 : index
    %158 = vector.load %arg17[%c0_115, %c1_116, %c0_117] : memref<18x18x128xf32, #tpu.memory_space<vmem>>, vector<16x16x128xf32>
    %159 = arith.truncf %158 : vector<16x16x128xf32> to vector<16x16x128xbf16>
    %160 = vector.shape_cast %159 : vector<16x16x128xbf16> to vector<256x128xbf16>
    %c1_118 = arith.constant 1 : index
    %c0_119 = arith.constant 0 : index
    %c0_120 = arith.constant 0 : index
    %161 = vector.load %arg13[%c1_118, %c0_119, %c0_120] : memref<9x128x128xbf16, #tpu.memory_space<vmem>>, vector<1x128x128xbf16>
    %162 = vector.shape_cast %161 : vector<1x128x128xbf16> to vector<128x128xbf16>
    %cst_121 = arith.constant dense<0.000000e+00> : vector<256x128xf32>
    %163 = tpu.matmul %160, %162, %cst_121 {dimension_numbers = #tpu.dot_dimension_numbers<[1], [0], [0], [1], [0, 0, 1, 1], [], []>} : vector<256x128xbf16>, vector<128x128xbf16>, vector<256x128xf32> -> vector<256x128xf32>
    %164 = arith.addf %157, %163 : vector<256x128xf32>
    %c0_122 = arith.constant 0 : index
    %c2_123 = arith.constant 2 : index
    %c0_124 = arith.constant 0 : index
    %165 = vector.load %arg17[%c0_122, %c2_123, %c0_124] : memref<18x18x128xf32, #tpu.memory_space<vmem>>, vector<16x16x128xf32>
    %166 = arith.truncf %165 : vector<16x16x128xf32> to vector<16x16x128xbf16>
    %167 = vector.shape_cast %166 : vector<16x16x128xbf16> to vector<256x128xbf16>
    %c2_125 = arith.constant 2 : index
    %c0_126 = arith.constant 0 : index
    %c0_127 = arith.constant 0 : index
    %168 = vector.load %arg13[%c2_125, %c0_126, %c0_127] : memref<9x128x128xbf16, #tpu.memory_space<vmem>>, vector<1x128x128xbf16>
    %169 = vector.shape_cast %168 : vector<1x128x128xbf16> to vector<128x128xbf16>
    %cst_128 = arith.constant dense<0.000000e+00> : vector<256x128xf32>
    %170 = tpu.matmul %167, %169, %cst_128 {dimension_numbers = #tpu.dot_dimension_numbers<[1], [0], [0], [1], [0, 0, 1, 1], [], []>} : vector<256x128xbf16>, vector<128x128xbf16>, vector<256x128xf32> -> vector<256x128xf32>
    %171 = arith.addf %164, %170 : vector<256x128xf32>
    %c1_129 = arith.constant 1 : index
    %c0_130 = arith.constant 0 : index
    %c0_131 = arith.constant 0 : index
    %172 = vector.load %arg17[%c1_129, %c0_130, %c0_131] : memref<18x18x128xf32, #tpu.memory_space<vmem>>, vector<16x16x128xf32>
    %173 = arith.truncf %172 : vector<16x16x128xf32> to vector<16x16x128xbf16>
    %174 = vector.shape_cast %173 : vector<16x16x128xbf16> to vector<256x128xbf16>
    %c3_132 = arith.constant 3 : index
    %c0_133 = arith.constant 0 : index
    %c0_134 = arith.constant 0 : index
    %175 = vector.load %arg13[%c3_132, %c0_133, %c0_134] : memref<9x128x128xbf16, #tpu.memory_space<vmem>>, vector<1x128x128xbf16>
    %176 = vector.shape_cast %175 : vector<1x128x128xbf16> to vector<128x128xbf16>
    %cst_135 = arith.constant dense<0.000000e+00> : vector<256x128xf32>
    %177 = tpu.matmul %174, %176, %cst_135 {dimension_numbers = #tpu.dot_dimension_numbers<[1], [0], [0], [1], [0, 0, 1, 1], [], []>} : vector<256x128xbf16>, vector<128x128xbf16>, vector<256x128xf32> -> vector<256x128xf32>
    %178 = arith.addf %171, %177 : vector<256x128xf32>
    %c1_136 = arith.constant 1 : index
    %c1_137 = arith.constant 1 : index
    %c0_138 = arith.constant 0 : index
    %179 = vector.load %arg17[%c1_136, %c1_137, %c0_138] : memref<18x18x128xf32, #tpu.memory_space<vmem>>, vector<16x16x128xf32>
    %180 = arith.truncf %179 : vector<16x16x128xf32> to vector<16x16x128xbf16>
    %181 = vector.shape_cast %180 : vector<16x16x128xbf16> to vector<256x128xbf16>
    %c4_139 = arith.constant 4 : index
    %c0_140 = arith.constant 0 : index
    %c0_141 = arith.constant 0 : index
    %182 = vector.load %arg13[%c4_139, %c0_140, %c0_141] : memref<9x128x128xbf16, #tpu.memory_space<vmem>>, vector<1x128x128xbf16>
    %183 = vector.shape_cast %182 : vector<1x128x128xbf16> to vector<128x128xbf16>
    %cst_142 = arith.constant dense<0.000000e+00> : vector<256x128xf32>
    %184 = tpu.matmul %181, %183, %cst_142 {dimension_numbers = #tpu.dot_dimension_numbers<[1], [0], [0], [1], [0, 0, 1, 1], [], []>} : vector<256x128xbf16>, vector<128x128xbf16>, vector<256x128xf32> -> vector<256x128xf32>
    %185 = arith.addf %178, %184 : vector<256x128xf32>
    %c1_143 = arith.constant 1 : index
    %c2_144 = arith.constant 2 : index
    %c0_145 = arith.constant 0 : index
    %186 = vector.load %arg17[%c1_143, %c2_144, %c0_145] : memref<18x18x128xf32, #tpu.memory_space<vmem>>, vector<16x16x128xf32>
    %187 = arith.truncf %186 : vector<16x16x128xf32> to vector<16x16x128xbf16>
    %188 = vector.shape_cast %187 : vector<16x16x128xbf16> to vector<256x128xbf16>
    %c5_146 = arith.constant 5 : index
    %c0_147 = arith.constant 0 : index
    %c0_148 = arith.constant 0 : index
    %189 = vector.load %arg13[%c5_146, %c0_147, %c0_148] : memref<9x128x128xbf16, #tpu.memory_space<vmem>>, vector<1x128x128xbf16>
    %190 = vector.shape_cast %189 : vector<1x128x128xbf16> to vector<128x128xbf16>
    %cst_149 = arith.constant dense<0.000000e+00> : vector<256x128xf32>
    %191 = tpu.matmul %188, %190, %cst_149 {dimension_numbers = #tpu.dot_dimension_numbers<[1], [0], [0], [1], [0, 0, 1, 1], [], []>} : vector<256x128xbf16>, vector<128x128xbf16>, vector<256x128xf32> -> vector<256x128xf32>
    %192 = arith.addf %185, %191 : vector<256x128xf32>
    %c2_150 = arith.constant 2 : index
    %c0_151 = arith.constant 0 : index
    %c0_152 = arith.constant 0 : index
    %193 = vector.load %arg17[%c2_150, %c0_151, %c0_152] : memref<18x18x128xf32, #tpu.memory_space<vmem>>, vector<16x16x128xf32>
    %194 = arith.truncf %193 : vector<16x16x128xf32> to vector<16x16x128xbf16>
    %195 = vector.shape_cast %194 : vector<16x16x128xbf16> to vector<256x128xbf16>
    %c6_153 = arith.constant 6 : index
    %c0_154 = arith.constant 0 : index
    %c0_155 = arith.constant 0 : index
    %196 = vector.load %arg13[%c6_153, %c0_154, %c0_155] : memref<9x128x128xbf16, #tpu.memory_space<vmem>>, vector<1x128x128xbf16>
    %197 = vector.shape_cast %196 : vector<1x128x128xbf16> to vector<128x128xbf16>
    %cst_156 = arith.constant dense<0.000000e+00> : vector<256x128xf32>
    %198 = tpu.matmul %195, %197, %cst_156 {dimension_numbers = #tpu.dot_dimension_numbers<[1], [0], [0], [1], [0, 0, 1, 1], [], []>} : vector<256x128xbf16>, vector<128x128xbf16>, vector<256x128xf32> -> vector<256x128xf32>
    %199 = arith.addf %192, %198 : vector<256x128xf32>
    %c2_157 = arith.constant 2 : index
    %c1_158 = arith.constant 1 : index
    %c0_159 = arith.constant 0 : index
    %200 = vector.load %arg17[%c2_157, %c1_158, %c0_159] : memref<18x18x128xf32, #tpu.memory_space<vmem>>, vector<16x16x128xf32>
    %201 = arith.truncf %200 : vector<16x16x128xf32> to vector<16x16x128xbf16>
    %202 = vector.shape_cast %201 : vector<16x16x128xbf16> to vector<256x128xbf16>
    %c7_160 = arith.constant 7 : index
    %c0_161 = arith.constant 0 : index
    %c0_162 = arith.constant 0 : index
    %203 = vector.load %arg13[%c7_160, %c0_161, %c0_162] : memref<9x128x128xbf16, #tpu.memory_space<vmem>>, vector<1x128x128xbf16>
    %204 = vector.shape_cast %203 : vector<1x128x128xbf16> to vector<128x128xbf16>
    %cst_163 = arith.constant dense<0.000000e+00> : vector<256x128xf32>
    %205 = tpu.matmul %202, %204, %cst_163 {dimension_numbers = #tpu.dot_dimension_numbers<[1], [0], [0], [1], [0, 0, 1, 1], [], []>} : vector<256x128xbf16>, vector<128x128xbf16>, vector<256x128xf32> -> vector<256x128xf32>
    %206 = arith.addf %199, %205 : vector<256x128xf32>
    %c2_164 = arith.constant 2 : index
    %c2_165 = arith.constant 2 : index
    %c0_166 = arith.constant 0 : index
    %207 = vector.load %arg17[%c2_164, %c2_165, %c0_166] : memref<18x18x128xf32, #tpu.memory_space<vmem>>, vector<16x16x128xf32>
    %208 = arith.truncf %207 : vector<16x16x128xf32> to vector<16x16x128xbf16>
    %209 = vector.shape_cast %208 : vector<16x16x128xbf16> to vector<256x128xbf16>
    %c8_167 = arith.constant 8 : index
    %c0_168 = arith.constant 0 : index
    %c0_169 = arith.constant 0 : index
    %210 = vector.load %arg13[%c8_167, %c0_168, %c0_169] : memref<9x128x128xbf16, #tpu.memory_space<vmem>>, vector<1x128x128xbf16>
    %211 = vector.shape_cast %210 : vector<1x128x128xbf16> to vector<128x128xbf16>
    %cst_170 = arith.constant dense<0.000000e+00> : vector<256x128xf32>
    %212 = tpu.matmul %209, %211, %cst_170 {dimension_numbers = #tpu.dot_dimension_numbers<[1], [0], [0], [1], [0, 0, 1, 1], [], []>} : vector<256x128xbf16>, vector<128x128xbf16>, vector<256x128xf32> -> vector<256x128xf32>
    %213 = arith.addf %206, %212 : vector<256x128xf32>
    %c0_171 = arith.constant 0 : index
    %c0_172 = arith.constant 0 : index
    %214 = vector.load %arg14[%c0_171, %c0_172] : memref<1x128xf32, #tpu.memory_space<vmem>>, vector<1x128xf32>
    %215 = vector.broadcast %214 : vector<1x128xf32> to vector<256x128xf32>
    %216 = arith.addf %213, %215 : vector<256x128xf32>
    %217 = arith.addf %216, %1 : vector<256x128xf32>
    %218 = vector.shape_cast %217 : vector<256x128xf32> to vector<1x16x16x128xf32>
    %c0_173 = arith.constant 0 : index
    %c0_174 = arith.constant 0 : index
    %c0_175 = arith.constant 0 : index
    %c0_176 = arith.constant 0 : index
    %219 = vector.load %arg15[%c0_173, %c0_174, %c0_175, %c0_176] : memref<1x16x16x128xf32, #tpu.memory_space<vmem>>, vector<1x16x16x128xf32>
    tpu.vector_store %arg15[%c0_173, %c0_174, %c0_175, %c0_176], %218 {strides = array<i32>} : memref<1x16x16x128xf32, #tpu.memory_space<vmem>>, vector<1x16x16x128xf32>,
    return
  }
  func.func @transform_0(%arg0: i32) -> (i32, i32, i32, i32) {
    %c0_i32 = arith.constant 0 : i32
    %c0_i32_0 = arith.constant 0 : i32
    %c0_i32_1 = arith.constant 0 : i32
    %c0_i32_2 = arith.constant 0 : i32
    return %arg0, %c0_i32, %c0_i32_0, %c0_i32_1 : i32, i32, i32, i32
  }
  func.func @transform_1(%arg0: i32) -> (i32, i32, i32) {
    %c0_i32 = arith.constant 0 : i32
    %c0_i32_0 = arith.constant 0 : i32
    %c0_i32_1 = arith.constant 0 : i32
    return %arg0, %c0_i32, %c0_i32_0 : i32, i32, i32
  }
  func.func @transform_2(%arg0: i32) -> (i32, i32) {
    %c0_i32 = arith.constant 0 : i32
    %c0_i32_0 = arith.constant 0 : i32
    %c0_i32_1 = arith.constant 0 : i32
    return %c0_i32, %c0_i32_0 : i32, i32
  }
  func.func @transform_3(%arg0: i32) -> (i32, i32) {
    %c0_i32 = arith.constant 0 : i32
    %c0_i32_0 = arith.constant 0 : i32
    %c0_i32_1 = arith.constant 0 : i32
    return %c0_i32, %c0_i32_0 : i32, i32
  }
  func.func @transform_4(%arg0: i32) -> (i32, i32) {
    %c0_i32 = arith.constant 0 : i32
    %c0_i32_0 = arith.constant 0 : i32
    %c0_i32_1 = arith.constant 0 : i32
    return %c0_i32, %c0_i32_0 : i32, i32
  }
  func.func @transform_5(%arg0: i32) -> (i32, i32, i32) {
    %c0_i32 = arith.constant 0 : i32
    %c0_i32_0 = arith.constant 0 : i32
    %c0_i32_1 = arith.constant 0 : i32
    %c0_i32_2 = arith.constant 0 : i32
    return %c0_i32, %c0_i32_0, %c0_i32_1 : i32, i32, i32
  }
  func.func @transform_6(%arg0: i32) -> (i32, i32) {
    %c0_i32 = arith.constant 0 : i32
    %c0_i32_0 = arith.constant 0 : i32
    %c0_i32_1 = arith.constant 0 : i32
    return %c0_i32, %c0_i32_0 : i32, i32
  }
  func.func @transform_7(%arg0: i32) -> (i32, i32) {
    %c0_i32 = arith.constant 0 : i32
    %c0_i32_0 = arith.constant 0 : i32
    %c0_i32_1 = arith.constant 0 : i32
    return %c0_i32, %c0_i32_0 : i32, i32
  }
  func.func @transform_8(%arg0: i32) -> (i32, i32) {
    %c0_i32 = arith.constant 0 : i32
    %c0_i32_0 = arith.constant 0 : i32
    %c0_i32_1 = arith.constant 0 : i32
    return %c0_i32, %c0_i32_0 : i32, i32
  }
  func.func @transform_9(%arg0: i32) -> (i32, i32) {
    %c0_i32 = arith.constant 0 : i32
    %c0_i32_0 = arith.constant 0 : i32
    %c0_i32_1 = arith.constant 0 : i32
    return %c0_i32, %c0_i32_0 : i32, i32
  }
  func.func @transform_10(%arg0: i32) -> (i32, i32) {
    %c0_i32 = arith.constant 0 : i32
    %c0_i32_0 = arith.constant 0 : i32
    %c0_i32_1 = arith.constant 0 : i32
    return %c0_i32, %c0_i32_0 : i32, i32
  }
  func.func @transform_11(%arg0: i32) -> (i32, i32) {
    %c0_i32 = arith.constant 0 : i32
    %c0_i32_0 = arith.constant 0 : i32
    %c0_i32_1 = arith.constant 0 : i32
    return %c0_i32, %c0_i32_0 : i32, i32
  }
  func.func @transform_12(%arg0: i32) -> (i32, i32, i32) {
    %c0_i32 = arith.constant 0 : i32
    %c0_i32_0 = arith.constant 0 : i32
    %c0_i32_1 = arith.constant 0 : i32
    %c0_i32_2 = arith.constant 0 : i32
    return %c0_i32, %c0_i32_0, %c0_i32_1 : i32, i32, i32
  }
  func.func @transform_13(%arg0: i32) -> (i32, i32) {
    %c0_i32 = arith.constant 0 : i32
    %c0_i32_0 = arith.constant 0 : i32
    %c0_i32_1 = arith.constant 0 : i32
    return %c0_i32, %c0_i32_0 : i32, i32
  }
  func.func @transform_14(%arg0: i32) -> (i32, i32, i32, i32) {
    %c0_i32 = arith.constant 0 : i32
    %c0_i32_0 = arith.constant 0 : i32
    %c0_i32_1 = arith.constant 0 : i32
    %c0_i32_2 = arith.constant 0 : i32
    return %arg0, %c0_i32, %c0_i32_0, %c0_i32_1 : i32, i32, i32, i32
  }
}

</mosaic_0001>

<llo_original>
// kernel: resnet_block_forward.1
$region0: #{resnet_block_forward.1}
  #allocation0 [shape = 'u32[]', space=smem, size = 0x4, offset = 0x4, fixed_abs, tag = 'smem constant byte address 0x4 - core index']
  #allocation1 [shape = 'u32[72,128]{1,0:T(1,128)}', space=vmem, size = 0x9000, scoped, tag = 'internal scratch']
  #allocation2 [shape = 'f32[18,18,128]{2,1,0:T(8,128)}', space=vmem, size = 0x36000, scoped, tag = 'scratch operand']
  #allocation3 [shape = 'f32[18,18,128]{2,1,0:T(8,128)}', space=vmem, size = 0x36000, scoped, tag = 'scratch operand']
  %s0 = inlined_call_operand.vmem [shape: f32[2,16,16,128], index: 0, kind: input, shape index: {}]
  %s1 = inlined_call_operand.vmem [shape: f32[2,1,64], index: 1, kind: input, shape index: {}]
  %s2 = inlined_call_operand.vmem [shape: f32[128,128], index: 2, kind: input, shape index: {}, may-alias: {2,9}]
  %s3 = inlined_call_operand.vmem [shape: f32[1,128], index: 3, kind: input, shape index: {}]
  %s4 = inlined_call_operand.vmem [shape: f32[1,128], index: 4, kind: input, shape index: {}]
  %s5 = inlined_call_operand.vmem [shape: bf16[9,128,128], index: 5, kind: input, shape index: {}]
  %s6 = inlined_call_operand.vmem [shape: f32[1,128], index: 6, kind: input, shape index: {}]
  %s7 = inlined_call_operand.vmem [shape: bf16[64,128], index: 7, kind: input, shape index: {}]
  %s8 = inlined_call_operand.vmem [shape: f32[1,128], index: 8, kind: input, shape index: {}]
  %s9 = inlined_call_operand.vmem [shape: f32[128,128], index: 9, kind: input, shape index: {}, may-alias: {2,9}]
  %s10 = inlined_call_operand.vmem [shape: f32[1,128], index: 10, kind: input, shape index: {}]
  %s11 = inlined_call_operand.vmem [shape: f32[1,128], index: 11, kind: input, shape index: {}]
  %s12 = inlined_call_operand.vmem [shape: bf16[9,128,128], index: 12, kind: input, shape index: {}]
  %s13 = inlined_call_operand.vmem [shape: f32[1,128], index: 13, kind: input, shape index: {}]
  %s14 = inlined_call_operand.hbm [shape: f32[2,16,16,128], index: 14, kind: output, shape index: {}]
  %s15 = sld [smem:[#allocation0]]
  $region89: #{resnet_block_forward.1} parent=0
    _
  %s17 = ssub.s32 1, %s15
  %s18 = scalar_select 0, %s17, %s15
  $region1: #{resnet_block_forward.1} parent=0
    #allocation4 [shape = 'u8[262144]{0}', space=vmem, size = 0x40000, scoped, tag = 'output window, operand 0']
    #allocation5 [shape = 's32[2]{0}', space=sflag, size = 0x8, scoped, tag = 'scoped memory for resnet_block_forward.1']
    %19 = vsyncpa [#allocation5], 0
    %s20 = scalar_lea.sflag [#allocation5], 1
    %21 = vsyncpa %s20, 0
    loop: start=0, step=1, limit=4
    $region2: #{resnet_block_forward.1} parent=1 // loop_pre_header
      _
    $region3: #{resnet_block_forward.1} parent=1 // loop_header
      %s23 = sphi 0, %s27
      %p24 = scmp.ge.s32.totalorder %s23, 4
      %s33 = sphi 0, %s35
      %s36 = sphi 0, %s33
      %s37 = sphi 0, %s36
      %s53 = sphi 0, %s37
      %s59 = sphi 0, %s61
      %s62 = sphi 0, %s59
      %s63 = sphi 0, %s62
      %s79 = sphi 0, %s63
      %s83 = sphi 0, %s83
      %s85 = sphi 0, %s83
      %s86 = sphi 0, %s85
      %s100 = sphi 0, %s86
      %s104 = sphi 0, %s104
      %s106 = sphi 0, %s104
      %s107 = sphi 0, %s106
      %s121 = sphi 0, %s107
      %s125 = sphi 0, %s125
      %s127 = sphi 0, %s125
      %s128 = sphi 0, %s127
      %s142 = sphi 0, %s128
      %s146 = sphi 0, %s146
      %s148 = sphi 0, %s146
      %s149 = sphi 0, %s148
      %s163 = sphi 0, %s149
      %s167 = sphi 0, %s167
      %s169 = sphi 0, %s167
      %s170 = sphi 0, %s169
      %s184 = sphi 0, %s170
      %s188 = sphi 0, %s188
      %s190 = sphi 0, %s188
      %s191 = sphi 0, %s190
      %s205 = sphi 0, %s191
      %s209 = sphi 0, %s209
      %s211 = sphi 0, %s209
      %s212 = sphi 0, %s211
      %s226 = sphi 0, %s212
      %s230 = sphi 0, %s230
      %s232 = sphi 0, %s230
      %s233 = sphi 0, %s232
      %s247 = sphi 0, %s233
      %s251 = sphi 0, %s251
      %s253 = sphi 0, %s251
      %s254 = sphi 0, %s253
      %s268 = sphi 0, %s254
      %s272 = sphi 0, %s272
      %s274 = sphi 0, %s272
      %s275 = sphi 0, %s274
      %s289 = sphi 0, %s275
      %s293 = sphi 0, %s293
      %s295 = sphi 0, %s293
      %s296 = sphi 0, %s295
      %s310 = sphi 0, %s296
      %s314 = sphi 0, %s314
      %s316 = sphi 0, %s314
      %s317 = sphi 0, %s316
      %s331 = sphi 0, %s317
      %s337 = sphi 0, %s339
      %s340 = sphi 0, %s337
      %s341 = sphi 0, %s340
      %s357 = sphi 0, %s341
    $region4: #{resnet_block_forward.1} parent=1 // loop_header_branch
      %26 = sbr.rel (%p24) target = $region8
    $region5: #{resnet_block_forward.1} parent=1 // loop_body
      %s28 = ssub.s32 %s23, 1
      %s29 = ssub.s32 %s23, 2
      %s30 = sadd.s32 %s23, 1
      %s31 = ssub.s32 %s23, %s30
      %p32 = scmp.eq.s32.totalorder %s31, 0
      %s34 = sadd.s32 %s33, 1
      %s35 = scalar_select %p32, %s33, %s34
      %p38 = pneg %p32
      %p39 = scmp.eq.s32.totalorder %s23, 1
      %p40 = por %p38, %p39
      %p41 = scmp.ne.s32.totalorder %s33, %s36
      %p42 = scmp.eq.s32.totalorder %s23, 0
      %p43 = por %p41, %p42
      %p44 = scmp.ne.s32.totalorder %s33, %s36
      %p45 = scmp.eq.s32.totalorder %s28, 1
      %p46 = por %p44, %p45
      %p47 = scmp.ne.s32.totalorder %s36, %s37
      %p48 = scmp.eq.s32.totalorder %s28, 0
      %p49 = por %p47, %p48
      %p50 = scmp.ne.s32.totalorder %s36, %s37
      %p51 = scmp.eq.s32.totalorder %s29, 1
      %p52 = por %p50, %p51
      %p54 = scmp.ne.s32.totalorder %s37, %s53
      %p55 = scmp.eq.s32.totalorder %s29, 0
      %p56 = por %p54, %p55
      %s57 = ssub.s32 %s23, %s30
      %p58 = scmp.eq.s32.totalorder %s57, 0
      %s60 = sadd.s32 %s59, 1
      %s61 = scalar_select %p58, %s59, %s60
      %p64 = pneg %p58
      %p65 = scmp.eq.s32.totalorder %s23, 1
      %p66 = por %p64, %p65
      %p67 = scmp.ne.s32.totalorder %s59, %s62
      %p68 = scmp.eq.s32.totalorder %s23, 0
      %p69 = por %p67, %p68
      %p70 = scmp.ne.s32.totalorder %s59, %s62
      %p71 = scmp.eq.s32.totalorder %s28, 1
      %p72 = por %p70, %p71
      %p73 = scmp.ne.s32.totalorder %s62, %s63
      %p74 = scmp.eq.s32.totalorder %s28, 0
      %p75 = por %p73, %p74
      %p76 = scmp.ne.s32.totalorder %s62, %s63
      %p77 = scmp.eq.s32.totalorder %s29, 1
      %p78 = por %p76, %p77
      %p80 = scmp.ne.s32.totalorder %s63, %s79
      %p81 = scmp.eq.s32.totalorder %s29, 0
      %p82 = por %p80, %p81
      %s84 = sadd.s32 %s83, 1
      %p87 = scmp.eq.s32.totalorder %s23, 1
      %p88 = scmp.ne.s32.totalorder %s83, %s85
      %p89 = scmp.eq.s32.totalorder %s23, 0
      %p90 = por %p88, %p89
      %p91 = scmp.ne.s32.totalorder %s83, %s85
      %p92 = scmp.eq.s32.totalorder %s28, 1
      %p93 = por %p91, %p92
      %p94 = scmp.ne.s32.totalorder %s85, %s86
      %p95 = scmp.eq.s32.totalorder %s28, 0
      %p96 = por %p94, %p95
      %p97 = scmp.ne.s32.totalorder %s85, %s86
      %p98 = scmp.eq.s32.totalorder %s29, 1
      %p99 = por %p97, %p98
      %p101 = scmp.ne.s32.totalorder %s86, %s100
      %p102 = scmp.eq.s32.totalorder %s29, 0
      %p103 = por %p101, %p102
      %s105 = sadd.s32 %s104, 1
      %p108 = scmp.eq.s32.totalorder %s23, 1
      %p109 = scmp.ne.s32.totalorder %s104, %s106
      %p110 = scmp.eq.s32.totalorder %s23, 0
      %p111 = por %p109, %p110
      %p112 = scmp.ne.s32.totalorder %s104, %s106
      %p113 = scmp.eq.s32.totalorder %s28, 1
      %p114 = por %p112, %p113
      %p115 = scmp.ne.s32.totalorder %s106, %s107
      %p116 = scmp.eq.s32.totalorder %s28, 0
      %p117 = por %p115, %p116
      %p118 = scmp.ne.s32.totalorder %s106, %s107
      %p119 = scmp.eq.s32.totalorder %s29, 1
      %p120 = por %p118, %p119
      %p122 = scmp.ne.s32.totalorder %s107, %s121
      %p123 = scmp.eq.s32.totalorder %s29, 0
      %p124 = por %p122, %p123
      %s126 = sadd.s32 %s125, 1
      %p129 = scmp.eq.s32.totalorder %s23, 1
      %p130 = scmp.ne.s32.totalorder %s125, %s127
      %p131 = scmp.eq.s32.totalorder %s23, 0
      %p132 = por %p130, %p131
      %p133 = scmp.ne.s32.totalorder %s125, %s127
      %p134 = scmp.eq.s32.totalorder %s28, 1
      %p135 = por %p133, %p134
      %p136 = scmp.ne.s32.totalorder %s127, %s128
      %p137 = scmp.eq.s32.totalorder %s28, 0
      %p138 = por %p136, %p137
      %p139 = scmp.ne.s32.totalorder %s127, %s128
      %p140 = scmp.eq.s32.totalorder %s29, 1
      %p141 = por %p139, %p140
      %p143 = scmp.ne.s32.totalorder %s128, %s142
      %p144 = scmp.eq.s32.totalorder %s29, 0
      %p145 = por %p143, %p144
      %s147 = sadd.s32 %s146, 1
      %p150 = scmp.eq.s32.totalorder %s23, 1
      %p151 = scmp.ne.s32.totalorder %s146, %s148
      %p152 = scmp.eq.s32.totalorder %s23, 0
      %p153 = por %p151, %p152
      %p154 = scmp.ne.s32.totalorder %s146, %s148
      %p155 = scmp.eq.s32.totalorder %s28, 1
      %p156 = por %p154, %p155
      %p157 = scmp.ne.s32.totalorder %s148, %s149
      %p158 = scmp.eq.s32.totalorder %s28, 0
      %p159 = por %p157, %p158
      %p160 = scmp.ne.s32.totalorder %s148, %s149
      %p161 = scmp.eq.s32.totalorder %s29, 1
      %p162 = por %p160, %p161
      %p164 = scmp.ne.s32.totalorder %s149, %s163
      %p165 = scmp.eq.s32.totalorder %s29, 0
      %p166 = por %p164, %p165
      %s168 = sadd.s32 %s167, 1
      %p171 = scmp.eq.s32.totalorder %s23, 1
      %p172 = scmp.ne.s32.totalorder %s167, %s169
      %p173 = scmp.eq.s32.totalorder %s23, 0
      %p174 = por %p172, %p173
      %p175 = scmp.ne.s32.totalorder %s167, %s169
      %p176 = scmp.eq.s32.totalorder %s28, 1
      %p177 = por %p175, %p176
      %p178 = scmp.ne.s32.totalorder %s169, %s170
      %p179 = scmp.eq.s32.totalorder %s28, 0
      %p180 = por %p178, %p179
      %p181 = scmp.ne.s32.totalorder %s169, %s170
      %p182 = scmp.eq.s32.totalorder %s29, 1
      %p183 = por %p181, %p182
      %p185 = scmp.ne.s32.totalorder %s170, %s184
      %p186 = scmp.eq.s32.totalorder %s29, 0
      %p187 = por %p185, %p186
      %s189 = sadd.s32 %s188, 1
      %p192 = scmp.eq.s32.totalorder %s23, 1
      %p193 = scmp.ne.s32.totalorder %s188, %s190
      %p194 = scmp.eq.s32.totalorder %s23, 0
      %p195 = por %p193, %p194
      %p196 = scmp.ne.s32.totalorder %s188, %s190
      %p197 = scmp.eq.s32.totalorder %s28, 1
      %p198 = por %p196, %p197
      %p199 = scmp.ne.s32.totalorder %s190, %s191
      %p200 = scmp.eq.s32.totalorder %s28, 0
      %p201 = por %p199, %p200
      %p202 = scmp.ne.s32.totalorder %s190, %s191
      %p203 = scmp.eq.s32.totalorder %s29, 1
      %p204 = por %p202, %p203
      %p206 = scmp.ne.s32.totalorder %s191, %s205
      %p207 = scmp.eq.s32.totalorder %s29, 0
      %p208 = por %p206, %p207
      %s210 = sadd.s32 %s209, 1
      %p213 = scmp.eq.s32.totalorder %s23, 1
      %p214 = scmp.ne.s32.totalorder %s209, %s211
      %p215 = scmp.eq.s32.totalorder %s23, 0
      %p216 = por %p214, %p215
      %p217 = scmp.ne.s32.totalorder %s209, %s211
      %p218 = scmp.eq.s32.totalorder %s28, 1
      %p219 = por %p217, %p218
      %p220 = scmp.ne.s32.totalorder %s211, %s212
      %p221 = scmp.eq.s32.totalorder %s28, 0
      %p222 = por %p220, %p221
      %p223 = scmp.ne.s32.totalorder %s211, %s212
      %p224 = scmp.eq.s32.totalorder %s29, 1
      %p225 = por %p223, %p224
      %p227 = scmp.ne.s32.totalorder %s212, %s226
      %p228 = scmp.eq.s32.totalorder %s29, 0
      %p229 = por %p227, %p228
      %s231 = sadd.s32 %s230, 1
      %p234 = scmp.eq.s32.totalorder %s23, 1
      %p235 = scmp.ne.s32.totalorder %s230, %s232
      %p236 = scmp.eq.s32.totalorder %s23, 0
      %p237 = por %p235, %p236
      %p238 = scmp.ne.s32.totalorder %s230, %s232
      %p239 = scmp.eq.s32.totalorder %s28, 1
      %p240 = por %p238, %p239
      %p241 = scmp.ne.s32.totalorder %s232, %s233
      %p242 = scmp.eq.s32.totalorder %s28, 0
      %p243 = por %p241, %p242
      %p244 = scmp.ne.s32.totalorder %s232, %s233
      %p245 = scmp.eq.s32.totalorder %s29, 1
      %p246 = por %p244, %p245
      %p248 = scmp.ne.s32.totalorder %s233, %s247
      %p249 = scmp.eq.s32.totalorder %s29, 0
      %p250 = por %p248, %p249
      %s252 = sadd.s32 %s251, 1
      %p255 = scmp.eq.s32.totalorder %s23, 1
      %p256 = scmp.ne.s32.totalorder %s251, %s253
      %p257 = scmp.eq.s32.totalorder %s23, 0
      %p258 = por %p256, %p257
      %p259 = scmp.ne.s32.totalorder %s251, %s253
      %p260 = scmp.eq.s32.totalorder %s28, 1
      %p261 = por %p259, %p260
      %p262 = scmp.ne.s32.totalorder %s253, %s254
      %p263 = scmp.eq.s32.totalorder %s28, 0
      %p264 = por %p262, %p263
      %p265 = scmp.ne.s32.totalorder %s253, %s254
      %p266 = scmp.eq.s32.totalorder %s29, 1
      %p267 = por %p265, %p266
      %p269 = scmp.ne.s32.totalorder %s254, %s268
      %p270 = scmp.eq.s32.totalorder %s29, 0
      %p271 = por %p269, %p270
      %s273 = sadd.s32 %s272, 1
      %p276 = scmp.eq.s32.totalorder %s23, 1
      %p277 = scmp.ne.s32.totalorder %s272, %s274
      %p278 = scmp.eq.s32.totalorder %s23, 0
      %p279 = por %p277, %p278
      %p280 = scmp.ne.s32.totalorder %s272, %s274
      %p281 = scmp.eq.s32.totalorder %s28, 1
      %p282 = por %p280, %p281
      %p283 = scmp.ne.s32.totalorder %s274, %s275
      %p284 = scmp.eq.s32.totalorder %s28, 0
      %p285 = por %p283, %p284
      %p286 = scmp.ne.s32.totalorder %s274, %s275
      %p287 = scmp.eq.s32.totalorder %s29, 1
      %p288 = por %p286, %p287
      %p290 = scmp.ne.s32.totalorder %s275, %s289
      %p291 = scmp.eq.s32.totalorder %s29, 0
      %p292 = por %p290, %p291
      %s294 = sadd.s32 %s293, 1
      %p297 = scmp.eq.s32.totalorder %s23, 1
      %p298 = scmp.ne.s32.totalorder %s293, %s295
      %p299 = scmp.eq.s32.totalorder %s23, 0
      %p300 = por %p298, %p299
      %p301 = scmp.ne.s32.totalorder %s293, %s295
      %p302 = scmp.eq.s32.totalorder %s28, 1
      %p303 = por %p301, %p302
      %p304 = scmp.ne.s32.totalorder %s295, %s296
      %p305 = scmp.eq.s32.totalorder %s28, 0
      %p306 = por %p304, %p305
      %p307 = scmp.ne.s32.totalorder %s295, %s296
      %p308 = scmp.eq.s32.totalorder %s29, 1
      %p309 = por %p307, %p308
      %p311 = scmp.ne.s32.totalorder %s296, %s310
      %p312 = scmp.eq.s32.totalorder %s29, 0
      %p313 = por %p311, %p312
      %s315 = sadd.s32 %s314, 1
      %p318 = scmp.eq.s32.totalorder %s23, 1
      %p319 = scmp.ne.s32.totalorder %s314, %s316
      %p320 = scmp.eq.s32.totalorder %s23, 0
      %p321 = por %p319, %p320
      %p322 = scmp.ne.s32.totalorder %s314, %s316
      %p323 = scmp.eq.s32.totalorder %s28, 1
      %p324 = por %p322, %p323
      %p325 = scmp.ne.s32.totalorder %s316, %s317
      %p326 = scmp.eq.s32.totalorder %s28, 0
      %p327 = por %p325, %p326
      %p328 = scmp.ne.s32.totalorder %s316, %s317
      %p329 = scmp.eq.s32.totalorder %s29, 1
      %p330 = por %p328, %p329
      %p332 = scmp.ne.s32.totalorder %s317, %s331
      %p333 = scmp.eq.s32.totalorder %s29, 0
      %p334 = por %p332, %p333
      %s335 = ssub.s32 %s23, %s30
      %p336 = scmp.eq.s32.totalorder %s335, 0
      %s338 = sadd.s32 %s337, 1
      %s339 = scalar_select %p336, %s337, %s338
      %p342 = pneg %p336
      %p343 = scmp.eq.s32.totalorder %s23, 1
      %p344 = por %p342, %p343
      %p345 = scmp.ne.s32.totalorder %s337, %s340
      %p346 = scmp.eq.s32.totalorder %s23, 0
      %p347 = por %p345, %p346
      %p348 = scmp.ne.s32.totalorder %s337, %s340
      %p349 = scmp.eq.s32.totalorder %s28, 1
      %p350 = por %p348, %p349
      %p351 = scmp.ne.s32.totalorder %s340, %s341
      %p352 = scmp.eq.s32.totalorder %s28, 0
      %p353 = por %p351, %p352
      %p354 = scmp.ne.s32.totalorder %s340, %s341
      %p355 = scmp.eq.s32.totalorder %s29, 1
      %p356 = por %p354, %p355
      %p358 = scmp.ne.s32.totalorder %s341, %s357
      %p359 = scmp.eq.s32.totalorder %s29, 0
      %p360 = por %p358, %p359
      %p361 = scmp.le.s32.totalorder 1, %s23
      %p362 = scmp.lt.s32.totalorder %s23, 3
      %p363 = pnand %p361, %p362
      %p364 = pneg %p363
      // Predicated region
      $region9: #{resnet_block_forward.1} parent=5 // pred_check
        _
      $region10: #{resnet_block_forward.1} parent=5 // pred_check_branch
        %366 = sbr.rel (%p363) target = $region12
      $region11: #{resnet_block_forward.1} parent=5 // pred_region
        %s367 = ssub.s32 %s23, 1
        // Predicated region
        $region13: #{resnet_block_forward.1} parent=11 // pred_check
          %p368 = pneg %p96
        $region14: #{resnet_block_forward.1} parent=11 // pred_check_branch
          %370 = sbr.rel (%p368) target = $region16
        $region15: #{resnet_block_forward.1} parent=11 // pred_region
          _
        $region16: #{resnet_block_forward.1} parent=11 // pred_fallthru
          _
        // Predicated region
        $region17: #{resnet_block_forward.1} parent=11 // pred_check
          %p371 = pneg %p117
        $region18: #{resnet_block_forward.1} parent=11 // pred_check_branch
          %373 = sbr.rel (%p371) target = $region20
        $region19: #{resnet_block_forward.1} parent=11 // pred_region
          _
        $region20: #{resnet_block_forward.1} parent=11 // pred_fallthru
          _
        // Predicated region
        $region21: #{resnet_block_forward.1} parent=11 // pred_check
          %p374 = pneg %p138
        $region22: #{resnet_block_forward.1} parent=11 // pred_check_branch
          %376 = sbr.rel (%p374) target = $region24
        $region23: #{resnet_block_forward.1} parent=11 // pred_region
          _
        $region24: #{resnet_block_forward.1} parent=11 // pred_fallthru
          _
        // Predicated region
        $region25: #{resnet_block_forward.1} parent=11 // pred_check
          %p377 = pneg %p159
        $region26: #{resnet_block_forward.1} parent=11 // pred_check_branch
          %379 = sbr.rel (%p377) target = $region28
        $region27: #{resnet_block_forward.1} parent=11 // pred_region
          _
        $region28: #{resnet_block_forward.1} parent=11 // pred_fallthru
          _
        // Predicated region
        $region29: #{resnet_block_forward.1} parent=11 // pred_check
          %p380 = pneg %p180
        $region30: #{resnet_block_forward.1} parent=11 // pred_check_branch
          %382 = sbr.rel (%p380) target = $region32
        $region31: #{resnet_block_forward.1} parent=11 // pred_region
          _
        $region32: #{resnet_block_forward.1} parent=11 // pred_fallthru
          _
        // Predicated region
        $region33: #{resnet_block_forward.1} parent=11 // pred_check
          %p383 = pneg %p201
        $region34: #{resnet_block_forward.1} parent=11 // pred_check_branch
          %385 = sbr.rel (%p383) target = $region36
        $region35: #{resnet_block_forward.1} parent=11 // pred_region
          _
        $region36: #{resnet_block_forward.1} parent=11 // pred_fallthru
          _
        // Predicated region
        $region37: #{resnet_block_forward.1} parent=11 // pred_check
          %p386 = pneg %p222
        $region38: #{resnet_block_forward.1} parent=11 // pred_check_branch
          %388 = sbr.rel (%p386) target = $region40
        $region39: #{resnet_block_forward.1} parent=11 // pred_region
          _
        $region40: #{resnet_block_forward.1} parent=11 // pred_fallthru
          _
        // Predicated region
        $region41: #{resnet_block_forward.1} parent=11 // pred_check
          %p389 = pneg %p243
        $region42: #{resnet_block_forward.1} parent=11 // pred_check_branch
          %391 = sbr.rel (%p389) target = $region44
        $region43: #{resnet_block_forward.1} parent=11 // pred_region
          _
        $region44: #{resnet_block_forward.1} parent=11 // pred_fallthru
          _
        // Predicated region
        $region45: #{resnet_block_forward.1} parent=11 // pred_check
          %p392 = pneg %p264
        $region46: #{resnet_block_forward.1} parent=11 // pred_check_branch
          %394 = sbr.rel (%p392) target = $region48
        $region47: #{resnet_block_forward.1} parent=11 // pred_region
          _
        $region48: #{resnet_block_forward.1} parent=11 // pred_fallthru
          _
        // Predicated region
        $region49: #{resnet_block_forward.1} parent=11 // pred_check
          %p395 = pneg %p285
        $region50: #{resnet_block_forward.1} parent=11 // pred_check_branch
          %397 = sbr.rel (%p395) target = $region52
        $region51: #{resnet_block_forward.1} parent=11 // pred_region
          _
        $region52: #{resnet_block_forward.1} parent=11 // pred_fallthru
          _
        // Predicated region
        $region53: #{resnet_block_forward.1} parent=11 // pred_check
          %p398 = pneg %p306
        $region54: #{resnet_block_forward.1} parent=11 // pred_check_branch
          %400 = sbr.rel (%p398) target = $region56
        $region55: #{resnet_block_forward.1} parent=11 // pred_region
          _
        $region56: #{resnet_block_forward.1} parent=11 // pred_fallthru
          _
        // Predicated region
        $region57: #{resnet_block_forward.1} parent=11 // pred_check
          %p401 = pneg %p327
        $region58: #{resnet_block_forward.1} parent=11 // pred_check_branch
          %403 = sbr.rel (%p401) target = $region60
        $region59: #{resnet_block_forward.1} parent=11 // pred_region
          _
        $region60: #{resnet_block_forward.1} parent=11 // pred_fallthru
          _
      $region12: #{resnet_block_forward.1} parent=5 // pred_fallthru
        _
      %p404 = scmp.lt.s32.totalorder %s23, 2
      // Predicated region
      $region61: #{resnet_block_forward.1} parent=5 // pred_check
        %p405 = pneg %p404
      $region62: #{resnet_block_forward.1} parent=5 // pred_check_branch
        %407 = sbr.rel (%p405) target = $region64
      $region63: #{resnet_block_forward.1} parent=5 // pred_region
        // Predicated region
        $region65: #{resnet_block_forward.1} parent=63 // pred_check
          %p408 = pneg %p43
        $region66: #{resnet_block_forward.1} parent=63 // pred_check_branch
          %410 = sbr.rel (%p408) target = $region68
        $region67: #{resnet_block_forward.1} parent=63 // pred_region
          %p411 = scmp.lt.s32.totalorder %s23, 1
          %s412 = scalar_select %p411, %s23, 1
          %s413 = smul.addr %s412, 32
          %s414 = smul.addr %s413, 8
          %s415 = scalar_lea.vmem %s0, %s414
        $region68: #{resnet_block_forward.1} parent=63 // pred_fallthru
          _
        // Predicated region
        $region69: #{resnet_block_forward.1} parent=63 // pred_check
          %p416 = pneg %p69
        $region70: #{resnet_block_forward.1} parent=63 // pred_check_branch
          %418 = sbr.rel (%p416) target = $region72
        $region71: #{resnet_block_forward.1} parent=63 // pred_region
          %p419 = scmp.lt.s32.totalorder %s23, 1
          %s420 = scalar_select %p419, %s23, 1
          %s421 = scalar_lea.vmem %s1, %s420
        $region72: #{resnet_block_forward.1} parent=63 // pred_fallthru
          _
      $region64: #{resnet_block_forward.1} parent=5 // pred_fallthru
        _
      %p422 = scmp.le.s32.totalorder 1, %s23
      %p423 = scmp.lt.s32.totalorder %s23, 3
      %p424 = pnand %p422, %p423
      %p425 = pneg %p424
      // Predicated region
      $region73: #{resnet_block_forward.1} parent=5 // pred_check
        _
      $region74: #{resnet_block_forward.1} parent=5 // pred_check_branch
        %427 = sbr.rel (%p424) target = $region76
      $region75: #{resnet_block_forward.1} parent=5 // pred_region
        %s428 = ssub.s32 %s23, 1
        %p429 = scmp.lt.s32.totalorder %s28, 1
        %s430 = scalar_select %p429, %s28, 1
        %s431 = smul.addr %s430, 32
        %s432 = smul.addr %s431, 8
        %s433 = scalar_lea.vmem %s0, %s432
        %p434 = pneg %p49
        %p435 = pneg %p46
        %p436 = scmp.lt.s32.totalorder %s28, 1
        %s437 = scalar_select %p436, %s28, 1
        %s438 = scalar_lea.vmem %s1, %s437
        %p439 = pneg %p75
        %p440 = pneg %p72
        %p441 = pneg %p96
        %p442 = pneg %p93
        %p443 = pneg %p117
        %p444 = pneg %p114
        %p445 = pneg %p138
        %p446 = pneg %p135
        %p447 = pneg %p159
        %p448 = pneg %p156
        %p449 = pneg %p180
        %p450 = pneg %p177
        %p451 = pneg %p201
        %p452 = pneg %p198
        %p453 = pneg %p222
        %p454 = pneg %p219
        %p455 = pneg %p243
        %p456 = pneg %p240
        %p457 = pneg %p264
        %p458 = pneg %p261
        %p459 = pneg %p285
        %p460 = pneg %p282
        %p461 = pneg %p306
        %p462 = pneg %p303
        %p463 = pneg %p327
        %p464 = pneg %p324
        %p465 = pneg %p353
        %p466 = pneg %p350
        %s467 = sand.u32 %s340, 1
        %s468 = scalar_lea.sflag [#allocation5], %s467
        %s469 = sand.u32 %s340, 1
        %s470 = smul.addr %s469, 256
        %s471 = scalar_lea.vmem [#allocation4], %s470
        %p472 = scmp.lt.s32.totalorder %s28, 1
        %s473 = scalar_select %p472, %s28, 1
        %s474 = smul.addr %s473, 32
        %s475 = smul.addr %s474, 8
        %s476 = scalar_lea.vmem %s0, %s475
        %p477 = scmp.lt.s32.totalorder %s28, 1
        %s478 = scalar_select %p477, %s28, 1
        %s479 = scalar_lea.vmem %s1, %s478
        %v481 = vld [vmem:[%s476] sm:$0xff]
        %v482 = vld [vmem:[%s476 + $0x8] sm:$0xff]
        %v483 = vld [vmem:[%s476 + $0x10] sm:$0xff]
        %v484 = vld [vmem:[%s476 + $0x18] sm:$0xff]
        %v485 = vld [vmem:[%s476 + $0x20] sm:$0xff]
        %v486 = vld [vmem:[%s476 + $0x28] sm:$0xff]
        %v487 = vld [vmem:[%s476 + $0x30] sm:$0xff]
        %v488 = vld [vmem:[%s476 + $0x38] sm:$0xff]
        %v489 = vld [vmem:[%s476 + $0x40] sm:$0xff]
        %v490 = vld [vmem:[%s476 + $0x48] sm:$0xff]
        %v491 = vld [vmem:[%s476 + $0x50] sm:$0xff]
        %v492 = vld [vmem:[%s476 + $0x58] sm:$0xff]
        %v493 = vld [vmem:[%s476 + $0x60] sm:$0xff]
        %v494 = vld [vmem:[%s476 + $0x68] sm:$0xff]
        %v495 = vld [vmem:[%s476 + $0x70] sm:$0xff]
        %v496 = vld [vmem:[%s476 + $0x78] sm:$0xff]
        %v497 = vld [vmem:[%s476 + $0x80] sm:$0xff]
        %v498 = vld [vmem:[%s476 + $0x88] sm:$0xff]
        %v499 = vld [vmem:[%s476 + $0x90] sm:$0xff]
        %v500 = vld [vmem:[%s476 + $0x98] sm:$0xff]
        %v501 = vld [vmem:[%s476 + $0xa0] sm:$0xff]
        %v502 = vld [vmem:[%s476 + $0xa8] sm:$0xff]
        %v503 = vld [vmem:[%s476 + $0xb0] sm:$0xff]
        %v504 = vld [vmem:[%s476 + $0xb8] sm:$0xff]
        %v505 = vld [vmem:[%s476 + $0xc0] sm:$0xff]
        %v506 = vld [vmem:[%s476 + $0xc8] sm:$0xff]
        %v507 = vld [vmem:[%s476 + $0xd0] sm:$0xff]
        %v508 = vld [vmem:[%s476 + $0xd8] sm:$0xff]
        %v509 = vld [vmem:[%s476 + $0xe0] sm:$0xff]
        %v510 = vld [vmem:[%s476 + $0xe8] sm:$0xff]
        %v511 = vld [vmem:[%s476 + $0xf0] sm:$0xff]
        %v512 = vld [vmem:[%s476 + $0xf8] sm:$0xff]
        %v513 = vld [vmem:[%s2] sm:$0xff]
        %v514 = vld [vmem:[%s2 + $0x8] sm:$0xff]
        %v515 = vld [vmem:[%s2 + $0x10] sm:$0xff]
        %v516 = vld [vmem:[%s2 + $0x18] sm:$0xff]
        %v517 = vld [vmem:[%s2 + $0x20] sm:$0xff]
        %v518 = vld [vmem:[%s2 + $0x28] sm:$0xff]
        %v519 = vld [vmem:[%s2 + $0x30] sm:$0xff]
        %v520 = vld [vmem:[%s2 + $0x38] sm:$0xff]
        %v521 = vld [vmem:[%s2 + $0x40] sm:$0xff]
        %v522 = vld [vmem:[%s2 + $0x48] sm:$0xff]
        %v523 = vld [vmem:[%s2 + $0x50] sm:$0xff]
        %v524 = vld [vmem:[%s2 + $0x58] sm:$0xff]
        %v525 = vld [vmem:[%s2 + $0x60] sm:$0xff]
        %v526 = vld [vmem:[%s2 + $0x68] sm:$0xff]
        %v527 = vld [vmem:[%s2 + $0x70] sm:$0xff]
        %v528 = vld [vmem:[%s2 + $0x78] sm:$0xff]
        %v529 = vadd.f32 %v481, %v482
        %v530 = vadd.f32 %v529, %v483
        %v531 = vadd.f32 %v530, %v484
        %v532 = vadd.f32 %v531, %v485
        %v533 = vadd.f32 %v532, %v486
        %v534 = vadd.f32 %v533, %v487
        %v535 = vadd.f32 %v534, %v488
        %v536 = vadd.f32 %v535, %v489
        %v537 = vadd.f32 %v536, %v490
        %v538 = vadd.f32 %v537, %v491
        %v539 = vadd.f32 %v538, %v492
        %v540 = vadd.f32 %v539, %v493
        %v541 = vadd.f32 %v540, %v494
        %v542 = vadd.f32 %v541, %v495
        %v543 = vadd.f32 %v542, %v496
        %v544 = vadd.f32 %v543, %v497
        %v545 = vadd.f32 %v544, %v498
        %v546 = vadd.f32 %v545, %v499
        %v547 = vadd.f32 %v546, %v500
        %v548 = vadd.f32 %v547, %v501
        %v549 = vadd.f32 %v548, %v502
        %v550 = vadd.f32 %v549, %v503
        %v551 = vadd.f32 %v550, %v504
        %v552 = vadd.f32 %v551, %v505
        %v553 = vadd.f32 %v552, %v506
        %v554 = vadd.f32 %v553, %v507
        %v555 = vadd.f32 %v554, %v508
        %v556 = vadd.f32 %v555, %v509
        %v557 = vadd.f32 %v556, %v510
        %v558 = vadd.f32 %v557, %v511
        %v559 = vadd.f32 %v558, %v512
        %v560 = vrot.slane %v559, 4
        %v561 = vadd.f32 %v559, %v560
        %v562 = vrot.slane %v561, 2
        %v563 = vadd.f32 %v561, %v562
        %v564 = vrot.slane %v563, 1
        %v565 = vadd.f32 %v563, %v564
        %v566 = vmul.f32 %v481, %v481
        %v567 = vmul.f32 %v482, %v482
        %v568 = vmul.f32 %v483, %v483
        %v569 = vmul.f32 %v484, %v484
        %v570 = vmul.f32 %v485, %v485
        %v571 = vmul.f32 %v486, %v486
        %v572 = vmul.f32 %v487, %v487
        %v573 = vmul.f32 %v488, %v488
        %v574 = vmul.f32 %v489, %v489
        %v575 = vmul.f32 %v490, %v490
        %v576 = vmul.f32 %v491, %v491
        %v577 = vmul.f32 %v492, %v492
        %v578 = vmul.f32 %v493, %v493
        %v579 = vmul.f32 %v494, %v494
        %v580 = vmul.f32 %v495, %v495
        %v581 = vmul.f32 %v496, %v496
        %v582 = vmul.f32 %v497, %v497
        %v583 = vmul.f32 %v498, %v498
        %v584 = vmul.f32 %v499, %v499
        %v585 = vmul.f32 %v500, %v500
        %v586 = vmul.f32 %v501, %v501
        %v587 = vmul.f32 %v502, %v502
        %v588 = vmul.f32 %v503, %v503
        %v589 = vmul.f32 %v504, %v504
        %v590 = vmul.f32 %v505, %v505
        %v591 = vmul.f32 %v506, %v506
        %v592 = vmul.f32 %v507, %v507
        %v593 = vmul.f32 %v508, %v508
        %v594 = vmul.f32 %v509, %v509
        %v595 = vmul.f32 %v510, %v510
        %v596 = vmul.f32 %v511, %v511
        %v597 = vmul.f32 %v512, %v512
        %v598 = vadd.f32 %v566, %v567
        %v599 = vadd.f32 %v598, %v568
        %v600 = vadd.f32 %v599, %v569
        %v601 = vadd.f32 %v600, %v570
        %v602 = vadd.f32 %v601, %v571
        %v603 = vadd.f32 %v602, %v572
        %v604 = vadd.f32 %v603, %v573
        %v605 = vadd.f32 %v604, %v574
        %v606 = vadd.f32 %v605, %v575
        %v607 = vadd.f32 %v606, %v576
        %v608 = vadd.f32 %v607, %v577
        %v609 = vadd.f32 %v608, %v578
        %v610 = vadd.f32 %v609, %v579
        %v611 = vadd.f32 %v610, %v580
        %v612 = vadd.f32 %v611, %v581
        %v613 = vadd.f32 %v612, %v582
        %v614 = vadd.f32 %v613, %v583
        %v615 = vadd.f32 %v614, %v584
        %v616 = vadd.f32 %v615, %v585
        %v617 = vadd.f32 %v616, %v586
        %v618 = vadd.f32 %v617, %v587
        %v619 = vadd.f32 %v618, %v588
        %v620 = vadd.f32 %v619, %v589
        %v621 = vadd.f32 %v620, %v590
        %v622 = vadd.f32 %v621, %v591
        %v623 = vadd.f32 %v622, %v592
        %v624 = vadd.f32 %v623, %v593
        %v625 = vadd.f32 %v624, %v594
        %v626 = vadd.f32 %v625, %v595
        %v627 = vadd.f32 %v626, %v596
        %v628 = vadd.f32 %v627, %v597
        %v629 = vrot.slane %v628, 4
        %v630 = vadd.f32 %v628, %v629
        %v631 = vrot.slane %v630, 2
        %v632 = vadd.f32 %v630, %v631
        %v633 = vrot.slane %v632, 1
        %v634 = vadd.f32 %v632, %v633
        %635 = vmatpush.msra.mxu0 %v528
        %636 = vmatpush.msra.mxu0 %v527
        %637 = vmatpush.msra.mxu0 %v526
        %638 = vmatpush.msra.mxu0 %v525
        %639 = vmatpush.msra.mxu0 %v524
        %640 = vmatpush.msra.mxu0 %v523
        %641 = vmatpush.msra.mxu0 %v522
        %642 = vmatpush.msra.mxu0 %v521
        %643 = vmatpush.msra.mxu0 %v520
        %644 = vmatpush.msra.mxu0 %v519
        %645 = vmatpush.msra.mxu0 %v518
        %646 = vmatpush.msra.mxu0 %v517
        %647 = vmatpush.msra.mxu0 %v516
        %648 = vmatpush.msra.mxu0 %v515
        %649 = vmatpush.msra.mxu0 %v514
        %650 = vmatpush.msra.mxu0 %v513
        %651 = vmatmul.f32.gmra.mxu0 %v565
        %v652 = vpop.f32.mrf.mxu0
        %v653 = vadd.f32 0.0, %v652
        %654 = vdwg.mxu0
        %655 = vmatpush.msra.mxu0 %v528
        %656 = vmatpush.msra.mxu0 %v527
        %657 = vmatpush.msra.mxu0 %v526
        %658 = vmatpush.msra.mxu0 %v525
        %659 = vmatpush.msra.mxu0 %v524
        %660 = vmatpush.msra.mxu0 %v523
        %661 = vmatpush.msra.mxu0 %v522
        %662 = vmatpush.msra.mxu0 %v521
        %663 = vmatpush.msra.mxu0 %v520
        %664 = vmatpush.msra.mxu0 %v519
        %665 = vmatpush.msra.mxu0 %v518
        %666 = vmatpush.msra.mxu0 %v517
        %667 = vmatpush.msra.mxu0 %v516
        %668 = vmatpush.msra.mxu0 %v515
        %669 = vmatpush.msra.mxu0 %v514
        %670 = vmatpush.msra.mxu0 %v513
        %671 = vmatmul.f32.gmra.mxu0 %v634
        %v672 = vpop.f32.mrf.mxu0
        %v673 = vadd.f32 0.0, %v672
        %674 = vdwg.mxu0
        %v675 = vmul.f32 %v653, %v653
        %v676 = vsub.f32 %v673, %v675
        %v677 = vadd.f32 %v676, 1e-06
        %v678 = vrsqrt.pop %v677
        %v679 = vmul.f32 %v678, %v677
        %v680 = vmul.f32 %v679, %v678
        %v681 = vmul.f32 0.5, %v680
        %v682 = vsub.f32 1.5, %v681
        %v683 = vmul.f32 %v678, %v682
        %vm684 = vweird.f32 %v677
        %vm685 = vweird.f32 %v678
        %vm686 = vmor %vm684, %vm685
        %v687 = vsel %vm686, %v678, %v683
        %v688 = vperm.slane %v653, 0
        %v689 = vsub.f32 %v481, %v688
        %v690 = vsub.f32 %v482, %v688
        %v691 = vsub.f32 %v483, %v688
        %v692 = vsub.f32 %v484, %v688
        %v693 = vsub.f32 %v485, %v688
        %v694 = vsub.f32 %v486, %v688
        %v695 = vsub.f32 %v487, %v688
        %v696 = vsub.f32 %v488, %v688
        %v697 = vsub.f32 %v489, %v688
        %v698 = vsub.f32 %v490, %v688
        %v699 = vsub.f32 %v491, %v688
        %v700 = vsub.f32 %v492, %v688
        %v701 = vsub.f32 %v493, %v688
        %v702 = vsub.f32 %v494, %v688
        %v703 = vsub.f32 %v495, %v688
        %v704 = vsub.f32 %v496, %v688
        %v705 = vsub.f32 %v497, %v688
        %v706 = vsub.f32 %v498, %v688
        %v707 = vsub.f32 %v499, %v688
        %v708 = vsub.f32 %v500, %v688
        %v709 = vsub.f32 %v501, %v688
        %v710 = vsub.f32 %v502, %v688
        %v711 = vsub.f32 %v503, %v688
        %v712 = vsub.f32 %v504, %v688
        %v713 = vsub.f32 %v505, %v688
        %v714 = vsub.f32 %v506, %v688
        %v715 = vsub.f32 %v507, %v688
        %v716 = vsub.f32 %v508, %v688
        %v717 = vsub.f32 %v509, %v688
        %v718 = vsub.f32 %v510, %v688
        %v719 = vsub.f32 %v511, %v688
        %v720 = vsub.f32 %v512, %v688
        %v721 = vperm.slane %v687, 0
        %v722 = vmul.f32 %v689, %v721
        %v723 = vmul.f32 %v690, %v721
        %v724 = vmul.f32 %v691, %v721
        %v725 = vmul.f32 %v692, %v721
        %v726 = vmul.f32 %v693, %v721
        %v727 = vmul.f32 %v694, %v721
        %v728 = vmul.f32 %v695, %v721
        %v729 = vmul.f32 %v696, %v721
        %v730 = vmul.f32 %v697, %v721
        %v731 = vmul.f32 %v698, %v721
        %v732 = vmul.f32 %v699, %v721
        %v733 = vmul.f32 %v700, %v721
        %v734 = vmul.f32 %v701, %v721
        %v735 = vmul.f32 %v702, %v721
        %v736 = vmul.f32 %v703, %v721
        %v737 = vmul.f32 %v704, %v721
        %v738 = vmul.f32 %v705, %v721
        %v739 = vmul.f32 %v706, %v721
        %v740 = vmul.f32 %v707, %v721
        %v741 = vmul.f32 %v708, %v721
        %v742 = vmul.f32 %v709, %v721
        %v743 = vmul.f32 %v710, %v721
        %v744 = vmul.f32 %v711, %v721
        %v745 = vmul.f32 %v712, %v721
        %v746 = vmul.f32 %v713, %v721
        %v747 = vmul.f32 %v714, %v721
        %v748 = vmul.f32 %v715, %v721
        %v749 = vmul.f32 %v716, %v721
        %v750 = vmul.f32 %v717, %v721
        %v751 = vmul.f32 %v718, %v721
        %v752 = vmul.f32 %v719, %v721
        %v753 = vmul.f32 %v720, %v721
        %v754 = vld [vmem:[%s3] sm:$0x1]
        %v756 = vperm.slane %v754, 0
        %v758 = vmul.f32 %v722, %v756
        %v759 = vmul.f32 %v723, %v756
        %v760 = vmul.f32 %v724, %v756
        %v761 = vmul.f32 %v725, %v756
        %v762 = vmul.f32 %v726, %v756
        %v763 = vmul.f32 %v727, %v756
        %v764 = vmul.f32 %v728, %v756
        %v765 = vmul.f32 %v729, %v756
        %v766 = vmul.f32 %v730, %v756
        %v767 = vmul.f32 %v731, %v756
        %v768 = vmul.f32 %v732, %v756
        %v769 = vmul.f32 %v733, %v756
        %v770 = vmul.f32 %v734, %v756
        %v771 = vmul.f32 %v735, %v756
        %v772 = vmul.f32 %v736, %v756
        %v773 = vmul.f32 %v737, %v756
        %v774 = vmul.f32 %v738, %v756
        %v775 = vmul.f32 %v739, %v756
        %v776 = vmul.f32 %v740, %v756
        %v777 = vmul.f32 %v741, %v756
        %v778 = vmul.f32 %v742, %v756
        %v779 = vmul.f32 %v743, %v756
        %v780 = vmul.f32 %v744, %v756
        %v781 = vmul.f32 %v745, %v756
        %v782 = vmul.f32 %v746, %v756
        %v783 = vmul.f32 %v747, %v756
        %v784 = vmul.f32 %v748, %v756
        %v785 = vmul.f32 %v749, %v756
        %v786 = vmul.f32 %v750, %v756
        %v787 = vmul.f32 %v751, %v756
        %v788 = vmul.f32 %v752, %v756
        %v789 = vmul.f32 %v753, %v756
        %v790 = vld [vmem:[%s4] sm:$0x1]
        %v792 = vperm.slane %v790, 0
        %v794 = vadd.f32 %v758, %v792
        %v795 = vadd.f32 %v759, %v792
        %v796 = vadd.f32 %v760, %v792
        %v797 = vadd.f32 %v761, %v792
        %v798 = vadd.f32 %v762, %v792
        %v799 = vadd.f32 %v763, %v792
        %v800 = vadd.f32 %v764, %v792
        %v801 = vadd.f32 %v765, %v792
        %v802 = vadd.f32 %v766, %v792
        %v803 = vadd.f32 %v767, %v792
        %v804 = vadd.f32 %v768, %v792
        %v805 = vadd.f32 %v769, %v792
        %v806 = vadd.f32 %v770, %v792
        %v807 = vadd.f32 %v771, %v792
        %v808 = vadd.f32 %v772, %v792
        %v809 = vadd.f32 %v773, %v792
        %v810 = vadd.f32 %v774, %v792
        %v811 = vadd.f32 %v775, %v792
        %v812 = vadd.f32 %v776, %v792
        %v813 = vadd.f32 %v777, %v792
        %v814 = vadd.f32 %v778, %v792
        %v815 = vadd.f32 %v779, %v792
        %v816 = vadd.f32 %v780, %v792
        %v817 = vadd.f32 %v781, %v792
        %v818 = vadd.f32 %v782, %v792
        %v819 = vadd.f32 %v783, %v792
        %v820 = vadd.f32 %v784, %v792
        %v821 = vadd.f32 %v785, %v792
        %v822 = vadd.f32 %v786, %v792
        %v823 = vadd.f32 %v787, %v792
        %v824 = vadd.f32 %v788, %v792
        %v825 = vadd.f32 %v789, %v792
        %v826 = vxor.u32 %v794, 2147483648
        %v827 = vxor.u32 %v795, 2147483648
        %v828 = vxor.u32 %v796, 2147483648
        %v829 = vxor.u32 %v797, 2147483648
        %v830 = vxor.u32 %v798, 2147483648
        %v831 = vxor.u32 %v799, 2147483648
        %v832 = vxor.u32 %v800, 2147483648
        %v833 = vxor.u32 %v801, 2147483648
        %v834 = vxor.u32 %v802, 2147483648
        %v835 = vxor.u32 %v803, 2147483648
        %v836 = vxor.u32 %v804, 2147483648
        %v837 = vxor.u32 %v805, 2147483648
        %v838 = vxor.u32 %v806, 2147483648
        %v839 = vxor.u32 %v807, 2147483648
        %v840 = vxor.u32 %v808, 2147483648
        %v841 = vxor.u32 %v809, 2147483648
        %v842 = vxor.u32 %v810, 2147483648
        %v843 = vxor.u32 %v811, 2147483648
        %v844 = vxor.u32 %v812, 2147483648
        %v845 = vxor.u32 %v813, 2147483648
        %v846 = vxor.u32 %v814, 2147483648
        %v847 = vxor.u32 %v815, 2147483648
        %v848 = vxor.u32 %v816, 2147483648
        %v849 = vxor.u32 %v817, 2147483648
        %v850 = vxor.u32 %v818, 2147483648
        %v851 = vxor.u32 %v819, 2147483648
        %v852 = vxor.u32 %v820, 2147483648
        %v853 = vxor.u32 %v821, 2147483648
        %v854 = vxor.u32 %v822, 2147483648
        %v855 = vxor.u32 %v823, 2147483648
        %v856 = vxor.u32 %v824, 2147483648
        %v857 = vxor.u32 %v825, 2147483648
        %v858 = vmul.f32 %v826, 1.442695
        %v859 = vpow.pop %v858
        %v860 = vmul.f32 %v827, 1.442695
        %v861 = vpow.pop %v860
        %v862 = vmul.f32 %v828, 1.442695
        %v863 = vpow.pop %v862
        %v864 = vmul.f32 %v829, 1.442695
        %v865 = vpow.pop %v864
        %v866 = vmul.f32 %v830, 1.442695
        %v867 = vpow.pop %v866
        %v868 = vmul.f32 %v831, 1.442695
        %v869 = vpow.pop %v868
        %v870 = vmul.f32 %v832, 1.442695
        %v871 = vpow.pop %v870
        %v872 = vmul.f32 %v833, 1.442695
        %v873 = vpow.pop %v872
        %v874 = vmul.f32 %v834, 1.442695
        %v875 = vpow.pop %v874
        %v876 = vmul.f32 %v835, 1.442695
        %v877 = vpow.pop %v876
        %v878 = vmul.f32 %v836, 1.442695
        %v879 = vpow.pop %v878
        %v880 = vmul.f32 %v837, 1.442695
        %v881 = vpow.pop %v880
        %v882 = vmul.f32 %v838, 1.442695
        %v883 = vpow.pop %v882
        %v884 = vmul.f32 %v839, 1.442695
        %v885 = vpow.pop %v884
        %v886 = vmul.f32 %v840, 1.442695
        %v887 = vpow.pop %v886
        %v888 = vmul.f32 %v841, 1.442695
        %v889 = vpow.pop %v888
        %v890 = vmul.f32 %v842, 1.442695
        %v891 = vpow.pop %v890
        %v892 = vmul.f32 %v843, 1.442695
        %v893 = vpow.pop %v892
        %v894 = vmul.f32 %v844, 1.442695
        %v895 = vpow.pop %v894
        %v896 = vmul.f32 %v845, 1.442695
        %v897 = vpow.pop %v896
        %v898 = vmul.f32 %v846, 1.442695
        %v899 = vpow.pop %v898
        %v900 = vmul.f32 %v847, 1.442695
        %v901 = vpow.pop %v900
        %v902 = vmul.f32 %v848, 1.442695
        %v903 = vpow.pop %v902
        %v904 = vmul.f32 %v849, 1.442695
        %v905 = vpow.pop %v904
        %v906 = vmul.f32 %v850, 1.442695
        %v907 = vpow.pop %v906
        %v908 = vmul.f32 %v851, 1.442695
        %v909 = vpow.pop %v908
        %v910 = vmul.f32 %v852, 1.442695
        %v911 = vpow.pop %v910
        %v912 = vmul.f32 %v853, 1.442695
        %v913 = vpow.pop %v912
        %v914 = vmul.f32 %v854, 1.442695
        %v915 = vpow.pop %v914
        %v916 = vmul.f32 %v855, 1.442695
        %v917 = vpow.pop %v916
        %v918 = vmul.f32 %v856, 1.442695
        %v919 = vpow.pop %v918
        %v920 = vmul.f32 %v857, 1.442695
        %v921 = vpow.pop %v920
        %v922 = vadd.f32 %v859, 1.0
        %v923 = vadd.f32 %v861, 1.0
        %v924 = vadd.f32 %v863, 1.0
        %v925 = vadd.f32 %v865, 1.0
        %v926 = vadd.f32 %v867, 1.0
        %v927 = vadd.f32 %v869, 1.0
        %v928 = vadd.f32 %v871, 1.0
        %v929 = vadd.f32 %v873, 1.0
        %v930 = vadd.f32 %v875, 1.0
        %v931 = vadd.f32 %v877, 1.0
        %v932 = vadd.f32 %v879, 1.0
        %v933 = vadd.f32 %v881, 1.0
        %v934 = vadd.f32 %v883, 1.0
        %v935 = vadd.f32 %v885, 1.0
        %v936 = vadd.f32 %v887, 1.0
        %v937 = vadd.f32 %v889, 1.0
        %v938 = vadd.f32 %v891, 1.0
        %v939 = vadd.f32 %v893, 1.0
        %v940 = vadd.f32 %v895, 1.0
        %v941 = vadd.f32 %v897, 1.0
        %v942 = vadd.f32 %v899, 1.0
        %v943 = vadd.f32 %v901, 1.0
        %v944 = vadd.f32 %v903, 1.0
        %v945 = vadd.f32 %v905, 1.0
        %v946 = vadd.f32 %v907, 1.0
        %v947 = vadd.f32 %v909, 1.0
        %v948 = vadd.f32 %v911, 1.0
        %v949 = vadd.f32 %v913, 1.0
        %v950 = vadd.f32 %v915, 1.0
        %v951 = vadd.f32 %v917, 1.0
        %v952 = vadd.f32 %v919, 1.0
        %v953 = vadd.f32 %v921, 1.0
        %v954 = vrcp.pop %v922
        %v955 = vmul.f32 %v922, %v954
        %v956 = vsub.f32 1.0, %v955
        %v957 = vmul.f32 %v954, %v956
        %v958 = vadd.f32 %v954, %v957
        %vm959 = vweird.f32 %v922
        %vm960 = vweird.f32 %v954
        %vm961 = vmor %vm959, %vm960
        %v962 = vsel %vm961, %v954, %v958
        %v963 = vand.u32 2147483647, %v922
        %vm964 = vcmp.eq.f32.partialorder %v963, 8.507059e+37
        %v965 = vand.u32 %v922, 2147483648
        %v966 = vor.u32 1.1754944e-38, %v965
        %v967 = vsel %vm964, %v966, %v962
        %v968 = vmul.f32 1.0, %v967
        %v969 = vrcp.pop %v923
        %v970 = vmul.f32 %v923, %v969
        %v971 = vsub.f32 1.0, %v970
        %v972 = vmul.f32 %v969, %v971
        %v973 = vadd.f32 %v969, %v972
        %vm974 = vweird.f32 %v923
        %vm975 = vweird.f32 %v969
        %vm976 = vmor %vm974, %vm975
        %v977 = vsel %vm976, %v969, %v973
        %v978 = vand.u32 2147483647, %v923
        %vm979 = vcmp.eq.f32.partialorder %v978, 8.507059e+37
        %v980 = vand.u32 %v923, 2147483648
        %v981 = vor.u32 1.1754944e-38, %v980
        %v982 = vsel %vm979, %v981, %v977
        %v983 = vmul.f32 1.0, %v982
        %v984 = vrcp.pop %v924
        %v985 = vmul.f32 %v924, %v984
        %v986 = vsub.f32 1.0, %v985
        %v987 = vmul.f32 %v984, %v986
        %v988 = vadd.f32 %v984, %v987
        %vm989 = vweird.f32 %v924
        %vm990 = vweird.f32 %v984
        %vm991 = vmor %vm989, %vm990
        %v992 = vsel %vm991, %v984, %v988
        %v993 = vand.u32 2147483647, %v924
        %vm994 = vcmp.eq.f32.partialorder %v993, 8.507059e+37
        %v995 = vand.u32 %v924, 2147483648
        %v996 = vor.u32 1.1754944e-38, %v995
        %v997 = vsel %vm994, %v996, %v992
        %v998 = vmul.f32 1.0, %v997
        %v999 = vrcp.pop %v925
        %v1000 = vmul.f32 %v925, %v999
        %v1001 = vsub.f32 1.0, %v1000
        %v1002 = vmul.f32 %v999, %v1001
        %v1003 = vadd.f32 %v999, %v1002
        %vm1004 = vweird.f32 %v925
        %vm1005 = vweird.f32 %v999
        %vm1006 = vmor %vm1004, %vm1005
        %v1007 = vsel %vm1006, %v999, %v1003
        %v1008 = vand.u32 2147483647, %v925
        %vm1009 = vcmp.eq.f32.partialorder %v1008, 8.507059e+37
        %v1010 = vand.u32 %v925, 2147483648
        %v1011 = vor.u32 1.1754944e-38, %v1010
        %v1012 = vsel %vm1009, %v1011, %v1007
        %v1013 = vmul.f32 1.0, %v1012
        %v1014 = vrcp.pop %v926
        %v1015 = vmul.f32 %v926, %v1014
        %v1016 = vsub.f32 1.0, %v1015
        %v1017 = vmul.f32 %v1014, %v1016
        %v1018 = vadd.f32 %v1014, %v1017
        %vm1019 = vweird.f32 %v926
        %vm1020 = vweird.f32 %v1014
        %vm1021 = vmor %vm1019, %vm1020
        %v1022 = vsel %vm1021, %v1014, %v1018
        %v1023 = vand.u32 2147483647, %v926
        %vm1024 = vcmp.eq.f32.partialorder %v1023, 8.507059e+37
        %v1025 = vand.u32 %v926, 2147483648
        %v1026 = vor.u32 1.1754944e-38, %v1025
        %v1027 = vsel %vm1024, %v1026, %v1022
        %v1028 = vmul.f32 1.0, %v1027
        %v1029 = vrcp.pop %v927
        %v1030 = vmul.f32 %v927, %v1029
        %v1031 = vsub.f32 1.0, %v1030
        %v1032 = vmul.f32 %v1029, %v1031
        %v1033 = vadd.f32 %v1029, %v1032
        %vm1034 = vweird.f32 %v927
        %vm1035 = vweird.f32 %v1029
        %vm1036 = vmor %vm1034, %vm1035
        %v1037 = vsel %vm1036, %v1029, %v1033
        %v1038 = vand.u32 2147483647, %v927
        %vm1039 = vcmp.eq.f32.partialorder %v1038, 8.507059e+37
        %v1040 = vand.u32 %v927, 2147483648
        %v1041 = vor.u32 1.1754944e-38, %v1040
        %v1042 = vsel %vm1039, %v1041, %v1037
        %v1043 = vmul.f32 1.0, %v1042
        %v1044 = vrcp.pop %v928
        %v1045 = vmul.f32 %v928, %v1044
        %v1046 = vsub.f32 1.0, %v1045
        %v1047 = vmul.f32 %v1044, %v1046
        %v1048 = vadd.f32 %v1044, %v1047
        %vm1049 = vweird.f32 %v928
        %vm1050 = vweird.f32 %v1044
        %vm1051 = vmor %vm1049, %vm1050
        %v1052 = vsel %vm1051, %v1044, %v1048
        %v1053 = vand.u32 2147483647, %v928
        %vm1054 = vcmp.eq.f32.partialorder %v1053, 8.507059e+37
        %v1055 = vand.u32 %v928, 2147483648
        %v1056 = vor.u32 1.1754944e-38, %v1055
        %v1057 = vsel %vm1054, %v1056, %v1052
        %v1058 = vmul.f32 1.0, %v1057
        %v1059 = vrcp.pop %v929
        %v1060 = vmul.f32 %v929, %v1059
        %v1061 = vsub.f32 1.0, %v1060
        %v1062 = vmul.f32 %v1059, %v1061
        %v1063 = vadd.f32 %v1059, %v1062
        %vm1064 = vweird.f32 %v929
        %vm1065 = vweird.f32 %v1059
        %vm1066 = vmor %vm1064, %vm1065
        %v1067 = vsel %vm1066, %v1059, %v1063
        %v1068 = vand.u32 2147483647, %v929
        %vm1069 = vcmp.eq.f32.partialorder %v1068, 8.507059e+37
        %v1070 = vand.u32 %v929, 2147483648
        %v1071 = vor.u32 1.1754944e-38, %v1070
        %v1072 = vsel %vm1069, %v1071, %v1067
        %v1073 = vmul.f32 1.0, %v1072
        %v1074 = vrcp.pop %v930
        %v1075 = vmul.f32 %v930, %v1074
        %v1076 = vsub.f32 1.0, %v1075
        %v1077 = vmul.f32 %v1074, %v1076
        %v1078 = vadd.f32 %v1074, %v1077
        %vm1079 = vweird.f32 %v930
        %vm1080 = vweird.f32 %v1074
        %vm1081 = vmor %vm1079, %vm1080
        %v1082 = vsel %vm1081, %v1074, %v1078
        %v1083 = vand.u32 2147483647, %v930
        %vm1084 = vcmp.eq.f32.partialorder %v1083, 8.507059e+37
        %v1085 = vand.u32 %v930, 2147483648
        %v1086 = vor.u32 1.1754944e-38, %v1085
        %v1087 = vsel %vm1084, %v1086, %v1082
        %v1088 = vmul.f32 1.0, %v1087
        %v1089 = vrcp.pop %v931
        %v1090 = vmul.f32 %v931, %v1089
        %v1091 = vsub.f32 1.0, %v1090
        %v1092 = vmul.f32 %v1089, %v1091
        %v1093 = vadd.f32 %v1089, %v1092
        %vm1094 = vweird.f32 %v931
        %vm1095 = vweird.f32 %v1089
        %vm1096 = vmor %vm1094, %vm1095
        %v1097 = vsel %vm1096, %v1089, %v1093
        %v1098 = vand.u32 2147483647, %v931
        %vm1099 = vcmp.eq.f32.partialorder %v1098, 8.507059e+37
        %v1100 = vand.u32 %v931, 2147483648
        %v1101 = vor.u32 1.1754944e-38, %v1100
        %v1102 = vsel %vm1099, %v1101, %v1097
        %v1103 = vmul.f32 1.0, %v1102
        %v1104 = vrcp.pop %v932
        %v1105 = vmul.f32 %v932, %v1104
        %v1106 = vsub.f32 1.0, %v1105
        %v1107 = vmul.f32 %v1104, %v1106
        %v1108 = vadd.f32 %v1104, %v1107
        %vm1109 = vweird.f32 %v932
        %vm1110 = vweird.f32 %v1104
        %vm1111 = vmor %vm1109, %vm1110
        %v1112 = vsel %vm1111, %v1104, %v1108
        %v1113 = vand.u32 2147483647, %v932
        %vm1114 = vcmp.eq.f32.partialorder %v1113, 8.507059e+37
        %v1115 = vand.u32 %v932, 2147483648
        %v1116 = vor.u32 1.1754944e-38, %v1115
        %v1117 = vsel %vm1114, %v1116, %v1112
        %v1118 = vmul.f32 1.0, %v1117
        %v1119 = vrcp.pop %v933
        %v1120 = vmul.f32 %v933, %v1119
        %v1121 = vsub.f32 1.0, %v1120
        %v1122 = vmul.f32 %v1119, %v1121
        %v1123 = vadd.f32 %v1119, %v1122
        %vm1124 = vweird.f32 %v933
        %vm1125 = vweird.f32 %v1119
        %vm1126 = vmor %vm1124, %vm1125
        %v1127 = vsel %vm1126, %v1119, %v1123
        %v1128 = vand.u32 2147483647, %v933
        %vm1129 = vcmp.eq.f32.partialorder %v1128, 8.507059e+37
        %v1130 = vand.u32 %v933, 2147483648
        %v1131 = vor.u32 1.1754944e-38, %v1130
        %v1132 = vsel %vm1129, %v1131, %v1127
        %v1133 = vmul.f32 1.0, %v1132
        %v1134 = vrcp.pop %v934
        %v1135 = vmul.f32 %v934, %v1134
        %v1136 = vsub.f32 1.0, %v1135
        %v1137 = vmul.f32 %v1134, %v1136
        %v1138 = vadd.f32 %v1134, %v1137
        %vm1139 = vweird.f32 %v934
        %vm1140 = vweird.f32 %v1134
        %vm1141 = vmor %vm1139, %vm1140
        %v1142 = vsel %vm1141, %v1134, %v1138
        %v1143 = vand.u32 2147483647, %v934
        %vm1144 = vcmp.eq.f32.partialorder %v1143, 8.507059e+37
        %v1145 = vand.u32 %v934, 2147483648
        %v1146 = vor.u32 1.1754944e-38, %v1145
        %v1147 = vsel %vm1144, %v1146, %v1142
        %v1148 = vmul.f32 1.0, %v1147
        %v1149 = vrcp.pop %v935
        %v1150 = vmul.f32 %v935, %v1149
        %v1151 = vsub.f32 1.0, %v1150
        %v1152 = vmul.f32 %v1149, %v1151
        %v1153 = vadd.f32 %v1149, %v1152
        %vm1154 = vweird.f32 %v935
        %vm1155 = vweird.f32 %v1149
        %vm1156 = vmor %vm1154, %vm1155
        %v1157 = vsel %vm1156, %v1149, %v1153
        %v1158 = vand.u32 2147483647, %v935
        %vm1159 = vcmp.eq.f32.partialorder %v1158, 8.507059e+37
        %v1160 = vand.u32 %v935, 2147483648
        %v1161 = vor.u32 1.1754944e-38, %v1160
        %v1162 = vsel %vm1159, %v1161, %v1157
        %v1163 = vmul.f32 1.0, %v1162
        %v1164 = vrcp.pop %v936
        %v1165 = vmul.f32 %v936, %v1164
        %v1166 = vsub.f32 1.0, %v1165
        %v1167 = vmul.f32 %v1164, %v1166
        %v1168 = vadd.f32 %v1164, %v1167
        %vm1169 = vweird.f32 %v936
        %vm1170 = vweird.f32 %v1164
        %vm1171 = vmor %vm1169, %vm1170
        %v1172 = vsel %vm1171, %v1164, %v1168
        %v1173 = vand.u32 2147483647, %v936
        %vm1174 = vcmp.eq.f32.partialorder %v1173, 8.507059e+37
        %v1175 = vand.u32 %v936, 2147483648
        %v1176 = vor.u32 1.1754944e-38, %v1175
        %v1177 = vsel %vm1174, %v1176, %v1172
        %v1178 = vmul.f32 1.0, %v1177
        %v1179 = vrcp.pop %v937
        %v1180 = vmul.f32 %v937, %v1179
        %v1181 = vsub.f32 1.0, %v1180
        %v1182 = vmul.f32 %v1179, %v1181
        %v1183 = vadd.f32 %v1179, %v1182
        %vm1184 = vweird.f32 %v937
        %vm1185 = vweird.f32 %v1179
        %vm1186 = vmor %vm1184, %vm1185
        %v1187 = vsel %vm1186, %v1179, %v1183
        %v1188 = vand.u32 2147483647, %v937
        %vm1189 = vcmp.eq.f32.partialorder %v1188, 8.507059e+37
        %v1190 = vand.u32 %v937, 2147483648
        %v1191 = vor.u32 1.1754944e-38, %v1190
        %v1192 = vsel %vm1189, %v1191, %v1187
        %v1193 = vmul.f32 1.0, %v1192
        %v1194 = vrcp.pop %v938
        %v1195 = vmul.f32 %v938, %v1194
        %v1196 = vsub.f32 1.0, %v1195
        %v1197 = vmul.f32 %v1194, %v1196
        %v1198 = vadd.f32 %v1194, %v1197
        %vm1199 = vweird.f32 %v938
        %vm1200 = vweird.f32 %v1194
        %vm1201 = vmor %vm1199, %vm1200
        %v1202 = vsel %vm1201, %v1194, %v1198
        %v1203 = vand.u32 2147483647, %v938
        %vm1204 = vcmp.eq.f32.partialorder %v1203, 8.507059e+37
        %v1205 = vand.u32 %v938, 2147483648
        %v1206 = vor.u32 1.1754944e-38, %v1205
        %v1207 = vsel %vm1204, %v1206, %v1202
        %v1208 = vmul.f32 1.0, %v1207
        %v1209 = vrcp.pop %v939
        %v1210 = vmul.f32 %v939, %v1209
        %v1211 = vsub.f32 1.0, %v1210
        %v1212 = vmul.f32 %v1209, %v1211
        %v1213 = vadd.f32 %v1209, %v1212
        %vm1214 = vweird.f32 %v939
        %vm1215 = vweird.f32 %v1209
        %vm1216 = vmor %vm1214, %vm1215
        %v1217 = vsel %vm1216, %v1209, %v1213
        %v1218 = vand.u32 2147483647, %v939
        %vm1219 = vcmp.eq.f32.partialorder %v1218, 8.507059e+37
        %v1220 = vand.u32 %v939, 2147483648
        %v1221 = vor.u32 1.1754944e-38, %v1220
        %v1222 = vsel %vm1219, %v1221, %v1217
        %v1223 = vmul.f32 1.0, %v1222
        %v1224 = vrcp.pop %v940
        %v1225 = vmul.f32 %v940, %v1224
        %v1226 = vsub.f32 1.0, %v1225
        %v1227 = vmul.f32 %v1224, %v1226
        %v1228 = vadd.f32 %v1224, %v1227
        %vm1229 = vweird.f32 %v940
        %vm1230 = vweird.f32 %v1224
        %vm1231 = vmor %vm1229, %vm1230
        %v1232 = vsel %vm1231, %v1224, %v1228
        %v1233 = vand.u32 2147483647, %v940
        %vm1234 = vcmp.eq.f32.partialorder %v1233, 8.507059e+37
        %v1235 = vand.u32 %v940, 2147483648
        %v1236 = vor.u32 1.1754944e-38, %v1235
        %v1237 = vsel %vm1234, %v1236, %v1232
        %v1238 = vmul.f32 1.0, %v1237
        %v1239 = vrcp.pop %v941
        %v1240 = vmul.f32 %v941, %v1239
        %v1241 = vsub.f32 1.0, %v1240
        %v1242 = vmul.f32 %v1239, %v1241
        %v1243 = vadd.f32 %v1239, %v1242
        %vm1244 = vweird.f32 %v941
        %vm1245 = vweird.f32 %v1239
        %vm1246 = vmor %vm1244, %vm1245
        %v1247 = vsel %vm1246, %v1239, %v1243
        %v1248 = vand.u32 2147483647, %v941
        %vm1249 = vcmp.eq.f32.partialorder %v1248, 8.507059e+37
        %v1250 = vand.u32 %v941, 2147483648
        %v1251 = vor.u32 1.1754944e-38, %v1250
        %v1252 = vsel %vm1249, %v1251, %v1247
        %v1253 = vmul.f32 1.0, %v1252
        %v1254 = vrcp.pop %v942
        %v1255 = vmul.f32 %v942, %v1254
        %v1256 = vsub.f32 1.0, %v1255
        %v1257 = vmul.f32 %v1254, %v1256
        %v1258 = vadd.f32 %v1254, %v1257
        %vm1259 = vweird.f32 %v942
        %vm1260 = vweird.f32 %v1254
        %vm1261 = vmor %vm1259, %vm1260
        %v1262 = vsel %vm1261, %v1254, %v1258
        %v1263 = vand.u32 2147483647, %v942
        %vm1264 = vcmp.eq.f32.partialorder %v1263, 8.507059e+37
        %v1265 = vand.u32 %v942, 2147483648
        %v1266 = vor.u32 1.1754944e-38, %v1265
        %v1267 = vsel %vm1264, %v1266, %v1262
        %v1268 = vmul.f32 1.0, %v1267
        %v1269 = vrcp.pop %v943
        %v1270 = vmul.f32 %v943, %v1269
        %v1271 = vsub.f32 1.0, %v1270
        %v1272 = vmul.f32 %v1269, %v1271
        %v1273 = vadd.f32 %v1269, %v1272
        %vm1274 = vweird.f32 %v943
        %vm1275 = vweird.f32 %v1269
        %vm1276 = vmor %vm1274, %vm1275
        %v1277 = vsel %vm1276, %v1269, %v1273
        %v1278 = vand.u32 2147483647, %v943
        %vm1279 = vcmp.eq.f32.partialorder %v1278, 8.507059e+37
        %v1280 = vand.u32 %v943, 2147483648
        %v1281 = vor.u32 1.1754944e-38, %v1280
        %v1282 = vsel %vm1279, %v1281, %v1277
        %v1283 = vmul.f32 1.0, %v1282
        %v1284 = vrcp.pop %v944
        %v1285 = vmul.f32 %v944, %v1284
        %v1286 = vsub.f32 1.0, %v1285
        %v1287 = vmul.f32 %v1284, %v1286
        %v1288 = vadd.f32 %v1284, %v1287
        %vm1289 = vweird.f32 %v944
        %vm1290 = vweird.f32 %v1284
        %vm1291 = vmor %vm1289, %vm1290
        %v1292 = vsel %vm1291, %v1284, %v1288
        %v1293 = vand.u32 2147483647, %v944
        %vm1294 = vcmp.eq.f32.partialorder %v1293, 8.507059e+37
        %v1295 = vand.u32 %v944, 2147483648
        %v1296 = vor.u32 1.1754944e-38, %v1295
        %v1297 = vsel %vm1294, %v1296, %v1292
        %v1298 = vmul.f32 1.0, %v1297
        %v1299 = vrcp.pop %v945
        %v1300 = vmul.f32 %v945, %v1299
        %v1301 = vsub.f32 1.0, %v1300
        %v1302 = vmul.f32 %v1299, %v1301
        %v1303 = vadd.f32 %v1299, %v1302
        %vm1304 = vweird.f32 %v945
        %vm1305 = vweird.f32 %v1299
        %vm1306 = vmor %vm1304, %vm1305
        %v1307 = vsel %vm1306, %v1299, %v1303
        %v1308 = vand.u32 2147483647, %v945
        %vm1309 = vcmp.eq.f32.partialorder %v1308, 8.507059e+37
        %v1310 = vand.u32 %v945, 2147483648
        %v1311 = vor.u32 1.1754944e-38, %v1310
        %v1312 = vsel %vm1309, %v1311, %v1307
        %v1313 = vmul.f32 1.0, %v1312
        %v1314 = vrcp.pop %v946
        %v1315 = vmul.f32 %v946, %v1314
        %v1316 = vsub.f32 1.0, %v1315
        %v1317 = vmul.f32 %v1314, %v1316
        %v1318 = vadd.f32 %v1314, %v1317
        %vm1319 = vweird.f32 %v946
        %vm1320 = vweird.f32 %v1314
        %vm1321 = vmor %vm1319, %vm1320
        %v1322 = vsel %vm1321, %v1314, %v1318
        %v1323 = vand.u32 2147483647, %v946
        %vm1324 = vcmp.eq.f32.partialorder %v1323, 8.507059e+37
        %v1325 = vand.u32 %v946, 2147483648
        %v1326 = vor.u32 1.1754944e-38, %v1325
        %v1327 = vsel %vm1324, %v1326, %v1322
        %v1328 = vmul.f32 1.0, %v1327
        %v1329 = vrcp.pop %v947
        %v1330 = vmul.f32 %v947, %v1329
        %v1331 = vsub.f32 1.0, %v1330
        %v1332 = vmul.f32 %v1329, %v1331
        %v1333 = vadd.f32 %v1329, %v1332
        %vm1334 = vweird.f32 %v947
        %vm1335 = vweird.f32 %v1329
        %vm1336 = vmor %vm1334, %vm1335
        %v1337 = vsel %vm1336, %v1329, %v1333
        %v1338 = vand.u32 2147483647, %v947
        %vm1339 = vcmp.eq.f32.partialorder %v1338, 8.507059e+37
        %v1340 = vand.u32 %v947, 2147483648
        %v1341 = vor.u32 1.1754944e-38, %v1340
        %v1342 = vsel %vm1339, %v1341, %v1337
        %v1343 = vmul.f32 1.0, %v1342
        %v1344 = vrcp.pop %v948
        %v1345 = vmul.f32 %v948, %v1344
        %v1346 = vsub.f32 1.0, %v1345
        %v1347 = vmul.f32 %v1344, %v1346
        %v1348 = vadd.f32 %v1344, %v1347
        %vm1349 = vweird.f32 %v948
        %vm1350 = vweird.f32 %v1344
        %vm1351 = vmor %vm1349, %vm1350
        %v1352 = vsel %vm1351, %v1344, %v1348
        %v1353 = vand.u32 2147483647, %v948
        %vm1354 = vcmp.eq.f32.partialorder %v1353, 8.507059e+37
        %v1355 = vand.u32 %v948, 2147483648
        %v1356 = vor.u32 1.1754944e-38, %v1355
        %v1357 = vsel %vm1354, %v1356, %v1352
        %v1358 = vmul.f32 1.0, %v1357
        %v1359 = vrcp.pop %v949
        %v1360 = vmul.f32 %v949, %v1359
        %v1361 = vsub.f32 1.0, %v1360
        %v1362 = vmul.f32 %v1359, %v1361
        %v1363 = vadd.f32 %v1359, %v1362
        %vm1364 = vweird.f32 %v949
        %vm1365 = vweird.f32 %v1359
        %vm1366 = vmor %vm1364, %vm1365
        %v1367 = vsel %vm1366, %v1359, %v1363
        %v1368 = vand.u32 2147483647, %v949
        %vm1369 = vcmp.eq.f32.partialorder %v1368, 8.507059e+37
        %v1370 = vand.u32 %v949, 2147483648
        %v1371 = vor.u32 1.1754944e-38, %v1370
        %v1372 = vsel %vm1369, %v1371, %v1367
        %v1373 = vmul.f32 1.0, %v1372
        %v1374 = vrcp.pop %v950
        %v1375 = vmul.f32 %v950, %v1374
        %v1376 = vsub.f32 1.0, %v1375
        %v1377 = vmul.f32 %v1374, %v1376
        %v1378 = vadd.f32 %v1374, %v1377
        %vm1379 = vweird.f32 %v950
        %vm1380 = vweird.f32 %v1374
        %vm1381 = vmor %vm1379, %vm1380
        %v1382 = vsel %vm1381, %v1374, %v1378
        %v1383 = vand.u32 2147483647, %v950
        %vm1384 = vcmp.eq.f32.partialorder %v1383, 8.507059e+37
        %v1385 = vand.u32 %v950, 2147483648
        %v1386 = vor.u32 1.1754944e-38, %v1385
        %v1387 = vsel %vm1384, %v1386, %v1382
        %v1388 = vmul.f32 1.0, %v1387
        %v1389 = vrcp.pop %v951
        %v1390 = vmul.f32 %v951, %v1389
        %v1391 = vsub.f32 1.0, %v1390
        %v1392 = vmul.f32 %v1389, %v1391
        %v1393 = vadd.f32 %v1389, %v1392
        %vm1394 = vweird.f32 %v951
        %vm1395 = vweird.f32 %v1389
        %vm1396 = vmor %vm1394, %vm1395
        %v1397 = vsel %vm1396, %v1389, %v1393
        %v1398 = vand.u32 2147483647, %v951
        %vm1399 = vcmp.eq.f32.partialorder %v1398, 8.507059e+37
        %v1400 = vand.u32 %v951, 2147483648
        %v1401 = vor.u32 1.1754944e-38, %v1400
        %v1402 = vsel %vm1399, %v1401, %v1397
        %v1403 = vmul.f32 1.0, %v1402
        %v1404 = vrcp.pop %v952
        %v1405 = vmul.f32 %v952, %v1404
        %v1406 = vsub.f32 1.0, %v1405
        %v1407 = vmul.f32 %v1404, %v1406
        %v1408 = vadd.f32 %v1404, %v1407
        %vm1409 = vweird.f32 %v952
        %vm1410 = vweird.f32 %v1404
        %vm1411 = vmor %vm1409, %vm1410
        %v1412 = vsel %vm1411, %v1404, %v1408
        %v1413 = vand.u32 2147483647, %v952
        %vm1414 = vcmp.eq.f32.partialorder %v1413, 8.507059e+37
        %v1415 = vand.u32 %v952, 2147483648
        %v1416 = vor.u32 1.1754944e-38, %v1415
        %v1417 = vsel %vm1414, %v1416, %v1412
        %v1418 = vmul.f32 1.0, %v1417
        %v1419 = vrcp.pop %v953
        %v1420 = vmul.f32 %v953, %v1419
        %v1421 = vsub.f32 1.0, %v1420
        %v1422 = vmul.f32 %v1419, %v1421
        %v1423 = vadd.f32 %v1419, %v1422
        %vm1424 = vweird.f32 %v953
        %vm1425 = vweird.f32 %v1419
        %vm1426 = vmor %vm1424, %vm1425
        %v1427 = vsel %vm1426, %v1419, %v1423
        %v1428 = vand.u32 2147483647, %v953
        %vm1429 = vcmp.eq.f32.partialorder %v1428, 8.507059e+37
        %v1430 = vand.u32 %v953, 2147483648
        %v1431 = vor.u32 1.1754944e-38, %v1430
        %v1432 = vsel %vm1429, %v1431, %v1427
        %v1433 = vmul.f32 1.0, %v1432
        %v1434 = vmul.f32 %v794, %v968
        %v1435 = vmul.f32 %v795, %v983
        %v1436 = vmul.f32 %v796, %v998
        %v1437 = vmul.f32 %v797, %v1013
        %v1438 = vmul.f32 %v798, %v1028
        %v1439 = vmul.f32 %v799, %v1043
        %v1440 = vmul.f32 %v800, %v1058
        %v1441 = vmul.f32 %v801, %v1073
        %v1442 = vmul.f32 %v802, %v1088
        %v1443 = vmul.f32 %v803, %v1103
        %v1444 = vmul.f32 %v804, %v1118
        %v1445 = vmul.f32 %v805, %v1133
        %v1446 = vmul.f32 %v806, %v1148
        %v1447 = vmul.f32 %v807, %v1163
        %v1448 = vmul.f32 %v808, %v1178
        %v1449 = vmul.f32 %v809, %v1193
        %v1450 = vmul.f32 %v810, %v1208
        %v1451 = vmul.f32 %v811, %v1223
        %v1452 = vmul.f32 %v812, %v1238
        %v1453 = vmul.f32 %v813, %v1253
        %v1454 = vmul.f32 %v814, %v1268
        %v1455 = vmul.f32 %v815, %v1283
        %v1456 = vmul.f32 %v816, %v1298
        %v1457 = vmul.f32 %v817, %v1313
        %v1458 = vmul.f32 %v818, %v1328
        %v1459 = vmul.f32 %v819, %v1343
        %v1460 = vmul.f32 %v820, %v1358
        %v1461 = vmul.f32 %v821, %v1373
        %v1462 = vmul.f32 %v822, %v1388
        %v1463 = vmul.f32 %v823, %v1403
        %v1464 = vmul.f32 %v824, %v1418
        %v1465 = vmul.f32 %v825, %v1433
        %1466 = vst [vmem:[#allocation2] sm:$0xff] 0.0
        %1467 = vst [vmem:[#allocation2 + $0x8] sm:$0xff] 0.0
        %1468 = vst [vmem:[#allocation2 + $0x10] sm:$0x3] 0.0
        %1469 = vst [vmem:[#allocation2 + $0x18] sm:$0xff] 0.0
        %1470 = vst [vmem:[#allocation2 + $0x20] sm:$0xff] 0.0
        %1471 = vst [vmem:[#allocation2 + $0x28] sm:$0x3] 0.0
        %1472 = vst [vmem:[#allocation2 + $0x30] sm:$0xff] 0.0
        %1473 = vst [vmem:[#allocation2 + $0x38] sm:$0xff] 0.0
        %1474 = vst [vmem:[#allocation2 + $0x40] sm:$0x3] 0.0
        %1475 = vst [vmem:[#allocation2 + $0x48] sm:$0xff] 0.0
        %1476 = vst [vmem:[#allocation2 + $0x50] sm:$0xff] 0.0
        %1477 = vst [vmem:[#allocation2 + $0x58] sm:$0x3] 0.0
        %1478 = vst [vmem:[#allocation2 + $0x60] sm:$0xff] 0.0
        %1479 = vst [vmem:[#allocation2 + $0x68] sm:$0xff] 0.0
        %1480 = vst [vmem:[#allocation2 + $0x70] sm:$0x3] 0.0
        %1481 = vst [vmem:[#allocation2 + $0x78] sm:$0xff] 0.0
        %1482 = vst [vmem:[#allocation2 + $0x80] sm:$0xff] 0.0
        %1483 = vst [vmem:[#allocation2 + $0x88] sm:$0x3] 0.0
        %1484 = vst [vmem:[#allocation2 + $0x90] sm:$0xff] 0.0
        %1485 = vst [vmem:[#allocation2 + $0x98] sm:$0xff] 0.0
        %1486 = vst [vmem:[#allocation2 + $0xa0] sm:$0x3] 0.0
        %1487 = vst [vmem:[#allocation2 + $0xa8] sm:$0xff] 0.0
        %1488 = vst [vmem:[#allocation2 + $0xb0] sm:$0xff] 0.0
        %1489 = vst [vmem:[#allocation2 + $0xb8] sm:$0x3] 0.0
        %1490 = vst [vmem:[#allocation2 + $0xc0] sm:$0xff] 0.0
        %1491 = vst [vmem:[#allocation2 + $0xc8] sm:$0xff] 0.0
        %1492 = vst [vmem:[#allocation2 + $0xd0] sm:$0x3] 0.0
        %1493 = vst [vmem:[#allocation2 + $0xd8] sm:$0xff] 0.0
        %1494 = vst [vmem:[#allocation2 + $0xe0] sm:$0xff] 0.0
        %1495 = vst [vmem:[#allocation2 + $0xe8] sm:$0x3] 0.0
        %1496 = vst [vmem:[#allocation2 + $0xf0] sm:$0xff] 0.0
        %1497 = vst [vmem:[#allocation2 + $0xf8] sm:$0xff] 0.0
        %1498 = vst [vmem:[#allocation2 + $0x100] sm:$0x3] 0.0
        %1499 = vst [vmem:[#allocation2 + $0x108] sm:$0xff] 0.0
        %1500 = vst [vmem:[#allocation2 + $0x110] sm:$0xff] 0.0
        %1501 = vst [vmem:[#allocation2 + $0x118] sm:$0x3] 0.0
        %1502 = vst [vmem:[#allocation2 + $0x120] sm:$0xff] 0.0
        %1503 = vst [vmem:[#allocation2 + $0x128] sm:$0xff] 0.0
        %1504 = vst [vmem:[#allocation2 + $0x130] sm:$0x3] 0.0
        %1505 = vst [vmem:[#allocation2 + $0x138] sm:$0xff] 0.0
        %1506 = vst [vmem:[#allocation2 + $0x140] sm:$0xff] 0.0
        %1507 = vst [vmem:[#allocation2 + $0x148] sm:$0x3] 0.0
        %1508 = vst [vmem:[#allocation2 + $0x150] sm:$0xff] 0.0
        %1509 = vst [vmem:[#allocation2 + $0x158] sm:$0xff] 0.0
        %1510 = vst [vmem:[#allocation2 + $0x160] sm:$0x3] 0.0
        %1511 = vst [vmem:[#allocation2 + $0x168] sm:$0xff] 0.0
        %1512 = vst [vmem:[#allocation2 + $0x170] sm:$0xff] 0.0
        %1513 = vst [vmem:[#allocation2 + $0x178] sm:$0x3] 0.0
        %1514 = vst [vmem:[#allocation2 + $0x180] sm:$0xff] 0.0
        %1515 = vst [vmem:[#allocation2 + $0x188] sm:$0xff] 0.0
        %1516 = vst [vmem:[#allocation2 + $0x190] sm:$0x3] 0.0
        %1517 = vst [vmem:[#allocation2 + $0x198] sm:$0xff] 0.0
        %1518 = vst [vmem:[#allocation2 + $0x1a0] sm:$0xff] 0.0
        %1519 = vst [vmem:[#allocation2 + $0x1a8] sm:$0x3] 0.0
        %s1520 = scalar_lea.vmem [#allocation2], 24
        %1521 = vst [vmem:[%s1520 + $0x1] sm:$0xff] %v1434
        %1522 = vst [vmem:[%s1520 + $0x9] sm:$0xff] %v1435
        %1523 = vst [vmem:[%s1520 + $0x19] sm:$0xff] %v1436
        %1524 = vst [vmem:[%s1520 + $0x21] sm:$0xff] %v1437
        %1525 = vst [vmem:[%s1520 + $0x31] sm:$0xff] %v1438
        %1526 = vst [vmem:[%s1520 + $0x39] sm:$0xff] %v1439
        %1527 = vst [vmem:[%s1520 + $0x49] sm:$0xff] %v1440
        %1528 = vst [vmem:[%s1520 + $0x51] sm:$0xff] %v1441
        %1529 = vst [vmem:[%s1520 + $0x61] sm:$0xff] %v1442
        %1530 = vst [vmem:[%s1520 + $0x69] sm:$0xff] %v1443
        %1531 = vst [vmem:[%s1520 + $0x79] sm:$0xff] %v1444
        %1532 = vst [vmem:[%s1520 + $0x81] sm:$0xff] %v1445
        %1533 = vst [vmem:[%s1520 + $0x91] sm:$0xff] %v1446
        %1534 = vst [vmem:[%s1520 + $0x99] sm:$0xff] %v1447
        %1535 = vst [vmem:[%s1520 + $0xa9] sm:$0xff] %v1448
        %1536 = vst [vmem:[%s1520 + $0xb1] sm:$0xff] %v1449
        %1537 = vst [vmem:[%s1520 + $0xc1] sm:$0xff] %v1450
        %1538 = vst [vmem:[%s1520 + $0xc9] sm:$0xff] %v1451
        %1539 = vst [vmem:[%s1520 + $0xd9] sm:$0xff] %v1452
        %1540 = vst [vmem:[%s1520 + $0xe1] sm:$0xff] %v1453
        %1541 = vst [vmem:[%s1520 + $0xf1] sm:$0xff] %v1454
        %1542 = vst [vmem:[%s1520 + $0xf9] sm:$0xff] %v1455
        %1543 = vst [vmem:[%s1520 + $0x109] sm:$0xff] %v1456
        %1544 = vst [vmem:[%s1520 + $0x111] sm:$0xff] %v1457
        %1545 = vst [vmem:[%s1520 + $0x121] sm:$0xff] %v1458
        %1546 = vst [vmem:[%s1520 + $0x129] sm:$0xff] %v1459
        %1547 = vst [vmem:[%s1520 + $0x139] sm:$0xff] %v1460
        %1548 = vst [vmem:[%s1520 + $0x141] sm:$0xff] %v1461
        %1549 = vst [vmem:[%s1520 + $0x151] sm:$0xff] %v1462
        %1550 = vst [vmem:[%s1520 + $0x159] sm:$0xff] %v1463
        %1551 = vst [vmem:[%s1520 + $0x169] sm:$0xff] %v1464
        %1552 = vst [vmem:[%s1520 + $0x171] sm:$0xff] %v1465
        %v1553 = vld [vmem:[#allocation2] sm:$0xff]
        %v1554 = vld [vmem:[#allocation2 + $0x8] sm:$0xff]
        %v1555 = vld [vmem:[#allocation2 + $0x18] sm:$0xff]
        %v1556 = vld [vmem:[#allocation2 + $0x20] sm:$0xff]
        %v1557 = vld [vmem:[#allocation2 + $0x30] sm:$0xff]
        %v1558 = vld [vmem:[#allocation2 + $0x38] sm:$0xff]
        %v1559 = vld [vmem:[#allocation2 + $0x48] sm:$0xff]
        %v1560 = vld [vmem:[#allocation2 + $0x50] sm:$0xff]
        %v1561 = vld [vmem:[#allocation2 + $0x60] sm:$0xff]
        %v1562 = vld [vmem:[#allocation2 + $0x68] sm:$0xff]
        %v1563 = vld [vmem:[#allocation2 + $0x78] sm:$0xff]
        %v1564 = vld [vmem:[#allocation2 + $0x80] sm:$0xff]
        %v1565 = vld [vmem:[#allocation2 + $0x90] sm:$0xff]
        %v1566 = vld [vmem:[#allocation2 + $0x98] sm:$0xff]
        %v1567 = vld [vmem:[#allocation2 + $0xa8] sm:$0xff]
        %v1568 = vld [vmem:[#allocation2 + $0xb0] sm:$0xff]
        %v1569 = vld [vmem:[#allocation2 + $0xc0] sm:$0xff]
        %v1570 = vld [vmem:[#allocation2 + $0xc8] sm:$0xff]
        %v1571 = vld [vmem:[#allocation2 + $0xd8] sm:$0xff]
        %v1572 = vld [vmem:[#allocation2 + $0xe0] sm:$0xff]
        %v1573 = vld [vmem:[#allocation2 + $0xf0] sm:$0xff]
        %v1574 = vld [vmem:[#allocation2 + $0xf8] sm:$0xff]
        %v1575 = vld [vmem:[#allocation2 + $0x108] sm:$0xff]
        %v1576 = vld [vmem:[#allocation2 + $0x110] sm:$0xff]
        %v1577 = vld [vmem:[#allocation2 + $0x120] sm:$0xff]
        %v1578 = vld [vmem:[#allocation2 + $0x128] sm:$0xff]
        %v1579 = vld [vmem:[#allocation2 + $0x138] sm:$0xff]
        %v1580 = vld [vmem:[#allocation2 + $0x140] sm:$0xff]
        %v1581 = vld [vmem:[#allocation2 + $0x150] sm:$0xff]
        %v1582 = vld [vmem:[#allocation2 + $0x158] sm:$0xff]
        %v1583 = vld [vmem:[#allocation2 + $0x168] sm:$0xff]
        %v1584 = vld [vmem:[#allocation2 + $0x170] sm:$0xff]
        %v1585 = vpack.c.bf16 %v1553, %v1553
        %v1586 = vpack.c.bf16 %v1554, %v1554
        %v1587 = vpack.c.bf16 %v1555, %v1555
        %v1588 = vpack.c.bf16 %v1556, %v1556
        %v1589 = vpack.c.bf16 %v1557, %v1557
        %v1590 = vpack.c.bf16 %v1558, %v1558
        %v1591 = vpack.c.bf16 %v1559, %v1559
        %v1592 = vpack.c.bf16 %v1560, %v1560
        %v1593 = vpack.c.bf16 %v1561, %v1561
        %v1594 = vpack.c.bf16 %v1562, %v1562
        %v1595 = vpack.c.bf16 %v1563, %v1563
        %v1596 = vpack.c.bf16 %v1564, %v1564
        %v1597 = vpack.c.bf16 %v1565, %v1565
        %v1598 = vpack.c.bf16 %v1566, %v1566
        %v1599 = vpack.c.bf16 %v1567, %v1567
        %v1600 = vpack.c.bf16 %v1568, %v1568
        %v1601 = vpack.c.bf16 %v1569, %v1569
        %v1602 = vpack.c.bf16 %v1570, %v1570
        %v1603 = vpack.c.bf16 %v1571, %v1571
        %v1604 = vpack.c.bf16 %v1572, %v1572
        %v1605 = vpack.c.bf16 %v1573, %v1573
        %v1606 = vpack.c.bf16 %v1574, %v1574
        %v1607 = vpack.c.bf16 %v1575, %v1575
        %v1608 = vpack.c.bf16 %v1576, %v1576
        %v1609 = vpack.c.bf16 %v1577, %v1577
        %v1610 = vpack.c.bf16 %v1578, %v1578
        %v1611 = vpack.c.bf16 %v1579, %v1579
        %v1612 = vpack.c.bf16 %v1580, %v1580
        %v1613 = vpack.c.bf16 %v1581, %v1581
        %v1614 = vpack.c.bf16 %v1582, %v1582
        %v1615 = vpack.c.bf16 %v1583, %v1583
        %v1616 = vpack.c.bf16 %v1584, %v1584
        %v1617 = vld [vmem:[%s5] sm:$0xf]
        %v1618 = vld [vmem:[%s5 + $0x4] sm:$0xf]
        %v1619 = vld [vmem:[%s5 + $0x8] sm:$0xf]
        %v1620 = vld [vmem:[%s5 + $0xc] sm:$0xf]
        %v1621 = vld [vmem:[%s5 + $0x10] sm:$0xf]
        %v1622 = vld [vmem:[%s5 + $0x14] sm:$0xf]
        %v1623 = vld [vmem:[%s5 + $0x18] sm:$0xf]
        %v1624 = vld [vmem:[%s5 + $0x1c] sm:$0xf]
        %v1625 = vld [vmem:[%s5 + $0x20] sm:$0xf]
        %v1626 = vld [vmem:[%s5 + $0x24] sm:$0xf]
        %v1627 = vld [vmem:[%s5 + $0x28] sm:$0xf]
        %v1628 = vld [vmem:[%s5 + $0x2c] sm:$0xf]
        %v1629 = vld [vmem:[%s5 + $0x30] sm:$0xf]
        %v1630 = vld [vmem:[%s5 + $0x34] sm:$0xf]
        %v1631 = vld [vmem:[%s5 + $0x38] sm:$0xf]
        %v1632 = vld [vmem:[%s5 + $0x3c] sm:$0xf]
        %v1633 = vld [vmem:[#allocation2 + $0x1] sm:$0xff]
        %v1634 = vld [vmem:[#allocation2 + $0x9] sm:$0xff]
        %v1635 = vld [vmem:[#allocation2 + $0x19] sm:$0xff]
        %v1636 = vld [vmem:[#allocation2 + $0x21] sm:$0xff]
        %v1637 = vld [vmem:[#allocation2 + $0x31] sm:$0xff]
        %v1638 = vld [vmem:[#allocation2 + $0x39] sm:$0xff]
        %v1639 = vld [vmem:[#allocation2 + $0x49] sm:$0xff]
        %v1640 = vld [vmem:[#allocation2 + $0x51] sm:$0xff]
        %v1641 = vld [vmem:[#allocation2 + $0x61] sm:$0xff]
        %v1642 = vld [vmem:[#allocation2 + $0x69] sm:$0xff]
        %v1643 = vld [vmem:[#allocation2 + $0x79] sm:$0xff]
        %v1644 = vld [vmem:[#allocation2 + $0x81] sm:$0xff]
        %v1645 = vld [vmem:[#allocation2 + $0x91] sm:$0xff]
        %v1646 = vld [vmem:[#allocation2 + $0x99] sm:$0xff]
        %v1647 = vld [vmem:[#allocation2 + $0xa9] sm:$0xff]
        %v1648 = vld [vmem:[#allocation2 + $0xb1] sm:$0xff]
        %v1649 = vld [vmem:[#allocation2 + $0xc1] sm:$0xff]
        %v1650 = vld [vmem:[#allocation2 + $0xc9] sm:$0xff]
        %v1651 = vld [vmem:[#allocation2 + $0xd9] sm:$0xff]
        %v1652 = vld [vmem:[#allocation2 + $0xe1] sm:$0xff]
        %v1653 = vld [vmem:[#allocation2 + $0xf1] sm:$0xff]
        %v1654 = vld [vmem:[#allocation2 + $0xf9] sm:$0xff]
        %v1655 = vld [vmem:[#allocation2 + $0x109] sm:$0xff]
        %v1656 = vld [vmem:[#allocation2 + $0x111] sm:$0xff]
        %v1657 = vld [vmem:[#allocation2 + $0x121] sm:$0xff]
        %v1658 = vld [vmem:[#allocation2 + $0x129] sm:$0xff]
        %v1659 = vld [vmem:[#allocation2 + $0x139] sm:$0xff]
        %v1660 = vld [vmem:[#allocation2 + $0x141] sm:$0xff]
        %v1661 = vld [vmem:[#allocation2 + $0x151] sm:$0xff]
        %v1662 = vld [vmem:[#allocation2 + $0x159] sm:$0xff]
        %v1663 = vld [vmem:[#allocation2 + $0x169] sm:$0xff]
        %v1664 = vld [vmem:[#allocation2 + $0x171] sm:$0xff]
        %v1665 = vpack.c.bf16 %v1633, %v1633
        %v1666 = vpack.c.bf16 %v1634, %v1634
        %v1667 = vpack.c.bf16 %v1635, %v1635
        %v1668 = vpack.c.bf16 %v1636, %v1636
        %v1669 = vpack.c.bf16 %v1637, %v1637
        %v1670 = vpack.c.bf16 %v1638, %v1638
        %v1671 = vpack.c.bf16 %v1639, %v1639
        %v1672 = vpack.c.bf16 %v1640, %v1640
        %v1673 = vpack.c.bf16 %v1641, %v1641
        %v1674 = vpack.c.bf16 %v1642, %v1642
        %v1675 = vpack.c.bf16 %v1643, %v1643
        %v1676 = vpack.c.bf16 %v1644, %v1644
        %v1677 = vpack.c.bf16 %v1645, %v1645
        %v1678 = vpack.c.bf16 %v1646, %v1646
        %v1679 = vpack.c.bf16 %v1647, %v1647
        %v1680 = vpack.c.bf16 %v1648, %v1648
        %v1681 = vpack.c.bf16 %v1649, %v1649
        %v1682 = vpack.c.bf16 %v1650, %v1650
        %v1683 = vpack.c.bf16 %v1651, %v1651
        %v1684 = vpack.c.bf16 %v1652, %v1652
        %v1685 = vpack.c.bf16 %v1653, %v1653
        %v1686 = vpack.c.bf16 %v1654, %v1654
        %v1687 = vpack.c.bf16 %v1655, %v1655
        %v1688 = vpack.c.bf16 %v1656, %v1656
        %v1689 = vpack.c.bf16 %v1657, %v1657
        %v1690 = vpack.c.bf16 %v1658, %v1658
        %v1691 = vpack.c.bf16 %v1659, %v1659
        %v1692 = vpack.c.bf16 %v1660, %v1660
        %v1693 = vpack.c.bf16 %v1661, %v1661
        %v1694 = vpack.c.bf16 %v1662, %v1662
        %v1695 = vpack.c.bf16 %v1663, %v1663
        %v1696 = vpack.c.bf16 %v1664, %v1664
        %s1697 = scalar_lea.vmem %s5, 64
        %v1698 = vld [vmem:[%s1697] sm:$0xf]
        %v1699 = vld [vmem:[%s1697 + $0x4] sm:$0xf]
        %v1700 = vld [vmem:[%s1697 + $0x8] sm:$0xf]
        %v1701 = vld [vmem:[%s1697 + $0xc] sm:$0xf]
        %v1702 = vld [vmem:[%s1697 + $0x10] sm:$0xf]
        %v1703 = vld [vmem:[%s1697 + $0x14] sm:$0xf]
        %v1704 = vld [vmem:[%s1697 + $0x18] sm:$0xf]
        %v1705 = vld [vmem:[%s1697 + $0x1c] sm:$0xf]
        %v1706 = vld [vmem:[%s1697 + $0x20] sm:$0xf]
        %v1707 = vld [vmem:[%s1697 + $0x24] sm:$0xf]
        %v1708 = vld [vmem:[%s1697 + $0x28] sm:$0xf]
        %v1709 = vld [vmem:[%s1697 + $0x2c] sm:$0xf]
        %v1710 = vld [vmem:[%s1697 + $0x30] sm:$0xf]
        %v1711 = vld [vmem:[%s1697 + $0x34] sm:$0xf]
        %v1712 = vld [vmem:[%s1697 + $0x38] sm:$0xf]
        %v1713 = vld [vmem:[%s1697 + $0x3c] sm:$0xf]
        %v1746 = vunpack.c.l.b16 %v1665
        %v1747 = vunpack.c.l.b16 %v1666
        %v1748 = vunpack.c.l.b16 %v1667
        %v1749 = vunpack.c.l.b16 %v1668
        %v1750 = vunpack.c.l.b16 %v1669
        %v1751 = vunpack.c.l.b16 %v1670
        %v1752 = vunpack.c.l.b16 %v1671
        %v1753 = vunpack.c.l.b16 %v1672
        %v1754 = vunpack.c.l.b16 %v1673
        %v1755 = vunpack.c.l.b16 %v1674
        %v1756 = vunpack.c.l.b16 %v1675
        %v1757 = vunpack.c.l.b16 %v1676
        %v1758 = vunpack.c.l.b16 %v1677
        %v1759 = vunpack.c.l.b16 %v1678
        %v1760 = vunpack.c.l.b16 %v1679
        %v1761 = vunpack.c.l.b16 %v1680
        %v1762 = vunpack.c.l.b16 %v1681
        %v1763 = vunpack.c.l.b16 %v1682
        %v1764 = vunpack.c.l.b16 %v1683
        %v1765 = vunpack.c.l.b16 %v1684
        %v1766 = vunpack.c.l.b16 %v1685
        %v1767 = vunpack.c.l.b16 %v1686
        %v1768 = vunpack.c.l.b16 %v1687
        %v1769 = vunpack.c.l.b16 %v1688
        %v1770 = vunpack.c.l.b16 %v1689
        %v1771 = vunpack.c.l.b16 %v1690
        %v1772 = vunpack.c.l.b16 %v1691
        %v1773 = vunpack.c.l.b16 %v1692
        %v1774 = vunpack.c.l.b16 %v1693
        %v1775 = vunpack.c.l.b16 %v1694
        %v1776 = vunpack.c.l.b16 %v1695
        %v1777 = vunpack.c.l.b16 %v1696
        %v1778 = vpack.c.b16 %v1747, %v1746
        %v1779 = vpack.c.b16 %v1749, %v1748
        %v1780 = vpack.c.b16 %v1751, %v1750
        %v1781 = vpack.c.b16 %v1753, %v1752
        %v1782 = vpack.c.b16 %v1755, %v1754
        %v1783 = vpack.c.b16 %v1757, %v1756
        %v1784 = vpack.c.b16 %v1759, %v1758
        %v1785 = vpack.c.b16 %v1761, %v1760
        %v1786 = vpack.c.b16 %v1763, %v1762
        %v1787 = vpack.c.b16 %v1765, %v1764
        %v1788 = vpack.c.b16 %v1767, %v1766
        %v1789 = vpack.c.b16 %v1769, %v1768
        %v1790 = vpack.c.b16 %v1771, %v1770
        %v1791 = vpack.c.b16 %v1773, %v1772
        %v1792 = vpack.c.b16 %v1775, %v1774
        %v1793 = vpack.c.b16 %v1777, %v1776
        %v1826 = vunpack.c.l.b16 %v1698
        %v1827 = vunpack.c.l.b16 %v1699
        %v1828 = vunpack.c.l.b16 %v1700
        %v1829 = vunpack.c.l.b16 %v1701
        %v1830 = vunpack.c.l.b16 %v1702
        %v1831 = vunpack.c.l.b16 %v1703
        %v1832 = vunpack.c.l.b16 %v1704
        %v1833 = vunpack.c.l.b16 %v1705
        %v1834 = vunpack.c.l.b16 %v1706
        %v1835 = vunpack.c.l.b16 %v1707
        %v1836 = vunpack.c.l.b16 %v1708
        %v1837 = vunpack.c.l.b16 %v1709
        %v1838 = vunpack.c.l.b16 %v1710
        %v1839 = vunpack.c.l.b16 %v1711
        %v1840 = vunpack.c.l.b16 %v1712
        %v1841 = vunpack.c.l.b16 %v1713
        %v1842 = vpack.c.b16 %v1827, %v1826
        %v1843 = vpack.c.b16 %v1829, %v1828
        %v1844 = vpack.c.b16 %v1831, %v1830
        %v1845 = vpack.c.b16 %v1833, %v1832
        %v1846 = vpack.c.b16 %v1835, %v1834
        %v1847 = vpack.c.b16 %v1837, %v1836
        %v1848 = vpack.c.b16 %v1839, %v1838
        %v1849 = vpack.c.b16 %v1841, %v1840
        %1858 = vmatpush.bf16.msra.mxu0 %v1849
        %1859 = vmatpush.bf16.msra.mxu0 %v1848
        %1860 = vmatpush.bf16.msra.mxu0 %v1847
        %1861 = vmatpush.bf16.msra.mxu0 %v1846
        %1862 = vmatpush.bf16.msra.mxu0 %v1845
        %1863 = vmatpush.bf16.msra.mxu0 %v1844
        %1864 = vmatpush.bf16.msra.mxu0 %v1843
        %1865 = vmatpush.bf16.msra.mxu0 %v1842
        %1866 = vmatmul.bf16.gmra.mxu0 %v1778
        %v1867 = vpop.f32.mrf.mxu0
        %v1868 = vadd.f32 0.0, %v1867
        %v1869 = vpop.f32.mrf.mxu0
        %v1870 = vadd.f32 0.0, %v1869
        %1871 = vmatmul.bf16.gmra.mxu0 %v1779
        %v1872 = vpop.f32.mrf.mxu0
        %v1873 = vadd.f32 0.0, %v1872
        %v1874 = vpop.f32.mrf.mxu0
        %v1875 = vadd.f32 0.0, %v1874
        %1876 = vmatmul.bf16.gmra.mxu0 %v1780
        %v1877 = vpop.f32.mrf.mxu0
        %v1878 = vadd.f32 0.0, %v1877
        %v1879 = vpop.f32.mrf.mxu0
        %v1880 = vadd.f32 0.0, %v1879
        %1881 = vmatmul.bf16.gmra.mxu0 %v1781
        %v1882 = vpop.f32.mrf.mxu0
        %v1883 = vadd.f32 0.0, %v1882
        %v1884 = vpop.f32.mrf.mxu0
        %v1885 = vadd.f32 0.0, %v1884
        %1886 = vmatmul.bf16.gmra.mxu0 %v1782
        %v1887 = vpop.f32.mrf.mxu0
        %v1888 = vadd.f32 0.0, %v1887
        %v1889 = vpop.f32.mrf.mxu0
        %v1890 = vadd.f32 0.0, %v1889
        %1891 = vmatmul.bf16.gmra.mxu0 %v1783
        %v1892 = vpop.f32.mrf.mxu0
        %v1893 = vadd.f32 0.0, %v1892
        %v1894 = vpop.f32.mrf.mxu0
        %v1895 = vadd.f32 0.0, %v1894
        %1896 = vmatmul.bf16.gmra.mxu0 %v1784
        %v1897 = vpop.f32.mrf.mxu0
        %v1898 = vadd.f32 0.0, %v1897
        %v1899 = vpop.f32.mrf.mxu0
        %v1900 = vadd.f32 0.0, %v1899
        %1901 = vmatmul.bf16.gmra.mxu0 %v1785
        %v1902 = vpop.f32.mrf.mxu0
        %v1903 = vadd.f32 0.0, %v1902
        %v1904 = vpop.f32.mrf.mxu0
        %v1905 = vadd.f32 0.0, %v1904
        %1906 = vmatmul.bf16.gmra.mxu0 %v1786
        %v1907 = vpop.f32.mrf.mxu0
        %v1908 = vadd.f32 0.0, %v1907
        %v1909 = vpop.f32.mrf.mxu0
        %v1910 = vadd.f32 0.0, %v1909
        %1911 = vmatmul.bf16.gmra.mxu0 %v1787
        %v1912 = vpop.f32.mrf.mxu0
        %v1913 = vadd.f32 0.0, %v1912
        %v1914 = vpop.f32.mrf.mxu0
        %v1915 = vadd.f32 0.0, %v1914
        %1916 = vmatmul.bf16.gmra.mxu0 %v1788
        %v1917 = vpop.f32.mrf.mxu0
        %v1918 = vadd.f32 0.0, %v1917
        %v1919 = vpop.f32.mrf.mxu0
        %v1920 = vadd.f32 0.0, %v1919
        %1921 = vmatmul.bf16.gmra.mxu0 %v1789
        %v1922 = vpop.f32.mrf.mxu0
        %v1923 = vadd.f32 0.0, %v1922
        %v1924 = vpop.f32.mrf.mxu0
        %v1925 = vadd.f32 0.0, %v1924
        %1926 = vmatmul.bf16.gmra.mxu0 %v1790
        %v1927 = vpop.f32.mrf.mxu0
        %v1928 = vadd.f32 0.0, %v1927
        %v1929 = vpop.f32.mrf.mxu0
        %v1930 = vadd.f32 0.0, %v1929
        %1931 = vmatmul.bf16.gmra.mxu0 %v1791
        %v1932 = vpop.f32.mrf.mxu0
        %v1933 = vadd.f32 0.0, %v1932
        %v1934 = vpop.f32.mrf.mxu0
        %v1935 = vadd.f32 0.0, %v1934
        %1936 = vmatmul.bf16.gmra.mxu0 %v1792
        %v1937 = vpop.f32.mrf.mxu0
        %v1938 = vadd.f32 0.0, %v1937
        %v1939 = vpop.f32.mrf.mxu0
        %v1940 = vadd.f32 0.0, %v1939
        %1941 = vmatmul.bf16.gmra.mxu0 %v1793
        %v1942 = vpop.f32.mrf.mxu0
        %v1943 = vadd.f32 0.0, %v1942
        %v1944 = vpop.f32.mrf.mxu0
        %v1945 = vadd.f32 0.0, %v1944
        %1946 = vdwg.mxu0
        %v1979 = vunpack.c.l.b16 %v1585
        %v1980 = vunpack.c.l.b16 %v1586
        %v1981 = vunpack.c.l.b16 %v1587
        %v1982 = vunpack.c.l.b16 %v1588
        %v1983 = vunpack.c.l.b16 %v1589
        %v1984 = vunpack.c.l.b16 %v1590
        %v1985 = vunpack.c.l.b16 %v1591
        %v1986 = vunpack.c.l.b16 %v1592
        %v1987 = vunpack.c.l.b16 %v1593
        %v1988 = vunpack.c.l.b16 %v1594
        %v1989 = vunpack.c.l.b16 %v1595
        %v1990 = vunpack.c.l.b16 %v1596
        %v1991 = vunpack.c.l.b16 %v1597
        %v1992 = vunpack.c.l.b16 %v1598
        %v1993 = vunpack.c.l.b16 %v1599
        %v1994 = vunpack.c.l.b16 %v1600
        %v1995 = vunpack.c.l.b16 %v1601
        %v1996 = vunpack.c.l.b16 %v1602
        %v1997 = vunpack.c.l.b16 %v1603
        %v1998 = vunpack.c.l.b16 %v1604
        %v1999 = vunpack.c.l.b16 %v1605
        %v2000 = vunpack.c.l.b16 %v1606
        %v2001 = vunpack.c.l.b16 %v1607
        %v2002 = vunpack.c.l.b16 %v1608
        %v2003 = vunpack.c.l.b16 %v1609
        %v2004 = vunpack.c.l.b16 %v1610
        %v2005 = vunpack.c.l.b16 %v1611
        %v2006 = vunpack.c.l.b16 %v1612
        %v2007 = vunpack.c.l.b16 %v1613
        %v2008 = vunpack.c.l.b16 %v1614
        %v2009 = vunpack.c.l.b16 %v1615
        %v2010 = vunpack.c.l.b16 %v1616
        %v2011 = vpack.c.b16 %v1980, %v1979
        %v2012 = vpack.c.b16 %v1982, %v1981
        %v2013 = vpack.c.b16 %v1984, %v1983
        %v2014 = vpack.c.b16 %v1986, %v1985
        %v2015 = vpack.c.b16 %v1988, %v1987
        %v2016 = vpack.c.b16 %v1990, %v1989
        %v2017 = vpack.c.b16 %v1992, %v1991
        %v2018 = vpack.c.b16 %v1994, %v1993
        %v2019 = vpack.c.b16 %v1996, %v1995
        %v2020 = vpack.c.b16 %v1998, %v1997
        %v2021 = vpack.c.b16 %v2000, %v1999
        %v2022 = vpack.c.b16 %v2002, %v2001
        %v2023 = vpack.c.b16 %v2004, %v2003
        %v2024 = vpack.c.b16 %v2006, %v2005
        %v2025 = vpack.c.b16 %v2008, %v2007
        %v2026 = vpack.c.b16 %v2010, %v2009
        %v2059 = vunpack.c.l.b16 %v1617
        %v2060 = vunpack.c.l.b16 %v1618
        %v2061 = vunpack.c.l.b16 %v1619
        %v2062 = vunpack.c.l.b16 %v1620
        %v2063 = vunpack.c.l.b16 %v1621
        %v2064 = vunpack.c.l.b16 %v1622
        %v2065 = vunpack.c.l.b16 %v1623
        %v2066 = vunpack.c.l.b16 %v1624
        %v2067 = vunpack.c.l.b16 %v1625
        %v2068 = vunpack.c.l.b16 %v1626
        %v2069 = vunpack.c.l.b16 %v1627
        %v2070 = vunpack.c.l.b16 %v1628
        %v2071 = vunpack.c.l.b16 %v1629
        %v2072 = vunpack.c.l.b16 %v1630
        %v2073 = vunpack.c.l.b16 %v1631
        %v2074 = vunpack.c.l.b16 %v1632
        %v2075 = vpack.c.b16 %v2060, %v2059
        %v2076 = vpack.c.b16 %v2062, %v2061
        %v2077 = vpack.c.b16 %v2064, %v2063
        %v2078 = vpack.c.b16 %v2066, %v2065
        %v2079 = vpack.c.b16 %v2068, %v2067
        %v2080 = vpack.c.b16 %v2070, %v2069
        %v2081 = vpack.c.b16 %v2072, %v2071
        %v2082 = vpack.c.b16 %v2074, %v2073
        %2091 = vmatpush.bf16.msra.mxu0 %v2082
        %2092 = vmatpush.bf16.msra.mxu0 %v2081
        %2093 = vmatpush.bf16.msra.mxu0 %v2080
        %2094 = vmatpush.bf16.msra.mxu0 %v2079
        %2095 = vmatpush.bf16.msra.mxu0 %v2078
        %2096 = vmatpush.bf16.msra.mxu0 %v2077
        %2097 = vmatpush.bf16.msra.mxu0 %v2076
        %2098 = vmatpush.bf16.msra.mxu0 %v2075
        %2099 = vmatmul.bf16.gmra.mxu0 %v2011
        %v2100 = vpop.f32.mrf.mxu0
        %v2101 = vadd.f32 %v1868, %v2100
        %v2102 = vpop.f32.mrf.mxu0
        %v2103 = vadd.f32 %v1870, %v2102
        %2104 = vmatmul.bf16.gmra.mxu0 %v2012
        %v2105 = vpop.f32.mrf.mxu0
        %v2106 = vadd.f32 %v1873, %v2105
        %v2107 = vpop.f32.mrf.mxu0
        %v2108 = vadd.f32 %v1875, %v2107
        %2109 = vmatmul.bf16.gmra.mxu0 %v2013
        %v2110 = vpop.f32.mrf.mxu0
        %v2111 = vadd.f32 %v1878, %v2110
        %v2112 = vpop.f32.mrf.mxu0
        %v2113 = vadd.f32 %v1880, %v2112
        %2114 = vmatmul.bf16.gmra.mxu0 %v2014
        %v2115 = vpop.f32.mrf.mxu0
        %v2116 = vadd.f32 %v1883, %v2115
        %v2117 = vpop.f32.mrf.mxu0
        %v2118 = vadd.f32 %v1885, %v2117
        %2119 = vmatmul.bf16.gmra.mxu0 %v2015
        %v2120 = vpop.f32.mrf.mxu0
        %v2121 = vadd.f32 %v1888, %v2120
        %v2122 = vpop.f32.mrf.mxu0
        %v2123 = vadd.f32 %v1890, %v2122
        %2124 = vmatmul.bf16.gmra.mxu0 %v2016
        %v2125 = vpop.f32.mrf.mxu0
        %v2126 = vadd.f32 %v1893, %v2125
        %v2127 = vpop.f32.mrf.mxu0
        %v2128 = vadd.f32 %v1895, %v2127
        %2129 = vmatmul.bf16.gmra.mxu0 %v2017
        %v2130 = vpop.f32.mrf.mxu0
        %v2131 = vadd.f32 %v1898, %v2130
        %v2132 = vpop.f32.mrf.mxu0
        %v2133 = vadd.f32 %v1900, %v2132
        %2134 = vmatmul.bf16.gmra.mxu0 %v2018
        %v2135 = vpop.f32.mrf.mxu0
        %v2136 = vadd.f32 %v1903, %v2135
        %v2137 = vpop.f32.mrf.mxu0
        %v2138 = vadd.f32 %v1905, %v2137
        %2139 = vmatmul.bf16.gmra.mxu0 %v2019
        %v2140 = vpop.f32.mrf.mxu0
        %v2141 = vadd.f32 %v1908, %v2140
        %v2142 = vpop.f32.mrf.mxu0
        %v2143 = vadd.f32 %v1910, %v2142
        %2144 = vmatmul.bf16.gmra.mxu0 %v2020
        %v2145 = vpop.f32.mrf.mxu0
        %v2146 = vadd.f32 %v1913, %v2145
        %v2147 = vpop.f32.mrf.mxu0
        %v2148 = vadd.f32 %v1915, %v2147
        %2149 = vmatmul.bf16.gmra.mxu0 %v2021
        %v2150 = vpop.f32.mrf.mxu0
        %v2151 = vadd.f32 %v1918, %v2150
        %v2152 = vpop.f32.mrf.mxu0
        %v2153 = vadd.f32 %v1920, %v2152
        %2154 = vmatmul.bf16.gmra.mxu0 %v2022
        %v2155 = vpop.f32.mrf.mxu0
        %v2156 = vadd.f32 %v1923, %v2155
        %v2157 = vpop.f32.mrf.mxu0
        %v2158 = vadd.f32 %v1925, %v2157
        %2159 = vmatmul.bf16.gmra.mxu0 %v2023
        %v2160 = vpop.f32.mrf.mxu0
        %v2161 = vadd.f32 %v1928, %v2160
        %v2162 = vpop.f32.mrf.mxu0
        %v2163 = vadd.f32 %v1930, %v2162
        %2164 = vmatmul.bf16.gmra.mxu0 %v2024
        %v2165 = vpop.f32.mrf.mxu0
        %v2166 = vadd.f32 %v1933, %v2165
        %v2167 = vpop.f32.mrf.mxu0
        %v2168 = vadd.f32 %v1935, %v2167
        %2169 = vmatmul.bf16.gmra.mxu0 %v2025
        %v2170 = vpop.f32.mrf.mxu0
        %v2171 = vadd.f32 %v1938, %v2170
        %v2172 = vpop.f32.mrf.mxu0
        %v2173 = vadd.f32 %v1940, %v2172
        %2174 = vmatmul.bf16.gmra.mxu0 %v2026
        %v2175 = vpop.f32.mrf.mxu0
        %v2176 = vadd.f32 %v1943, %v2175
        %v2177 = vpop.f32.mrf.mxu0
        %v2178 = vadd.f32 %v1945, %v2177
        %2179 = vdwg.mxu0
        %v2180 = vld [vmem:[#allocation2 + $0x2] sm:$0xff]
        %v2181 = vld [vmem:[#allocation2 + $0xa] sm:$0xff]
        %v2182 = vld [vmem:[#allocation2 + $0x1a] sm:$0xff]
        %v2183 = vld [vmem:[#allocation2 + $0x22] sm:$0xff]
        %v2184 = vld [vmem:[#allocation2 + $0x32] sm:$0xff]
        %v2185 = vld [vmem:[#allocation2 + $0x3a] sm:$0xff]
        %v2186 = vld [vmem:[#allocation2 + $0x4a] sm:$0xff]
        %v2187 = vld [vmem:[#allocation2 + $0x52] sm:$0xff]
        %v2188 = vld [vmem:[#allocation2 + $0x62] sm:$0xff]
        %v2189 = vld [vmem:[#allocation2 + $0x6a] sm:$0xff]
        %v2190 = vld [vmem:[#allocation2 + $0x7a] sm:$0xff]
        %v2191 = vld [vmem:[#allocation2 + $0x82] sm:$0xff]
        %v2192 = vld [vmem:[#allocation2 + $0x92] sm:$0xff]
        %v2193 = vld [vmem:[#allocation2 + $0x9a] sm:$0xff]
        %v2194 = vld [vmem:[#allocation2 + $0xaa] sm:$0xff]
        %v2195 = vld [vmem:[#allocation2 + $0xb2] sm:$0xff]
        %v2196 = vld [vmem:[#allocation2 + $0xc2] sm:$0xff]
        %v2197 = vld [vmem:[#allocation2 + $0xca] sm:$0xff]
        %v2198 = vld [vmem:[#allocation2 + $0xda] sm:$0xff]
        %v2199 = vld [vmem:[#allocation2 + $0xe2] sm:$0xff]
        %v2200 = vld [vmem:[#allocation2 + $0xf2] sm:$0xff]
        %v2201 = vld [vmem:[#allocation2 + $0xfa] sm:$0xff]
        %v2202 = vld [vmem:[#allocation2 + $0x10a] sm:$0xff]
        %v2203 = vld [vmem:[#allocation2 + $0x112] sm:$0xff]
        %v2204 = vld [vmem:[#allocation2 + $0x122] sm:$0xff]
        %v2205 = vld [vmem:[#allocation2 + $0x12a] sm:$0xff]
        %v2206 = vld [vmem:[#allocation2 + $0x13a] sm:$0xff]
        %v2207 = vld [vmem:[#allocation2 + $0x142] sm:$0xff]
        %v2208 = vld [vmem:[#allocation2 + $0x152] sm:$0xff]
        %v2209 = vld [vmem:[#allocation2 + $0x15a] sm:$0xff]
        %v2210 = vld [vmem:[#allocation2 + $0x16a] sm:$0xff]
        %v2211 = vld [vmem:[#allocation2 + $0x172] sm:$0xff]
        %v2212 = vpack.c.bf16 %v2180, %v2180
        %v2213 = vpack.c.bf16 %v2181, %v2181
        %v2214 = vpack.c.bf16 %v2182, %v2182
        %v2215 = vpack.c.bf16 %v2183, %v2183
        %v2216 = vpack.c.bf16 %v2184, %v2184
        %v2217 = vpack.c.bf16 %v2185, %v2185
        %v2218 = vpack.c.bf16 %v2186, %v2186
        %v2219 = vpack.c.bf16 %v2187, %v2187
        %v2220 = vpack.c.bf16 %v2188, %v2188
        %v2221 = vpack.c.bf16 %v2189, %v2189
        %v2222 = vpack.c.bf16 %v2190, %v2190
        %v2223 = vpack.c.bf16 %v2191, %v2191
        %v2224 = vpack.c.bf16 %v2192, %v2192
        %v2225 = vpack.c.bf16 %v2193, %v2193
        %v2226 = vpack.c.bf16 %v2194, %v2194
        %v2227 = vpack.c.bf16 %v2195, %v2195
        %v2228 = vpack.c.bf16 %v2196, %v2196
        %v2229 = vpack.c.bf16 %v2197, %v2197
        %v2230 = vpack.c.bf16 %v2198, %v2198
        %v2231 = vpack.c.bf16 %v2199, %v2199
        %v2232 = vpack.c.bf16 %v2200, %v2200
        %v2233 = vpack.c.bf16 %v2201, %v2201
        %v2234 = vpack.c.bf16 %v2202, %v2202
        %v2235 = vpack.c.bf16 %v2203, %v2203
        %v2236 = vpack.c.bf16 %v2204, %v2204
        %v2237 = vpack.c.bf16 %v2205, %v2205
        %v2238 = vpack.c.bf16 %v2206, %v2206
        %v2239 = vpack.c.bf16 %v2207, %v2207
        %v2240 = vpack.c.bf16 %v2208, %v2208
        %v2241 = vpack.c.bf16 %v2209, %v2209
        %v2242 = vpack.c.bf16 %v2210, %v2210
        %v2243 = vpack.c.bf16 %v2211, %v2211
        %s2244 = scalar_lea.vmem %s5, 128
        %v2245 = vld [vmem:[%s2244] sm:$0xf]
        %v2246 = vld [vmem:[%s2244 + $0x4] sm:$0xf]
        %v2247 = vld [vmem:[%s2244 + $0x8] sm:$0xf]
        %v2248 = vld [vmem:[%s2244 + $0xc] sm:$0xf]
        %v2249 = vld [vmem:[%s2244 + $0x10] sm:$0xf]
        %v2250 = vld [vmem:[%s2244 + $0x14] sm:$0xf]
        %v2251 = vld [vmem:[%s2244 + $0x18] sm:$0xf]
        %v2252 = vld [vmem:[%s2244 + $0x1c] sm:$0xf]
        %v2253 = vld [vmem:[%s2244 + $0x20] sm:$0xf]
        %v2254 = vld [vmem:[%s2244 + $0x24] sm:$0xf]
        %v2255 = vld [vmem:[%s2244 + $0x28] sm:$0xf]
        %v2256 = vld [vmem:[%s2244 + $0x2c] sm:$0xf]
        %v2257 = vld [vmem:[%s2244 + $0x30] sm:$0xf]
        %v2258 = vld [vmem:[%s2244 + $0x34] sm:$0xf]
        %v2259 = vld [vmem:[%s2244 + $0x38] sm:$0xf]
        %v2260 = vld [vmem:[%s2244 + $0x3c] sm:$0xf]
        %v2293 = vunpack.c.l.b16 %v2212
        %v2294 = vunpack.c.l.b16 %v2213
        %v2295 = vunpack.c.l.b16 %v2214
        %v2296 = vunpack.c.l.b16 %v2215
        %v2297 = vunpack.c.l.b16 %v2216
        %v2298 = vunpack.c.l.b16 %v2217
        %v2299 = vunpack.c.l.b16 %v2218
        %v2300 = vunpack.c.l.b16 %v2219
        %v2301 = vunpack.c.l.b16 %v2220
        %v2302 = vunpack.c.l.b16 %v2221
        %v2303 = vunpack.c.l.b16 %v2222
        %v2304 = vunpack.c.l.b16 %v2223
        %v2305 = vunpack.c.l.b16 %v2224
        %v2306 = vunpack.c.l.b16 %v2225
        %v2307 = vunpack.c.l.b16 %v2226
        %v2308 = vunpack.c.l.b16 %v2227
        %v2309 = vunpack.c.l.b16 %v2228
        %v2310 = vunpack.c.l.b16 %v2229
        %v2311 = vunpack.c.l.b16 %v2230
        %v2312 = vunpack.c.l.b16 %v2231
        %v2313 = vunpack.c.l.b16 %v2232
        %v2314 = vunpack.c.l.b16 %v2233
        %v2315 = vunpack.c.l.b16 %v2234
        %v2316 = vunpack.c.l.b16 %v2235
        %v2317 = vunpack.c.l.b16 %v2236
        %v2318 = vunpack.c.l.b16 %v2237
        %v2319 = vunpack.c.l.b16 %v2238
        %v2320 = vunpack.c.l.b16 %v2239
        %v2321 = vunpack.c.l.b16 %v2240
        %v2322 = vunpack.c.l.b16 %v2241
        %v2323 = vunpack.c.l.b16 %v2242
        %v2324 = vunpack.c.l.b16 %v2243
        %v2325 = vpack.c.b16 %v2294, %v2293
        %v2326 = vpack.c.b16 %v2296, %v2295
        %v2327 = vpack.c.b16 %v2298, %v2297
        %v2328 = vpack.c.b16 %v2300, %v2299
        %v2329 = vpack.c.b16 %v2302, %v2301
        %v2330 = vpack.c.b16 %v2304, %v2303
        %v2331 = vpack.c.b16 %v2306, %v2305
        %v2332 = vpack.c.b16 %v2308, %v2307
        %v2333 = vpack.c.b16 %v2310, %v2309
        %v2334 = vpack.c.b16 %v2312, %v2311
        %v2335 = vpack.c.b16 %v2314, %v2313
        %v2336 = vpack.c.b16 %v2316, %v2315
        %v2337 = vpack.c.b16 %v2318, %v2317
        %v2338 = vpack.c.b16 %v2320, %v2319
        %v2339 = vpack.c.b16 %v2322, %v2321
        %v2340 = vpack.c.b16 %v2324, %v2323
        %v2373 = vunpack.c.l.b16 %v2245
        %v2374 = vunpack.c.l.b16 %v2246
        %v2375 = vunpack.c.l.b16 %v2247
        %v2376 = vunpack.c.l.b16 %v2248
        %v2377 = vunpack.c.l.b16 %v2249
        %v2378 = vunpack.c.l.b16 %v2250
        %v2379 = vunpack.c.l.b16 %v2251
        %v2380 = vunpack.c.l.b16 %v2252
        %v2381 = vunpack.c.l.b16 %v2253
        %v2382 = vunpack.c.l.b16 %v2254
        %v2383 = vunpack.c.l.b16 %v2255
        %v2384 = vunpack.c.l.b16 %v2256
        %v2385 = vunpack.c.l.b16 %v2257
        %v2386 = vunpack.c.l.b16 %v2258
        %v2387 = vunpack.c.l.b16 %v2259
        %v2388 = vunpack.c.l.b16 %v2260
        %v2389 = vpack.c.b16 %v2374, %v2373
        %v2390 = vpack.c.b16 %v2376, %v2375
        %v2391 = vpack.c.b16 %v2378, %v2377
        %v2392 = vpack.c.b16 %v2380, %v2379
        %v2393 = vpack.c.b16 %v2382, %v2381
        %v2394 = vpack.c.b16 %v2384, %v2383
        %v2395 = vpack.c.b16 %v2386, %v2385
        %v2396 = vpack.c.b16 %v2388, %v2387
        %2405 = vmatpush.bf16.msra.mxu0 %v2396
        %2406 = vmatpush.bf16.msra.mxu0 %v2395
        %2407 = vmatpush.bf16.msra.mxu0 %v2394
        %2408 = vmatpush.bf16.msra.mxu0 %v2393
        %2409 = vmatpush.bf16.msra.mxu0 %v2392
        %2410 = vmatpush.bf16.msra.mxu0 %v2391
        %2411 = vmatpush.bf16.msra.mxu0 %v2390
        %2412 = vmatpush.bf16.msra.mxu0 %v2389
        %2413 = vmatmul.bf16.gmra.mxu0 %v2325
        %v2414 = vpop.f32.mrf.mxu0
        %v2415 = vadd.f32 0.0, %v2414
        %v2416 = vpop.f32.mrf.mxu0
        %v2417 = vadd.f32 0.0, %v2416
        %2418 = vmatmul.bf16.gmra.mxu0 %v2326
        %v2419 = vpop.f32.mrf.mxu0
        %v2420 = vadd.f32 0.0, %v2419
        %v2421 = vpop.f32.mrf.mxu0
        %v2422 = vadd.f32 0.0, %v2421
        %2423 = vmatmul.bf16.gmra.mxu0 %v2327
        %v2424 = vpop.f32.mrf.mxu0
        %v2425 = vadd.f32 0.0, %v2424
        %v2426 = vpop.f32.mrf.mxu0
        %v2427 = vadd.f32 0.0, %v2426
        %2428 = vmatmul.bf16.gmra.mxu0 %v2328
        %v2429 = vpop.f32.mrf.mxu0
        %v2430 = vadd.f32 0.0, %v2429
        %v2431 = vpop.f32.mrf.mxu0
        %v2432 = vadd.f32 0.0, %v2431
        %2433 = vmatmul.bf16.gmra.mxu0 %v2329
        %v2434 = vpop.f32.mrf.mxu0
        %v2435 = vadd.f32 0.0, %v2434
        %v2436 = vpop.f32.mrf.mxu0
        %v2437 = vadd.f32 0.0, %v2436
        %2438 = vmatmul.bf16.gmra.mxu0 %v2330
        %v2439 = vpop.f32.mrf.mxu0
        %v2440 = vadd.f32 0.0, %v2439
        %v2441 = vpop.f32.mrf.mxu0
        %v2442 = vadd.f32 0.0, %v2441
        %2443 = vmatmul.bf16.gmra.mxu0 %v2331
        %v2444 = vpop.f32.mrf.mxu0
        %v2445 = vadd.f32 0.0, %v2444
        %v2446 = vpop.f32.mrf.mxu0
        %v2447 = vadd.f32 0.0, %v2446
        %2448 = vmatmul.bf16.gmra.mxu0 %v2332
        %v2449 = vpop.f32.mrf.mxu0
        %v2450 = vadd.f32 0.0, %v2449
        %v2451 = vpop.f32.mrf.mxu0
        %v2452 = vadd.f32 0.0, %v2451
        %2453 = vmatmul.bf16.gmra.mxu0 %v2333
        %v2454 = vpop.f32.mrf.mxu0
        %v2455 = vadd.f32 0.0, %v2454
        %v2456 = vpop.f32.mrf.mxu0
        %v2457 = vadd.f32 0.0, %v2456
        %2458 = vmatmul.bf16.gmra.mxu0 %v2334
        %v2459 = vpop.f32.mrf.mxu0
        %v2460 = vadd.f32 0.0, %v2459
        %v2461 = vpop.f32.mrf.mxu0
        %v2462 = vadd.f32 0.0, %v2461
        %2463 = vmatmul.bf16.gmra.mxu0 %v2335
        %v2464 = vpop.f32.mrf.mxu0
        %v2465 = vadd.f32 0.0, %v2464
        %v2466 = vpop.f32.mrf.mxu0
        %v2467 = vadd.f32 0.0, %v2466
        %2468 = vmatmul.bf16.gmra.mxu0 %v2336
        %v2469 = vpop.f32.mrf.mxu0
        %v2470 = vadd.f32 0.0, %v2469
        %v2471 = vpop.f32.mrf.mxu0
        %v2472 = vadd.f32 0.0, %v2471
        %2473 = vmatmul.bf16.gmra.mxu0 %v2337
        %v2474 = vpop.f32.mrf.mxu0
        %v2475 = vadd.f32 0.0, %v2474
        %v2476 = vpop.f32.mrf.mxu0
        %v2477 = vadd.f32 0.0, %v2476
        %2478 = vmatmul.bf16.gmra.mxu0 %v2338
        %v2479 = vpop.f32.mrf.mxu0
        %v2480 = vadd.f32 0.0, %v2479
        %v2481 = vpop.f32.mrf.mxu0
        %v2482 = vadd.f32 0.0, %v2481
        %2483 = vmatmul.bf16.gmra.mxu0 %v2339
        %v2484 = vpop.f32.mrf.mxu0
        %v2485 = vadd.f32 0.0, %v2484
        %v2486 = vpop.f32.mrf.mxu0
        %v2487 = vadd.f32 0.0, %v2486
        %2488 = vmatmul.bf16.gmra.mxu0 %v2340
        %v2489 = vpop.f32.mrf.mxu0
        %v2490 = vadd.f32 0.0, %v2489
        %v2491 = vpop.f32.mrf.mxu0
        %v2492 = vadd.f32 0.0, %v2491
        %2493 = vdwg.mxu0
        %v2494 = vadd.f32 %v2101, %v2415
        %v2495 = vadd.f32 %v2103, %v2417
        %v2496 = vadd.f32 %v2106, %v2420
        %v2497 = vadd.f32 %v2108, %v2422
        %v2498 = vadd.f32 %v2111, %v2425
        %v2499 = vadd.f32 %v2113, %v2427
        %v2500 = vadd.f32 %v2116, %v2430
        %v2501 = vadd.f32 %v2118, %v2432
        %v2502 = vadd.f32 %v2121, %v2435
        %v2503 = vadd.f32 %v2123, %v2437
        %v2504 = vadd.f32 %v2126, %v2440
        %v2505 = vadd.f32 %v2128, %v2442
        %v2506 = vadd.f32 %v2131, %v2445
        %v2507 = vadd.f32 %v2133, %v2447
        %v2508 = vadd.f32 %v2136, %v2450
        %v2509 = vadd.f32 %v2138, %v2452
        %v2510 = vadd.f32 %v2141, %v2455
        %v2511 = vadd.f32 %v2143, %v2457
        %v2512 = vadd.f32 %v2146, %v2460
        %v2513 = vadd.f32 %v2148, %v2462
        %v2514 = vadd.f32 %v2151, %v2465
        %v2515 = vadd.f32 %v2153, %v2467
        %v2516 = vadd.f32 %v2156, %v2470
        %v2517 = vadd.f32 %v2158, %v2472
        %v2518 = vadd.f32 %v2161, %v2475
        %v2519 = vadd.f32 %v2163, %v2477
        %v2520 = vadd.f32 %v2166, %v2480
        %v2521 = vadd.f32 %v2168, %v2482
        %v2522 = vadd.f32 %v2171, %v2485
        %v2523 = vadd.f32 %v2173, %v2487
        %v2524 = vadd.f32 %v2176, %v2490
        %v2525 = vadd.f32 %v2178, %v2492
        %v2526 = vld [vmem:[%s1520] sm:$0xff]
        %v2527 = vld [vmem:[%s1520 + $0x8] sm:$0xff]
        %v2528 = vld [vmem:[%s1520 + $0x18] sm:$0xff]
        %v2529 = vld [vmem:[%s1520 + $0x20] sm:$0xff]
        %v2530 = vld [vmem:[%s1520 + $0x30] sm:$0xff]
        %v2531 = vld [vmem:[%s1520 + $0x38] sm:$0xff]
        %v2532 = vld [vmem:[%s1520 + $0x48] sm:$0xff]
        %v2533 = vld [vmem:[%s1520 + $0x50] sm:$0xff]
        %v2534 = vld [vmem:[%s1520 + $0x60] sm:$0xff]
        %v2535 = vld [vmem:[%s1520 + $0x68] sm:$0xff]
        %v2536 = vld [vmem:[%s1520 + $0x78] sm:$0xff]
        %v2537 = vld [vmem:[%s1520 + $0x80] sm:$0xff]
        %v2538 = vld [vmem:[%s1520 + $0x90] sm:$0xff]
        %v2539 = vld [vmem:[%s1520 + $0x98] sm:$0xff]
        %v2540 = vld [vmem:[%s1520 + $0xa8] sm:$0xff]
        %v2541 = vld [vmem:[%s1520 + $0xb0] sm:$0xff]
        %v2542 = vld [vmem:[%s1520 + $0xc0] sm:$0xff]
        %v2543 = vld [vmem:[%s1520 + $0xc8] sm:$0xff]
        %v2544 = vld [vmem:[%s1520 + $0xd8] sm:$0xff]
        %v2545 = vld [vmem:[%s1520 + $0xe0] sm:$0xff]
        %v2546 = vld [vmem:[%s1520 + $0xf0] sm:$0xff]
        %v2547 = vld [vmem:[%s1520 + $0xf8] sm:$0xff]
        %v2548 = vld [vmem:[%s1520 + $0x108] sm:$0xff]
        %v2549 = vld [vmem:[%s1520 + $0x110] sm:$0xff]
        %v2550 = vld [vmem:[%s1520 + $0x120] sm:$0xff]
        %v2551 = vld [vmem:[%s1520 + $0x128] sm:$0xff]
        %v2552 = vld [vmem:[%s1520 + $0x138] sm:$0xff]
        %v2553 = vld [vmem:[%s1520 + $0x140] sm:$0xff]
        %v2554 = vld [vmem:[%s1520 + $0x150] sm:$0xff]
        %v2555 = vld [vmem:[%s1520 + $0x158] sm:$0xff]
        %v2556 = vld [vmem:[%s1520 + $0x168] sm:$0xff]
        %v2557 = vld [vmem:[%s1520 + $0x170] sm:$0xff]
        %v2558 = vpack.c.bf16 %v2526, %v2526
        %v2559 = vpack.c.bf16 %v2527, %v2527
        %v2560 = vpack.c.bf16 %v2528, %v2528
        %v2561 = vpack.c.bf16 %v2529, %v2529
        %v2562 = vpack.c.bf16 %v2530, %v2530
        %v2563 = vpack.c.bf16 %v2531, %v2531
        %v2564 = vpack.c.bf16 %v2532, %v2532
        %v2565 = vpack.c.bf16 %v2533, %v2533
        %v2566 = vpack.c.bf16 %v2534, %v2534
        %v2567 = vpack.c.bf16 %v2535, %v2535
        %v2568 = vpack.c.bf16 %v2536, %v2536
        %v2569 = vpack.c.bf16 %v2537, %v2537
        %v2570 = vpack.c.bf16 %v2538, %v2538
        %v2571 = vpack.c.bf16 %v2539, %v2539
        %v2572 = vpack.c.bf16 %v2540, %v2540
        %v2573 = vpack.c.bf16 %v2541, %v2541
        %v2574 = vpack.c.bf16 %v2542, %v2542
        %v2575 = vpack.c.bf16 %v2543, %v2543
        %v2576 = vpack.c.bf16 %v2544, %v2544
        %v2577 = vpack.c.bf16 %v2545, %v2545
        %v2578 = vpack.c.bf16 %v2546, %v2546
        %v2579 = vpack.c.bf16 %v2547, %v2547
        %v2580 = vpack.c.bf16 %v2548, %v2548
        %v2581 = vpack.c.bf16 %v2549, %v2549
        %v2582 = vpack.c.bf16 %v2550, %v2550
        %v2583 = vpack.c.bf16 %v2551, %v2551
        %v2584 = vpack.c.bf16 %v2552, %v2552
        %v2585 = vpack.c.bf16 %v2553, %v2553
        %v2586 = vpack.c.bf16 %v2554, %v2554
        %v2587 = vpack.c.bf16 %v2555, %v2555
        %v2588 = vpack.c.bf16 %v2556, %v2556
        %v2589 = vpack.c.bf16 %v2557, %v2557
        %s2590 = scalar_lea.vmem %s5, 192
        %v2591 = vld [vmem:[%s2590] sm:$0xf]
        %v2592 = vld [vmem:[%s2590 + $0x4] sm:$0xf]
        %v2593 = vld [vmem:[%s2590 + $0x8] sm:$0xf]
        %v2594 = vld [vmem:[%s2590 + $0xc] sm:$0xf]
        %v2595 = vld [vmem:[%s2590 + $0x10] sm:$0xf]
        %v2596 = vld [vmem:[%s2590 + $0x14] sm:$0xf]
        %v2597 = vld [vmem:[%s2590 + $0x18] sm:$0xf]
        %v2598 = vld [vmem:[%s2590 + $0x1c] sm:$0xf]
        %v2599 = vld [vmem:[%s2590 + $0x20] sm:$0xf]
        %v2600 = vld [vmem:[%s2590 + $0x24] sm:$0xf]
        %v2601 = vld [vmem:[%s2590 + $0x28] sm:$0xf]
        %v2602 = vld [vmem:[%s2590 + $0x2c] sm:$0xf]
        %v2603 = vld [vmem:[%s2590 + $0x30] sm:$0xf]
        %v2604 = vld [vmem:[%s2590 + $0x34] sm:$0xf]
        %v2605 = vld [vmem:[%s2590 + $0x38] sm:$0xf]
        %v2606 = vld [vmem:[%s2590 + $0x3c] sm:$0xf]
        %v2639 = vunpack.c.l.b16 %v2558
        %v2640 = vunpack.c.l.b16 %v2559
        %v2641 = vunpack.c.l.b16 %v2560
        %v2642 = vunpack.c.l.b16 %v2561
        %v2643 = vunpack.c.l.b16 %v2562
        %v2644 = vunpack.c.l.b16 %v2563
        %v2645 = vunpack.c.l.b16 %v2564
        %v2646 = vunpack.c.l.b16 %v2565
        %v2647 = vunpack.c.l.b16 %v2566
        %v2648 = vunpack.c.l.b16 %v2567
        %v2649 = vunpack.c.l.b16 %v2568
        %v2650 = vunpack.c.l.b16 %v2569
        %v2651 = vunpack.c.l.b16 %v2570
        %v2652 = vunpack.c.l.b16 %v2571
        %v2653 = vunpack.c.l.b16 %v2572
        %v2654 = vunpack.c.l.b16 %v2573
        %v2655 = vunpack.c.l.b16 %v2574
        %v2656 = vunpack.c.l.b16 %v2575
        %v2657 = vunpack.c.l.b16 %v2576
        %v2658 = vunpack.c.l.b16 %v2577
        %v2659 = vunpack.c.l.b16 %v2578
        %v2660 = vunpack.c.l.b16 %v2579
        %v2661 = vunpack.c.l.b16 %v2580
        %v2662 = vunpack.c.l.b16 %v2581
        %v2663 = vunpack.c.l.b16 %v2582
        %v2664 = vunpack.c.l.b16 %v2583
        %v2665 = vunpack.c.l.b16 %v2584
        %v2666 = vunpack.c.l.b16 %v2585
        %v2667 = vunpack.c.l.b16 %v2586
        %v2668 = vunpack.c.l.b16 %v2587
        %v2669 = vunpack.c.l.b16 %v2588
        %v2670 = vunpack.c.l.b16 %v2589
        %v2671 = vpack.c.b16 %v2640, %v2639
        %v2672 = vpack.c.b16 %v2642, %v2641
        %v2673 = vpack.c.b16 %v2644, %v2643
        %v2674 = vpack.c.b16 %v2646, %v2645
        %v2675 = vpack.c.b16 %v2648, %v2647
        %v2676 = vpack.c.b16 %v2650, %v2649
        %v2677 = vpack.c.b16 %v2652, %v2651
        %v2678 = vpack.c.b16 %v2654, %v2653
        %v2679 = vpack.c.b16 %v2656, %v2655
        %v2680 = vpack.c.b16 %v2658, %v2657
        %v2681 = vpack.c.b16 %v2660, %v2659
        %v2682 = vpack.c.b16 %v2662, %v2661
        %v2683 = vpack.c.b16 %v2664, %v2663
        %v2684 = vpack.c.b16 %v2666, %v2665
        %v2685 = vpack.c.b16 %v2668, %v2667
        %v2686 = vpack.c.b16 %v2670, %v2669
        %v2719 = vunpack.c.l.b16 %v2591
        %v2720 = vunpack.c.l.b16 %v2592
        %v2721 = vunpack.c.l.b16 %v2593
        %v2722 = vunpack.c.l.b16 %v2594
        %v2723 = vunpack.c.l.b16 %v2595
        %v2724 = vunpack.c.l.b16 %v2596
        %v2725 = vunpack.c.l.b16 %v2597
        %v2726 = vunpack.c.l.b16 %v2598
        %v2727 = vunpack.c.l.b16 %v2599
        %v2728 = vunpack.c.l.b16 %v2600
        %v2729 = vunpack.c.l.b16 %v2601
        %v2730 = vunpack.c.l.b16 %v2602
        %v2731 = vunpack.c.l.b16 %v2603
        %v2732 = vunpack.c.l.b16 %v2604
        %v2733 = vunpack.c.l.b16 %v2605
        %v2734 = vunpack.c.l.b16 %v2606
        %v2735 = vpack.c.b16 %v2720, %v2719
        %v2736 = vpack.c.b16 %v2722, %v2721
        %v2737 = vpack.c.b16 %v2724, %v2723
        %v2738 = vpack.c.b16 %v2726, %v2725
        %v2739 = vpack.c.b16 %v2728, %v2727
        %v2740 = vpack.c.b16 %v2730, %v2729
        %v2741 = vpack.c.b16 %v2732, %v2731
        %v2742 = vpack.c.b16 %v2734, %v2733
        %2751 = vmatpush.bf16.msra.mxu0 %v2742
        %2752 = vmatpush.bf16.msra.mxu0 %v2741
        %2753 = vmatpush.bf16.msra.mxu0 %v2740
        %2754 = vmatpush.bf16.msra.mxu0 %v2739
        %2755 = vmatpush.bf16.msra.mxu0 %v2738
        %2756 = vmatpush.bf16.msra.mxu0 %v2737
        %2757 = vmatpush.bf16.msra.mxu0 %v2736
        %2758 = vmatpush.bf16.msra.mxu0 %v2735
        %2759 = vmatmul.bf16.gmra.mxu0 %v2671
        %v2760 = vpop.f32.mrf.mxu0
        %v2761 = vadd.f32 0.0, %v2760
        %v2762 = vpop.f32.mrf.mxu0
        %v2763 = vadd.f32 0.0, %v2762
        %2764 = vmatmul.bf16.gmra.mxu0 %v2672
        %v2765 = vpop.f32.mrf.mxu0
        %v2766 = vadd.f32 0.0, %v2765
        %v2767 = vpop.f32.mrf.mxu0
        %v2768 = vadd.f32 0.0, %v2767
        %2769 = vmatmul.bf16.gmra.mxu0 %v2673
        %v2770 = vpop.f32.mrf.mxu0
        %v2771 = vadd.f32 0.0, %v2770
        %v2772 = vpop.f32.mrf.mxu0
        %v2773 = vadd.f32 0.0, %v2772
        %2774 = vmatmul.bf16.gmra.mxu0 %v2674
        %v2775 = vpop.f32.mrf.mxu0
        %v2776 = vadd.f32 0.0, %v2775
        %v2777 = vpop.f32.mrf.mxu0
        %v2778 = vadd.f32 0.0, %v2777
        %2779 = vmatmul.bf16.gmra.mxu0 %v2675
        %v2780 = vpop.f32.mrf.mxu0
        %v2781 = vadd.f32 0.0, %v2780
        %v2782 = vpop.f32.mrf.mxu0
        %v2783 = vadd.f32 0.0, %v2782
        %2784 = vmatmul.bf16.gmra.mxu0 %v2676
        %v2785 = vpop.f32.mrf.mxu0
        %v2786 = vadd.f32 0.0, %v2785
        %v2787 = vpop.f32.mrf.mxu0
        %v2788 = vadd.f32 0.0, %v2787
        %2789 = vmatmul.bf16.gmra.mxu0 %v2677
        %v2790 = vpop.f32.mrf.mxu0
        %v2791 = vadd.f32 0.0, %v2790
        %v2792 = vpop.f32.mrf.mxu0
        %v2793 = vadd.f32 0.0, %v2792
        %2794 = vmatmul.bf16.gmra.mxu0 %v2678
        %v2795 = vpop.f32.mrf.mxu0
        %v2796 = vadd.f32 0.0, %v2795
        %v2797 = vpop.f32.mrf.mxu0
        %v2798 = vadd.f32 0.0, %v2797
        %2799 = vmatmul.bf16.gmra.mxu0 %v2679
        %v2800 = vpop.f32.mrf.mxu0
        %v2801 = vadd.f32 0.0, %v2800
        %v2802 = vpop.f32.mrf.mxu0
        %v2803 = vadd.f32 0.0, %v2802
        %2804 = vmatmul.bf16.gmra.mxu0 %v2680
        %v2805 = vpop.f32.mrf.mxu0
        %v2806 = vadd.f32 0.0, %v2805
        %v2807 = vpop.f32.mrf.mxu0
        %v2808 = vadd.f32 0.0, %v2807
        %2809 = vmatmul.bf16.gmra.mxu0 %v2681
        %v2810 = vpop.f32.mrf.mxu0
        %v2811 = vadd.f32 0.0, %v2810
        %v2812 = vpop.f32.mrf.mxu0
        %v2813 = vadd.f32 0.0, %v2812
        %2814 = vmatmul.bf16.gmra.mxu0 %v2682
        %v2815 = vpop.f32.mrf.mxu0
        %v2816 = vadd.f32 0.0, %v2815
        %v2817 = vpop.f32.mrf.mxu0
        %v2818 = vadd.f32 0.0, %v2817
        %2819 = vmatmul.bf16.gmra.mxu0 %v2683
        %v2820 = vpop.f32.mrf.mxu0
        %v2821 = vadd.f32 0.0, %v2820
        %v2822 = vpop.f32.mrf.mxu0
        %v2823 = vadd.f32 0.0, %v2822
        %2824 = vmatmul.bf16.gmra.mxu0 %v2684
        %v2825 = vpop.f32.mrf.mxu0
        %v2826 = vadd.f32 0.0, %v2825
        %v2827 = vpop.f32.mrf.mxu0
        %v2828 = vadd.f32 0.0, %v2827
        %2829 = vmatmul.bf16.gmra.mxu0 %v2685
        %v2830 = vpop.f32.mrf.mxu0
        %v2831 = vadd.f32 0.0, %v2830
        %v2832 = vpop.f32.mrf.mxu0
        %v2833 = vadd.f32 0.0, %v2832
        %2834 = vmatmul.bf16.gmra.mxu0 %v2686
        %v2835 = vpop.f32.mrf.mxu0
        %v2836 = vadd.f32 0.0, %v2835
        %v2837 = vpop.f32.mrf.mxu0
        %v2838 = vadd.f32 0.0, %v2837
        %2839 = vdwg.mxu0
        %v2840 = vadd.f32 %v2494, %v2761
        %v2841 = vadd.f32 %v2495, %v2763
        %v2842 = vadd.f32 %v2496, %v2766
        %v2843 = vadd.f32 %v2497, %v2768
        %v2844 = vadd.f32 %v2498, %v2771
        %v2845 = vadd.f32 %v2499, %v2773
        %v2846 = vadd.f32 %v2500, %v2776
        %v2847 = vadd.f32 %v2501, %v2778
        %v2848 = vadd.f32 %v2502, %v2781
        %v2849 = vadd.f32 %v2503, %v2783
        %v2850 = vadd.f32 %v2504, %v2786
        %v2851 = vadd.f32 %v2505, %v2788
        %v2852 = vadd.f32 %v2506, %v2791
        %v2853 = vadd.f32 %v2507, %v2793
        %v2854 = vadd.f32 %v2508, %v2796
        %v2855 = vadd.f32 %v2509, %v2798
        %v2856 = vadd.f32 %v2510, %v2801
        %v2857 = vadd.f32 %v2511, %v2803
        %v2858 = vadd.f32 %v2512, %v2806
        %v2859 = vadd.f32 %v2513, %v2808
        %v2860 = vadd.f32 %v2514, %v2811
        %v2861 = vadd.f32 %v2515, %v2813
        %v2862 = vadd.f32 %v2516, %v2816
        %v2863 = vadd.f32 %v2517, %v2818
        %v2864 = vadd.f32 %v2518, %v2821
        %v2865 = vadd.f32 %v2519, %v2823
        %v2866 = vadd.f32 %v2520, %v2826
        %v2867 = vadd.f32 %v2521, %v2828
        %v2868 = vadd.f32 %v2522, %v2831
        %v2869 = vadd.f32 %v2523, %v2833
        %v2870 = vadd.f32 %v2524, %v2836
        %v2871 = vadd.f32 %v2525, %v2838
        %v2872 = vld [vmem:[%s1520 + $0x1] sm:$0xff]
        %v2873 = vld [vmem:[%s1520 + $0x9] sm:$0xff]
        %v2874 = vld [vmem:[%s1520 + $0x19] sm:$0xff]
        %v2875 = vld [vmem:[%s1520 + $0x21] sm:$0xff]
        %v2876 = vld [vmem:[%s1520 + $0x31] sm:$0xff]
        %v2877 = vld [vmem:[%s1520 + $0x39] sm:$0xff]
        %v2878 = vld [vmem:[%s1520 + $0x49] sm:$0xff]
        %v2879 = vld [vmem:[%s1520 + $0x51] sm:$0xff]
        %v2880 = vld [vmem:[%s1520 + $0x61] sm:$0xff]
        %v2881 = vld [vmem:[%s1520 + $0x69] sm:$0xff]
        %v2882 = vld [vmem:[%s1520 + $0x79] sm:$0xff]
        %v2883 = vld [vmem:[%s1520 + $0x81] sm:$0xff]
        %v2884 = vld [vmem:[%s1520 + $0x91] sm:$0xff]
        %v2885 = vld [vmem:[%s1520 + $0x99] sm:$0xff]
        %v2886 = vld [vmem:[%s1520 + $0xa9] sm:$0xff]
        %v2887 = vld [vmem:[%s1520 + $0xb1] sm:$0xff]
        %v2888 = vld [vmem:[%s1520 + $0xc1] sm:$0xff]
        %v2889 = vld [vmem:[%s1520 + $0xc9] sm:$0xff]
        %v2890 = vld [vmem:[%s1520 + $0xd9] sm:$0xff]
        %v2891 = vld [vmem:[%s1520 + $0xe1] sm:$0xff]
        %v2892 = vld [vmem:[%s1520 + $0xf1] sm:$0xff]
        %v2893 = vld [vmem:[%s1520 + $0xf9] sm:$0xff]
        %v2894 = vld [vmem:[%s1520 + $0x109] sm:$0xff]
        %v2895 = vld [vmem:[%s1520 + $0x111] sm:$0xff]
        %v2896 = vld [vmem:[%s1520 + $0x121] sm:$0xff]
        %v2897 = vld [vmem:[%s1520 + $0x129] sm:$0xff]
        %v2898 = vld [vmem:[%s1520 + $0x139] sm:$0xff]
        %v2899 = vld [vmem:[%s1520 + $0x141] sm:$0xff]
        %v2900 = vld [vmem:[%s1520 + $0x151] sm:$0xff]
        %v2901 = vld [vmem:[%s1520 + $0x159] sm:$0xff]
        %v2902 = vld [vmem:[%s1520 + $0x169] sm:$0xff]
        %v2903 = vld [vmem:[%s1520 + $0x171] sm:$0xff]
        %v2904 = vpack.c.bf16 %v2872, %v2872
        %v2905 = vpack.c.bf16 %v2873, %v2873
        %v2906 = vpack.c.bf16 %v2874, %v2874
        %v2907 = vpack.c.bf16 %v2875, %v2875
        %v2908 = vpack.c.bf16 %v2876, %v2876
        %v2909 = vpack.c.bf16 %v2877, %v2877
        %v2910 = vpack.c.bf16 %v2878, %v2878
        %v2911 = vpack.c.bf16 %v2879, %v2879
        %v2912 = vpack.c.bf16 %v2880, %v2880
        %v2913 = vpack.c.bf16 %v2881, %v2881
        %v2914 = vpack.c.bf16 %v2882, %v2882
        %v2915 = vpack.c.bf16 %v2883, %v2883
        %v2916 = vpack.c.bf16 %v2884, %v2884
        %v2917 = vpack.c.bf16 %v2885, %v2885
        %v2918 = vpack.c.bf16 %v2886, %v2886
        %v2919 = vpack.c.bf16 %v2887, %v2887
        %v2920 = vpack.c.bf16 %v2888, %v2888
        %v2921 = vpack.c.bf16 %v2889, %v2889
        %v2922 = vpack.c.bf16 %v2890, %v2890
        %v2923 = vpack.c.bf16 %v2891, %v2891
        %v2924 = vpack.c.bf16 %v2892, %v2892
        %v2925 = vpack.c.bf16 %v2893, %v2893
        %v2926 = vpack.c.bf16 %v2894, %v2894
        %v2927 = vpack.c.bf16 %v2895, %v2895
        %v2928 = vpack.c.bf16 %v2896, %v2896
        %v2929 = vpack.c.bf16 %v2897, %v2897
        %v2930 = vpack.c.bf16 %v2898, %v2898
        %v2931 = vpack.c.bf16 %v2899, %v2899
        %v2932 = vpack.c.bf16 %v2900, %v2900
        %v2933 = vpack.c.bf16 %v2901, %v2901
        %v2934 = vpack.c.bf16 %v2902, %v2902
        %v2935 = vpack.c.bf16 %v2903, %v2903
        %s2936 = scalar_lea.vmem %s5, 256
        %v2937 = vld [vmem:[%s2936] sm:$0xf]
        %v2938 = vld [vmem:[%s2936 + $0x4] sm:$0xf]
        %v2939 = vld [vmem:[%s2936 + $0x8] sm:$0xf]
        %v2940 = vld [vmem:[%s2936 + $0xc] sm:$0xf]
        %v2941 = vld [vmem:[%s2936 + $0x10] sm:$0xf]
        %v2942 = vld [vmem:[%s2936 + $0x14] sm:$0xf]
        %v2943 = vld [vmem:[%s2936 + $0x18] sm:$0xf]
        %v2944 = vld [vmem:[%s2936 + $0x1c] sm:$0xf]
        %v2945 = vld [vmem:[%s2936 + $0x20] sm:$0xf]
        %v2946 = vld [vmem:[%s2936 + $0x24] sm:$0xf]
        %v2947 = vld [vmem:[%s2936 + $0x28] sm:$0xf]
        %v2948 = vld [vmem:[%s2936 + $0x2c] sm:$0xf]
        %v2949 = vld [vmem:[%s2936 + $0x30] sm:$0xf]
        %v2950 = vld [vmem:[%s2936 + $0x34] sm:$0xf]
        %v2951 = vld [vmem:[%s2936 + $0x38] sm:$0xf]
        %v2952 = vld [vmem:[%s2936 + $0x3c] sm:$0xf]
        %v2985 = vunpack.c.l.b16 %v2904
        %v2986 = vunpack.c.l.b16 %v2905
        %v2987 = vunpack.c.l.b16 %v2906
        %v2988 = vunpack.c.l.b16 %v2907
        %v2989 = vunpack.c.l.b16 %v2908
        %v2990 = vunpack.c.l.b16 %v2909
        %v2991 = vunpack.c.l.b16 %v2910
        %v2992 = vunpack.c.l.b16 %v2911
        %v2993 = vunpack.c.l.b16 %v2912
        %v2994 = vunpack.c.l.b16 %v2913
        %v2995 = vunpack.c.l.b16 %v2914
        %v2996 = vunpack.c.l.b16 %v2915
        %v2997 = vunpack.c.l.b16 %v2916
        %v2998 = vunpack.c.l.b16 %v2917
        %v2999 = vunpack.c.l.b16 %v2918
        %v3000 = vunpack.c.l.b16 %v2919
        %v3001 = vunpack.c.l.b16 %v2920
        %v3002 = vunpack.c.l.b16 %v2921
        %v3003 = vunpack.c.l.b16 %v2922
        %v3004 = vunpack.c.l.b16 %v2923
        %v3005 = vunpack.c.l.b16 %v2924
        %v3006 = vunpack.c.l.b16 %v2925
        %v3007 = vunpack.c.l.b16 %v2926
        %v3008 = vunpack.c.l.b16 %v2927
        %v3009 = vunpack.c.l.b16 %v2928
        %v3010 = vunpack.c.l.b16 %v2929
        %v3011 = vunpack.c.l.b16 %v2930
        %v3012 = vunpack.c.l.b16 %v2931
        %v3013 = vunpack.c.l.b16 %v2932
        %v3014 = vunpack.c.l.b16 %v2933
        %v3015 = vunpack.c.l.b16 %v2934
        %v3016 = vunpack.c.l.b16 %v2935
        %v3017 = vpack.c.b16 %v2986, %v2985
        %v3018 = vpack.c.b16 %v2988, %v2987
        %v3019 = vpack.c.b16 %v2990, %v2989
        %v3020 = vpack.c.b16 %v2992, %v2991
        %v3021 = vpack.c.b16 %v2994, %v2993
        %v3022 = vpack.c.b16 %v2996, %v2995
        %v3023 = vpack.c.b16 %v2998, %v2997
        %v3024 = vpack.c.b16 %v3000, %v2999
        %v3025 = vpack.c.b16 %v3002, %v3001
        %v3026 = vpack.c.b16 %v3004, %v3003
        %v3027 = vpack.c.b16 %v3006, %v3005
        %v3028 = vpack.c.b16 %v3008, %v3007
        %v3029 = vpack.c.b16 %v3010, %v3009
        %v3030 = vpack.c.b16 %v3012, %v3011
        %v3031 = vpack.c.b16 %v3014, %v3013
        %v3032 = vpack.c.b16 %v3016, %v3015
        %v3065 = vunpack.c.l.b16 %v2937
        %v3066 = vunpack.c.l.b16 %v2938
        %v3067 = vunpack.c.l.b16 %v2939
        %v3068 = vunpack.c.l.b16 %v2940
        %v3069 = vunpack.c.l.b16 %v2941
        %v3070 = vunpack.c.l.b16 %v2942
        %v3071 = vunpack.c.l.b16 %v2943
        %v3072 = vunpack.c.l.b16 %v2944
        %v3073 = vunpack.c.l.b16 %v2945
        %v3074 = vunpack.c.l.b16 %v2946
        %v3075 = vunpack.c.l.b16 %v2947
        %v3076 = vunpack.c.l.b16 %v2948
        %v3077 = vunpack.c.l.b16 %v2949
        %v3078 = vunpack.c.l.b16 %v2950
        %v3079 = vunpack.c.l.b16 %v2951
        %v3080 = vunpack.c.l.b16 %v2952
        %v3081 = vpack.c.b16 %v3066, %v3065
        %v3082 = vpack.c.b16 %v3068, %v3067
        %v3083 = vpack.c.b16 %v3070, %v3069
        %v3084 = vpack.c.b16 %v3072, %v3071
        %v3085 = vpack.c.b16 %v3074, %v3073
        %v3086 = vpack.c.b16 %v3076, %v3075
        %v3087 = vpack.c.b16 %v3078, %v3077
        %v3088 = vpack.c.b16 %v3080, %v3079
        %3097 = vmatpush.bf16.msra.mxu0 %v3088
        %3098 = vmatpush.bf16.msra.mxu0 %v3087
        %3099 = vmatpush.bf16.msra.mxu0 %v3086
        %3100 = vmatpush.bf16.msra.mxu0 %v3085
        %3101 = vmatpush.bf16.msra.mxu0 %v3084
        %3102 = vmatpush.bf16.msra.mxu0 %v3083
        %3103 = vmatpush.bf16.msra.mxu0 %v3082
        %3104 = vmatpush.bf16.msra.mxu0 %v3081
        %3105 = vmatmul.bf16.gmra.mxu0 %v3017
        %v3106 = vpop.f32.mrf.mxu0
        %v3107 = vadd.f32 0.0, %v3106
        %v3108 = vpop.f32.mrf.mxu0
        %v3109 = vadd.f32 0.0, %v3108
        %3110 = vmatmul.bf16.gmra.mxu0 %v3018
        %v3111 = vpop.f32.mrf.mxu0
        %v3112 = vadd.f32 0.0, %v3111
        %v3113 = vpop.f32.mrf.mxu0
        %v3114 = vadd.f32 0.0, %v3113
        %3115 = vmatmul.bf16.gmra.mxu0 %v3019
        %v3116 = vpop.f32.mrf.mxu0
        %v3117 = vadd.f32 0.0, %v3116
        %v3118 = vpop.f32.mrf.mxu0
        %v3119 = vadd.f32 0.0, %v3118
        %3120 = vmatmul.bf16.gmra.mxu0 %v3020
        %v3121 = vpop.f32.mrf.mxu0
        %v3122 = vadd.f32 0.0, %v3121
        %v3123 = vpop.f32.mrf.mxu0
        %v3124 = vadd.f32 0.0, %v3123
        %3125 = vmatmul.bf16.gmra.mxu0 %v3021
        %v3126 = vpop.f32.mrf.mxu0
        %v3127 = vadd.f32 0.0, %v3126
        %v3128 = vpop.f32.mrf.mxu0
        %v3129 = vadd.f32 0.0, %v3128
        %3130 = vmatmul.bf16.gmra.mxu0 %v3022
        %v3131 = vpop.f32.mrf.mxu0
        %v3132 = vadd.f32 0.0, %v3131
        %v3133 = vpop.f32.mrf.mxu0
        %v3134 = vadd.f32 0.0, %v3133
        %3135 = vmatmul.bf16.gmra.mxu0 %v3023
        %v3136 = vpop.f32.mrf.mxu0
        %v3137 = vadd.f32 0.0, %v3136
        %v3138 = vpop.f32.mrf.mxu0
        %v3139 = vadd.f32 0.0, %v3138
        %3140 = vmatmul.bf16.gmra.mxu0 %v3024
        %v3141 = vpop.f32.mrf.mxu0
        %v3142 = vadd.f32 0.0, %v3141
        %v3143 = vpop.f32.mrf.mxu0
        %v3144 = vadd.f32 0.0, %v3143
        %3145 = vmatmul.bf16.gmra.mxu0 %v3025
        %v3146 = vpop.f32.mrf.mxu0
        %v3147 = vadd.f32 0.0, %v3146
        %v3148 = vpop.f32.mrf.mxu0
        %v3149 = vadd.f32 0.0, %v3148
        %3150 = vmatmul.bf16.gmra.mxu0 %v3026
        %v3151 = vpop.f32.mrf.mxu0
        %v3152 = vadd.f32 0.0, %v3151
        %v3153 = vpop.f32.mrf.mxu0
        %v3154 = vadd.f32 0.0, %v3153
        %3155 = vmatmul.bf16.gmra.mxu0 %v3027
        %v3156 = vpop.f32.mrf.mxu0
        %v3157 = vadd.f32 0.0, %v3156
        %v3158 = vpop.f32.mrf.mxu0
        %v3159 = vadd.f32 0.0, %v3158
        %3160 = vmatmul.bf16.gmra.mxu0 %v3028
        %v3161 = vpop.f32.mrf.mxu0
        %v3162 = vadd.f32 0.0, %v3161
        %v3163 = vpop.f32.mrf.mxu0
        %v3164 = vadd.f32 0.0, %v3163
        %3165 = vmatmul.bf16.gmra.mxu0 %v3029
        %v3166 = vpop.f32.mrf.mxu0
        %v3167 = vadd.f32 0.0, %v3166
        %v3168 = vpop.f32.mrf.mxu0
        %v3169 = vadd.f32 0.0, %v3168
        %3170 = vmatmul.bf16.gmra.mxu0 %v3030
        %v3171 = vpop.f32.mrf.mxu0
        %v3172 = vadd.f32 0.0, %v3171
        %v3173 = vpop.f32.mrf.mxu0
        %v3174 = vadd.f32 0.0, %v3173
        %3175 = vmatmul.bf16.gmra.mxu0 %v3031
        %v3176 = vpop.f32.mrf.mxu0
        %v3177 = vadd.f32 0.0, %v3176
        %v3178 = vpop.f32.mrf.mxu0
        %v3179 = vadd.f32 0.0, %v3178
        %3180 = vmatmul.bf16.gmra.mxu0 %v3032
        %v3181 = vpop.f32.mrf.mxu0
        %v3182 = vadd.f32 0.0, %v3181
        %v3183 = vpop.f32.mrf.mxu0
        %v3184 = vadd.f32 0.0, %v3183
        %3185 = vdwg.mxu0
        %v3186 = vadd.f32 %v2840, %v3107
        %v3187 = vadd.f32 %v2841, %v3109
        %v3188 = vadd.f32 %v2842, %v3112
        %v3189 = vadd.f32 %v2843, %v3114
        %v3190 = vadd.f32 %v2844, %v3117
        %v3191 = vadd.f32 %v2845, %v3119
        %v3192 = vadd.f32 %v2846, %v3122
        %v3193 = vadd.f32 %v2847, %v3124
        %v3194 = vadd.f32 %v2848, %v3127
        %v3195 = vadd.f32 %v2849, %v3129
        %v3196 = vadd.f32 %v2850, %v3132
        %v3197 = vadd.f32 %v2851, %v3134
        %v3198 = vadd.f32 %v2852, %v3137
        %v3199 = vadd.f32 %v2853, %v3139
        %v3200 = vadd.f32 %v2854, %v3142
        %v3201 = vadd.f32 %v2855, %v3144
        %v3202 = vadd.f32 %v2856, %v3147
        %v3203 = vadd.f32 %v2857, %v3149
        %v3204 = vadd.f32 %v2858, %v3152
        %v3205 = vadd.f32 %v2859, %v3154
        %v3206 = vadd.f32 %v2860, %v3157
        %v3207 = vadd.f32 %v2861, %v3159
        %v3208 = vadd.f32 %v2862, %v3162
        %v3209 = vadd.f32 %v2863, %v3164
        %v3210 = vadd.f32 %v2864, %v3167
        %v3211 = vadd.f32 %v2865, %v3169
        %v3212 = vadd.f32 %v2866, %v3172
        %v3213 = vadd.f32 %v2867, %v3174
        %v3214 = vadd.f32 %v2868, %v3177
        %v3215 = vadd.f32 %v2869, %v3179
        %v3216 = vadd.f32 %v2870, %v3182
        %v3217 = vadd.f32 %v2871, %v3184
        %v3218 = vld [vmem:[%s1520 + $0x2] sm:$0xff]
        %v3219 = vld [vmem:[%s1520 + $0xa] sm:$0xff]
        %v3220 = vld [vmem:[%s1520 + $0x1a] sm:$0xff]
        %v3221 = vld [vmem:[%s1520 + $0x22] sm:$0xff]
        %v3222 = vld [vmem:[%s1520 + $0x32] sm:$0xff]
        %v3223 = vld [vmem:[%s1520 + $0x3a] sm:$0xff]
        %v3224 = vld [vmem:[%s1520 + $0x4a] sm:$0xff]
        %v3225 = vld [vmem:[%s1520 + $0x52] sm:$0xff]
        %v3226 = vld [vmem:[%s1520 + $0x62] sm:$0xff]
        %v3227 = vld [vmem:[%s1520 + $0x6a] sm:$0xff]
        %v3228 = vld [vmem:[%s1520 + $0x7a] sm:$0xff]
        %v3229 = vld [vmem:[%s1520 + $0x82] sm:$0xff]
        %v3230 = vld [vmem:[%s1520 + $0x92] sm:$0xff]
        %v3231 = vld [vmem:[%s1520 + $0x9a] sm:$0xff]
        %v3232 = vld [vmem:[%s1520 + $0xaa] sm:$0xff]
        %v3233 = vld [vmem:[%s1520 + $0xb2] sm:$0xff]
        %v3234 = vld [vmem:[%s1520 + $0xc2] sm:$0xff]
        %v3235 = vld [vmem:[%s1520 + $0xca] sm:$0xff]
        %v3236 = vld [vmem:[%s1520 + $0xda] sm:$0xff]
        %v3237 = vld [vmem:[%s1520 + $0xe2] sm:$0xff]
        %v3238 = vld [vmem:[%s1520 + $0xf2] sm:$0xff]
        %v3239 = vld [vmem:[%s1520 + $0xfa] sm:$0xff]
        %v3240 = vld [vmem:[%s1520 + $0x10a] sm:$0xff]
        %v3241 = vld [vmem:[%s1520 + $0x112] sm:$0xff]
        %v3242 = vld [vmem:[%s1520 + $0x122] sm:$0xff]
        %v3243 = vld [vmem:[%s1520 + $0x12a] sm:$0xff]
        %v3244 = vld [vmem:[%s1520 + $0x13a] sm:$0xff]
        %v3245 = vld [vmem:[%s1520 + $0x142] sm:$0xff]
        %v3246 = vld [vmem:[%s1520 + $0x152] sm:$0xff]
        %v3247 = vld [vmem:[%s1520 + $0x15a] sm:$0xff]
        %v3248 = vld [vmem:[%s1520 + $0x16a] sm:$0xff]
        %v3249 = vld [vmem:[%s1520 + $0x172] sm:$0xff]
        %v3250 = vpack.c.bf16 %v3218, %v3218
        %v3251 = vpack.c.bf16 %v3219, %v3219
        %v3252 = vpack.c.bf16 %v3220, %v3220
        %v3253 = vpack.c.bf16 %v3221, %v3221
        %v3254 = vpack.c.bf16 %v3222, %v3222
        %v3255 = vpack.c.bf16 %v3223, %v3223
        %v3256 = vpack.c.bf16 %v3224, %v3224
        %v3257 = vpack.c.bf16 %v3225, %v3225
        %v3258 = vpack.c.bf16 %v3226, %v3226
        %v3259 = vpack.c.bf16 %v3227, %v3227
        %v3260 = vpack.c.bf16 %v3228, %v3228
        %v3261 = vpack.c.bf16 %v3229, %v3229
        %v3262 = vpack.c.bf16 %v3230, %v3230
        %v3263 = vpack.c.bf16 %v3231, %v3231
        %v3264 = vpack.c.bf16 %v3232, %v3232
        %v3265 = vpack.c.bf16 %v3233, %v3233
        %v3266 = vpack.c.bf16 %v3234, %v3234
        %v3267 = vpack.c.bf16 %v3235, %v3235
        %v3268 = vpack.c.bf16 %v3236, %v3236
        %v3269 = vpack.c.bf16 %v3237, %v3237
        %v3270 = vpack.c.bf16 %v3238, %v3238
        %v3271 = vpack.c.bf16 %v3239, %v3239
        %v3272 = vpack.c.bf16 %v3240, %v3240
        %v3273 = vpack.c.bf16 %v3241, %v3241
        %v3274 = vpack.c.bf16 %v3242, %v3242
        %v3275 = vpack.c.bf16 %v3243, %v3243
        %v3276 = vpack.c.bf16 %v3244, %v3244
        %v3277 = vpack.c.bf16 %v3245, %v3245
        %v3278 = vpack.c.bf16 %v3246, %v3246
        %v3279 = vpack.c.bf16 %v3247, %v3247
        %v3280 = vpack.c.bf16 %v3248, %v3248
        %v3281 = vpack.c.bf16 %v3249, %v3249
        %s3282 = scalar_lea.vmem %s5, 320
        %v3283 = vld [vmem:[%s3282] sm:$0xf]
        %v3284 = vld [vmem:[%s3282 + $0x4] sm:$0xf]
        %v3285 = vld [vmem:[%s3282 + $0x8] sm:$0xf]
        %v3286 = vld [vmem:[%s3282 + $0xc] sm:$0xf]
        %v3287 = vld [vmem:[%s3282 + $0x10] sm:$0xf]
        %v3288 = vld [vmem:[%s3282 + $0x14] sm:$0xf]
        %v3289 = vld [vmem:[%s3282 + $0x18] sm:$0xf]
        %v3290 = vld [vmem:[%s3282 + $0x1c] sm:$0xf]
        %v3291 = vld [vmem:[%s3282 + $0x20] sm:$0xf]
        %v3292 = vld [vmem:[%s3282 + $0x24] sm:$0xf]
        %v3293 = vld [vmem:[%s3282 + $0x28] sm:$0xf]
        %v3294 = vld [vmem:[%s3282 + $0x2c] sm:$0xf]
        %v3295 = vld [vmem:[%s3282 + $0x30] sm:$0xf]
        %v3296 = vld [vmem:[%s3282 + $0x34] sm:$0xf]
        %v3297 = vld [vmem:[%s3282 + $0x38] sm:$0xf]
        %v3298 = vld [vmem:[%s3282 + $0x3c] sm:$0xf]
        %v3331 = vunpack.c.l.b16 %v3250
        %v3332 = vunpack.c.l.b16 %v3251
        %v3333 = vunpack.c.l.b16 %v3252
        %v3334 = vunpack.c.l.b16 %v3253
        %v3335 = vunpack.c.l.b16 %v3254
        %v3336 = vunpack.c.l.b16 %v3255
        %v3337 = vunpack.c.l.b16 %v3256
        %v3338 = vunpack.c.l.b16 %v3257
        %v3339 = vunpack.c.l.b16 %v3258
        %v3340 = vunpack.c.l.b16 %v3259
        %v3341 = vunpack.c.l.b16 %v3260
        %v3342 = vunpack.c.l.b16 %v3261
        %v3343 = vunpack.c.l.b16 %v3262
        %v3344 = vunpack.c.l.b16 %v3263
        %v3345 = vunpack.c.l.b16 %v3264
        %v3346 = vunpack.c.l.b16 %v3265
        %v3347 = vunpack.c.l.b16 %v3266
        %v3348 = vunpack.c.l.b16 %v3267
        %v3349 = vunpack.c.l.b16 %v3268
        %v3350 = vunpack.c.l.b16 %v3269
        %v3351 = vunpack.c.l.b16 %v3270
        %v3352 = vunpack.c.l.b16 %v3271
        %v3353 = vunpack.c.l.b16 %v3272
        %v3354 = vunpack.c.l.b16 %v3273
        %v3355 = vunpack.c.l.b16 %v3274
        %v3356 = vunpack.c.l.b16 %v3275
        %v3357 = vunpack.c.l.b16 %v3276
        %v3358 = vunpack.c.l.b16 %v3277
        %v3359 = vunpack.c.l.b16 %v3278
        %v3360 = vunpack.c.l.b16 %v3279
        %v3361 = vunpack.c.l.b16 %v3280
        %v3362 = vunpack.c.l.b16 %v3281
        %v3363 = vpack.c.b16 %v3332, %v3331
        %v3364 = vpack.c.b16 %v3334, %v3333
        %v3365 = vpack.c.b16 %v3336, %v3335
        %v3366 = vpack.c.b16 %v3338, %v3337
        %v3367 = vpack.c.b16 %v3340, %v3339
        %v3368 = vpack.c.b16 %v3342, %v3341
        %v3369 = vpack.c.b16 %v3344, %v3343
        %v3370 = vpack.c.b16 %v3346, %v3345
        %v3371 = vpack.c.b16 %v3348, %v3347
        %v3372 = vpack.c.b16 %v3350, %v3349
        %v3373 = vpack.c.b16 %v3352, %v3351
        %v3374 = vpack.c.b16 %v3354, %v3353
        %v3375 = vpack.c.b16 %v3356, %v3355
        %v3376 = vpack.c.b16 %v3358, %v3357
        %v3377 = vpack.c.b16 %v3360, %v3359
        %v3378 = vpack.c.b16 %v3362, %v3361
        %v3411 = vunpack.c.l.b16 %v3283
        %v3412 = vunpack.c.l.b16 %v3284
        %v3413 = vunpack.c.l.b16 %v3285
        %v3414 = vunpack.c.l.b16 %v3286
        %v3415 = vunpack.c.l.b16 %v3287
        %v3416 = vunpack.c.l.b16 %v3288
        %v3417 = vunpack.c.l.b16 %v3289
        %v3418 = vunpack.c.l.b16 %v3290
        %v3419 = vunpack.c.l.b16 %v3291
        %v3420 = vunpack.c.l.b16 %v3292
        %v3421 = vunpack.c.l.b16 %v3293
        %v3422 = vunpack.c.l.b16 %v3294
        %v3423 = vunpack.c.l.b16 %v3295
        %v3424 = vunpack.c.l.b16 %v3296
        %v3425 = vunpack.c.l.b16 %v3297
        %v3426 = vunpack.c.l.b16 %v3298
        %v3427 = vpack.c.b16 %v3412, %v3411
        %v3428 = vpack.c.b16 %v3414, %v3413
        %v3429 = vpack.c.b16 %v3416, %v3415
        %v3430 = vpack.c.b16 %v3418, %v3417
        %v3431 = vpack.c.b16 %v3420, %v3419
        %v3432 = vpack.c.b16 %v3422, %v3421
        %v3433 = vpack.c.b16 %v3424, %v3423
        %v3434 = vpack.c.b16 %v3426, %v3425
        %3443 = vmatpush.bf16.msra.mxu0 %v3434
        %3444 = vmatpush.bf16.msra.mxu0 %v3433
        %3445 = vmatpush.bf16.msra.mxu0 %v3432
        %3446 = vmatpush.bf16.msra.mxu0 %v3431
        %3447 = vmatpush.bf16.msra.mxu0 %v3430
        %3448 = vmatpush.bf16.msra.mxu0 %v3429
        %3449 = vmatpush.bf16.msra.mxu0 %v3428
        %3450 = vmatpush.bf16.msra.mxu0 %v3427
        %3451 = vmatmul.bf16.gmra.mxu0 %v3363
        %v3452 = vpop.f32.mrf.mxu0
        %v3453 = vadd.f32 0.0, %v3452
        %v3454 = vpop.f32.mrf.mxu0
        %v3455 = vadd.f32 0.0, %v3454
        %3456 = vmatmul.bf16.gmra.mxu0 %v3364
        %v3457 = vpop.f32.mrf.mxu0
        %v3458 = vadd.f32 0.0, %v3457
        %v3459 = vpop.f32.mrf.mxu0
        %v3460 = vadd.f32 0.0, %v3459
        %3461 = vmatmul.bf16.gmra.mxu0 %v3365
        %v3462 = vpop.f32.mrf.mxu0
        %v3463 = vadd.f32 0.0, %v3462
        %v3464 = vpop.f32.mrf.mxu0
        %v3465 = vadd.f32 0.0, %v3464
        %3466 = vmatmul.bf16.gmra.mxu0 %v3366
        %v3467 = vpop.f32.mrf.mxu0
        %v3468 = vadd.f32 0.0, %v3467
        %v3469 = vpop.f32.mrf.mxu0
        %v3470 = vadd.f32 0.0, %v3469
        %3471 = vmatmul.bf16.gmra.mxu0 %v3367
        %v3472 = vpop.f32.mrf.mxu0
        %v3473 = vadd.f32 0.0, %v3472
        %v3474 = vpop.f32.mrf.mxu0
        %v3475 = vadd.f32 0.0, %v3474
        %3476 = vmatmul.bf16.gmra.mxu0 %v3368
        %v3477 = vpop.f32.mrf.mxu0
        %v3478 = vadd.f32 0.0, %v3477
        %v3479 = vpop.f32.mrf.mxu0
        %v3480 = vadd.f32 0.0, %v3479
        %3481 = vmatmul.bf16.gmra.mxu0 %v3369
        %v3482 = vpop.f32.mrf.mxu0
        %v3483 = vadd.f32 0.0, %v3482
        %v3484 = vpop.f32.mrf.mxu0
        %v3485 = vadd.f32 0.0, %v3484
        %3486 = vmatmul.bf16.gmra.mxu0 %v3370
        %v3487 = vpop.f32.mrf.mxu0
        %v3488 = vadd.f32 0.0, %v3487
        %v3489 = vpop.f32.mrf.mxu0
        %v3490 = vadd.f32 0.0, %v3489
        %3491 = vmatmul.bf16.gmra.mxu0 %v3371
        %v3492 = vpop.f32.mrf.mxu0
        %v3493 = vadd.f32 0.0, %v3492
        %v3494 = vpop.f32.mrf.mxu0
        %v3495 = vadd.f32 0.0, %v3494
        %3496 = vmatmul.bf16.gmra.mxu0 %v3372
        %v3497 = vpop.f32.mrf.mxu0
        %v3498 = vadd.f32 0.0, %v3497
        %v3499 = vpop.f32.mrf.mxu0
        %v3500 = vadd.f32 0.0, %v3499
        %3501 = vmatmul.bf16.gmra.mxu0 %v3373
        %v3502 = vpop.f32.mrf.mxu0
        %v3503 = vadd.f32 0.0, %v3502
        %v3504 = vpop.f32.mrf.mxu0
        %v3505 = vadd.f32 0.0, %v3504
        %3506 = vmatmul.bf16.gmra.mxu0 %v3374
        %v3507 = vpop.f32.mrf.mxu0
        %v3508 = vadd.f32 0.0, %v3507
        %v3509 = vpop.f32.mrf.mxu0
        %v3510 = vadd.f32 0.0, %v3509
        %3511 = vmatmul.bf16.gmra.mxu0 %v3375
        %v3512 = vpop.f32.mrf.mxu0
        %v3513 = vadd.f32 0.0, %v3512
        %v3514 = vpop.f32.mrf.mxu0
        %v3515 = vadd.f32 0.0, %v3514
        %3516 = vmatmul.bf16.gmra.mxu0 %v3376
        %v3517 = vpop.f32.mrf.mxu0
        %v3518 = vadd.f32 0.0, %v3517
        %v3519 = vpop.f32.mrf.mxu0
        %v3520 = vadd.f32 0.0, %v3519
        %3521 = vmatmul.bf16.gmra.mxu0 %v3377
        %v3522 = vpop.f32.mrf.mxu0
        %v3523 = vadd.f32 0.0, %v3522
        %v3524 = vpop.f32.mrf.mxu0
        %v3525 = vadd.f32 0.0, %v3524
        %3526 = vmatmul.bf16.gmra.mxu0 %v3378
        %v3527 = vpop.f32.mrf.mxu0
        %v3528 = vadd.f32 0.0, %v3527
        %v3529 = vpop.f32.mrf.mxu0
        %v3530 = vadd.f32 0.0, %v3529
        %3531 = vdwg.mxu0
        %v3532 = vadd.f32 %v3186, %v3453
        %v3533 = vadd.f32 %v3187, %v3455
        %v3534 = vadd.f32 %v3188, %v3458
        %v3535 = vadd.f32 %v3189, %v3460
        %v3536 = vadd.f32 %v3190, %v3463
        %v3537 = vadd.f32 %v3191, %v3465
        %v3538 = vadd.f32 %v3192, %v3468
        %v3539 = vadd.f32 %v3193, %v3470
        %v3540 = vadd.f32 %v3194, %v3473
        %v3541 = vadd.f32 %v3195, %v3475
        %v3542 = vadd.f32 %v3196, %v3478
        %v3543 = vadd.f32 %v3197, %v3480
        %v3544 = vadd.f32 %v3198, %v3483
        %v3545 = vadd.f32 %v3199, %v3485
        %v3546 = vadd.f32 %v3200, %v3488
        %v3547 = vadd.f32 %v3201, %v3490
        %v3548 = vadd.f32 %v3202, %v3493
        %v3549 = vadd.f32 %v3203, %v3495
        %v3550 = vadd.f32 %v3204, %v3498
        %v3551 = vadd.f32 %v3205, %v3500
        %v3552 = vadd.f32 %v3206, %v3503
        %v3553 = vadd.f32 %v3207, %v3505
        %v3554 = vadd.f32 %v3208, %v3508
        %v3555 = vadd.f32 %v3209, %v3510
        %v3556 = vadd.f32 %v3210, %v3513
        %v3557 = vadd.f32 %v3211, %v3515
        %v3558 = vadd.f32 %v3212, %v3518
        %v3559 = vadd.f32 %v3213, %v3520
        %v3560 = vadd.f32 %v3214, %v3523
        %v3561 = vadd.f32 %v3215, %v3525
        %v3562 = vadd.f32 %v3216, %v3528
        %v3563 = vadd.f32 %v3217, %v3530
        %s3564 = scalar_lea.vmem [#allocation2], 48
        %v3565 = vld [vmem:[%s3564] sm:$0xff]
        %v3566 = vld [vmem:[%s3564 + $0x8] sm:$0xff]
        %v3567 = vld [vmem:[%s3564 + $0x18] sm:$0xff]
        %v3568 = vld [vmem:[%s3564 + $0x20] sm:$0xff]
        %v3569 = vld [vmem:[%s3564 + $0x30] sm:$0xff]
        %v3570 = vld [vmem:[%s3564 + $0x38] sm:$0xff]
        %v3571 = vld [vmem:[%s3564 + $0x48] sm:$0xff]
        %v3572 = vld [vmem:[%s3564 + $0x50] sm:$0xff]
        %v3573 = vld [vmem:[%s3564 + $0x60] sm:$0xff]
        %v3574 = vld [vmem:[%s3564 + $0x68] sm:$0xff]
        %v3575 = vld [vmem:[%s3564 + $0x78] sm:$0xff]
        %v3576 = vld [vmem:[%s3564 + $0x80] sm:$0xff]
        %v3577 = vld [vmem:[%s3564 + $0x90] sm:$0xff]
        %v3578 = vld [vmem:[%s3564 + $0x98] sm:$0xff]
        %v3579 = vld [vmem:[%s3564 + $0xa8] sm:$0xff]
        %v3580 = vld [vmem:[%s3564 + $0xb0] sm:$0xff]
        %v3581 = vld [vmem:[%s3564 + $0xc0] sm:$0xff]
        %v3582 = vld [vmem:[%s3564 + $0xc8] sm:$0xff]
        %v3583 = vld [vmem:[%s3564 + $0xd8] sm:$0xff]
        %v3584 = vld [vmem:[%s3564 + $0xe0] sm:$0xff]
        %v3585 = vld [vmem:[%s3564 + $0xf0] sm:$0xff]
        %v3586 = vld [vmem:[%s3564 + $0xf8] sm:$0xff]
        %v3587 = vld [vmem:[%s3564 + $0x108] sm:$0xff]
        %v3588 = vld [vmem:[%s3564 + $0x110] sm:$0xff]
        %v3589 = vld [vmem:[%s3564 + $0x120] sm:$0xff]
        %v3590 = vld [vmem:[%s3564 + $0x128] sm:$0xff]
        %v3591 = vld [vmem:[%s3564 + $0x138] sm:$0xff]
        %v3592 = vld [vmem:[%s3564 + $0x140] sm:$0xff]
        %v3593 = vld [vmem:[%s3564 + $0x150] sm:$0xff]
        %v3594 = vld [vmem:[%s3564 + $0x158] sm:$0xff]
        %v3595 = vld [vmem:[%s3564 + $0x168] sm:$0xff]
        %v3596 = vld [vmem:[%s3564 + $0x170] sm:$0xff]
        %v3597 = vpack.c.bf16 %v3565, %v3565
        %v3598 = vpack.c.bf16 %v3566, %v3566
        %v3599 = vpack.c.bf16 %v3567, %v3567
        %v3600 = vpack.c.bf16 %v3568, %v3568
        %v3601 = vpack.c.bf16 %v3569, %v3569
        %v3602 = vpack.c.bf16 %v3570, %v3570
        %v3603 = vpack.c.bf16 %v3571, %v3571
        %v3604 = vpack.c.bf16 %v3572, %v3572
        %v3605 = vpack.c.bf16 %v3573, %v3573
        %v3606 = vpack.c.bf16 %v3574, %v3574
        %v3607 = vpack.c.bf16 %v3575, %v3575
        %v3608 = vpack.c.bf16 %v3576, %v3576
        %v3609 = vpack.c.bf16 %v3577, %v3577
        %v3610 = vpack.c.bf16 %v3578, %v3578
        %v3611 = vpack.c.bf16 %v3579, %v3579
        %v3612 = vpack.c.bf16 %v3580, %v3580
        %v3613 = vpack.c.bf16 %v3581, %v3581
        %v3614 = vpack.c.bf16 %v3582, %v3582
        %v3615 = vpack.c.bf16 %v3583, %v3583
        %v3616 = vpack.c.bf16 %v3584, %v3584
        %v3617 = vpack.c.bf16 %v3585, %v3585
        %v3618 = vpack.c.bf16 %v3586, %v3586
        %v3619 = vpack.c.bf16 %v3587, %v3587
        %v3620 = vpack.c.bf16 %v3588, %v3588
        %v3621 = vpack.c.bf16 %v3589, %v3589
        %v3622 = vpack.c.bf16 %v3590, %v3590
        %v3623 = vpack.c.bf16 %v3591, %v3591
        %v3624 = vpack.c.bf16 %v3592, %v3592
        %v3625 = vpack.c.bf16 %v3593, %v3593
        %v3626 = vpack.c.bf16 %v3594, %v3594
        %v3627 = vpack.c.bf16 %v3595, %v3595
        %v3628 = vpack.c.bf16 %v3596, %v3596
        %s3629 = scalar_lea.vmem %s5, 384
        %v3630 = vld [vmem:[%s3629] sm:$0xf]
        %v3631 = vld [vmem:[%s3629 + $0x4] sm:$0xf]
        %v3632 = vld [vmem:[%s3629 + $0x8] sm:$0xf]
        %v3633 = vld [vmem:[%s3629 + $0xc] sm:$0xf]
        %v3634 = vld [vmem:[%s3629 + $0x10] sm:$0xf]
        %v3635 = vld [vmem:[%s3629 + $0x14] sm:$0xf]
        %v3636 = vld [vmem:[%s3629 + $0x18] sm:$0xf]
        %v3637 = vld [vmem:[%s3629 + $0x1c] sm:$0xf]
        %v3638 = vld [vmem:[%s3629 + $0x20] sm:$0xf]
        %v3639 = vld [vmem:[%s3629 + $0x24] sm:$0xf]
        %v3640 = vld [vmem:[%s3629 + $0x28] sm:$0xf]
        %v3641 = vld [vmem:[%s3629 + $0x2c] sm:$0xf]
        %v3642 = vld [vmem:[%s3629 + $0x30] sm:$0xf]
        %v3643 = vld [vmem:[%s3629 + $0x34] sm:$0xf]
        %v3644 = vld [vmem:[%s3629 + $0x38] sm:$0xf]
        %v3645 = vld [vmem:[%s3629 + $0x3c] sm:$0xf]
        %v3678 = vunpack.c.l.b16 %v3597
        %v3679 = vunpack.c.l.b16 %v3598
        %v3680 = vunpack.c.l.b16 %v3599
        %v3681 = vunpack.c.l.b16 %v3600
        %v3682 = vunpack.c.l.b16 %v3601
        %v3683 = vunpack.c.l.b16 %v3602
        %v3684 = vunpack.c.l.b16 %v3603
        %v3685 = vunpack.c.l.b16 %v3604
        %v3686 = vunpack.c.l.b16 %v3605
        %v3687 = vunpack.c.l.b16 %v3606
        %v3688 = vunpack.c.l.b16 %v3607
        %v3689 = vunpack.c.l.b16 %v3608
        %v3690 = vunpack.c.l.b16 %v3609
        %v3691 = vunpack.c.l.b16 %v3610
        %v3692 = vunpack.c.l.b16 %v3611
        %v3693 = vunpack.c.l.b16 %v3612
        %v3694 = vunpack.c.l.b16 %v3613
        %v3695 = vunpack.c.l.b16 %v3614
        %v3696 = vunpack.c.l.b16 %v3615
        %v3697 = vunpack.c.l.b16 %v3616
        %v3698 = vunpack.c.l.b16 %v3617
        %v3699 = vunpack.c.l.b16 %v3618
        %v3700 = vunpack.c.l.b16 %v3619
        %v3701 = vunpack.c.l.b16 %v3620
        %v3702 = vunpack.c.l.b16 %v3621
        %v3703 = vunpack.c.l.b16 %v3622
        %v3704 = vunpack.c.l.b16 %v3623
        %v3705 = vunpack.c.l.b16 %v3624
        %v3706 = vunpack.c.l.b16 %v3625
        %v3707 = vunpack.c.l.b16 %v3626
        %v3708 = vunpack.c.l.b16 %v3627
        %v3709 = vunpack.c.l.b16 %v3628
        %v3710 = vpack.c.b16 %v3679, %v3678
        %v3711 = vpack.c.b16 %v3681, %v3680
        %v3712 = vpack.c.b16 %v3683, %v3682
        %v3713 = vpack.c.b16 %v3685, %v3684
        %v3714 = vpack.c.b16 %v3687, %v3686
        %v3715 = vpack.c.b16 %v3689, %v3688
        %v3716 = vpack.c.b16 %v3691, %v3690
        %v3717 = vpack.c.b16 %v3693, %v3692
        %v3718 = vpack.c.b16 %v3695, %v3694
        %v3719 = vpack.c.b16 %v3697, %v3696
        %v3720 = vpack.c.b16 %v3699, %v3698
        %v3721 = vpack.c.b16 %v3701, %v3700
        %v3722 = vpack.c.b16 %v3703, %v3702
        %v3723 = vpack.c.b16 %v3705, %v3704
        %v3724 = vpack.c.b16 %v3707, %v3706
        %v3725 = vpack.c.b16 %v3709, %v3708
        %v3758 = vunpack.c.l.b16 %v3630
        %v3759 = vunpack.c.l.b16 %v3631
        %v3760 = vunpack.c.l.b16 %v3632
        %v3761 = vunpack.c.l.b16 %v3633
        %v3762 = vunpack.c.l.b16 %v3634
        %v3763 = vunpack.c.l.b16 %v3635
        %v3764 = vunpack.c.l.b16 %v3636
        %v3765 = vunpack.c.l.b16 %v3637
        %v3766 = vunpack.c.l.b16 %v3638
        %v3767 = vunpack.c.l.b16 %v3639
        %v3768 = vunpack.c.l.b16 %v3640
        %v3769 = vunpack.c.l.b16 %v3641
        %v3770 = vunpack.c.l.b16 %v3642
        %v3771 = vunpack.c.l.b16 %v3643
        %v3772 = vunpack.c.l.b16 %v3644
        %v3773 = vunpack.c.l.b16 %v3645
        %v3774 = vpack.c.b16 %v3759, %v3758
        %v3775 = vpack.c.b16 %v3761, %v3760
        %v3776 = vpack.c.b16 %v3763, %v3762
        %v3777 = vpack.c.b16 %v3765, %v3764
        %v3778 = vpack.c.b16 %v3767, %v3766
        %v3779 = vpack.c.b16 %v3769, %v3768
        %v3780 = vpack.c.b16 %v3771, %v3770
        %v3781 = vpack.c.b16 %v3773, %v3772
        %3790 = vmatpush.bf16.msra.mxu0 %v3781
        %3791 = vmatpush.bf16.msra.mxu0 %v3780
        %3792 = vmatpush.bf16.msra.mxu0 %v3779
        %3793 = vmatpush.bf16.msra.mxu0 %v3778
        %3794 = vmatpush.bf16.msra.mxu0 %v3777
        %3795 = vmatpush.bf16.msra.mxu0 %v3776
        %3796 = vmatpush.bf16.msra.mxu0 %v3775
        %3797 = vmatpush.bf16.msra.mxu0 %v3774
        %3798 = vmatmul.bf16.gmra.mxu0 %v3710
        %v3799 = vpop.f32.mrf.mxu0
        %v3800 = vadd.f32 0.0, %v3799
        %v3801 = vpop.f32.mrf.mxu0
        %v3802 = vadd.f32 0.0, %v3801
        %3803 = vmatmul.bf16.gmra.mxu0 %v3711
        %v3804 = vpop.f32.mrf.mxu0
        %v3805 = vadd.f32 0.0, %v3804
        %v3806 = vpop.f32.mrf.mxu0
        %v3807 = vadd.f32 0.0, %v3806
        %3808 = vmatmul.bf16.gmra.mxu0 %v3712
        %v3809 = vpop.f32.mrf.mxu0
        %v3810 = vadd.f32 0.0, %v3809
        %v3811 = vpop.f32.mrf.mxu0
        %v3812 = vadd.f32 0.0, %v3811
        %3813 = vmatmul.bf16.gmra.mxu0 %v3713
        %v3814 = vpop.f32.mrf.mxu0
        %v3815 = vadd.f32 0.0, %v3814
        %v3816 = vpop.f32.mrf.mxu0
        %v3817 = vadd.f32 0.0, %v3816
        %3818 = vmatmul.bf16.gmra.mxu0 %v3714
        %v3819 = vpop.f32.mrf.mxu0
        %v3820 = vadd.f32 0.0, %v3819
        %v3821 = vpop.f32.mrf.mxu0
        %v3822 = vadd.f32 0.0, %v3821
        %3823 = vmatmul.bf16.gmra.mxu0 %v3715
        %v3824 = vpop.f32.mrf.mxu0
        %v3825 = vadd.f32 0.0, %v3824
        %v3826 = vpop.f32.mrf.mxu0
        %v3827 = vadd.f32 0.0, %v3826
        %3828 = vmatmul.bf16.gmra.mxu0 %v3716
        %v3829 = vpop.f32.mrf.mxu0
        %v3830 = vadd.f32 0.0, %v3829
        %v3831 = vpop.f32.mrf.mxu0
        %v3832 = vadd.f32 0.0, %v3831
        %3833 = vmatmul.bf16.gmra.mxu0 %v3717
        %v3834 = vpop.f32.mrf.mxu0
        %v3835 = vadd.f32 0.0, %v3834
        %v3836 = vpop.f32.mrf.mxu0
        %v3837 = vadd.f32 0.0, %v3836
        %3838 = vmatmul.bf16.gmra.mxu0 %v3718
        %v3839 = vpop.f32.mrf.mxu0
        %v3840 = vadd.f32 0.0, %v3839
        %v3841 = vpop.f32.mrf.mxu0
        %v3842 = vadd.f32 0.0, %v3841
        %3843 = vmatmul.bf16.gmra.mxu0 %v3719
        %v3844 = vpop.f32.mrf.mxu0
        %v3845 = vadd.f32 0.0, %v3844
        %v3846 = vpop.f32.mrf.mxu0
        %v3847 = vadd.f32 0.0, %v3846
        %3848 = vmatmul.bf16.gmra.mxu0 %v3720
        %v3849 = vpop.f32.mrf.mxu0
        %v3850 = vadd.f32 0.0, %v3849
        %v3851 = vpop.f32.mrf.mxu0
        %v3852 = vadd.f32 0.0, %v3851
        %3853 = vmatmul.bf16.gmra.mxu0 %v3721
        %v3854 = vpop.f32.mrf.mxu0
        %v3855 = vadd.f32 0.0, %v3854
        %v3856 = vpop.f32.mrf.mxu0
        %v3857 = vadd.f32 0.0, %v3856
        %3858 = vmatmul.bf16.gmra.mxu0 %v3722
        %v3859 = vpop.f32.mrf.mxu0
        %v3860 = vadd.f32 0.0, %v3859
        %v3861 = vpop.f32.mrf.mxu0
        %v3862 = vadd.f32 0.0, %v3861
        %3863 = vmatmul.bf16.gmra.mxu0 %v3723
        %v3864 = vpop.f32.mrf.mxu0
        %v3865 = vadd.f32 0.0, %v3864
        %v3866 = vpop.f32.mrf.mxu0
        %v3867 = vadd.f32 0.0, %v3866
        %3868 = vmatmul.bf16.gmra.mxu0 %v3724
        %v3869 = vpop.f32.mrf.mxu0
        %v3870 = vadd.f32 0.0, %v3869
        %v3871 = vpop.f32.mrf.mxu0
        %v3872 = vadd.f32 0.0, %v3871
        %3873 = vmatmul.bf16.gmra.mxu0 %v3725
        %v3874 = vpop.f32.mrf.mxu0
        %v3875 = vadd.f32 0.0, %v3874
        %v3876 = vpop.f32.mrf.mxu0
        %v3877 = vadd.f32 0.0, %v3876
        %3878 = vdwg.mxu0
        %v3879 = vadd.f32 %v3532, %v3800
        %v3880 = vadd.f32 %v3533, %v3802
        %v3881 = vadd.f32 %v3534, %v3805
        %v3882 = vadd.f32 %v3535, %v3807
        %v3883 = vadd.f32 %v3536, %v3810
        %v3884 = vadd.f32 %v3537, %v3812
        %v3885 = vadd.f32 %v3538, %v3815
        %v3886 = vadd.f32 %v3539, %v3817
        %v3887 = vadd.f32 %v3540, %v3820
        %v3888 = vadd.f32 %v3541, %v3822
        %v3889 = vadd.f32 %v3542, %v3825
        %v3890 = vadd.f32 %v3543, %v3827
        %v3891 = vadd.f32 %v3544, %v3830
        %v3892 = vadd.f32 %v3545, %v3832
        %v3893 = vadd.f32 %v3546, %v3835
        %v3894 = vadd.f32 %v3547, %v3837
        %v3895 = vadd.f32 %v3548, %v3840
        %v3896 = vadd.f32 %v3549, %v3842
        %v3897 = vadd.f32 %v3550, %v3845
        %v3898 = vadd.f32 %v3551, %v3847
        %v3899 = vadd.f32 %v3552, %v3850
        %v3900 = vadd.f32 %v3553, %v3852
        %v3901 = vadd.f32 %v3554, %v3855
        %v3902 = vadd.f32 %v3555, %v3857
        %v3903 = vadd.f32 %v3556, %v3860
        %v3904 = vadd.f32 %v3557, %v3862
        %v3905 = vadd.f32 %v3558, %v3865
        %v3906 = vadd.f32 %v3559, %v3867
        %v3907 = vadd.f32 %v3560, %v3870
        %v3908 = vadd.f32 %v3561, %v3872
        %v3909 = vadd.f32 %v3562, %v3875
        %v3910 = vadd.f32 %v3563, %v3877
        %v3911 = vld [vmem:[%s3564 + $0x1] sm:$0xff]
        %v3912 = vld [vmem:[%s3564 + $0x9] sm:$0xff]
        %v3913 = vld [vmem:[%s3564 + $0x19] sm:$0xff]
        %v3914 = vld [vmem:[%s3564 + $0x21] sm:$0xff]
        %v3915 = vld [vmem:[%s3564 + $0x31] sm:$0xff]
        %v3916 = vld [vmem:[%s3564 + $0x39] sm:$0xff]
        %v3917 = vld [vmem:[%s3564 + $0x49] sm:$0xff]
        %v3918 = vld [vmem:[%s3564 + $0x51] sm:$0xff]
        %v3919 = vld [vmem:[%s3564 + $0x61] sm:$0xff]
        %v3920 = vld [vmem:[%s3564 + $0x69] sm:$0xff]
        %v3921 = vld [vmem:[%s3564 + $0x79] sm:$0xff]
        %v3922 = vld [vmem:[%s3564 + $0x81] sm:$0xff]
        %v3923 = vld [vmem:[%s3564 + $0x91] sm:$0xff]
        %v3924 = vld [vmem:[%s3564 + $0x99] sm:$0xff]
        %v3925 = vld [vmem:[%s3564 + $0xa9] sm:$0xff]
        %v3926 = vld [vmem:[%s3564 + $0xb1] sm:$0xff]
        %v3927 = vld [vmem:[%s3564 + $0xc1] sm:$0xff]
        %v3928 = vld [vmem:[%s3564 + $0xc9] sm:$0xff]
        %v3929 = vld [vmem:[%s3564 + $0xd9] sm:$0xff]
        %v3930 = vld [vmem:[%s3564 + $0xe1] sm:$0xff]
        %v3931 = vld [vmem:[%s3564 + $0xf1] sm:$0xff]
        %v3932 = vld [vmem:[%s3564 + $0xf9] sm:$0xff]
        %v3933 = vld [vmem:[%s3564 + $0x109] sm:$0xff]
        %v3934 = vld [vmem:[%s3564 + $0x111] sm:$0xff]
        %v3935 = vld [vmem:[%s3564 + $0x121] sm:$0xff]
        %v3936 = vld [vmem:[%s3564 + $0x129] sm:$0xff]
        %v3937 = vld [vmem:[%s3564 + $0x139] sm:$0xff]
        %v3938 = vld [vmem:[%s3564 + $0x141] sm:$0xff]
        %v3939 = vld [vmem:[%s3564 + $0x151] sm:$0xff]
        %v3940 = vld [vmem:[%s3564 + $0x159] sm:$0xff]
        %v3941 = vld [vmem:[%s3564 + $0x169] sm:$0xff]
        %v3942 = vld [vmem:[%s3564 + $0x171] sm:$0xff]
        %v3943 = vpack.c.bf16 %v3911, %v3911
        %v3944 = vpack.c.bf16 %v3912, %v3912
        %v3945 = vpack.c.bf16 %v3913, %v3913
        %v3946 = vpack.c.bf16 %v3914, %v3914
        %v3947 = vpack.c.bf16 %v3915, %v3915
        %v3948 = vpack.c.bf16 %v3916, %v3916
        %v3949 = vpack.c.bf16 %v3917, %v3917
        %v3950 = vpack.c.bf16 %v3918, %v3918
        %v3951 = vpack.c.bf16 %v3919, %v3919
        %v3952 = vpack.c.bf16 %v3920, %v3920
        %v3953 = vpack.c.bf16 %v3921, %v3921
        %v3954 = vpack.c.bf16 %v3922, %v3922
        %v3955 = vpack.c.bf16 %v3923, %v3923
        %v3956 = vpack.c.bf16 %v3924, %v3924
        %v3957 = vpack.c.bf16 %v3925, %v3925
        %v3958 = vpack.c.bf16 %v3926, %v3926
        %v3959 = vpack.c.bf16 %v3927, %v3927
        %v3960 = vpack.c.bf16 %v3928, %v3928
        %v3961 = vpack.c.bf16 %v3929, %v3929
        %v3962 = vpack.c.bf16 %v3930, %v3930
        %v3963 = vpack.c.bf16 %v3931, %v3931
        %v3964 = vpack.c.bf16 %v3932, %v3932
        %v3965 = vpack.c.bf16 %v3933, %v3933
        %v3966 = vpack.c.bf16 %v3934, %v3934
        %v3967 = vpack.c.bf16 %v3935, %v3935
        %v3968 = vpack.c.bf16 %v3936, %v3936
        %v3969 = vpack.c.bf16 %v3937, %v3937
        %v3970 = vpack.c.bf16 %v3938, %v3938
        %v3971 = vpack.c.bf16 %v3939, %v3939
        %v3972 = vpack.c.bf16 %v3940, %v3940
        %v3973 = vpack.c.bf16 %v3941, %v3941
        %v3974 = vpack.c.bf16 %v3942, %v3942
        %s3975 = scalar_lea.vmem %s5, 448
        %v3976 = vld [vmem:[%s3975] sm:$0xf]
        %v3977 = vld [vmem:[%s3975 + $0x4] sm:$0xf]
        %v3978 = vld [vmem:[%s3975 + $0x8] sm:$0xf]
        %v3979 = vld [vmem:[%s3975 + $0xc] sm:$0xf]
        %v3980 = vld [vmem:[%s3975 + $0x10] sm:$0xf]
        %v3981 = vld [vmem:[%s3975 + $0x14] sm:$0xf]
        %v3982 = vld [vmem:[%s3975 + $0x18] sm:$0xf]
        %v3983 = vld [vmem:[%s3975 + $0x1c] sm:$0xf]
        %v3984 = vld [vmem:[%s3975 + $0x20] sm:$0xf]
        %v3985 = vld [vmem:[%s3975 + $0x24] sm:$0xf]
        %v3986 = vld [vmem:[%s3975 + $0x28] sm:$0xf]
        %v3987 = vld [vmem:[%s3975 + $0x2c] sm:$0xf]
        %v3988 = vld [vmem:[%s3975 + $0x30] sm:$0xf]
        %v3989 = vld [vmem:[%s3975 + $0x34] sm:$0xf]
        %v3990 = vld [vmem:[%s3975 + $0x38] sm:$0xf]
        %v3991 = vld [vmem:[%s3975 + $0x3c] sm:$0xf]
        %v4024 = vunpack.c.l.b16 %v3943
        %v4025 = vunpack.c.l.b16 %v3944
        %v4026 = vunpack.c.l.b16 %v3945
        %v4027 = vunpack.c.l.b16 %v3946
        %v4028 = vunpack.c.l.b16 %v3947
        %v4029 = vunpack.c.l.b16 %v3948
        %v4030 = vunpack.c.l.b16 %v3949
        %v4031 = vunpack.c.l.b16 %v3950
        %v4032 = vunpack.c.l.b16 %v3951
        %v4033 = vunpack.c.l.b16 %v3952
        %v4034 = vunpack.c.l.b16 %v3953
        %v4035 = vunpack.c.l.b16 %v3954
        %v4036 = vunpack.c.l.b16 %v3955
        %v4037 = vunpack.c.l.b16 %v3956
        %v4038 = vunpack.c.l.b16 %v3957
        %v4039 = vunpack.c.l.b16 %v3958
        %v4040 = vunpack.c.l.b16 %v3959
        %v4041 = vunpack.c.l.b16 %v3960
        %v4042 = vunpack.c.l.b16 %v3961
        %v4043 = vunpack.c.l.b16 %v3962
        %v4044 = vunpack.c.l.b16 %v3963
        %v4045 = vunpack.c.l.b16 %v3964
        %v4046 = vunpack.c.l.b16 %v3965
        %v4047 = vunpack.c.l.b16 %v3966
        %v4048 = vunpack.c.l.b16 %v3967
        %v4049 = vunpack.c.l.b16 %v3968
        %v4050 = vunpack.c.l.b16 %v3969
        %v4051 = vunpack.c.l.b16 %v3970
        %v4052 = vunpack.c.l.b16 %v3971
        %v4053 = vunpack.c.l.b16 %v3972
        %v4054 = vunpack.c.l.b16 %v3973
        %v4055 = vunpack.c.l.b16 %v3974
        %v4056 = vpack.c.b16 %v4025, %v4024
        %v4057 = vpack.c.b16 %v4027, %v4026
        %v4058 = vpack.c.b16 %v4029, %v4028
        %v4059 = vpack.c.b16 %v4031, %v4030
        %v4060 = vpack.c.b16 %v4033, %v4032
        %v4061 = vpack.c.b16 %v4035, %v4034
        %v4062 = vpack.c.b16 %v4037, %v4036
        %v4063 = vpack.c.b16 %v4039, %v4038
        %v4064 = vpack.c.b16 %v4041, %v4040
        %v4065 = vpack.c.b16 %v4043, %v4042
        %v4066 = vpack.c.b16 %v4045, %v4044
        %v4067 = vpack.c.b16 %v4047, %v4046
        %v4068 = vpack.c.b16 %v4049, %v4048
        %v4069 = vpack.c.b16 %v4051, %v4050
        %v4070 = vpack.c.b16 %v4053, %v4052
        %v4071 = vpack.c.b16 %v4055, %v4054
        %v4104 = vunpack.c.l.b16 %v3976
        %v4105 = vunpack.c.l.b16 %v3977
        %v4106 = vunpack.c.l.b16 %v3978
        %v4107 = vunpack.c.l.b16 %v3979
        %v4108 = vunpack.c.l.b16 %v3980
        %v4109 = vunpack.c.l.b16 %v3981
        %v4110 = vunpack.c.l.b16 %v3982
        %v4111 = vunpack.c.l.b16 %v3983
        %v4112 = vunpack.c.l.b16 %v3984
        %v4113 = vunpack.c.l.b16 %v3985
        %v4114 = vunpack.c.l.b16 %v3986
        %v4115 = vunpack.c.l.b16 %v3987
        %v4116 = vunpack.c.l.b16 %v3988
        %v4117 = vunpack.c.l.b16 %v3989
        %v4118 = vunpack.c.l.b16 %v3990
        %v4119 = vunpack.c.l.b16 %v3991
        %v4120 = vpack.c.b16 %v4105, %v4104
        %v4121 = vpack.c.b16 %v4107, %v4106
        %v4122 = vpack.c.b16 %v4109, %v4108
        %v4123 = vpack.c.b16 %v4111, %v4110
        %v4124 = vpack.c.b16 %v4113, %v4112
        %v4125 = vpack.c.b16 %v4115, %v4114
        %v4126 = vpack.c.b16 %v4117, %v4116
        %v4127 = vpack.c.b16 %v4119, %v4118
        %4136 = vmatpush.bf16.msra.mxu0 %v4127
        %4137 = vmatpush.bf16.msra.mxu0 %v4126
        %4138 = vmatpush.bf16.msra.mxu0 %v4125
        %4139 = vmatpush.bf16.msra.mxu0 %v4124
        %4140 = vmatpush.bf16.msra.mxu0 %v4123
        %4141 = vmatpush.bf16.msra.mxu0 %v4122
        %4142 = vmatpush.bf16.msra.mxu0 %v4121
        %4143 = vmatpush.bf16.msra.mxu0 %v4120
        %4144 = vmatmul.bf16.gmra.mxu0 %v4056
        %v4145 = vpop.f32.mrf.mxu0
        %v4146 = vadd.f32 0.0, %v4145
        %v4147 = vpop.f32.mrf.mxu0
        %v4148 = vadd.f32 0.0, %v4147
        %4149 = vmatmul.bf16.gmra.mxu0 %v4057
        %v4150 = vpop.f32.mrf.mxu0
        %v4151 = vadd.f32 0.0, %v4150
        %v4152 = vpop.f32.mrf.mxu0
        %v4153 = vadd.f32 0.0, %v4152
        %4154 = vmatmul.bf16.gmra.mxu0 %v4058
        %v4155 = vpop.f32.mrf.mxu0
        %v4156 = vadd.f32 0.0, %v4155
        %v4157 = vpop.f32.mrf.mxu0
        %v4158 = vadd.f32 0.0, %v4157
        %4159 = vmatmul.bf16.gmra.mxu0 %v4059
        %v4160 = vpop.f32.mrf.mxu0
        %v4161 = vadd.f32 0.0, %v4160
        %v4162 = vpop.f32.mrf.mxu0
        %v4163 = vadd.f32 0.0, %v4162
        %4164 = vmatmul.bf16.gmra.mxu0 %v4060
        %v4165 = vpop.f32.mrf.mxu0
        %v4166 = vadd.f32 0.0, %v4165
        %v4167 = vpop.f32.mrf.mxu0
        %v4168 = vadd.f32 0.0, %v4167
        %4169 = vmatmul.bf16.gmra.mxu0 %v4061
        %v4170 = vpop.f32.mrf.mxu0
        %v4171 = vadd.f32 0.0, %v4170
        %v4172 = vpop.f32.mrf.mxu0
        %v4173 = vadd.f32 0.0, %v4172
        %4174 = vmatmul.bf16.gmra.mxu0 %v4062
        %v4175 = vpop.f32.mrf.mxu0
        %v4176 = vadd.f32 0.0, %v4175
        %v4177 = vpop.f32.mrf.mxu0
        %v4178 = vadd.f32 0.0, %v4177
        %4179 = vmatmul.bf16.gmra.mxu0 %v4063
        %v4180 = vpop.f32.mrf.mxu0
        %v4181 = vadd.f32 0.0, %v4180
        %v4182 = vpop.f32.mrf.mxu0
        %v4183 = vadd.f32 0.0, %v4182
        %4184 = vmatmul.bf16.gmra.mxu0 %v4064
        %v4185 = vpop.f32.mrf.mxu0
        %v4186 = vadd.f32 0.0, %v4185
        %v4187 = vpop.f32.mrf.mxu0
        %v4188 = vadd.f32 0.0, %v4187
        %4189 = vmatmul.bf16.gmra.mxu0 %v4065
        %v4190 = vpop.f32.mrf.mxu0
        %v4191 = vadd.f32 0.0, %v4190
        %v4192 = vpop.f32.mrf.mxu0
        %v4193 = vadd.f32 0.0, %v4192
        %4194 = vmatmul.bf16.gmra.mxu0 %v4066
        %v4195 = vpop.f32.mrf.mxu0
        %v4196 = vadd.f32 0.0, %v4195
        %v4197 = vpop.f32.mrf.mxu0
        %v4198 = vadd.f32 0.0, %v4197
        %4199 = vmatmul.bf16.gmra.mxu0 %v4067
        %v4200 = vpop.f32.mrf.mxu0
        %v4201 = vadd.f32 0.0, %v4200
        %v4202 = vpop.f32.mrf.mxu0
        %v4203 = vadd.f32 0.0, %v4202
        %4204 = vmatmul.bf16.gmra.mxu0 %v4068
        %v4205 = vpop.f32.mrf.mxu0
        %v4206 = vadd.f32 0.0, %v4205
        %v4207 = vpop.f32.mrf.mxu0
        %v4208 = vadd.f32 0.0, %v4207
        %4209 = vmatmul.bf16.gmra.mxu0 %v4069
        %v4210 = vpop.f32.mrf.mxu0
        %v4211 = vadd.f32 0.0, %v4210
        %v4212 = vpop.f32.mrf.mxu0
        %v4213 = vadd.f32 0.0, %v4212
        %4214 = vmatmul.bf16.gmra.mxu0 %v4070
        %v4215 = vpop.f32.mrf.mxu0
        %v4216 = vadd.f32 0.0, %v4215
        %v4217 = vpop.f32.mrf.mxu0
        %v4218 = vadd.f32 0.0, %v4217
        %4219 = vmatmul.bf16.gmra.mxu0 %v4071
        %v4220 = vpop.f32.mrf.mxu0
        %v4221 = vadd.f32 0.0, %v4220
        %v4222 = vpop.f32.mrf.mxu0
        %v4223 = vadd.f32 0.0, %v4222
        %4224 = vdwg.mxu0
        %v4225 = vadd.f32 %v3879, %v4146
        %v4226 = vadd.f32 %v3880, %v4148
        %v4227 = vadd.f32 %v3881, %v4151
        %v4228 = vadd.f32 %v3882, %v4153
        %v4229 = vadd.f32 %v3883, %v4156
        %v4230 = vadd.f32 %v3884, %v4158
        %v4231 = vadd.f32 %v3885, %v4161
        %v4232 = vadd.f32 %v3886, %v4163
        %v4233 = vadd.f32 %v3887, %v4166
        %v4234 = vadd.f32 %v3888, %v4168
        %v4235 = vadd.f32 %v3889, %v4171
        %v4236 = vadd.f32 %v3890, %v4173
        %v4237 = vadd.f32 %v3891, %v4176
        %v4238 = vadd.f32 %v3892, %v4178
        %v4239 = vadd.f32 %v3893, %v4181
        %v4240 = vadd.f32 %v3894, %v4183
        %v4241 = vadd.f32 %v3895, %v4186
        %v4242 = vadd.f32 %v3896, %v4188
        %v4243 = vadd.f32 %v3897, %v4191
        %v4244 = vadd.f32 %v3898, %v4193
        %v4245 = vadd.f32 %v3899, %v4196
        %v4246 = vadd.f32 %v3900, %v4198
        %v4247 = vadd.f32 %v3901, %v4201
        %v4248 = vadd.f32 %v3902, %v4203
        %v4249 = vadd.f32 %v3903, %v4206
        %v4250 = vadd.f32 %v3904, %v4208
        %v4251 = vadd.f32 %v3905, %v4211
        %v4252 = vadd.f32 %v3906, %v4213
        %v4253 = vadd.f32 %v3907, %v4216
        %v4254 = vadd.f32 %v3908, %v4218
        %v4255 = vadd.f32 %v3909, %v4221
        %v4256 = vadd.f32 %v3910, %v4223
        %v4257 = vld [vmem:[%s3564 + $0x2] sm:$0xff]
        %v4258 = vld [vmem:[%s3564 + $0xa] sm:$0xff]
        %v4259 = vld [vmem:[%s3564 + $0x1a] sm:$0xff]
        %v4260 = vld [vmem:[%s3564 + $0x22] sm:$0xff]
        %v4261 = vld [vmem:[%s3564 + $0x32] sm:$0xff]
        %v4262 = vld [vmem:[%s3564 + $0x3a] sm:$0xff]
        %v4263 = vld [vmem:[%s3564 + $0x4a] sm:$0xff]
        %v4264 = vld [vmem:[%s3564 + $0x52] sm:$0xff]
        %v4265 = vld [vmem:[%s3564 + $0x62] sm:$0xff]
        %v4266 = vld [vmem:[%s3564 + $0x6a] sm:$0xff]
        %v4267 = vld [vmem:[%s3564 + $0x7a] sm:$0xff]
        %v4268 = vld [vmem:[%s3564 + $0x82] sm:$0xff]
        %v4269 = vld [vmem:[%s3564 + $0x92] sm:$0xff]
        %v4270 = vld [vmem:[%s3564 + $0x9a] sm:$0xff]
        %v4271 = vld [vmem:[%s3564 + $0xaa] sm:$0xff]
        %v4272 = vld [vmem:[%s3564 + $0xb2] sm:$0xff]
        %v4273 = vld [vmem:[%s3564 + $0xc2] sm:$0xff]
        %v4274 = vld [vmem:[%s3564 + $0xca] sm:$0xff]
        %v4275 = vld [vmem:[%s3564 + $0xda] sm:$0xff]
        %v4276 = vld [vmem:[%s3564 + $0xe2] sm:$0xff]
        %v4277 = vld [vmem:[%s3564 + $0xf2] sm:$0xff]
        %v4278 = vld [vmem:[%s3564 + $0xfa] sm:$0xff]
        %v4279 = vld [vmem:[%s3564 + $0x10a] sm:$0xff]
        %v4280 = vld [vmem:[%s3564 + $0x112] sm:$0xff]
        %v4281 = vld [vmem:[%s3564 + $0x122] sm:$0xff]
        %v4282 = vld [vmem:[%s3564 + $0x12a] sm:$0xff]
        %v4283 = vld [vmem:[%s3564 + $0x13a] sm:$0xff]
        %v4284 = vld [vmem:[%s3564 + $0x142] sm:$0xff]
        %v4285 = vld [vmem:[%s3564 + $0x152] sm:$0xff]
        %v4286 = vld [vmem:[%s3564 + $0x15a] sm:$0xff]
        %v4287 = vld [vmem:[%s3564 + $0x16a] sm:$0xff]
        %v4288 = vld [vmem:[%s3564 + $0x172] sm:$0xff]
        %v4289 = vpack.c.bf16 %v4257, %v4257
        %v4290 = vpack.c.bf16 %v4258, %v4258
        %v4291 = vpack.c.bf16 %v4259, %v4259
        %v4292 = vpack.c.bf16 %v4260, %v4260
        %v4293 = vpack.c.bf16 %v4261, %v4261
        %v4294 = vpack.c.bf16 %v4262, %v4262
        %v4295 = vpack.c.bf16 %v4263, %v4263
        %v4296 = vpack.c.bf16 %v4264, %v4264
        %v4297 = vpack.c.bf16 %v4265, %v4265
        %v4298 = vpack.c.bf16 %v4266, %v4266
        %v4299 = vpack.c.bf16 %v4267, %v4267
        %v4300 = vpack.c.bf16 %v4268, %v4268
        %v4301 = vpack.c.bf16 %v4269, %v4269
        %v4302 = vpack.c.bf16 %v4270, %v4270
        %v4303 = vpack.c.bf16 %v4271, %v4271
        %v4304 = vpack.c.bf16 %v4272, %v4272
        %v4305 = vpack.c.bf16 %v4273, %v4273
        %v4306 = vpack.c.bf16 %v4274, %v4274
        %v4307 = vpack.c.bf16 %v4275, %v4275
        %v4308 = vpack.c.bf16 %v4276, %v4276
        %v4309 = vpack.c.bf16 %v4277, %v4277
        %v4310 = vpack.c.bf16 %v4278, %v4278
        %v4311 = vpack.c.bf16 %v4279, %v4279
        %v4312 = vpack.c.bf16 %v4280, %v4280
        %v4313 = vpack.c.bf16 %v4281, %v4281
        %v4314 = vpack.c.bf16 %v4282, %v4282
        %v4315 = vpack.c.bf16 %v4283, %v4283
        %v4316 = vpack.c.bf16 %v4284, %v4284
        %v4317 = vpack.c.bf16 %v4285, %v4285
        %v4318 = vpack.c.bf16 %v4286, %v4286
        %v4319 = vpack.c.bf16 %v4287, %v4287
        %v4320 = vpack.c.bf16 %v4288, %v4288
        %s4321 = scalar_lea.vmem %s5, 512
        %v4322 = vld [vmem:[%s4321] sm:$0xf]
        %v4323 = vld [vmem:[%s4321 + $0x4] sm:$0xf]
        %v4324 = vld [vmem:[%s4321 + $0x8] sm:$0xf]
        %v4325 = vld [vmem:[%s4321 + $0xc] sm:$0xf]
        %v4326 = vld [vmem:[%s4321 + $0x10] sm:$0xf]
        %v4327 = vld [vmem:[%s4321 + $0x14] sm:$0xf]
        %v4328 = vld [vmem:[%s4321 + $0x18] sm:$0xf]
        %v4329 = vld [vmem:[%s4321 + $0x1c] sm:$0xf]
        %v4330 = vld [vmem:[%s4321 + $0x20] sm:$0xf]
        %v4331 = vld [vmem:[%s4321 + $0x24] sm:$0xf]
        %v4332 = vld [vmem:[%s4321 + $0x28] sm:$0xf]
        %v4333 = vld [vmem:[%s4321 + $0x2c] sm:$0xf]
        %v4334 = vld [vmem:[%s4321 + $0x30] sm:$0xf]
        %v4335 = vld [vmem:[%s4321 + $0x34] sm:$0xf]
        %v4336 = vld [vmem:[%s4321 + $0x38] sm:$0xf]
        %v4337 = vld [vmem:[%s4321 + $0x3c] sm:$0xf]
        %v4370 = vunpack.c.l.b16 %v4289
        %v4371 = vunpack.c.l.b16 %v4290
        %v4372 = vunpack.c.l.b16 %v4291
        %v4373 = vunpack.c.l.b16 %v4292
        %v4374 = vunpack.c.l.b16 %v4293
        %v4375 = vunpack.c.l.b16 %v4294
        %v4376 = vunpack.c.l.b16 %v4295
        %v4377 = vunpack.c.l.b16 %v4296
        %v4378 = vunpack.c.l.b16 %v4297
        %v4379 = vunpack.c.l.b16 %v4298
        %v4380 = vunpack.c.l.b16 %v4299
        %v4381 = vunpack.c.l.b16 %v4300
        %v4382 = vunpack.c.l.b16 %v4301
        %v4383 = vunpack.c.l.b16 %v4302
        %v4384 = vunpack.c.l.b16 %v4303
        %v4385 = vunpack.c.l.b16 %v4304
        %v4386 = vunpack.c.l.b16 %v4305
        %v4387 = vunpack.c.l.b16 %v4306
        %v4388 = vunpack.c.l.b16 %v4307
        %v4389 = vunpack.c.l.b16 %v4308
        %v4390 = vunpack.c.l.b16 %v4309
        %v4391 = vunpack.c.l.b16 %v4310
        %v4392 = vunpack.c.l.b16 %v4311
        %v4393 = vunpack.c.l.b16 %v4312
        %v4394 = vunpack.c.l.b16 %v4313
        %v4395 = vunpack.c.l.b16 %v4314
        %v4396 = vunpack.c.l.b16 %v4315
        %v4397 = vunpack.c.l.b16 %v4316
        %v4398 = vunpack.c.l.b16 %v4317
        %v4399 = vunpack.c.l.b16 %v4318
        %v4400 = vunpack.c.l.b16 %v4319
        %v4401 = vunpack.c.l.b16 %v4320
        %v4402 = vpack.c.b16 %v4371, %v4370
        %v4403 = vpack.c.b16 %v4373, %v4372
        %v4404 = vpack.c.b16 %v4375, %v4374
        %v4405 = vpack.c.b16 %v4377, %v4376
        %v4406 = vpack.c.b16 %v4379, %v4378
        %v4407 = vpack.c.b16 %v4381, %v4380
        %v4408 = vpack.c.b16 %v4383, %v4382
        %v4409 = vpack.c.b16 %v4385, %v4384
        %v4410 = vpack.c.b16 %v4387, %v4386
        %v4411 = vpack.c.b16 %v4389, %v4388
        %v4412 = vpack.c.b16 %v4391, %v4390
        %v4413 = vpack.c.b16 %v4393, %v4392
        %v4414 = vpack.c.b16 %v4395, %v4394
        %v4415 = vpack.c.b16 %v4397, %v4396
        %v4416 = vpack.c.b16 %v4399, %v4398
        %v4417 = vpack.c.b16 %v4401, %v4400
        %v4450 = vunpack.c.l.b16 %v4322
        %v4451 = vunpack.c.l.b16 %v4323
        %v4452 = vunpack.c.l.b16 %v4324
        %v4453 = vunpack.c.l.b16 %v4325
        %v4454 = vunpack.c.l.b16 %v4326
        %v4455 = vunpack.c.l.b16 %v4327
        %v4456 = vunpack.c.l.b16 %v4328
        %v4457 = vunpack.c.l.b16 %v4329
        %v4458 = vunpack.c.l.b16 %v4330
        %v4459 = vunpack.c.l.b16 %v4331
        %v4460 = vunpack.c.l.b16 %v4332
        %v4461 = vunpack.c.l.b16 %v4333
        %v4462 = vunpack.c.l.b16 %v4334
        %v4463 = vunpack.c.l.b16 %v4335
        %v4464 = vunpack.c.l.b16 %v4336
        %v4465 = vunpack.c.l.b16 %v4337
        %v4466 = vpack.c.b16 %v4451, %v4450
        %v4467 = vpack.c.b16 %v4453, %v4452
        %v4468 = vpack.c.b16 %v4455, %v4454
        %v4469 = vpack.c.b16 %v4457, %v4456
        %v4470 = vpack.c.b16 %v4459, %v4458
        %v4471 = vpack.c.b16 %v4461, %v4460
        %v4472 = vpack.c.b16 %v4463, %v4462
        %v4473 = vpack.c.b16 %v4465, %v4464
        %4482 = vmatpush.bf16.msra.mxu0 %v4473
        %4483 = vmatpush.bf16.msra.mxu0 %v4472
        %4484 = vmatpush.bf16.msra.mxu0 %v4471
        %4485 = vmatpush.bf16.msra.mxu0 %v4470
        %4486 = vmatpush.bf16.msra.mxu0 %v4469
        %4487 = vmatpush.bf16.msra.mxu0 %v4468
        %4488 = vmatpush.bf16.msra.mxu0 %v4467
        %4489 = vmatpush.bf16.msra.mxu0 %v4466
        %4490 = vmatmul.bf16.gmra.mxu0 %v4402
        %v4491 = vpop.f32.mrf.mxu0
        %v4492 = vadd.f32 0.0, %v4491
        %v4493 = vpop.f32.mrf.mxu0
        %v4494 = vadd.f32 0.0, %v4493
        %4495 = vmatmul.bf16.gmra.mxu0 %v4403
        %v4496 = vpop.f32.mrf.mxu0
        %v4497 = vadd.f32 0.0, %v4496
        %v4498 = vpop.f32.mrf.mxu0
        %v4499 = vadd.f32 0.0, %v4498
        %4500 = vmatmul.bf16.gmra.mxu0 %v4404
        %v4501 = vpop.f32.mrf.mxu0
        %v4502 = vadd.f32 0.0, %v4501
        %v4503 = vpop.f32.mrf.mxu0
        %v4504 = vadd.f32 0.0, %v4503
        %4505 = vmatmul.bf16.gmra.mxu0 %v4405
        %v4506 = vpop.f32.mrf.mxu0
        %v4507 = vadd.f32 0.0, %v4506
        %v4508 = vpop.f32.mrf.mxu0
        %v4509 = vadd.f32 0.0, %v4508
        %4510 = vmatmul.bf16.gmra.mxu0 %v4406
        %v4511 = vpop.f32.mrf.mxu0
        %v4512 = vadd.f32 0.0, %v4511
        %v4513 = vpop.f32.mrf.mxu0
        %v4514 = vadd.f32 0.0, %v4513
        %4515 = vmatmul.bf16.gmra.mxu0 %v4407
        %v4516 = vpop.f32.mrf.mxu0
        %v4517 = vadd.f32 0.0, %v4516
        %v4518 = vpop.f32.mrf.mxu0
        %v4519 = vadd.f32 0.0, %v4518
        %4520 = vmatmul.bf16.gmra.mxu0 %v4408
        %v4521 = vpop.f32.mrf.mxu0
        %v4522 = vadd.f32 0.0, %v4521
        %v4523 = vpop.f32.mrf.mxu0
        %v4524 = vadd.f32 0.0, %v4523
        %4525 = vmatmul.bf16.gmra.mxu0 %v4409
        %v4526 = vpop.f32.mrf.mxu0
        %v4527 = vadd.f32 0.0, %v4526
        %v4528 = vpop.f32.mrf.mxu0
        %v4529 = vadd.f32 0.0, %v4528
        %4530 = vmatmul.bf16.gmra.mxu0 %v4410
        %v4531 = vpop.f32.mrf.mxu0
        %v4532 = vadd.f32 0.0, %v4531
        %v4533 = vpop.f32.mrf.mxu0
        %v4534 = vadd.f32 0.0, %v4533
        %4535 = vmatmul.bf16.gmra.mxu0 %v4411
        %v4536 = vpop.f32.mrf.mxu0
        %v4537 = vadd.f32 0.0, %v4536
        %v4538 = vpop.f32.mrf.mxu0
        %v4539 = vadd.f32 0.0, %v4538
        %4540 = vmatmul.bf16.gmra.mxu0 %v4412
        %v4541 = vpop.f32.mrf.mxu0
        %v4542 = vadd.f32 0.0, %v4541
        %v4543 = vpop.f32.mrf.mxu0
        %v4544 = vadd.f32 0.0, %v4543
        %4545 = vmatmul.bf16.gmra.mxu0 %v4413
        %v4546 = vpop.f32.mrf.mxu0
        %v4547 = vadd.f32 0.0, %v4546
        %v4548 = vpop.f32.mrf.mxu0
        %v4549 = vadd.f32 0.0, %v4548
        %4550 = vmatmul.bf16.gmra.mxu0 %v4414
        %v4551 = vpop.f32.mrf.mxu0
        %v4552 = vadd.f32 0.0, %v4551
        %v4553 = vpop.f32.mrf.mxu0
        %v4554 = vadd.f32 0.0, %v4553
        %4555 = vmatmul.bf16.gmra.mxu0 %v4415
        %v4556 = vpop.f32.mrf.mxu0
        %v4557 = vadd.f32 0.0, %v4556
        %v4558 = vpop.f32.mrf.mxu0
        %v4559 = vadd.f32 0.0, %v4558
        %4560 = vmatmul.bf16.gmra.mxu0 %v4416
        %v4561 = vpop.f32.mrf.mxu0
        %v4562 = vadd.f32 0.0, %v4561
        %v4563 = vpop.f32.mrf.mxu0
        %v4564 = vadd.f32 0.0, %v4563
        %4565 = vmatmul.bf16.gmra.mxu0 %v4417
        %v4566 = vpop.f32.mrf.mxu0
        %v4567 = vadd.f32 0.0, %v4566
        %v4568 = vpop.f32.mrf.mxu0
        %v4569 = vadd.f32 0.0, %v4568
        %4570 = vdwg.mxu0
        %v4571 = vadd.f32 %v4225, %v4492
        %v4572 = vadd.f32 %v4226, %v4494
        %v4573 = vadd.f32 %v4227, %v4497
        %v4574 = vadd.f32 %v4228, %v4499
        %v4575 = vadd.f32 %v4229, %v4502
        %v4576 = vadd.f32 %v4230, %v4504
        %v4577 = vadd.f32 %v4231, %v4507
        %v4578 = vadd.f32 %v4232, %v4509
        %v4579 = vadd.f32 %v4233, %v4512
        %v4580 = vadd.f32 %v4234, %v4514
        %v4581 = vadd.f32 %v4235, %v4517
        %v4582 = vadd.f32 %v4236, %v4519
        %v4583 = vadd.f32 %v4237, %v4522
        %v4584 = vadd.f32 %v4238, %v4524
        %v4585 = vadd.f32 %v4239, %v4527
        %v4586 = vadd.f32 %v4240, %v4529
        %v4587 = vadd.f32 %v4241, %v4532
        %v4588 = vadd.f32 %v4242, %v4534
        %v4589 = vadd.f32 %v4243, %v4537
        %v4590 = vadd.f32 %v4244, %v4539
        %v4591 = vadd.f32 %v4245, %v4542
        %v4592 = vadd.f32 %v4246, %v4544
        %v4593 = vadd.f32 %v4247, %v4547
        %v4594 = vadd.f32 %v4248, %v4549
        %v4595 = vadd.f32 %v4249, %v4552
        %v4596 = vadd.f32 %v4250, %v4554
        %v4597 = vadd.f32 %v4251, %v4557
        %v4598 = vadd.f32 %v4252, %v4559
        %v4599 = vadd.f32 %v4253, %v4562
        %v4600 = vadd.f32 %v4254, %v4564
        %v4601 = vadd.f32 %v4255, %v4567
        %v4602 = vadd.f32 %v4256, %v4569
        %v4603 = vld [vmem:[%s479] sm:$0x1]
        %v4604 = vxor.u32 %v4603, 2147483648
        %v4605 = vmul.f32 %v4604, 1.442695
        %v4606 = vpow.pop %v4605
        %v4607 = vadd.f32 %v4606, 1.0
        %v4608 = vrcp.pop %v4607
        %v4609 = vmul.f32 %v4607, %v4608
        %v4610 = vsub.f32 1.0, %v4609
        %v4611 = vmul.f32 %v4608, %v4610
        %v4612 = vadd.f32 %v4608, %v4611
        %vm4613 = vweird.f32 %v4607
        %vm4614 = vweird.f32 %v4608
        %vm4615 = vmor %vm4613, %vm4614
        %v4616 = vsel %vm4615, %v4608, %v4612
        %v4617 = vand.u32 2147483647, %v4607
        %vm4618 = vcmp.eq.f32.partialorder %v4617, 8.507059e+37
        %v4619 = vand.u32 %v4607, 2147483648
        %v4620 = vor.u32 1.1754944e-38, %v4619
        %v4621 = vsel %vm4618, %v4620, %v4616
        %v4622 = vmul.f32 1.0, %v4621
        %v4623 = vmul.f32 %v4603, %v4622
        %v4624 = vpack.c.bf16 %v4623, %v4623
        %v4625 = vld [vmem:[%s7] sm:$0xf]
        %v4626 = vld [vmem:[%s7 + $0x4] sm:$0xf]
        %v4627 = vld [vmem:[%s7 + $0x8] sm:$0xf]
        %v4628 = vld [vmem:[%s7 + $0xc] sm:$0xf]
        %v4629 = vld [vmem:[%s7 + $0x10] sm:$0xf]
        %v4630 = vld [vmem:[%s7 + $0x14] sm:$0xf]
        %v4631 = vld [vmem:[%s7 + $0x18] sm:$0xf]
        %v4632 = vld [vmem:[%s7 + $0x1c] sm:$0xf]
        %v4633 = vld [vmem:[%s8] sm:$0x1]
        %v4642 = vunpack.c.l.b16 %v4625
        %v4643 = vunpack.c.l.b16 %v4626
        %v4644 = vunpack.c.l.b16 %v4627
        %v4645 = vunpack.c.l.b16 %v4628
        %v4646 = vunpack.c.l.b16 %v4629
        %v4647 = vunpack.c.l.b16 %v4630
        %v4648 = vunpack.c.l.b16 %v4631
        %v4649 = vunpack.c.l.b16 %v4632
        %v4650 = vpack.c.b16 %v4643, %v4642
        %v4651 = vpack.c.b16 %v4645, %v4644
        %v4652 = vpack.c.b16 %v4647, %v4646
        %v4653 = vpack.c.b16 %v4649, %v4648
        %vm4658 = vcmask 523264
        %v4660 = vsel %vm4658, %v4624, 0
        %4662 = vmatpush.bf16.msra.mxu0 0
        %4663 = vmatpush.bf16.msra.mxu0 0
        %4664 = vmatpush.bf16.msra.mxu0 0
        %4665 = vmatpush.bf16.msra.mxu0 0
        %4666 = vmatpush.bf16.msra.mxu0 %v4653
        %4667 = vmatpush.bf16.msra.mxu0 %v4652
        %4668 = vmatpush.bf16.msra.mxu0 %v4651
        %4669 = vmatpush.bf16.msra.mxu0 %v4650
        %4670 = vmatmul.bf16.gmra.mxu0 %v4660
        %v4671 = vpop.f32.mrf.mxu0
        %v4672 = vadd.f32 %v4633, %v4671
        %v4673 = vpop.f32.mrf.mxu0
        %4674 = vdwg.mxu0
        %v4675 = vld [vmem:[%s6] sm:$0x1]
        %v4677 = vperm.slane %v4675, 0
        %v4679 = vadd.f32 %v4571, %v4677
        %v4680 = vadd.f32 %v4572, %v4677
        %v4681 = vadd.f32 %v4573, %v4677
        %v4682 = vadd.f32 %v4574, %v4677
        %v4683 = vadd.f32 %v4575, %v4677
        %v4684 = vadd.f32 %v4576, %v4677
        %v4685 = vadd.f32 %v4577, %v4677
        %v4686 = vadd.f32 %v4578, %v4677
        %v4687 = vadd.f32 %v4579, %v4677
        %v4688 = vadd.f32 %v4580, %v4677
        %v4689 = vadd.f32 %v4581, %v4677
        %v4690 = vadd.f32 %v4582, %v4677
        %v4691 = vadd.f32 %v4583, %v4677
        %v4692 = vadd.f32 %v4584, %v4677
        %v4693 = vadd.f32 %v4585, %v4677
        %v4694 = vadd.f32 %v4586, %v4677
        %v4695 = vadd.f32 %v4587, %v4677
        %v4696 = vadd.f32 %v4588, %v4677
        %v4697 = vadd.f32 %v4589, %v4677
        %v4698 = vadd.f32 %v4590, %v4677
        %v4699 = vadd.f32 %v4591, %v4677
        %v4700 = vadd.f32 %v4592, %v4677
        %v4701 = vadd.f32 %v4593, %v4677
        %v4702 = vadd.f32 %v4594, %v4677
        %v4703 = vadd.f32 %v4595, %v4677
        %v4704 = vadd.f32 %v4596, %v4677
        %v4705 = vadd.f32 %v4597, %v4677
        %v4706 = vadd.f32 %v4598, %v4677
        %v4707 = vadd.f32 %v4599, %v4677
        %v4708 = vadd.f32 %v4600, %v4677
        %v4709 = vadd.f32 %v4601, %v4677
        %v4710 = vadd.f32 %v4602, %v4677
        %v4711 = vperm.slane %v4672, 0
        %v4712 = vadd.f32 %v4679, %v4711
        %v4713 = vadd.f32 %v4680, %v4711
        %v4714 = vadd.f32 %v4681, %v4711
        %v4715 = vadd.f32 %v4682, %v4711
        %v4716 = vadd.f32 %v4683, %v4711
        %v4717 = vadd.f32 %v4684, %v4711
        %v4718 = vadd.f32 %v4685, %v4711
        %v4719 = vadd.f32 %v4686, %v4711
        %v4720 = vadd.f32 %v4687, %v4711
        %v4721 = vadd.f32 %v4688, %v4711
        %v4722 = vadd.f32 %v4689, %v4711
        %v4723 = vadd.f32 %v4690, %v4711
        %v4724 = vadd.f32 %v4691, %v4711
        %v4725 = vadd.f32 %v4692, %v4711
        %v4726 = vadd.f32 %v4693, %v4711
        %v4727 = vadd.f32 %v4694, %v4711
        %v4728 = vadd.f32 %v4695, %v4711
        %v4729 = vadd.f32 %v4696, %v4711
        %v4730 = vadd.f32 %v4697, %v4711
        %v4731 = vadd.f32 %v4698, %v4711
        %v4732 = vadd.f32 %v4699, %v4711
        %v4733 = vadd.f32 %v4700, %v4711
        %v4734 = vadd.f32 %v4701, %v4711
        %v4735 = vadd.f32 %v4702, %v4711
        %v4736 = vadd.f32 %v4703, %v4711
        %v4737 = vadd.f32 %v4704, %v4711
        %v4738 = vadd.f32 %v4705, %v4711
        %v4739 = vadd.f32 %v4706, %v4711
        %v4740 = vadd.f32 %v4707, %v4711
        %v4741 = vadd.f32 %v4708, %v4711
        %v4742 = vadd.f32 %v4709, %v4711
        %v4743 = vadd.f32 %v4710, %v4711
        %v4744 = vld [vmem:[%s9] sm:$0xff]
        %v4745 = vld [vmem:[%s9 + $0x8] sm:$0xff]
        %v4746 = vld [vmem:[%s9 + $0x10] sm:$0xff]
        %v4747 = vld [vmem:[%s9 + $0x18] sm:$0xff]
        %v4748 = vld [vmem:[%s9 + $0x20] sm:$0xff]
        %v4749 = vld [vmem:[%s9 + $0x28] sm:$0xff]
        %v4750 = vld [vmem:[%s9 + $0x30] sm:$0xff]
        %v4751 = vld [vmem:[%s9 + $0x38] sm:$0xff]
        %v4752 = vld [vmem:[%s9 + $0x40] sm:$0xff]
        %v4753 = vld [vmem:[%s9 + $0x48] sm:$0xff]
        %v4754 = vld [vmem:[%s9 + $0x50] sm:$0xff]
        %v4755 = vld [vmem:[%s9 + $0x58] sm:$0xff]
        %v4756 = vld [vmem:[%s9 + $0x60] sm:$0xff]
        %v4757 = vld [vmem:[%s9 + $0x68] sm:$0xff]
        %v4758 = vld [vmem:[%s9 + $0x70] sm:$0xff]
        %v4759 = vld [vmem:[%s9 + $0x78] sm:$0xff]
        %v4760 = vadd.f32 %v4712, %v4713
        %v4761 = vadd.f32 %v4760, %v4714
        %v4762 = vadd.f32 %v4761, %v4715
        %v4763 = vadd.f32 %v4762, %v4716
        %v4764 = vadd.f32 %v4763, %v4717
        %v4765 = vadd.f32 %v4764, %v4718
        %v4766 = vadd.f32 %v4765, %v4719
        %v4767 = vadd.f32 %v4766, %v4720
        %v4768 = vadd.f32 %v4767, %v4721
        %v4769 = vadd.f32 %v4768, %v4722
        %v4770 = vadd.f32 %v4769, %v4723
        %v4771 = vadd.f32 %v4770, %v4724
        %v4772 = vadd.f32 %v4771, %v4725
        %v4773 = vadd.f32 %v4772, %v4726
        %v4774 = vadd.f32 %v4773, %v4727
        %v4775 = vadd.f32 %v4774, %v4728
        %v4776 = vadd.f32 %v4775, %v4729
        %v4777 = vadd.f32 %v4776, %v4730
        %v4778 = vadd.f32 %v4777, %v4731
        %v4779 = vadd.f32 %v4778, %v4732
        %v4780 = vadd.f32 %v4779, %v4733
        %v4781 = vadd.f32 %v4780, %v4734
        %v4782 = vadd.f32 %v4781, %v4735
        %v4783 = vadd.f32 %v4782, %v4736
        %v4784 = vadd.f32 %v4783, %v4737
        %v4785 = vadd.f32 %v4784, %v4738
        %v4786 = vadd.f32 %v4785, %v4739
        %v4787 = vadd.f32 %v4786, %v4740
        %v4788 = vadd.f32 %v4787, %v4741
        %v4789 = vadd.f32 %v4788, %v4742
        %v4790 = vadd.f32 %v4789, %v4743
        %v4791 = vrot.slane %v4790, 4
        %v4792 = vadd.f32 %v4790, %v4791
        %v4793 = vrot.slane %v4792, 2
        %v4794 = vadd.f32 %v4792, %v4793
        %v4795 = vrot.slane %v4794, 1
        %v4796 = vadd.f32 %v4794, %v4795
        %v4797 = vmul.f32 %v4712, %v4712
        %v4798 = vmul.f32 %v4713, %v4713
        %v4799 = vmul.f32 %v4714, %v4714
        %v4800 = vmul.f32 %v4715, %v4715
        %v4801 = vmul.f32 %v4716, %v4716
        %v4802 = vmul.f32 %v4717, %v4717
        %v4803 = vmul.f32 %v4718, %v4718
        %v4804 = vmul.f32 %v4719, %v4719
        %v4805 = vmul.f32 %v4720, %v4720
        %v4806 = vmul.f32 %v4721, %v4721
        %v4807 = vmul.f32 %v4722, %v4722
        %v4808 = vmul.f32 %v4723, %v4723
        %v4809 = vmul.f32 %v4724, %v4724
        %v4810 = vmul.f32 %v4725, %v4725
        %v4811 = vmul.f32 %v4726, %v4726
        %v4812 = vmul.f32 %v4727, %v4727
        %v4813 = vmul.f32 %v4728, %v4728
        %v4814 = vmul.f32 %v4729, %v4729
        %v4815 = vmul.f32 %v4730, %v4730
        %v4816 = vmul.f32 %v4731, %v4731
        %v4817 = vmul.f32 %v4732, %v4732
        %v4818 = vmul.f32 %v4733, %v4733
        %v4819 = vmul.f32 %v4734, %v4734
        %v4820 = vmul.f32 %v4735, %v4735
        %v4821 = vmul.f32 %v4736, %v4736
        %v4822 = vmul.f32 %v4737, %v4737
        %v4823 = vmul.f32 %v4738, %v4738
        %v4824 = vmul.f32 %v4739, %v4739
        %v4825 = vmul.f32 %v4740, %v4740
        %v4826 = vmul.f32 %v4741, %v4741
        %v4827 = vmul.f32 %v4742, %v4742
        %v4828 = vmul.f32 %v4743, %v4743
        %v4829 = vadd.f32 %v4797, %v4798
        %v4830 = vadd.f32 %v4829, %v4799
        %v4831 = vadd.f32 %v4830, %v4800
        %v4832 = vadd.f32 %v4831, %v4801
        %v4833 = vadd.f32 %v4832, %v4802
        %v4834 = vadd.f32 %v4833, %v4803
        %v4835 = vadd.f32 %v4834, %v4804
        %v4836 = vadd.f32 %v4835, %v4805
        %v4837 = vadd.f32 %v4836, %v4806
        %v4838 = vadd.f32 %v4837, %v4807
        %v4839 = vadd.f32 %v4838, %v4808
        %v4840 = vadd.f32 %v4839, %v4809
        %v4841 = vadd.f32 %v4840, %v4810
        %v4842 = vadd.f32 %v4841, %v4811
        %v4843 = vadd.f32 %v4842, %v4812
        %v4844 = vadd.f32 %v4843, %v4813
        %v4845 = vadd.f32 %v4844, %v4814
        %v4846 = vadd.f32 %v4845, %v4815
        %v4847 = vadd.f32 %v4846, %v4816
        %v4848 = vadd.f32 %v4847, %v4817
        %v4849 = vadd.f32 %v4848, %v4818
        %v4850 = vadd.f32 %v4849, %v4819
        %v4851 = vadd.f32 %v4850, %v4820
        %v4852 = vadd.f32 %v4851, %v4821
        %v4853 = vadd.f32 %v4852, %v4822
        %v4854 = vadd.f32 %v4853, %v4823
        %v4855 = vadd.f32 %v4854, %v4824
        %v4856 = vadd.f32 %v4855, %v4825
        %v4857 = vadd.f32 %v4856, %v4826
        %v4858 = vadd.f32 %v4857, %v4827
        %v4859 = vadd.f32 %v4858, %v4828
        %v4860 = vrot.slane %v4859, 4
        %v4861 = vadd.f32 %v4859, %v4860
        %v4862 = vrot.slane %v4861, 2
        %v4863 = vadd.f32 %v4861, %v4862
        %v4864 = vrot.slane %v4863, 1
        %v4865 = vadd.f32 %v4863, %v4864
        %4866 = vmatpush.msra.mxu0 %v4759
        %4867 = vmatpush.msra.mxu0 %v4758
        %4868 = vmatpush.msra.mxu0 %v4757
        %4869 = vmatpush.msra.mxu0 %v4756
        %4870 = vmatpush.msra.mxu0 %v4755
        %4871 = vmatpush.msra.mxu0 %v4754
        %4872 = vmatpush.msra.mxu0 %v4753
        %4873 = vmatpush.msra.mxu0 %v4752
        %4874 = vmatpush.msra.mxu0 %v4751
        %4875 = vmatpush.msra.mxu0 %v4750
        %4876 = vmatpush.msra.mxu0 %v4749
        %4877 = vmatpush.msra.mxu0 %v4748
        %4878 = vmatpush.msra.mxu0 %v4747
        %4879 = vmatpush.msra.mxu0 %v4746
        %4880 = vmatpush.msra.mxu0 %v4745
        %4881 = vmatpush.msra.mxu0 %v4744
        %4882 = vmatmul.f32.gmra.mxu0 %v4796
        %v4883 = vpop.f32.mrf.mxu0
        %v4884 = vadd.f32 0.0, %v4883
        %4885 = vdwg.mxu0
        %4886 = vmatpush.msra.mxu0 %v4759
        %4887 = vmatpush.msra.mxu0 %v4758
        %4888 = vmatpush.msra.mxu0 %v4757
        %4889 = vmatpush.msra.mxu0 %v4756
        %4890 = vmatpush.msra.mxu0 %v4755
        %4891 = vmatpush.msra.mxu0 %v4754
        %4892 = vmatpush.msra.mxu0 %v4753
        %4893 = vmatpush.msra.mxu0 %v4752
        %4894 = vmatpush.msra.mxu0 %v4751
        %4895 = vmatpush.msra.mxu0 %v4750
        %4896 = vmatpush.msra.mxu0 %v4749
        %4897 = vmatpush.msra.mxu0 %v4748
        %4898 = vmatpush.msra.mxu0 %v4747
        %4899 = vmatpush.msra.mxu0 %v4746
        %4900 = vmatpush.msra.mxu0 %v4745
        %4901 = vmatpush.msra.mxu0 %v4744
        %4902 = vmatmul.f32.gmra.mxu0 %v4865
        %v4903 = vpop.f32.mrf.mxu0
        %v4904 = vadd.f32 0.0, %v4903
        %4905 = vdwg.mxu0
        %v4906 = vmul.f32 %v4884, %v4884
        %v4907 = vsub.f32 %v4904, %v4906
        %v4908 = vadd.f32 %v4907, 1e-06
        %v4909 = vrsqrt.pop %v4908
        %v4910 = vmul.f32 %v4909, %v4908
        %v4911 = vmul.f32 %v4910, %v4909
        %v4912 = vmul.f32 0.5, %v4911
        %v4913 = vsub.f32 1.5, %v4912
        %v4914 = vmul.f32 %v4909, %v4913
        %vm4915 = vweird.f32 %v4908
        %vm4916 = vweird.f32 %v4909
        %vm4917 = vmor %vm4915, %vm4916
        %v4918 = vsel %vm4917, %v4909, %v4914
        %v4919 = vperm.slane %v4884, 0
        %v4920 = vsub.f32 %v4712, %v4919
        %v4921 = vsub.f32 %v4713, %v4919
        %v4922 = vsub.f32 %v4714, %v4919
        %v4923 = vsub.f32 %v4715, %v4919
        %v4924 = vsub.f32 %v4716, %v4919
        %v4925 = vsub.f32 %v4717, %v4919
        %v4926 = vsub.f32 %v4718, %v4919
        %v4927 = vsub.f32 %v4719, %v4919
        %v4928 = vsub.f32 %v4720, %v4919
        %v4929 = vsub.f32 %v4721, %v4919
        %v4930 = vsub.f32 %v4722, %v4919
        %v4931 = vsub.f32 %v4723, %v4919
        %v4932 = vsub.f32 %v4724, %v4919
        %v4933 = vsub.f32 %v4725, %v4919
        %v4934 = vsub.f32 %v4726, %v4919
        %v4935 = vsub.f32 %v4727, %v4919
        %v4936 = vsub.f32 %v4728, %v4919
        %v4937 = vsub.f32 %v4729, %v4919
        %v4938 = vsub.f32 %v4730, %v4919
        %v4939 = vsub.f32 %v4731, %v4919
        %v4940 = vsub.f32 %v4732, %v4919
        %v4941 = vsub.f32 %v4733, %v4919
        %v4942 = vsub.f32 %v4734, %v4919
        %v4943 = vsub.f32 %v4735, %v4919
        %v4944 = vsub.f32 %v4736, %v4919
        %v4945 = vsub.f32 %v4737, %v4919
        %v4946 = vsub.f32 %v4738, %v4919
        %v4947 = vsub.f32 %v4739, %v4919
        %v4948 = vsub.f32 %v4740, %v4919
        %v4949 = vsub.f32 %v4741, %v4919
        %v4950 = vsub.f32 %v4742, %v4919
        %v4951 = vsub.f32 %v4743, %v4919
        %v4952 = vperm.slane %v4918, 0
        %v4953 = vmul.f32 %v4920, %v4952
        %v4954 = vmul.f32 %v4921, %v4952
        %v4955 = vmul.f32 %v4922, %v4952
        %v4956 = vmul.f32 %v4923, %v4952
        %v4957 = vmul.f32 %v4924, %v4952
        %v4958 = vmul.f32 %v4925, %v4952
        %v4959 = vmul.f32 %v4926, %v4952
        %v4960 = vmul.f32 %v4927, %v4952
        %v4961 = vmul.f32 %v4928, %v4952
        %v4962 = vmul.f32 %v4929, %v4952
        %v4963 = vmul.f32 %v4930, %v4952
        %v4964 = vmul.f32 %v4931, %v4952
        %v4965 = vmul.f32 %v4932, %v4952
        %v4966 = vmul.f32 %v4933, %v4952
        %v4967 = vmul.f32 %v4934, %v4952
        %v4968 = vmul.f32 %v4935, %v4952
        %v4969 = vmul.f32 %v4936, %v4952
        %v4970 = vmul.f32 %v4937, %v4952
        %v4971 = vmul.f32 %v4938, %v4952
        %v4972 = vmul.f32 %v4939, %v4952
        %v4973 = vmul.f32 %v4940, %v4952
        %v4974 = vmul.f32 %v4941, %v4952
        %v4975 = vmul.f32 %v4942, %v4952
        %v4976 = vmul.f32 %v4943, %v4952
        %v4977 = vmul.f32 %v4944, %v4952
        %v4978 = vmul.f32 %v4945, %v4952
        %v4979 = vmul.f32 %v4946, %v4952
        %v4980 = vmul.f32 %v4947, %v4952
        %v4981 = vmul.f32 %v4948, %v4952
        %v4982 = vmul.f32 %v4949, %v4952
        %v4983 = vmul.f32 %v4950, %v4952
        %v4984 = vmul.f32 %v4951, %v4952
        %v4985 = vld [vmem:[%s10] sm:$0x1]
        %v4987 = vperm.slane %v4985, 0
        %v4989 = vmul.f32 %v4953, %v4987
        %v4990 = vmul.f32 %v4954, %v4987
        %v4991 = vmul.f32 %v4955, %v4987
        %v4992 = vmul.f32 %v4956, %v4987
        %v4993 = vmul.f32 %v4957, %v4987
        %v4994 = vmul.f32 %v4958, %v4987
        %v4995 = vmul.f32 %v4959, %v4987
        %v4996 = vmul.f32 %v4960, %v4987
        %v4997 = vmul.f32 %v4961, %v4987
        %v4998 = vmul.f32 %v4962, %v4987
        %v4999 = vmul.f32 %v4963, %v4987
        %v5000 = vmul.f32 %v4964, %v4987
        %v5001 = vmul.f32 %v4965, %v4987
        %v5002 = vmul.f32 %v4966, %v4987
        %v5003 = vmul.f32 %v4967, %v4987
        %v5004 = vmul.f32 %v4968, %v4987
        %v5005 = vmul.f32 %v4969, %v4987
        %v5006 = vmul.f32 %v4970, %v4987
        %v5007 = vmul.f32 %v4971, %v4987
        %v5008 = vmul.f32 %v4972, %v4987
        %v5009 = vmul.f32 %v4973, %v4987
        %v5010 = vmul.f32 %v4974, %v4987
        %v5011 = vmul.f32 %v4975, %v4987
        %v5012 = vmul.f32 %v4976, %v4987
        %v5013 = vmul.f32 %v4977, %v4987
        %v5014 = vmul.f32 %v4978, %v4987
        %v5015 = vmul.f32 %v4979, %v4987
        %v5016 = vmul.f32 %v4980, %v4987
        %v5017 = vmul.f32 %v4981, %v4987
        %v5018 = vmul.f32 %v4982, %v4987
        %v5019 = vmul.f32 %v4983, %v4987
        %v5020 = vmul.f32 %v4984, %v4987
        %v5021 = vld [vmem:[%s11] sm:$0x1]
        %v5023 = vperm.slane %v5021, 0
        %v5025 = vadd.f32 %v4989, %v5023
        %v5026 = vadd.f32 %v4990, %v5023
        %v5027 = vadd.f32 %v4991, %v5023
        %v5028 = vadd.f32 %v4992, %v5023
        %v5029 = vadd.f32 %v4993, %v5023
        %v5030 = vadd.f32 %v4994, %v5023
        %v5031 = vadd.f32 %v4995, %v5023
        %v5032 = vadd.f32 %v4996, %v5023
        %v5033 = vadd.f32 %v4997, %v5023
        %v5034 = vadd.f32 %v4998, %v5023
        %v5035 = vadd.f32 %v4999, %v5023
        %v5036 = vadd.f32 %v5000, %v5023
        %v5037 = vadd.f32 %v5001, %v5023
        %v5038 = vadd.f32 %v5002, %v5023
        %v5039 = vadd.f32 %v5003, %v5023
        %v5040 = vadd.f32 %v5004, %v5023
        %v5041 = vadd.f32 %v5005, %v5023
        %v5042 = vadd.f32 %v5006, %v5023
        %v5043 = vadd.f32 %v5007, %v5023
        %v5044 = vadd.f32 %v5008, %v5023
        %v5045 = vadd.f32 %v5009, %v5023
        %v5046 = vadd.f32 %v5010, %v5023
        %v5047 = vadd.f32 %v5011, %v5023
        %v5048 = vadd.f32 %v5012, %v5023
        %v5049 = vadd.f32 %v5013, %v5023
        %v5050 = vadd.f32 %v5014, %v5023
        %v5051 = vadd.f32 %v5015, %v5023
        %v5052 = vadd.f32 %v5016, %v5023
        %v5053 = vadd.f32 %v5017, %v5023
        %v5054 = vadd.f32 %v5018, %v5023
        %v5055 = vadd.f32 %v5019, %v5023
        %v5056 = vadd.f32 %v5020, %v5023
        %v5057 = vxor.u32 %v5025, 2147483648
        %v5058 = vxor.u32 %v5026, 2147483648
        %v5059 = vxor.u32 %v5027, 2147483648
        %v5060 = vxor.u32 %v5028, 2147483648
        %v5061 = vxor.u32 %v5029, 2147483648
        %v5062 = vxor.u32 %v5030, 2147483648
        %v5063 = vxor.u32 %v5031, 2147483648
        %v5064 = vxor.u32 %v5032, 2147483648
        %v5065 = vxor.u32 %v5033, 2147483648
        %v5066 = vxor.u32 %v5034, 2147483648
        %v5067 = vxor.u32 %v5035, 2147483648
        %v5068 = vxor.u32 %v5036, 2147483648
        %v5069 = vxor.u32 %v5037, 2147483648
        %v5070 = vxor.u32 %v5038, 2147483648
        %v5071 = vxor.u32 %v5039, 2147483648
        %v5072 = vxor.u32 %v5040, 2147483648
        %v5073 = vxor.u32 %v5041, 2147483648
        %v5074 = vxor.u32 %v5042, 2147483648
        %v5075 = vxor.u32 %v5043, 2147483648
        %v5076 = vxor.u32 %v5044, 2147483648
        %v5077 = vxor.u32 %v5045, 2147483648
        %v5078 = vxor.u32 %v5046, 2147483648
        %v5079 = vxor.u32 %v5047, 2147483648
        %v5080 = vxor.u32 %v5048, 2147483648
        %v5081 = vxor.u32 %v5049, 2147483648
        %v5082 = vxor.u32 %v5050, 2147483648
        %v5083 = vxor.u32 %v5051, 2147483648
        %v5084 = vxor.u32 %v5052, 2147483648
        %v5085 = vxor.u32 %v5053, 2147483648
        %v5086 = vxor.u32 %v5054, 2147483648
        %v5087 = vxor.u32 %v5055, 2147483648
        %v5088 = vxor.u32 %v5056, 2147483648
        %v5089 = vmul.f32 %v5057, 1.442695
        %v5090 = vpow.pop %v5089
        %v5091 = vmul.f32 %v5058, 1.442695
        %v5092 = vpow.pop %v5091
        %v5093 = vmul.f32 %v5059, 1.442695
        %v5094 = vpow.pop %v5093
        %v5095 = vmul.f32 %v5060, 1.442695
        %v5096 = vpow.pop %v5095
        %v5097 = vmul.f32 %v5061, 1.442695
        %v5098 = vpow.pop %v5097
        %v5099 = vmul.f32 %v5062, 1.442695
        %v5100 = vpow.pop %v5099
        %v5101 = vmul.f32 %v5063, 1.442695
        %v5102 = vpow.pop %v5101
        %v5103 = vmul.f32 %v5064, 1.442695
        %v5104 = vpow.pop %v5103
        %v5105 = vmul.f32 %v5065, 1.442695
        %v5106 = vpow.pop %v5105
        %v5107 = vmul.f32 %v5066, 1.442695
        %v5108 = vpow.pop %v5107
        %v5109 = vmul.f32 %v5067, 1.442695
        %v5110 = vpow.pop %v5109
        %v5111 = vmul.f32 %v5068, 1.442695
        %v5112 = vpow.pop %v5111
        %v5113 = vmul.f32 %v5069, 1.442695
        %v5114 = vpow.pop %v5113
        %v5115 = vmul.f32 %v5070, 1.442695
        %v5116 = vpow.pop %v5115
        %v5117 = vmul.f32 %v5071, 1.442695
        %v5118 = vpow.pop %v5117
        %v5119 = vmul.f32 %v5072, 1.442695
        %v5120 = vpow.pop %v5119
        %v5121 = vmul.f32 %v5073, 1.442695
        %v5122 = vpow.pop %v5121
        %v5123 = vmul.f32 %v5074, 1.442695
        %v5124 = vpow.pop %v5123
        %v5125 = vmul.f32 %v5075, 1.442695
        %v5126 = vpow.pop %v5125
        %v5127 = vmul.f32 %v5076, 1.442695
        %v5128 = vpow.pop %v5127
        %v5129 = vmul.f32 %v5077, 1.442695
        %v5130 = vpow.pop %v5129
        %v5131 = vmul.f32 %v5078, 1.442695
        %v5132 = vpow.pop %v5131
        %v5133 = vmul.f32 %v5079, 1.442695
        %v5134 = vpow.pop %v5133
        %v5135 = vmul.f32 %v5080, 1.442695
        %v5136 = vpow.pop %v5135
        %v5137 = vmul.f32 %v5081, 1.442695
        %v5138 = vpow.pop %v5137
        %v5139 = vmul.f32 %v5082, 1.442695
        %v5140 = vpow.pop %v5139
        %v5141 = vmul.f32 %v5083, 1.442695
        %v5142 = vpow.pop %v5141
        %v5143 = vmul.f32 %v5084, 1.442695
        %v5144 = vpow.pop %v5143
        %v5145 = vmul.f32 %v5085, 1.442695
        %v5146 = vpow.pop %v5145
        %v5147 = vmul.f32 %v5086, 1.442695
        %v5148 = vpow.pop %v5147
        %v5149 = vmul.f32 %v5087, 1.442695
        %v5150 = vpow.pop %v5149
        %v5151 = vmul.f32 %v5088, 1.442695
        %v5152 = vpow.pop %v5151
        %v5153 = vadd.f32 %v5090, 1.0
        %v5154 = vadd.f32 %v5092, 1.0
        %v5155 = vadd.f32 %v5094, 1.0
        %v5156 = vadd.f32 %v5096, 1.0
        %v5157 = vadd.f32 %v5098, 1.0
        %v5158 = vadd.f32 %v5100, 1.0
        %v5159 = vadd.f32 %v5102, 1.0
        %v5160 = vadd.f32 %v5104, 1.0
        %v5161 = vadd.f32 %v5106, 1.0
        %v5162 = vadd.f32 %v5108, 1.0
        %v5163 = vadd.f32 %v5110, 1.0
        %v5164 = vadd.f32 %v5112, 1.0
        %v5165 = vadd.f32 %v5114, 1.0
        %v5166 = vadd.f32 %v5116, 1.0
        %v5167 = vadd.f32 %v5118, 1.0
        %v5168 = vadd.f32 %v5120, 1.0
        %v5169 = vadd.f32 %v5122, 1.0
        %v5170 = vadd.f32 %v5124, 1.0
        %v5171 = vadd.f32 %v5126, 1.0
        %v5172 = vadd.f32 %v5128, 1.0
        %v5173 = vadd.f32 %v5130, 1.0
        %v5174 = vadd.f32 %v5132, 1.0
        %v5175 = vadd.f32 %v5134, 1.0
        %v5176 = vadd.f32 %v5136, 1.0
        %v5177 = vadd.f32 %v5138, 1.0
        %v5178 = vadd.f32 %v5140, 1.0
        %v5179 = vadd.f32 %v5142, 1.0
        %v5180 = vadd.f32 %v5144, 1.0
        %v5181 = vadd.f32 %v5146, 1.0
        %v5182 = vadd.f32 %v5148, 1.0
        %v5183 = vadd.f32 %v5150, 1.0
        %v5184 = vadd.f32 %v5152, 1.0
        %v5185 = vrcp.pop %v5153
        %v5186 = vmul.f32 %v5153, %v5185
        %v5187 = vsub.f32 1.0, %v5186
        %v5188 = vmul.f32 %v5185, %v5187
        %v5189 = vadd.f32 %v5185, %v5188
        %vm5190 = vweird.f32 %v5153
        %vm5191 = vweird.f32 %v5185
        %vm5192 = vmor %vm5190, %vm5191
        %v5193 = vsel %vm5192, %v5185, %v5189
        %v5194 = vand.u32 2147483647, %v5153
        %vm5195 = vcmp.eq.f32.partialorder %v5194, 8.507059e+37
        %v5196 = vand.u32 %v5153, 2147483648
        %v5197 = vor.u32 1.1754944e-38, %v5196
        %v5198 = vsel %vm5195, %v5197, %v5193
        %v5199 = vmul.f32 1.0, %v5198
        %v5200 = vrcp.pop %v5154
        %v5201 = vmul.f32 %v5154, %v5200
        %v5202 = vsub.f32 1.0, %v5201
        %v5203 = vmul.f32 %v5200, %v5202
        %v5204 = vadd.f32 %v5200, %v5203
        %vm5205 = vweird.f32 %v5154
        %vm5206 = vweird.f32 %v5200
        %vm5207 = vmor %vm5205, %vm5206
        %v5208 = vsel %vm5207, %v5200, %v5204
        %v5209 = vand.u32 2147483647, %v5154
        %vm5210 = vcmp.eq.f32.partialorder %v5209, 8.507059e+37
        %v5211 = vand.u32 %v5154, 2147483648
        %v5212 = vor.u32 1.1754944e-38, %v5211
        %v5213 = vsel %vm5210, %v5212, %v5208
        %v5214 = vmul.f32 1.0, %v5213
        %v5215 = vrcp.pop %v5155
        %v5216 = vmul.f32 %v5155, %v5215
        %v5217 = vsub.f32 1.0, %v5216
        %v5218 = vmul.f32 %v5215, %v5217
        %v5219 = vadd.f32 %v5215, %v5218
        %vm5220 = vweird.f32 %v5155
        %vm5221 = vweird.f32 %v5215
        %vm5222 = vmor %vm5220, %vm5221
        %v5223 = vsel %vm5222, %v5215, %v5219
        %v5224 = vand.u32 2147483647, %v5155
        %vm5225 = vcmp.eq.f32.partialorder %v5224, 8.507059e+37
        %v5226 = vand.u32 %v5155, 2147483648
        %v5227 = vor.u32 1.1754944e-38, %v5226
        %v5228 = vsel %vm5225, %v5227, %v5223
        %v5229 = vmul.f32 1.0, %v5228
        %v5230 = vrcp.pop %v5156
        %v5231 = vmul.f32 %v5156, %v5230
        %v5232 = vsub.f32 1.0, %v5231
        %v5233 = vmul.f32 %v5230, %v5232
        %v5234 = vadd.f32 %v5230, %v5233
        %vm5235 = vweird.f32 %v5156
        %vm5236 = vweird.f32 %v5230
        %vm5237 = vmor %vm5235, %vm5236
        %v5238 = vsel %vm5237, %v5230, %v5234
        %v5239 = vand.u32 2147483647, %v5156
        %vm5240 = vcmp.eq.f32.partialorder %v5239, 8.507059e+37
        %v5241 = vand.u32 %v5156, 2147483648
        %v5242 = vor.u32 1.1754944e-38, %v5241
        %v5243 = vsel %vm5240, %v5242, %v5238
        %v5244 = vmul.f32 1.0, %v5243
        %v5245 = vrcp.pop %v5157
        %v5246 = vmul.f32 %v5157, %v5245
        %v5247 = vsub.f32 1.0, %v5246
        %v5248 = vmul.f32 %v5245, %v5247
        %v5249 = vadd.f32 %v5245, %v5248
        %vm5250 = vweird.f32 %v5157
        %vm5251 = vweird.f32 %v5245
        %vm5252 = vmor %vm5250, %vm5251
        %v5253 = vsel %vm5252, %v5245, %v5249
        %v5254 = vand.u32 2147483647, %v5157
        %vm5255 = vcmp.eq.f32.partialorder %v5254, 8.507059e+37
        %v5256 = vand.u32 %v5157, 2147483648
        %v5257 = vor.u32 1.1754944e-38, %v5256
        %v5258 = vsel %vm5255, %v5257, %v5253
        %v5259 = vmul.f32 1.0, %v5258
        %v5260 = vrcp.pop %v5158
        %v5261 = vmul.f32 %v5158, %v5260
        %v5262 = vsub.f32 1.0, %v5261
        %v5263 = vmul.f32 %v5260, %v5262
        %v5264 = vadd.f32 %v5260, %v5263
        %vm5265 = vweird.f32 %v5158
        %vm5266 = vweird.f32 %v5260
        %vm5267 = vmor %vm5265, %vm5266
        %v5268 = vsel %vm5267, %v5260, %v5264
        %v5269 = vand.u32 2147483647, %v5158
        %vm5270 = vcmp.eq.f32.partialorder %v5269, 8.507059e+37
        %v5271 = vand.u32 %v5158, 2147483648
        %v5272 = vor.u32 1.1754944e-38, %v5271
        %v5273 = vsel %vm5270, %v5272, %v5268
        %v5274 = vmul.f32 1.0, %v5273
        %v5275 = vrcp.pop %v5159
        %v5276 = vmul.f32 %v5159, %v5275
        %v5277 = vsub.f32 1.0, %v5276
        %v5278 = vmul.f32 %v5275, %v5277
        %v5279 = vadd.f32 %v5275, %v5278
        %vm5280 = vweird.f32 %v5159
        %vm5281 = vweird.f32 %v5275
        %vm5282 = vmor %vm5280, %vm5281
        %v5283 = vsel %vm5282, %v5275, %v5279
        %v5284 = vand.u32 2147483647, %v5159
        %vm5285 = vcmp.eq.f32.partialorder %v5284, 8.507059e+37
        %v5286 = vand.u32 %v5159, 2147483648
        %v5287 = vor.u32 1.1754944e-38, %v5286
        %v5288 = vsel %vm5285, %v5287, %v5283
        %v5289 = vmul.f32 1.0, %v5288
        %v5290 = vrcp.pop %v5160
        %v5291 = vmul.f32 %v5160, %v5290
        %v5292 = vsub.f32 1.0, %v5291
        %v5293 = vmul.f32 %v5290, %v5292
        %v5294 = vadd.f32 %v5290, %v5293
        %vm5295 = vweird.f32 %v5160
        %vm5296 = vweird.f32 %v5290
        %vm5297 = vmor %vm5295, %vm5296
        %v5298 = vsel %vm5297, %v5290, %v5294
        %v5299 = vand.u32 2147483647, %v5160
        %vm5300 = vcmp.eq.f32.partialorder %v5299, 8.507059e+37
        %v5301 = vand.u32 %v5160, 2147483648
        %v5302 = vor.u32 1.1754944e-38, %v5301
        %v5303 = vsel %vm5300, %v5302, %v5298
        %v5304 = vmul.f32 1.0, %v5303
        %v5305 = vrcp.pop %v5161
        %v5306 = vmul.f32 %v5161, %v5305
        %v5307 = vsub.f32 1.0, %v5306
        %v5308 = vmul.f32 %v5305, %v5307
        %v5309 = vadd.f32 %v5305, %v5308
        %vm5310 = vweird.f32 %v5161
        %vm5311 = vweird.f32 %v5305
        %vm5312 = vmor %vm5310, %vm5311
        %v5313 = vsel %vm5312, %v5305, %v5309
        %v5314 = vand.u32 2147483647, %v5161
        %vm5315 = vcmp.eq.f32.partialorder %v5314, 8.507059e+37
        %v5316 = vand.u32 %v5161, 2147483648
        %v5317 = vor.u32 1.1754944e-38, %v5316
        %v5318 = vsel %vm5315, %v5317, %v5313
        %v5319 = vmul.f32 1.0, %v5318
        %v5320 = vrcp.pop %v5162
        %v5321 = vmul.f32 %v5162, %v5320
        %v5322 = vsub.f32 1.0, %v5321
        %v5323 = vmul.f32 %v5320, %v5322
        %v5324 = vadd.f32 %v5320, %v5323
        %vm5325 = vweird.f32 %v5162
        %vm5326 = vweird.f32 %v5320
        %vm5327 = vmor %vm5325, %vm5326
        %v5328 = vsel %vm5327, %v5320, %v5324
        %v5329 = vand.u32 2147483647, %v5162
        %vm5330 = vcmp.eq.f32.partialorder %v5329, 8.507059e+37
        %v5331 = vand.u32 %v5162, 2147483648
        %v5332 = vor.u32 1.1754944e-38, %v5331
        %v5333 = vsel %vm5330, %v5332, %v5328
        %v5334 = vmul.f32 1.0, %v5333
        %v5335 = vrcp.pop %v5163
        %v5336 = vmul.f32 %v5163, %v5335
        %v5337 = vsub.f32 1.0, %v5336
        %v5338 = vmul.f32 %v5335, %v5337
        %v5339 = vadd.f32 %v5335, %v5338
        %vm5340 = vweird.f32 %v5163
        %vm5341 = vweird.f32 %v5335
        %vm5342 = vmor %vm5340, %vm5341
        %v5343 = vsel %vm5342, %v5335, %v5339
        %v5344 = vand.u32 2147483647, %v5163
        %vm5345 = vcmp.eq.f32.partialorder %v5344, 8.507059e+37
        %v5346 = vand.u32 %v5163, 2147483648
        %v5347 = vor.u32 1.1754944e-38, %v5346
        %v5348 = vsel %vm5345, %v5347, %v5343
        %v5349 = vmul.f32 1.0, %v5348
        %v5350 = vrcp.pop %v5164
        %v5351 = vmul.f32 %v5164, %v5350
        %v5352 = vsub.f32 1.0, %v5351
        %v5353 = vmul.f32 %v5350, %v5352
        %v5354 = vadd.f32 %v5350, %v5353
        %vm5355 = vweird.f32 %v5164
        %vm5356 = vweird.f32 %v5350
        %vm5357 = vmor %vm5355, %vm5356
        %v5358 = vsel %vm5357, %v5350, %v5354
        %v5359 = vand.u32 2147483647, %v5164
        %vm5360 = vcmp.eq.f32.partialorder %v5359, 8.507059e+37
        %v5361 = vand.u32 %v5164, 2147483648
        %v5362 = vor.u32 1.1754944e-38, %v5361
        %v5363 = vsel %vm5360, %v5362, %v5358
        %v5364 = vmul.f32 1.0, %v5363
        %v5365 = vrcp.pop %v5165
        %v5366 = vmul.f32 %v5165, %v5365
        %v5367 = vsub.f32 1.0, %v5366
        %v5368 = vmul.f32 %v5365, %v5367
        %v5369 = vadd.f32 %v5365, %v5368
        %vm5370 = vweird.f32 %v5165
        %vm5371 = vweird.f32 %v5365
        %vm5372 = vmor %vm5370, %vm5371
        %v5373 = vsel %vm5372, %v5365, %v5369
        %v5374 = vand.u32 2147483647, %v5165
        %vm5375 = vcmp.eq.f32.partialorder %v5374, 8.507059e+37
        %v5376 = vand.u32 %v5165, 2147483648
        %v5377 = vor.u32 1.1754944e-38, %v5376
        %v5378 = vsel %vm5375, %v5377, %v5373
        %v5379 = vmul.f32 1.0, %v5378
        %v5380 = vrcp.pop %v5166
        %v5381 = vmul.f32 %v5166, %v5380
        %v5382 = vsub.f32 1.0, %v5381
        %v5383 = vmul.f32 %v5380, %v5382
        %v5384 = vadd.f32 %v5380, %v5383
        %vm5385 = vweird.f32 %v5166
        %vm5386 = vweird.f32 %v5380
        %vm5387 = vmor %vm5385, %vm5386
        %v5388 = vsel %vm5387, %v5380, %v5384
        %v5389 = vand.u32 2147483647, %v5166
        %vm5390 = vcmp.eq.f32.partialorder %v5389, 8.507059e+37
        %v5391 = vand.u32 %v5166, 2147483648
        %v5392 = vor.u32 1.1754944e-38, %v5391
        %v5393 = vsel %vm5390, %v5392, %v5388
        %v5394 = vmul.f32 1.0, %v5393
        %v5395 = vrcp.pop %v5167
        %v5396 = vmul.f32 %v5167, %v5395
        %v5397 = vsub.f32 1.0, %v5396
        %v5398 = vmul.f32 %v5395, %v5397
        %v5399 = vadd.f32 %v5395, %v5398
        %vm5400 = vweird.f32 %v5167
        %vm5401 = vweird.f32 %v5395
        %vm5402 = vmor %vm5400, %vm5401
        %v5403 = vsel %vm5402, %v5395, %v5399
        %v5404 = vand.u32 2147483647, %v5167
        %vm5405 = vcmp.eq.f32.partialorder %v5404, 8.507059e+37
        %v5406 = vand.u32 %v5167, 2147483648
        %v5407 = vor.u32 1.1754944e-38, %v5406
        %v5408 = vsel %vm5405, %v5407, %v5403
        %v5409 = vmul.f32 1.0, %v5408
        %v5410 = vrcp.pop %v5168
        %v5411 = vmul.f32 %v5168, %v5410
        %v5412 = vsub.f32 1.0, %v5411
        %v5413 = vmul.f32 %v5410, %v5412
        %v5414 = vadd.f32 %v5410, %v5413
        %vm5415 = vweird.f32 %v5168
        %vm5416 = vweird.f32 %v5410
        %vm5417 = vmor %vm5415, %vm5416
        %v5418 = vsel %vm5417, %v5410, %v5414
        %v5419 = vand.u32 2147483647, %v5168
        %vm5420 = vcmp.eq.f32.partialorder %v5419, 8.507059e+37
        %v5421 = vand.u32 %v5168, 2147483648
        %v5422 = vor.u32 1.1754944e-38, %v5421
        %v5423 = vsel %vm5420, %v5422, %v5418
        %v5424 = vmul.f32 1.0, %v5423
        %v5425 = vrcp.pop %v5169
        %v5426 = vmul.f32 %v5169, %v5425
        %v5427 = vsub.f32 1.0, %v5426
        %v5428 = vmul.f32 %v5425, %v5427
        %v5429 = vadd.f32 %v5425, %v5428
        %vm5430 = vweird.f32 %v5169
        %vm5431 = vweird.f32 %v5425
        %vm5432 = vmor %vm5430, %vm5431
        %v5433 = vsel %vm5432, %v5425, %v5429
        %v5434 = vand.u32 2147483647, %v5169
        %vm5435 = vcmp.eq.f32.partialorder %v5434, 8.507059e+37
        %v5436 = vand.u32 %v5169, 2147483648
        %v5437 = vor.u32 1.1754944e-38, %v5436
        %v5438 = vsel %vm5435, %v5437, %v5433
        %v5439 = vmul.f32 1.0, %v5438
        %v5440 = vrcp.pop %v5170
        %v5441 = vmul.f32 %v5170, %v5440
        %v5442 = vsub.f32 1.0, %v5441
        %v5443 = vmul.f32 %v5440, %v5442
        %v5444 = vadd.f32 %v5440, %v5443
        %vm5445 = vweird.f32 %v5170
        %vm5446 = vweird.f32 %v5440
        %vm5447 = vmor %vm5445, %vm5446
        %v5448 = vsel %vm5447, %v5440, %v5444
        %v5449 = vand.u32 2147483647, %v5170
        %vm5450 = vcmp.eq.f32.partialorder %v5449, 8.507059e+37
        %v5451 = vand.u32 %v5170, 2147483648
        %v5452 = vor.u32 1.1754944e-38, %v5451
        %v5453 = vsel %vm5450, %v5452, %v5448
        %v5454 = vmul.f32 1.0, %v5453
        %v5455 = vrcp.pop %v5171
        %v5456 = vmul.f32 %v5171, %v5455
        %v5457 = vsub.f32 1.0, %v5456
        %v5458 = vmul.f32 %v5455, %v5457
        %v5459 = vadd.f32 %v5455, %v5458
        %vm5460 = vweird.f32 %v5171
        %vm5461 = vweird.f32 %v5455
        %vm5462 = vmor %vm5460, %vm5461
        %v5463 = vsel %vm5462, %v5455, %v5459
        %v5464 = vand.u32 2147483647, %v5171
        %vm5465 = vcmp.eq.f32.partialorder %v5464, 8.507059e+37
        %v5466 = vand.u32 %v5171, 2147483648
        %v5467 = vor.u32 1.1754944e-38, %v5466
        %v5468 = vsel %vm5465, %v5467, %v5463
        %v5469 = vmul.f32 1.0, %v5468
        %v5470 = vrcp.pop %v5172
        %v5471 = vmul.f32 %v5172, %v5470
        %v5472 = vsub.f32 1.0, %v5471
        %v5473 = vmul.f32 %v5470, %v5472
        %v5474 = vadd.f32 %v5470, %v5473
        %vm5475 = vweird.f32 %v5172
        %vm5476 = vweird.f32 %v5470
        %vm5477 = vmor %vm5475, %vm5476
        %v5478 = vsel %vm5477, %v5470, %v5474
        %v5479 = vand.u32 2147483647, %v5172
        %vm5480 = vcmp.eq.f32.partialorder %v5479, 8.507059e+37
        %v5481 = vand.u32 %v5172, 2147483648
        %v5482 = vor.u32 1.1754944e-38, %v5481
        %v5483 = vsel %vm5480, %v5482, %v5478
        %v5484 = vmul.f32 1.0, %v5483
        %v5485 = vrcp.pop %v5173
        %v5486 = vmul.f32 %v5173, %v5485
        %v5487 = vsub.f32 1.0, %v5486
        %v5488 = vmul.f32 %v5485, %v5487
        %v5489 = vadd.f32 %v5485, %v5488
        %vm5490 = vweird.f32 %v5173
        %vm5491 = vweird.f32 %v5485
        %vm5492 = vmor %vm5490, %vm5491
        %v5493 = vsel %vm5492, %v5485, %v5489
        %v5494 = vand.u32 2147483647, %v5173
        %vm5495 = vcmp.eq.f32.partialorder %v5494, 8.507059e+37
        %v5496 = vand.u32 %v5173, 2147483648
        %v5497 = vor.u32 1.1754944e-38, %v5496
        %v5498 = vsel %vm5495, %v5497, %v5493
        %v5499 = vmul.f32 1.0, %v5498
        %v5500 = vrcp.pop %v5174
        %v5501 = vmul.f32 %v5174, %v5500
        %v5502 = vsub.f32 1.0, %v5501
        %v5503 = vmul.f32 %v5500, %v5502
        %v5504 = vadd.f32 %v5500, %v5503
        %vm5505 = vweird.f32 %v5174
        %vm5506 = vweird.f32 %v5500
        %vm5507 = vmor %vm5505, %vm5506
        %v5508 = vsel %vm5507, %v5500, %v5504
        %v5509 = vand.u32 2147483647, %v5174
        %vm5510 = vcmp.eq.f32.partialorder %v5509, 8.507059e+37
        %v5511 = vand.u32 %v5174, 2147483648
        %v5512 = vor.u32 1.1754944e-38, %v5511
        %v5513 = vsel %vm5510, %v5512, %v5508
        %v5514 = vmul.f32 1.0, %v5513
        %v5515 = vrcp.pop %v5175
        %v5516 = vmul.f32 %v5175, %v5515
        %v5517 = vsub.f32 1.0, %v5516
        %v5518 = vmul.f32 %v5515, %v5517
        %v5519 = vadd.f32 %v5515, %v5518
        %vm5520 = vweird.f32 %v5175
        %vm5521 = vweird.f32 %v5515
        %vm5522 = vmor %vm5520, %vm5521
        %v5523 = vsel %vm5522, %v5515, %v5519
        %v5524 = vand.u32 2147483647, %v5175
        %vm5525 = vcmp.eq.f32.partialorder %v5524, 8.507059e+37
        %v5526 = vand.u32 %v5175, 2147483648
        %v5527 = vor.u32 1.1754944e-38, %v5526
        %v5528 = vsel %vm5525, %v5527, %v5523
        %v5529 = vmul.f32 1.0, %v5528
        %v5530 = vrcp.pop %v5176
        %v5531 = vmul.f32 %v5176, %v5530
        %v5532 = vsub.f32 1.0, %v5531
        %v5533 = vmul.f32 %v5530, %v5532
        %v5534 = vadd.f32 %v5530, %v5533
        %vm5535 = vweird.f32 %v5176
        %vm5536 = vweird.f32 %v5530
        %vm5537 = vmor %vm5535, %vm5536
        %v5538 = vsel %vm5537, %v5530, %v5534
        %v5539 = vand.u32 2147483647, %v5176
        %vm5540 = vcmp.eq.f32.partialorder %v5539, 8.507059e+37
        %v5541 = vand.u32 %v5176, 2147483648
        %v5542 = vor.u32 1.1754944e-38, %v5541
        %v5543 = vsel %vm5540, %v5542, %v5538
        %v5544 = vmul.f32 1.0, %v5543
        %v5545 = vrcp.pop %v5177
        %v5546 = vmul.f32 %v5177, %v5545
        %v5547 = vsub.f32 1.0, %v5546
        %v5548 = vmul.f32 %v5545, %v5547
        %v5549 = vadd.f32 %v5545, %v5548
        %vm5550 = vweird.f32 %v5177
        %vm5551 = vweird.f32 %v5545
        %vm5552 = vmor %vm5550, %vm5551
        %v5553 = vsel %vm5552, %v5545, %v5549
        %v5554 = vand.u32 2147483647, %v5177
        %vm5555 = vcmp.eq.f32.partialorder %v5554, 8.507059e+37
        %v5556 = vand.u32 %v5177, 2147483648
        %v5557 = vor.u32 1.1754944e-38, %v5556
        %v5558 = vsel %vm5555, %v5557, %v5553
        %v5559 = vmul.f32 1.0, %v5558
        %v5560 = vrcp.pop %v5178
        %v5561 = vmul.f32 %v5178, %v5560
        %v5562 = vsub.f32 1.0, %v5561
        %v5563 = vmul.f32 %v5560, %v5562
        %v5564 = vadd.f32 %v5560, %v5563
        %vm5565 = vweird.f32 %v5178
        %vm5566 = vweird.f32 %v5560
        %vm5567 = vmor %vm5565, %vm5566
        %v5568 = vsel %vm5567, %v5560, %v5564
        %v5569 = vand.u32 2147483647, %v5178
        %vm5570 = vcmp.eq.f32.partialorder %v5569, 8.507059e+37
        %v5571 = vand.u32 %v5178, 2147483648
        %v5572 = vor.u32 1.1754944e-38, %v5571
        %v5573 = vsel %vm5570, %v5572, %v5568
        %v5574 = vmul.f32 1.0, %v5573
        %v5575 = vrcp.pop %v5179
        %v5576 = vmul.f32 %v5179, %v5575
        %v5577 = vsub.f32 1.0, %v5576
        %v5578 = vmul.f32 %v5575, %v5577
        %v5579 = vadd.f32 %v5575, %v5578
        %vm5580 = vweird.f32 %v5179
        %vm5581 = vweird.f32 %v5575
        %vm5582 = vmor %vm5580, %vm5581
        %v5583 = vsel %vm5582, %v5575, %v5579
        %v5584 = vand.u32 2147483647, %v5179
        %vm5585 = vcmp.eq.f32.partialorder %v5584, 8.507059e+37
        %v5586 = vand.u32 %v5179, 2147483648
        %v5587 = vor.u32 1.1754944e-38, %v5586
        %v5588 = vsel %vm5585, %v5587, %v5583
        %v5589 = vmul.f32 1.0, %v5588
        %v5590 = vrcp.pop %v5180
        %v5591 = vmul.f32 %v5180, %v5590
        %v5592 = vsub.f32 1.0, %v5591
        %v5593 = vmul.f32 %v5590, %v5592
        %v5594 = vadd.f32 %v5590, %v5593
        %vm5595 = vweird.f32 %v5180
        %vm5596 = vweird.f32 %v5590
        %vm5597 = vmor %vm5595, %vm5596
        %v5598 = vsel %vm5597, %v5590, %v5594
        %v5599 = vand.u32 2147483647, %v5180
        %vm5600 = vcmp.eq.f32.partialorder %v5599, 8.507059e+37
        %v5601 = vand.u32 %v5180, 2147483648
        %v5602 = vor.u32 1.1754944e-38, %v5601
        %v5603 = vsel %vm5600, %v5602, %v5598
        %v5604 = vmul.f32 1.0, %v5603
        %v5605 = vrcp.pop %v5181
        %v5606 = vmul.f32 %v5181, %v5605
        %v5607 = vsub.f32 1.0, %v5606
        %v5608 = vmul.f32 %v5605, %v5607
        %v5609 = vadd.f32 %v5605, %v5608
        %vm5610 = vweird.f32 %v5181
        %vm5611 = vweird.f32 %v5605
        %vm5612 = vmor %vm5610, %vm5611
        %v5613 = vsel %vm5612, %v5605, %v5609
        %v5614 = vand.u32 2147483647, %v5181
        %vm5615 = vcmp.eq.f32.partialorder %v5614, 8.507059e+37
        %v5616 = vand.u32 %v5181, 2147483648
        %v5617 = vor.u32 1.1754944e-38, %v5616
        %v5618 = vsel %vm5615, %v5617, %v5613
        %v5619 = vmul.f32 1.0, %v5618
        %v5620 = vrcp.pop %v5182
        %v5621 = vmul.f32 %v5182, %v5620
        %v5622 = vsub.f32 1.0, %v5621
        %v5623 = vmul.f32 %v5620, %v5622
        %v5624 = vadd.f32 %v5620, %v5623
        %vm5625 = vweird.f32 %v5182
        %vm5626 = vweird.f32 %v5620
        %vm5627 = vmor %vm5625, %vm5626
        %v5628 = vsel %vm5627, %v5620, %v5624
        %v5629 = vand.u32 2147483647, %v5182
        %vm5630 = vcmp.eq.f32.partialorder %v5629, 8.507059e+37
        %v5631 = vand.u32 %v5182, 2147483648
        %v5632 = vor.u32 1.1754944e-38, %v5631
        %v5633 = vsel %vm5630, %v5632, %v5628
        %v5634 = vmul.f32 1.0, %v5633
        %v5635 = vrcp.pop %v5183
        %v5636 = vmul.f32 %v5183, %v5635
        %v5637 = vsub.f32 1.0, %v5636
        %v5638 = vmul.f32 %v5635, %v5637
        %v5639 = vadd.f32 %v5635, %v5638
        %vm5640 = vweird.f32 %v5183
        %vm5641 = vweird.f32 %v5635
        %vm5642 = vmor %vm5640, %vm5641
        %v5643 = vsel %vm5642, %v5635, %v5639
        %v5644 = vand.u32 2147483647, %v5183
        %vm5645 = vcmp.eq.f32.partialorder %v5644, 8.507059e+37
        %v5646 = vand.u32 %v5183, 2147483648
        %v5647 = vor.u32 1.1754944e-38, %v5646
        %v5648 = vsel %vm5645, %v5647, %v5643
        %v5649 = vmul.f32 1.0, %v5648
        %v5650 = vrcp.pop %v5184
        %v5651 = vmul.f32 %v5184, %v5650
        %v5652 = vsub.f32 1.0, %v5651
        %v5653 = vmul.f32 %v5650, %v5652
        %v5654 = vadd.f32 %v5650, %v5653
        %vm5655 = vweird.f32 %v5184
        %vm5656 = vweird.f32 %v5650
        %vm5657 = vmor %vm5655, %vm5656
        %v5658 = vsel %vm5657, %v5650, %v5654
        %v5659 = vand.u32 2147483647, %v5184
        %vm5660 = vcmp.eq.f32.partialorder %v5659, 8.507059e+37
        %v5661 = vand.u32 %v5184, 2147483648
        %v5662 = vor.u32 1.1754944e-38, %v5661
        %v5663 = vsel %vm5660, %v5662, %v5658
        %v5664 = vmul.f32 1.0, %v5663
        %v5665 = vmul.f32 %v5025, %v5199
        %v5666 = vmul.f32 %v5026, %v5214
        %v5667 = vmul.f32 %v5027, %v5229
        %v5668 = vmul.f32 %v5028, %v5244
        %v5669 = vmul.f32 %v5029, %v5259
        %v5670 = vmul.f32 %v5030, %v5274
        %v5671 = vmul.f32 %v5031, %v5289
        %v5672 = vmul.f32 %v5032, %v5304
        %v5673 = vmul.f32 %v5033, %v5319
        %v5674 = vmul.f32 %v5034, %v5334
        %v5675 = vmul.f32 %v5035, %v5349
        %v5676 = vmul.f32 %v5036, %v5364
        %v5677 = vmul.f32 %v5037, %v5379
        %v5678 = vmul.f32 %v5038, %v5394
        %v5679 = vmul.f32 %v5039, %v5409
        %v5680 = vmul.f32 %v5040, %v5424
        %v5681 = vmul.f32 %v5041, %v5439
        %v5682 = vmul.f32 %v5042, %v5454
        %v5683 = vmul.f32 %v5043, %v5469
        %v5684 = vmul.f32 %v5044, %v5484
        %v5685 = vmul.f32 %v5045, %v5499
        %v5686 = vmul.f32 %v5046, %v5514
        %v5687 = vmul.f32 %v5047, %v5529
        %v5688 = vmul.f32 %v5048, %v5544
        %v5689 = vmul.f32 %v5049, %v5559
        %v5690 = vmul.f32 %v5050, %v5574
        %v5691 = vmul.f32 %v5051, %v5589
        %v5692 = vmul.f32 %v5052, %v5604
        %v5693 = vmul.f32 %v5053, %v5619
        %v5694 = vmul.f32 %v5054, %v5634
        %v5695 = vmul.f32 %v5055, %v5649
        %v5696 = vmul.f32 %v5056, %v5664
        %5697 = vst [vmem:[#allocation3] sm:$0xff] 0.0
        %5698 = vst [vmem:[#allocation3 + $0x8] sm:$0xff] 0.0
        %5699 = vst [vmem:[#allocation3 + $0x10] sm:$0x3] 0.0
        %5700 = vst [vmem:[#allocation3 + $0x18] sm:$0xff] 0.0
        %5701 = vst [vmem:[#allocation3 + $0x20] sm:$0xff] 0.0
        %5702 = vst [vmem:[#allocation3 + $0x28] sm:$0x3] 0.0
        %5703 = vst [vmem:[#allocation3 + $0x30] sm:$0xff] 0.0
        %5704 = vst [vmem:[#allocation3 + $0x38] sm:$0xff] 0.0
        %5705 = vst [vmem:[#allocation3 + $0x40] sm:$0x3] 0.0
        %5706 = vst [vmem:[#allocation3 + $0x48] sm:$0xff] 0.0
        %5707 = vst [vmem:[#allocation3 + $0x50] sm:$0xff] 0.0
        %5708 = vst [vmem:[#allocation3 + $0x58] sm:$0x3] 0.0
        %5709 = vst [vmem:[#allocation3 + $0x60] sm:$0xff] 0.0
        %5710 = vst [vmem:[#allocation3 + $0x68] sm:$0xff] 0.0
        %5711 = vst [vmem:[#allocation3 + $0x70] sm:$0x3] 0.0
        %5712 = vst [vmem:[#allocation3 + $0x78] sm:$0xff] 0.0
        %5713 = vst [vmem:[#allocation3 + $0x80] sm:$0xff] 0.0
        %5714 = vst [vmem:[#allocation3 + $0x88] sm:$0x3] 0.0
        %5715 = vst [vmem:[#allocation3 + $0x90] sm:$0xff] 0.0
        %5716 = vst [vmem:[#allocation3 + $0x98] sm:$0xff] 0.0
        %5717 = vst [vmem:[#allocation3 + $0xa0] sm:$0x3] 0.0
        %5718 = vst [vmem:[#allocation3 + $0xa8] sm:$0xff] 0.0
        %5719 = vst [vmem:[#allocation3 + $0xb0] sm:$0xff] 0.0
        %5720 = vst [vmem:[#allocation3 + $0xb8] sm:$0x3] 0.0
        %5721 = vst [vmem:[#allocation3 + $0xc0] sm:$0xff] 0.0
        %5722 = vst [vmem:[#allocation3 + $0xc8] sm:$0xff] 0.0
        %5723 = vst [vmem:[#allocation3 + $0xd0] sm:$0x3] 0.0
        %5724 = vst [vmem:[#allocation3 + $0xd8] sm:$0xff] 0.0
        %5725 = vst [vmem:[#allocation3 + $0xe0] sm:$0xff] 0.0
        %5726 = vst [vmem:[#allocation3 + $0xe8] sm:$0x3] 0.0
        %5727 = vst [vmem:[#allocation3 + $0xf0] sm:$0xff] 0.0
        %5728 = vst [vmem:[#allocation3 + $0xf8] sm:$0xff] 0.0
        %5729 = vst [vmem:[#allocation3 + $0x100] sm:$0x3] 0.0
        %5730 = vst [vmem:[#allocation3 + $0x108] sm:$0xff] 0.0
        %5731 = vst [vmem:[#allocation3 + $0x110] sm:$0xff] 0.0
        %5732 = vst [vmem:[#allocation3 + $0x118] sm:$0x3] 0.0
        %5733 = vst [vmem:[#allocation3 + $0x120] sm:$0xff] 0.0
        %5734 = vst [vmem:[#allocation3 + $0x128] sm:$0xff] 0.0
        %5735 = vst [vmem:[#allocation3 + $0x130] sm:$0x3] 0.0
        %5736 = vst [vmem:[#allocation3 + $0x138] sm:$0xff] 0.0
        %5737 = vst [vmem:[#allocation3 + $0x140] sm:$0xff] 0.0
        %5738 = vst [vmem:[#allocation3 + $0x148] sm:$0x3] 0.0
        %5739 = vst [vmem:[#allocation3 + $0x150] sm:$0xff] 0.0
        %5740 = vst [vmem:[#allocation3 + $0x158] sm:$0xff] 0.0
        %5741 = vst [vmem:[#allocation3 + $0x160] sm:$0x3] 0.0
        %5742 = vst [vmem:[#allocation3 + $0x168] sm:$0xff] 0.0
        %5743 = vst [vmem:[#allocation3 + $0x170] sm:$0xff] 0.0
        %5744 = vst [vmem:[#allocation3 + $0x178] sm:$0x3] 0.0
        %5745 = vst [vmem:[#allocation3 + $0x180] sm:$0xff] 0.0
        %5746 = vst [vmem:[#allocation3 + $0x188] sm:$0xff] 0.0
        %5747 = vst [vmem:[#allocation3 + $0x190] sm:$0x3] 0.0
        %5748 = vst [vmem:[#allocation3 + $0x198] sm:$0xff] 0.0
        %5749 = vst [vmem:[#allocation3 + $0x1a0] sm:$0xff] 0.0
        %5750 = vst [vmem:[#allocation3 + $0x1a8] sm:$0x3] 0.0
        %s5751 = scalar_lea.vmem [#allocation3], 24
        %5752 = vst [vmem:[%s5751 + $0x1] sm:$0xff] %v5665
        %5753 = vst [vmem:[%s5751 + $0x9] sm:$0xff] %v5666
        %5754 = vst [vmem:[%s5751 + $0x19] sm:$0xff] %v5667
        %5755 = vst [vmem:[%s5751 + $0x21] sm:$0xff] %v5668
        %5756 = vst [vmem:[%s5751 + $0x31] sm:$0xff] %v5669
        %5757 = vst [vmem:[%s5751 + $0x39] sm:$0xff] %v5670
        %5758 = vst [vmem:[%s5751 + $0x49] sm:$0xff] %v5671
        %5759 = vst [vmem:[%s5751 + $0x51] sm:$0xff] %v5672
        %5760 = vst [vmem:[%s5751 + $0x61] sm:$0xff] %v5673
        %5761 = vst [vmem:[%s5751 + $0x69] sm:$0xff] %v5674
        %5762 = vst [vmem:[%s5751 + $0x79] sm:$0xff] %v5675
        %5763 = vst [vmem:[%s5751 + $0x81] sm:$0xff] %v5676
        %5764 = vst [vmem:[%s5751 + $0x91] sm:$0xff] %v5677
        %5765 = vst [vmem:[%s5751 + $0x99] sm:$0xff] %v5678
        %5766 = vst [vmem:[%s5751 + $0xa9] sm:$0xff] %v5679
        %5767 = vst [vmem:[%s5751 + $0xb1] sm:$0xff] %v5680
        %5768 = vst [vmem:[%s5751 + $0xc1] sm:$0xff] %v5681
        %5769 = vst [vmem:[%s5751 + $0xc9] sm:$0xff] %v5682
        %5770 = vst [vmem:[%s5751 + $0xd9] sm:$0xff] %v5683
        %5771 = vst [vmem:[%s5751 + $0xe1] sm:$0xff] %v5684
        %5772 = vst [vmem:[%s5751 + $0xf1] sm:$0xff] %v5685
        %5773 = vst [vmem:[%s5751 + $0xf9] sm:$0xff] %v5686
        %5774 = vst [vmem:[%s5751 + $0x109] sm:$0xff] %v5687
        %5775 = vst [vmem:[%s5751 + $0x111] sm:$0xff] %v5688
        %5776 = vst [vmem:[%s5751 + $0x121] sm:$0xff] %v5689
        %5777 = vst [vmem:[%s5751 + $0x129] sm:$0xff] %v5690
        %5778 = vst [vmem:[%s5751 + $0x139] sm:$0xff] %v5691
        %5779 = vst [vmem:[%s5751 + $0x141] sm:$0xff] %v5692
        %5780 = vst [vmem:[%s5751 + $0x151] sm:$0xff] %v5693
        %5781 = vst [vmem:[%s5751 + $0x159] sm:$0xff] %v5694
        %5782 = vst [vmem:[%s5751 + $0x169] sm:$0xff] %v5695
        %5783 = vst [vmem:[%s5751 + $0x171] sm:$0xff] %v5696
        %v5784 = vld [vmem:[#allocation3] sm:$0xff]
        %v5785 = vld [vmem:[#allocation3 + $0x8] sm:$0xff]
        %v5786 = vld [vmem:[#allocation3 + $0x18] sm:$0xff]
        %v5787 = vld [vmem:[#allocation3 + $0x20] sm:$0xff]
        %v5788 = vld [vmem:[#allocation3 + $0x30] sm:$0xff]
        %v5789 = vld [vmem:[#allocation3 + $0x38] sm:$0xff]
        %v5790 = vld [vmem:[#allocation3 + $0x48] sm:$0xff]
        %v5791 = vld [vmem:[#allocation3 + $0x50] sm:$0xff]
        %v5792 = vld [vmem:[#allocation3 + $0x60] sm:$0xff]
        %v5793 = vld [vmem:[#allocation3 + $0x68] sm:$0xff]
        %v5794 = vld [vmem:[#allocation3 + $0x78] sm:$0xff]
        %v5795 = vld [vmem:[#allocation3 + $0x80] sm:$0xff]
        %v5796 = vld [vmem:[#allocation3 + $0x90] sm:$0xff]
        %v5797 = vld [vmem:[#allocation3 + $0x98] sm:$0xff]
        %v5798 = vld [vmem:[#allocation3 + $0xa8] sm:$0xff]
        %v5799 = vld [vmem:[#allocation3 + $0xb0] sm:$0xff]
        %v5800 = vld [vmem:[#allocation3 + $0xc0] sm:$0xff]
        %v5801 = vld [vmem:[#allocation3 + $0xc8] sm:$0xff]
        %v5802 = vld [vmem:[#allocation3 + $0xd8] sm:$0xff]
        %v5803 = vld [vmem:[#allocation3 + $0xe0] sm:$0xff]
        %v5804 = vld [vmem:[#allocation3 + $0xf0] sm:$0xff]
        %v5805 = vld [vmem:[#allocation3 + $0xf8] sm:$0xff]
        %v5806 = vld [vmem:[#allocation3 + $0x108] sm:$0xff]
        %v5807 = vld [vmem:[#allocation3 + $0x110] sm:$0xff]
        %v5808 = vld [vmem:[#allocation3 + $0x120] sm:$0xff]
        %v5809 = vld [vmem:[#allocation3 + $0x128] sm:$0xff]
        %v5810 = vld [vmem:[#allocation3 + $0x138] sm:$0xff]
        %v5811 = vld [vmem:[#allocation3 + $0x140] sm:$0xff]
        %v5812 = vld [vmem:[#allocation3 + $0x150] sm:$0xff]
        %v5813 = vld [vmem:[#allocation3 + $0x158] sm:$0xff]
        %v5814 = vld [vmem:[#allocation3 + $0x168] sm:$0xff]
        %v5815 = vld [vmem:[#allocation3 + $0x170] sm:$0xff]
        %v5816 = vpack.c.bf16 %v5784, %v5784
        %v5817 = vpack.c.bf16 %v5785, %v5785
        %v5818 = vpack.c.bf16 %v5786, %v5786
        %v5819 = vpack.c.bf16 %v5787, %v5787
        %v5820 = vpack.c.bf16 %v5788, %v5788
        %v5821 = vpack.c.bf16 %v5789, %v5789
        %v5822 = vpack.c.bf16 %v5790, %v5790
        %v5823 = vpack.c.bf16 %v5791, %v5791
        %v5824 = vpack.c.bf16 %v5792, %v5792
        %v5825 = vpack.c.bf16 %v5793, %v5793
        %v5826 = vpack.c.bf16 %v5794, %v5794
        %v5827 = vpack.c.bf16 %v5795, %v5795
        %v5828 = vpack.c.bf16 %v5796, %v5796
        %v5829 = vpack.c.bf16 %v5797, %v5797
        %v5830 = vpack.c.bf16 %v5798, %v5798
        %v5831 = vpack.c.bf16 %v5799, %v5799
        %v5832 = vpack.c.bf16 %v5800, %v5800
        %v5833 = vpack.c.bf16 %v5801, %v5801
        %v5834 = vpack.c.bf16 %v5802, %v5802
        %v5835 = vpack.c.bf16 %v5803, %v5803
        %v5836 = vpack.c.bf16 %v5804, %v5804
        %v5837 = vpack.c.bf16 %v5805, %v5805
        %v5838 = vpack.c.bf16 %v5806, %v5806
        %v5839 = vpack.c.bf16 %v5807, %v5807
        %v5840 = vpack.c.bf16 %v5808, %v5808
        %v5841 = vpack.c.bf16 %v5809, %v5809
        %v5842 = vpack.c.bf16 %v5810, %v5810
        %v5843 = vpack.c.bf16 %v5811, %v5811
        %v5844 = vpack.c.bf16 %v5812, %v5812
        %v5845 = vpack.c.bf16 %v5813, %v5813
        %v5846 = vpack.c.bf16 %v5814, %v5814
        %v5847 = vpack.c.bf16 %v5815, %v5815
        %v5848 = vld [vmem:[%s12] sm:$0xf]
        %v5849 = vld [vmem:[%s12 + $0x4] sm:$0xf]
        %v5850 = vld [vmem:[%s12 + $0x8] sm:$0xf]
        %v5851 = vld [vmem:[%s12 + $0xc] sm:$0xf]
        %v5852 = vld [vmem:[%s12 + $0x10] sm:$0xf]
        %v5853 = vld [vmem:[%s12 + $0x14] sm:$0xf]
        %v5854 = vld [vmem:[%s12 + $0x18] sm:$0xf]
        %v5855 = vld [vmem:[%s12 + $0x1c] sm:$0xf]
        %v5856 = vld [vmem:[%s12 + $0x20] sm:$0xf]
        %v5857 = vld [vmem:[%s12 + $0x24] sm:$0xf]
        %v5858 = vld [vmem:[%s12 + $0x28] sm:$0xf]
        %v5859 = vld [vmem:[%s12 + $0x2c] sm:$0xf]
        %v5860 = vld [vmem:[%s12 + $0x30] sm:$0xf]
        %v5861 = vld [vmem:[%s12 + $0x34] sm:$0xf]
        %v5862 = vld [vmem:[%s12 + $0x38] sm:$0xf]
        %v5863 = vld [vmem:[%s12 + $0x3c] sm:$0xf]
        %v5864 = vld [vmem:[#allocation3 + $0x1] sm:$0xff]
        %v5865 = vld [vmem:[#allocation3 + $0x9] sm:$0xff]
        %v5866 = vld [vmem:[#allocation3 + $0x19] sm:$0xff]
        %v5867 = vld [vmem:[#allocation3 + $0x21] sm:$0xff]
        %v5868 = vld [vmem:[#allocation3 + $0x31] sm:$0xff]
        %v5869 = vld [vmem:[#allocation3 + $0x39] sm:$0xff]
        %v5870 = vld [vmem:[#allocation3 + $0x49] sm:$0xff]
        %v5871 = vld [vmem:[#allocation3 + $0x51] sm:$0xff]
        %v5872 = vld [vmem:[#allocation3 + $0x61] sm:$0xff]
        %v5873 = vld [vmem:[#allocation3 + $0x69] sm:$0xff]
        %v5874 = vld [vmem:[#allocation3 + $0x79] sm:$0xff]
        %v5875 = vld [vmem:[#allocation3 + $0x81] sm:$0xff]
        %v5876 = vld [vmem:[#allocation3 + $0x91] sm:$0xff]
        %v5877 = vld [vmem:[#allocation3 + $0x99] sm:$0xff]
        %v5878 = vld [vmem:[#allocation3 + $0xa9] sm:$0xff]
        %v5879 = vld [vmem:[#allocation3 + $0xb1] sm:$0xff]
        %v5880 = vld [vmem:[#allocation3 + $0xc1] sm:$0xff]
        %v5881 = vld [vmem:[#allocation3 + $0xc9] sm:$0xff]
        %v5882 = vld [vmem:[#allocation3 + $0xd9] sm:$0xff]
        %v5883 = vld [vmem:[#allocation3 + $0xe1] sm:$0xff]
        %v5884 = vld [vmem:[#allocation3 + $0xf1] sm:$0xff]
        %v5885 = vld [vmem:[#allocation3 + $0xf9] sm:$0xff]
        %v5886 = vld [vmem:[#allocation3 + $0x109] sm:$0xff]
        %v5887 = vld [vmem:[#allocation3 + $0x111] sm:$0xff]
        %v5888 = vld [vmem:[#allocation3 + $0x121] sm:$0xff]
        %v5889 = vld [vmem:[#allocation3 + $0x129] sm:$0xff]
        %v5890 = vld [vmem:[#allocation3 + $0x139] sm:$0xff]
        %v5891 = vld [vmem:[#allocation3 + $0x141] sm:$0xff]
        %v5892 = vld [vmem:[#allocation3 + $0x151] sm:$0xff]
        %v5893 = vld [vmem:[#allocation3 + $0x159] sm:$0xff]
        %v5894 = vld [vmem:[#allocation3 + $0x169] sm:$0xff]
        %v5895 = vld [vmem:[#allocation3 + $0x171] sm:$0xff]
        %v5896 = vpack.c.bf16 %v5864, %v5864
        %v5897 = vpack.c.bf16 %v5865, %v5865
        %v5898 = vpack.c.bf16 %v5866, %v5866
        %v5899 = vpack.c.bf16 %v5867, %v5867
        %v5900 = vpack.c.bf16 %v5868, %v5868
        %v5901 = vpack.c.bf16 %v5869, %v5869
        %v5902 = vpack.c.bf16 %v5870, %v5870
        %v5903 = vpack.c.bf16 %v5871, %v5871
        %v5904 = vpack.c.bf16 %v5872, %v5872
        %v5905 = vpack.c.bf16 %v5873, %v5873
        %v5906 = vpack.c.bf16 %v5874, %v5874
        %v5907 = vpack.c.bf16 %v5875, %v5875
        %v5908 = vpack.c.bf16 %v5876, %v5876
        %v5909 = vpack.c.bf16 %v5877, %v5877
        %v5910 = vpack.c.bf16 %v5878, %v5878
        %v5911 = vpack.c.bf16 %v5879, %v5879
        %v5912 = vpack.c.bf16 %v5880, %v5880
        %v5913 = vpack.c.bf16 %v5881, %v5881
        %v5914 = vpack.c.bf16 %v5882, %v5882
        %v5915 = vpack.c.bf16 %v5883, %v5883
        %v5916 = vpack.c.bf16 %v5884, %v5884
        %v5917 = vpack.c.bf16 %v5885, %v5885
        %v5918 = vpack.c.bf16 %v5886, %v5886
        %v5919 = vpack.c.bf16 %v5887, %v5887
        %v5920 = vpack.c.bf16 %v5888, %v5888
        %v5921 = vpack.c.bf16 %v5889, %v5889
        %v5922 = vpack.c.bf16 %v5890, %v5890
        %v5923 = vpack.c.bf16 %v5891, %v5891
        %v5924 = vpack.c.bf16 %v5892, %v5892
        %v5925 = vpack.c.bf16 %v5893, %v5893
        %v5926 = vpack.c.bf16 %v5894, %v5894
        %v5927 = vpack.c.bf16 %v5895, %v5895
        %s5928 = scalar_lea.vmem %s12, 64
        %v5929 = vld [vmem:[%s5928] sm:$0xf]
        %v5930 = vld [vmem:[%s5928 + $0x4] sm:$0xf]
        %v5931 = vld [vmem:[%s5928 + $0x8] sm:$0xf]
        %v5932 = vld [vmem:[%s5928 + $0xc] sm:$0xf]
        %v5933 = vld [vmem:[%s5928 + $0x10] sm:$0xf]
        %v5934 = vld [vmem:[%s5928 + $0x14] sm:$0xf]
        %v5935 = vld [vmem:[%s5928 + $0x18] sm:$0xf]
        %v5936 = vld [vmem:[%s5928 + $0x1c] sm:$0xf]
        %v5937 = vld [vmem:[%s5928 + $0x20] sm:$0xf]
        %v5938 = vld [vmem:[%s5928 + $0x24] sm:$0xf]
        %v5939 = vld [vmem:[%s5928 + $0x28] sm:$0xf]
        %v5940 = vld [vmem:[%s5928 + $0x2c] sm:$0xf]
        %v5941 = vld [vmem:[%s5928 + $0x30] sm:$0xf]
        %v5942 = vld [vmem:[%s5928 + $0x34] sm:$0xf]
        %v5943 = vld [vmem:[%s5928 + $0x38] sm:$0xf]
        %v5944 = vld [vmem:[%s5928 + $0x3c] sm:$0xf]
        %v5977 = vunpack.c.l.b16 %v5896
        %v5978 = vunpack.c.l.b16 %v5897
        %v5979 = vunpack.c.l.b16 %v5898
        %v5980 = vunpack.c.l.b16 %v5899
        %v5981 = vunpack.c.l.b16 %v5900
        %v5982 = vunpack.c.l.b16 %v5901
        %v5983 = vunpack.c.l.b16 %v5902
        %v5984 = vunpack.c.l.b16 %v5903
        %v5985 = vunpack.c.l.b16 %v5904
        %v5986 = vunpack.c.l.b16 %v5905
        %v5987 = vunpack.c.l.b16 %v5906
        %v5988 = vunpack.c.l.b16 %v5907
        %v5989 = vunpack.c.l.b16 %v5908
        %v5990 = vunpack.c.l.b16 %v5909
        %v5991 = vunpack.c.l.b16 %v5910
        %v5992 = vunpack.c.l.b16 %v5911
        %v5993 = vunpack.c.l.b16 %v5912
        %v5994 = vunpack.c.l.b16 %v5913
        %v5995 = vunpack.c.l.b16 %v5914
        %v5996 = vunpack.c.l.b16 %v5915
        %v5997 = vunpack.c.l.b16 %v5916
        %v5998 = vunpack.c.l.b16 %v5917
        %v5999 = vunpack.c.l.b16 %v5918
        %v6000 = vunpack.c.l.b16 %v5919
        %v6001 = vunpack.c.l.b16 %v5920
        %v6002 = vunpack.c.l.b16 %v5921
        %v6003 = vunpack.c.l.b16 %v5922
        %v6004 = vunpack.c.l.b16 %v5923
        %v6005 = vunpack.c.l.b16 %v5924
        %v6006 = vunpack.c.l.b16 %v5925
        %v6007 = vunpack.c.l.b16 %v5926
        %v6008 = vunpack.c.l.b16 %v5927
        %v6009 = vpack.c.b16 %v5978, %v5977
        %v6010 = vpack.c.b16 %v5980, %v5979
        %v6011 = vpack.c.b16 %v5982, %v5981
        %v6012 = vpack.c.b16 %v5984, %v5983
        %v6013 = vpack.c.b16 %v5986, %v5985
        %v6014 = vpack.c.b16 %v5988, %v5987
        %v6015 = vpack.c.b16 %v5990, %v5989
        %v6016 = vpack.c.b16 %v5992, %v5991
        %v6017 = vpack.c.b16 %v5994, %v5993
        %v6018 = vpack.c.b16 %v5996, %v5995
        %v6019 = vpack.c.b16 %v5998, %v5997
        %v6020 = vpack.c.b16 %v6000, %v5999
        %v6021 = vpack.c.b16 %v6002, %v6001
        %v6022 = vpack.c.b16 %v6004, %v6003
        %v6023 = vpack.c.b16 %v6006, %v6005
        %v6024 = vpack.c.b16 %v6008, %v6007
        %v6057 = vunpack.c.l.b16 %v5929
        %v6058 = vunpack.c.l.b16 %v5930
        %v6059 = vunpack.c.l.b16 %v5931
        %v6060 = vunpack.c.l.b16 %v5932
        %v6061 = vunpack.c.l.b16 %v5933
        %v6062 = vunpack.c.l.b16 %v5934
        %v6063 = vunpack.c.l.b16 %v5935
        %v6064 = vunpack.c.l.b16 %v5936
        %v6065 = vunpack.c.l.b16 %v5937
        %v6066 = vunpack.c.l.b16 %v5938
        %v6067 = vunpack.c.l.b16 %v5939
        %v6068 = vunpack.c.l.b16 %v5940
        %v6069 = vunpack.c.l.b16 %v5941
        %v6070 = vunpack.c.l.b16 %v5942
        %v6071 = vunpack.c.l.b16 %v5943
        %v6072 = vunpack.c.l.b16 %v5944
        %v6073 = vpack.c.b16 %v6058, %v6057
        %v6074 = vpack.c.b16 %v6060, %v6059
        %v6075 = vpack.c.b16 %v6062, %v6061
        %v6076 = vpack.c.b16 %v6064, %v6063
        %v6077 = vpack.c.b16 %v6066, %v6065
        %v6078 = vpack.c.b16 %v6068, %v6067
        %v6079 = vpack.c.b16 %v6070, %v6069
        %v6080 = vpack.c.b16 %v6072, %v6071
        %6089 = vmatpush.bf16.msra.mxu0 %v6080
        %6090 = vmatpush.bf16.msra.mxu0 %v6079
        %6091 = vmatpush.bf16.msra.mxu0 %v6078
        %6092 = vmatpush.bf16.msra.mxu0 %v6077
        %6093 = vmatpush.bf16.msra.mxu0 %v6076
        %6094 = vmatpush.bf16.msra.mxu0 %v6075
        %6095 = vmatpush.bf16.msra.mxu0 %v6074
        %6096 = vmatpush.bf16.msra.mxu0 %v6073
        %6097 = vmatmul.bf16.gmra.mxu0 %v6009
        %v6098 = vpop.f32.mrf.mxu0
        %v6099 = vadd.f32 0.0, %v6098
        %v6100 = vpop.f32.mrf.mxu0
        %v6101 = vadd.f32 0.0, %v6100
        %6102 = vmatmul.bf16.gmra.mxu0 %v6010
        %v6103 = vpop.f32.mrf.mxu0
        %v6104 = vadd.f32 0.0, %v6103
        %v6105 = vpop.f32.mrf.mxu0
        %v6106 = vadd.f32 0.0, %v6105
        %6107 = vmatmul.bf16.gmra.mxu0 %v6011
        %v6108 = vpop.f32.mrf.mxu0
        %v6109 = vadd.f32 0.0, %v6108
        %v6110 = vpop.f32.mrf.mxu0
        %v6111 = vadd.f32 0.0, %v6110
        %6112 = vmatmul.bf16.gmra.mxu0 %v6012
        %v6113 = vpop.f32.mrf.mxu0
        %v6114 = vadd.f32 0.0, %v6113
        %v6115 = vpop.f32.mrf.mxu0
        %v6116 = vadd.f32 0.0, %v6115
        %6117 = vmatmul.bf16.gmra.mxu0 %v6013
        %v6118 = vpop.f32.mrf.mxu0
        %v6119 = vadd.f32 0.0, %v6118
        %v6120 = vpop.f32.mrf.mxu0
        %v6121 = vadd.f32 0.0, %v6120
        %6122 = vmatmul.bf16.gmra.mxu0 %v6014
        %v6123 = vpop.f32.mrf.mxu0
        %v6124 = vadd.f32 0.0, %v6123
        %v6125 = vpop.f32.mrf.mxu0
        %v6126 = vadd.f32 0.0, %v6125
        %6127 = vmatmul.bf16.gmra.mxu0 %v6015
        %v6128 = vpop.f32.mrf.mxu0
        %v6129 = vadd.f32 0.0, %v6128
        %v6130 = vpop.f32.mrf.mxu0
        %v6131 = vadd.f32 0.0, %v6130
        %6132 = vmatmul.bf16.gmra.mxu0 %v6016
        %v6133 = vpop.f32.mrf.mxu0
        %v6134 = vadd.f32 0.0, %v6133
        %v6135 = vpop.f32.mrf.mxu0
        %v6136 = vadd.f32 0.0, %v6135
        %6137 = vmatmul.bf16.gmra.mxu0 %v6017
        %v6138 = vpop.f32.mrf.mxu0
        %v6139 = vadd.f32 0.0, %v6138
        %v6140 = vpop.f32.mrf.mxu0
        %v6141 = vadd.f32 0.0, %v6140
        %6142 = vmatmul.bf16.gmra.mxu0 %v6018
        %v6143 = vpop.f32.mrf.mxu0
        %v6144 = vadd.f32 0.0, %v6143
        %v6145 = vpop.f32.mrf.mxu0
        %v6146 = vadd.f32 0.0, %v6145
        %6147 = vmatmul.bf16.gmra.mxu0 %v6019
        %v6148 = vpop.f32.mrf.mxu0
        %v6149 = vadd.f32 0.0, %v6148
        %v6150 = vpop.f32.mrf.mxu0
        %v6151 = vadd.f32 0.0, %v6150
        %6152 = vmatmul.bf16.gmra.mxu0 %v6020
        %v6153 = vpop.f32.mrf.mxu0
        %v6154 = vadd.f32 0.0, %v6153
        %v6155 = vpop.f32.mrf.mxu0
        %v6156 = vadd.f32 0.0, %v6155
        %6157 = vmatmul.bf16.gmra.mxu0 %v6021
        %v6158 = vpop.f32.mrf.mxu0
        %v6159 = vadd.f32 0.0, %v6158
        %v6160 = vpop.f32.mrf.mxu0
        %v6161 = vadd.f32 0.0, %v6160
        %6162 = vmatmul.bf16.gmra.mxu0 %v6022
        %v6163 = vpop.f32.mrf.mxu0
        %v6164 = vadd.f32 0.0, %v6163
        %v6165 = vpop.f32.mrf.mxu0
        %v6166 = vadd.f32 0.0, %v6165
        %6167 = vmatmul.bf16.gmra.mxu0 %v6023
        %v6168 = vpop.f32.mrf.mxu0
        %v6169 = vadd.f32 0.0, %v6168
        %v6170 = vpop.f32.mrf.mxu0
        %v6171 = vadd.f32 0.0, %v6170
        %6172 = vmatmul.bf16.gmra.mxu0 %v6024
        %v6173 = vpop.f32.mrf.mxu0
        %v6174 = vadd.f32 0.0, %v6173
        %v6175 = vpop.f32.mrf.mxu0
        %v6176 = vadd.f32 0.0, %v6175
        %6177 = vdwg.mxu0
        %v6210 = vunpack.c.l.b16 %v5816
        %v6211 = vunpack.c.l.b16 %v5817
        %v6212 = vunpack.c.l.b16 %v5818
        %v6213 = vunpack.c.l.b16 %v5819
        %v6214 = vunpack.c.l.b16 %v5820
        %v6215 = vunpack.c.l.b16 %v5821
        %v6216 = vunpack.c.l.b16 %v5822
        %v6217 = vunpack.c.l.b16 %v5823
        %v6218 = vunpack.c.l.b16 %v5824
        %v6219 = vunpack.c.l.b16 %v5825
        %v6220 = vunpack.c.l.b16 %v5826
        %v6221 = vunpack.c.l.b16 %v5827
        %v6222 = vunpack.c.l.b16 %v5828
        %v6223 = vunpack.c.l.b16 %v5829
        %v6224 = vunpack.c.l.b16 %v5830
        %v6225 = vunpack.c.l.b16 %v5831
        %v6226 = vunpack.c.l.b16 %v5832
        %v6227 = vunpack.c.l.b16 %v5833
        %v6228 = vunpack.c.l.b16 %v5834
        %v6229 = vunpack.c.l.b16 %v5835
        %v6230 = vunpack.c.l.b16 %v5836
        %v6231 = vunpack.c.l.b16 %v5837
        %v6232 = vunpack.c.l.b16 %v5838
        %v6233 = vunpack.c.l.b16 %v5839
        %v6234 = vunpack.c.l.b16 %v5840
        %v6235 = vunpack.c.l.b16 %v5841
        %v6236 = vunpack.c.l.b16 %v5842
        %v6237 = vunpack.c.l.b16 %v5843
        %v6238 = vunpack.c.l.b16 %v5844
        %v6239 = vunpack.c.l.b16 %v5845
        %v6240 = vunpack.c.l.b16 %v5846
        %v6241 = vunpack.c.l.b16 %v5847
        %v6242 = vpack.c.b16 %v6211, %v6210
        %v6243 = vpack.c.b16 %v6213, %v6212
        %v6244 = vpack.c.b16 %v6215, %v6214
        %v6245 = vpack.c.b16 %v6217, %v6216
        %v6246 = vpack.c.b16 %v6219, %v6218
        %v6247 = vpack.c.b16 %v6221, %v6220
        %v6248 = vpack.c.b16 %v6223, %v6222
        %v6249 = vpack.c.b16 %v6225, %v6224
        %v6250 = vpack.c.b16 %v6227, %v6226
        %v6251 = vpack.c.b16 %v6229, %v6228
        %v6252 = vpack.c.b16 %v6231, %v6230
        %v6253 = vpack.c.b16 %v6233, %v6232
        %v6254 = vpack.c.b16 %v6235, %v6234
        %v6255 = vpack.c.b16 %v6237, %v6236
        %v6256 = vpack.c.b16 %v6239, %v6238
        %v6257 = vpack.c.b16 %v6241, %v6240
        %v6290 = vunpack.c.l.b16 %v5848
        %v6291 = vunpack.c.l.b16 %v5849
        %v6292 = vunpack.c.l.b16 %v5850
        %v6293 = vunpack.c.l.b16 %v5851
        %v6294 = vunpack.c.l.b16 %v5852
        %v6295 = vunpack.c.l.b16 %v5853
        %v6296 = vunpack.c.l.b16 %v5854
        %v6297 = vunpack.c.l.b16 %v5855
        %v6298 = vunpack.c.l.b16 %v5856
        %v6299 = vunpack.c.l.b16 %v5857
        %v6300 = vunpack.c.l.b16 %v5858
        %v6301 = vunpack.c.l.b16 %v5859
        %v6302 = vunpack.c.l.b16 %v5860
        %v6303 = vunpack.c.l.b16 %v5861
        %v6304 = vunpack.c.l.b16 %v5862
        %v6305 = vunpack.c.l.b16 %v5863
        %v6306 = vpack.c.b16 %v6291, %v6290
        %v6307 = vpack.c.b16 %v6293, %v6292
        %v6308 = vpack.c.b16 %v6295, %v6294
        %v6309 = vpack.c.b16 %v6297, %v6296
        %v6310 = vpack.c.b16 %v6299, %v6298
        %v6311 = vpack.c.b16 %v6301, %v6300
        %v6312 = vpack.c.b16 %v6303, %v6302
        %v6313 = vpack.c.b16 %v6305, %v6304
        %6322 = vmatpush.bf16.msra.mxu0 %v6313
        %6323 = vmatpush.bf16.msra.mxu0 %v6312
        %6324 = vmatpush.bf16.msra.mxu0 %v6311
        %6325 = vmatpush.bf16.msra.mxu0 %v6310
        %6326 = vmatpush.bf16.msra.mxu0 %v6309
        %6327 = vmatpush.bf16.msra.mxu0 %v6308
        %6328 = vmatpush.bf16.msra.mxu0 %v6307
        %6329 = vmatpush.bf16.msra.mxu0 %v6306
        %6330 = vmatmul.bf16.gmra.mxu0 %v6242
        %v6331 = vpop.f32.mrf.mxu0
        %v6332 = vadd.f32 %v6099, %v6331
        %v6333 = vpop.f32.mrf.mxu0
        %v6334 = vadd.f32 %v6101, %v6333
        %6335 = vmatmul.bf16.gmra.mxu0 %v6243
        %v6336 = vpop.f32.mrf.mxu0
        %v6337 = vadd.f32 %v6104, %v6336
        %v6338 = vpop.f32.mrf.mxu0
        %v6339 = vadd.f32 %v6106, %v6338
        %6340 = vmatmul.bf16.gmra.mxu0 %v6244
        %v6341 = vpop.f32.mrf.mxu0
        %v6342 = vadd.f32 %v6109, %v6341
        %v6343 = vpop.f32.mrf.mxu0
        %v6344 = vadd.f32 %v6111, %v6343
        %6345 = vmatmul.bf16.gmra.mxu0 %v6245
        %v6346 = vpop.f32.mrf.mxu0
        %v6347 = vadd.f32 %v6114, %v6346
        %v6348 = vpop.f32.mrf.mxu0
        %v6349 = vadd.f32 %v6116, %v6348
        %6350 = vmatmul.bf16.gmra.mxu0 %v6246
        %v6351 = vpop.f32.mrf.mxu0
        %v6352 = vadd.f32 %v6119, %v6351
        %v6353 = vpop.f32.mrf.mxu0
        %v6354 = vadd.f32 %v6121, %v6353
        %6355 = vmatmul.bf16.gmra.mxu0 %v6247
        %v6356 = vpop.f32.mrf.mxu0
        %v6357 = vadd.f32 %v6124, %v6356
        %v6358 = vpop.f32.mrf.mxu0
        %v6359 = vadd.f32 %v6126, %v6358
        %6360 = vmatmul.bf16.gmra.mxu0 %v6248
        %v6361 = vpop.f32.mrf.mxu0
        %v6362 = vadd.f32 %v6129, %v6361
        %v6363 = vpop.f32.mrf.mxu0
        %v6364 = vadd.f32 %v6131, %v6363
        %6365 = vmatmul.bf16.gmra.mxu0 %v6249
        %v6366 = vpop.f32.mrf.mxu0
        %v6367 = vadd.f32 %v6134, %v6366
        %v6368 = vpop.f32.mrf.mxu0
        %v6369 = vadd.f32 %v6136, %v6368
        %6370 = vmatmul.bf16.gmra.mxu0 %v6250
        %v6371 = vpop.f32.mrf.mxu0
        %v6372 = vadd.f32 %v6139, %v6371
        %v6373 = vpop.f32.mrf.mxu0
        %v6374 = vadd.f32 %v6141, %v6373
        %6375 = vmatmul.bf16.gmra.mxu0 %v6251
        %v6376 = vpop.f32.mrf.mxu0
        %v6377 = vadd.f32 %v6144, %v6376
        %v6378 = vpop.f32.mrf.mxu0
        %v6379 = vadd.f32 %v6146, %v6378
        %6380 = vmatmul.bf16.gmra.mxu0 %v6252
        %v6381 = vpop.f32.mrf.mxu0
        %v6382 = vadd.f32 %v6149, %v6381
        %v6383 = vpop.f32.mrf.mxu0
        %v6384 = vadd.f32 %v6151, %v6383
        %6385 = vmatmul.bf16.gmra.mxu0 %v6253
        %v6386 = vpop.f32.mrf.mxu0
        %v6387 = vadd.f32 %v6154, %v6386
        %v6388 = vpop.f32.mrf.mxu0
        %v6389 = vadd.f32 %v6156, %v6388
        %6390 = vmatmul.bf16.gmra.mxu0 %v6254
        %v6391 = vpop.f32.mrf.mxu0
        %v6392 = vadd.f32 %v6159, %v6391
        %v6393 = vpop.f32.mrf.mxu0
        %v6394 = vadd.f32 %v6161, %v6393
        %6395 = vmatmul.bf16.gmra.mxu0 %v6255
        %v6396 = vpop.f32.mrf.mxu0
        %v6397 = vadd.f32 %v6164, %v6396
        %v6398 = vpop.f32.mrf.mxu0
        %v6399 = vadd.f32 %v6166, %v6398
        %6400 = vmatmul.bf16.gmra.mxu0 %v6256
        %v6401 = vpop.f32.mrf.mxu0
        %v6402 = vadd.f32 %v6169, %v6401
        %v6403 = vpop.f32.mrf.mxu0
        %v6404 = vadd.f32 %v6171, %v6403
        %6405 = vmatmul.bf16.gmra.mxu0 %v6257
        %v6406 = vpop.f32.mrf.mxu0
        %v6407 = vadd.f32 %v6174, %v6406
        %v6408 = vpop.f32.mrf.mxu0
        %v6409 = vadd.f32 %v6176, %v6408
        %6410 = vdwg.mxu0
        %v6411 = vld [vmem:[#allocation3 + $0x2] sm:$0xff]
        %v6412 = vld [vmem:[#allocation3 + $0xa] sm:$0xff]
        %v6413 = vld [vmem:[#allocation3 + $0x1a] sm:$0xff]
        %v6414 = vld [vmem:[#allocation3 + $0x22] sm:$0xff]
        %v6415 = vld [vmem:[#allocation3 + $0x32] sm:$0xff]
        %v6416 = vld [vmem:[#allocation3 + $0x3a] sm:$0xff]
        %v6417 = vld [vmem:[#allocation3 + $0x4a] sm:$0xff]
        %v6418 = vld [vmem:[#allocation3 + $0x52] sm:$0xff]
        %v6419 = vld [vmem:[#allocation3 + $0x62] sm:$0xff]
        %v6420 = vld [vmem:[#allocation3 + $0x6a] sm:$0xff]
        %v6421 = vld [vmem:[#allocation3 + $0x7a] sm:$0xff]
        %v6422 = vld [vmem:[#allocation3 + $0x82] sm:$0xff]
        %v6423 = vld [vmem:[#allocation3 + $0x92] sm:$0xff]
        %v6424 = vld [vmem:[#allocation3 + $0x9a] sm:$0xff]
        %v6425 = vld [vmem:[#allocation3 + $0xaa] sm:$0xff]
        %v6426 = vld [vmem:[#allocation3 + $0xb2] sm:$0xff]
        %v6427 = vld [vmem:[#allocation3 + $0xc2] sm:$0xff]
        %v6428 = vld [vmem:[#allocation3 + $0xca] sm:$0xff]
        %v6429 = vld [vmem:[#allocation3 + $0xda] sm:$0xff]
        %v6430 = vld [vmem:[#allocation3 + $0xe2] sm:$0xff]
        %v6431 = vld [vmem:[#allocation3 + $0xf2] sm:$0xff]
        %v6432 = vld [vmem:[#allocation3 + $0xfa] sm:$0xff]
        %v6433 = vld [vmem:[#allocation3 + $0x10a] sm:$0xff]
        %v6434 = vld [vmem:[#allocation3 + $0x112] sm:$0xff]
        %v6435 = vld [vmem:[#allocation3 + $0x122] sm:$0xff]
        %v6436 = vld [vmem:[#allocation3 + $0x12a] sm:$0xff]
        %v6437 = vld [vmem:[#allocation3 + $0x13a] sm:$0xff]
        %v6438 = vld [vmem:[#allocation3 + $0x142] sm:$0xff]
        %v6439 = vld [vmem:[#allocation3 + $0x152] sm:$0xff]
        %v6440 = vld [vmem:[#allocation3 + $0x15a] sm:$0xff]
        %v6441 = vld [vmem:[#allocation3 + $0x16a] sm:$0xff]
        %v6442 = vld [vmem:[#allocation3 + $0x172] sm:$0xff]
        %v6443 = vpack.c.bf16 %v6411, %v6411
        %v6444 = vpack.c.bf16 %v6412, %v6412
        %v6445 = vpack.c.bf16 %v6413, %v6413
        %v6446 = vpack.c.bf16 %v6414, %v6414
        %v6447 = vpack.c.bf16 %v6415, %v6415
        %v6448 = vpack.c.bf16 %v6416, %v6416
        %v6449 = vpack.c.bf16 %v6417, %v6417
        %v6450 = vpack.c.bf16 %v6418, %v6418
        %v6451 = vpack.c.bf16 %v6419, %v6419
        %v6452 = vpack.c.bf16 %v6420, %v6420
        %v6453 = vpack.c.bf16 %v6421, %v6421
        %v6454 = vpack.c.bf16 %v6422, %v6422
        %v6455 = vpack.c.bf16 %v6423, %v6423
        %v6456 = vpack.c.bf16 %v6424, %v6424
        %v6457 = vpack.c.bf16 %v6425, %v6425
        %v6458 = vpack.c.bf16 %v6426, %v6426
        %v6459 = vpack.c.bf16 %v6427, %v6427
        %v6460 = vpack.c.bf16 %v6428, %v6428
        %v6461 = vpack.c.bf16 %v6429, %v6429
        %v6462 = vpack.c.bf16 %v6430, %v6430
        %v6463 = vpack.c.bf16 %v6431, %v6431
        %v6464 = vpack.c.bf16 %v6432, %v6432
        %v6465 = vpack.c.bf16 %v6433, %v6433
        %v6466 = vpack.c.bf16 %v6434, %v6434
        %v6467 = vpack.c.bf16 %v6435, %v6435
        %v6468 = vpack.c.bf16 %v6436, %v6436
        %v6469 = vpack.c.bf16 %v6437, %v6437
        %v6470 = vpack.c.bf16 %v6438, %v6438
        %v6471 = vpack.c.bf16 %v6439, %v6439
        %v6472 = vpack.c.bf16 %v6440, %v6440
        %v6473 = vpack.c.bf16 %v6441, %v6441
        %v6474 = vpack.c.bf16 %v6442, %v6442
        %s6475 = scalar_lea.vmem %s12, 128
        %v6476 = vld [vmem:[%s6475] sm:$0xf]
        %v6477 = vld [vmem:[%s6475 + $0x4] sm:$0xf]
        %v6478 = vld [vmem:[%s6475 + $0x8] sm:$0xf]
        %v6479 = vld [vmem:[%s6475 + $0xc] sm:$0xf]
        %v6480 = vld [vmem:[%s6475 + $0x10] sm:$0xf]
        %v6481 = vld [vmem:[%s6475 + $0x14] sm:$0xf]
        %v6482 = vld [vmem:[%s6475 + $0x18] sm:$0xf]
        %v6483 = vld [vmem:[%s6475 + $0x1c] sm:$0xf]
        %v6484 = vld [vmem:[%s6475 + $0x20] sm:$0xf]
        %v6485 = vld [vmem:[%s6475 + $0x24] sm:$0xf]
        %v6486 = vld [vmem:[%s6475 + $0x28] sm:$0xf]
        %v6487 = vld [vmem:[%s6475 + $0x2c] sm:$0xf]
        %v6488 = vld [vmem:[%s6475 + $0x30] sm:$0xf]
        %v6489 = vld [vmem:[%s6475 + $0x34] sm:$0xf]
        %v6490 = vld [vmem:[%s6475 + $0x38] sm:$0xf]
        %v6491 = vld [vmem:[%s6475 + $0x3c] sm:$0xf]
        %v6524 = vunpack.c.l.b16 %v6443
        %v6525 = vunpack.c.l.b16 %v6444
        %v6526 = vunpack.c.l.b16 %v6445
        %v6527 = vunpack.c.l.b16 %v6446
        %v6528 = vunpack.c.l.b16 %v6447
        %v6529 = vunpack.c.l.b16 %v6448
        %v6530 = vunpack.c.l.b16 %v6449
        %v6531 = vunpack.c.l.b16 %v6450
        %v6532 = vunpack.c.l.b16 %v6451
        %v6533 = vunpack.c.l.b16 %v6452
        %v6534 = vunpack.c.l.b16 %v6453
        %v6535 = vunpack.c.l.b16 %v6454
        %v6536 = vunpack.c.l.b16 %v6455
        %v6537 = vunpack.c.l.b16 %v6456
        %v6538 = vunpack.c.l.b16 %v6457
        %v6539 = vunpack.c.l.b16 %v6458
        %v6540 = vunpack.c.l.b16 %v6459
        %v6541 = vunpack.c.l.b16 %v6460
        %v6542 = vunpack.c.l.b16 %v6461
        %v6543 = vunpack.c.l.b16 %v6462
        %v6544 = vunpack.c.l.b16 %v6463
        %v6545 = vunpack.c.l.b16 %v6464
        %v6546 = vunpack.c.l.b16 %v6465
        %v6547 = vunpack.c.l.b16 %v6466
        %v6548 = vunpack.c.l.b16 %v6467
        %v6549 = vunpack.c.l.b16 %v6468
        %v6550 = vunpack.c.l.b16 %v6469
        %v6551 = vunpack.c.l.b16 %v6470
        %v6552 = vunpack.c.l.b16 %v6471
        %v6553 = vunpack.c.l.b16 %v6472
        %v6554 = vunpack.c.l.b16 %v6473
        %v6555 = vunpack.c.l.b16 %v6474
        %v6556 = vpack.c.b16 %v6525, %v6524
        %v6557 = vpack.c.b16 %v6527, %v6526
        %v6558 = vpack.c.b16 %v6529, %v6528
        %v6559 = vpack.c.b16 %v6531, %v6530
        %v6560 = vpack.c.b16 %v6533, %v6532
        %v6561 = vpack.c.b16 %v6535, %v6534
        %v6562 = vpack.c.b16 %v6537, %v6536
        %v6563 = vpack.c.b16 %v6539, %v6538
        %v6564 = vpack.c.b16 %v6541, %v6540
        %v6565 = vpack.c.b16 %v6543, %v6542
        %v6566 = vpack.c.b16 %v6545, %v6544
        %v6567 = vpack.c.b16 %v6547, %v6546
        %v6568 = vpack.c.b16 %v6549, %v6548
        %v6569 = vpack.c.b16 %v6551, %v6550
        %v6570 = vpack.c.b16 %v6553, %v6552
        %v6571 = vpack.c.b16 %v6555, %v6554
        %v6604 = vunpack.c.l.b16 %v6476
        %v6605 = vunpack.c.l.b16 %v6477
        %v6606 = vunpack.c.l.b16 %v6478
        %v6607 = vunpack.c.l.b16 %v6479
        %v6608 = vunpack.c.l.b16 %v6480
        %v6609 = vunpack.c.l.b16 %v6481
        %v6610 = vunpack.c.l.b16 %v6482
        %v6611 = vunpack.c.l.b16 %v6483
        %v6612 = vunpack.c.l.b16 %v6484
        %v6613 = vunpack.c.l.b16 %v6485
        %v6614 = vunpack.c.l.b16 %v6486
        %v6615 = vunpack.c.l.b16 %v6487
        %v6616 = vunpack.c.l.b16 %v6488
        %v6617 = vunpack.c.l.b16 %v6489
        %v6618 = vunpack.c.l.b16 %v6490
        %v6619 = vunpack.c.l.b16 %v6491
        %v6620 = vpack.c.b16 %v6605, %v6604
        %v6621 = vpack.c.b16 %v6607, %v6606
        %v6622 = vpack.c.b16 %v6609, %v6608
        %v6623 = vpack.c.b16 %v6611, %v6610
        %v6624 = vpack.c.b16 %v6613, %v6612
        %v6625 = vpack.c.b16 %v6615, %v6614
        %v6626 = vpack.c.b16 %v6617, %v6616
        %v6627 = vpack.c.b16 %v6619, %v6618
        %6636 = vmatpush.bf16.msra.mxu0 %v6627
        %6637 = vmatpush.bf16.msra.mxu0 %v6626
        %6638 = vmatpush.bf16.msra.mxu0 %v6625
        %6639 = vmatpush.bf16.msra.mxu0 %v6624
        %6640 = vmatpush.bf16.msra.mxu0 %v6623
        %6641 = vmatpush.bf16.msra.mxu0 %v6622
        %6642 = vmatpush.bf16.msra.mxu0 %v6621
        %6643 = vmatpush.bf16.msra.mxu0 %v6620
        %6644 = vmatmul.bf16.gmra.mxu0 %v6556
        %v6645 = vpop.f32.mrf.mxu0
        %v6646 = vadd.f32 0.0, %v6645
        %v6647 = vpop.f32.mrf.mxu0
        %v6648 = vadd.f32 0.0, %v6647
        %6649 = vmatmul.bf16.gmra.mxu0 %v6557
        %v6650 = vpop.f32.mrf.mxu0
        %v6651 = vadd.f32 0.0, %v6650
        %v6652 = vpop.f32.mrf.mxu0
        %v6653 = vadd.f32 0.0, %v6652
        %6654 = vmatmul.bf16.gmra.mxu0 %v6558
        %v6655 = vpop.f32.mrf.mxu0
        %v6656 = vadd.f32 0.0, %v6655
        %v6657 = vpop.f32.mrf.mxu0
        %v6658 = vadd.f32 0.0, %v6657
        %6659 = vmatmul.bf16.gmra.mxu0 %v6559
        %v6660 = vpop.f32.mrf.mxu0
        %v6661 = vadd.f32 0.0, %v6660
        %v6662 = vpop.f32.mrf.mxu0
        %v6663 = vadd.f32 0.0, %v6662
        %6664 = vmatmul.bf16.gmra.mxu0 %v6560
        %v6665 = vpop.f32.mrf.mxu0
        %v6666 = vadd.f32 0.0, %v6665
        %v6667 = vpop.f32.mrf.mxu0
        %v6668 = vadd.f32 0.0, %v6667
        %6669 = vmatmul.bf16.gmra.mxu0 %v6561
        %v6670 = vpop.f32.mrf.mxu0
        %v6671 = vadd.f32 0.0, %v6670
        %v6672 = vpop.f32.mrf.mxu0
        %v6673 = vadd.f32 0.0, %v6672
        %6674 = vmatmul.bf16.gmra.mxu0 %v6562
        %v6675 = vpop.f32.mrf.mxu0
        %v6676 = vadd.f32 0.0, %v6675
        %v6677 = vpop.f32.mrf.mxu0
        %v6678 = vadd.f32 0.0, %v6677
        %6679 = vmatmul.bf16.gmra.mxu0 %v6563
        %v6680 = vpop.f32.mrf.mxu0
        %v6681 = vadd.f32 0.0, %v6680
        %v6682 = vpop.f32.mrf.mxu0
        %v6683 = vadd.f32 0.0, %v6682
        %6684 = vmatmul.bf16.gmra.mxu0 %v6564
        %v6685 = vpop.f32.mrf.mxu0
        %v6686 = vadd.f32 0.0, %v6685
        %v6687 = vpop.f32.mrf.mxu0
        %v6688 = vadd.f32 0.0, %v6687
        %6689 = vmatmul.bf16.gmra.mxu0 %v6565
        %v6690 = vpop.f32.mrf.mxu0
        %v6691 = vadd.f32 0.0, %v6690
        %v6692 = vpop.f32.mrf.mxu0
        %v6693 = vadd.f32 0.0, %v6692
        %6694 = vmatmul.bf16.gmra.mxu0 %v6566
        %v6695 = vpop.f32.mrf.mxu0
        %v6696 = vadd.f32 0.0, %v6695
        %v6697 = vpop.f32.mrf.mxu0
        %v6698 = vadd.f32 0.0, %v6697
        %6699 = vmatmul.bf16.gmra.mxu0 %v6567
        %v6700 = vpop.f32.mrf.mxu0
        %v6701 = vadd.f32 0.0, %v6700
        %v6702 = vpop.f32.mrf.mxu0
        %v6703 = vadd.f32 0.0, %v6702
        %6704 = vmatmul.bf16.gmra.mxu0 %v6568
        %v6705 = vpop.f32.mrf.mxu0
        %v6706 = vadd.f32 0.0, %v6705
        %v6707 = vpop.f32.mrf.mxu0
        %v6708 = vadd.f32 0.0, %v6707
        %6709 = vmatmul.bf16.gmra.mxu0 %v6569
        %v6710 = vpop.f32.mrf.mxu0
        %v6711 = vadd.f32 0.0, %v6710
        %v6712 = vpop.f32.mrf.mxu0
        %v6713 = vadd.f32 0.0, %v6712
        %6714 = vmatmul.bf16.gmra.mxu0 %v6570
        %v6715 = vpop.f32.mrf.mxu0
        %v6716 = vadd.f32 0.0, %v6715
        %v6717 = vpop.f32.mrf.mxu0
        %v6718 = vadd.f32 0.0, %v6717
        %6719 = vmatmul.bf16.gmra.mxu0 %v6571
        %v6720 = vpop.f32.mrf.mxu0
        %v6721 = vadd.f32 0.0, %v6720
        %v6722 = vpop.f32.mrf.mxu0
        %v6723 = vadd.f32 0.0, %v6722
        %6724 = vdwg.mxu0
        %v6725 = vadd.f32 %v6332, %v6646
        %v6726 = vadd.f32 %v6334, %v6648
        %v6727 = vadd.f32 %v6337, %v6651
        %v6728 = vadd.f32 %v6339, %v6653
        %v6729 = vadd.f32 %v6342, %v6656
        %v6730 = vadd.f32 %v6344, %v6658
        %v6731 = vadd.f32 %v6347, %v6661
        %v6732 = vadd.f32 %v6349, %v6663
        %v6733 = vadd.f32 %v6352, %v6666
        %v6734 = vadd.f32 %v6354, %v6668
        %v6735 = vadd.f32 %v6357, %v6671
        %v6736 = vadd.f32 %v6359, %v6673
        %v6737 = vadd.f32 %v6362, %v6676
        %v6738 = vadd.f32 %v6364, %v6678
        %v6739 = vadd.f32 %v6367, %v6681
        %v6740 = vadd.f32 %v6369, %v6683
        %v6741 = vadd.f32 %v6372, %v6686
        %v6742 = vadd.f32 %v6374, %v6688
        %v6743 = vadd.f32 %v6377, %v6691
        %v6744 = vadd.f32 %v6379, %v6693
        %v6745 = vadd.f32 %v6382, %v6696
        %v6746 = vadd.f32 %v6384, %v6698
        %v6747 = vadd.f32 %v6387, %v6701
        %v6748 = vadd.f32 %v6389, %v6703
        %v6749 = vadd.f32 %v6392, %v6706
        %v6750 = vadd.f32 %v6394, %v6708
        %v6751 = vadd.f32 %v6397, %v6711
        %v6752 = vadd.f32 %v6399, %v6713
        %v6753 = vadd.f32 %v6402, %v6716
        %v6754 = vadd.f32 %v6404, %v6718
        %v6755 = vadd.f32 %v6407, %v6721
        %v6756 = vadd.f32 %v6409, %v6723
        %v6757 = vld [vmem:[%s5751] sm:$0xff]
        %v6758 = vld [vmem:[%s5751 + $0x8] sm:$0xff]
        %v6759 = vld [vmem:[%s5751 + $0x18] sm:$0xff]
        %v6760 = vld [vmem:[%s5751 + $0x20] sm:$0xff]
        %v6761 = vld [vmem:[%s5751 + $0x30] sm:$0xff]
        %v6762 = vld [vmem:[%s5751 + $0x38] sm:$0xff]
        %v6763 = vld [vmem:[%s5751 + $0x48] sm:$0xff]
        %v6764 = vld [vmem:[%s5751 + $0x50] sm:$0xff]
        %v6765 = vld [vmem:[%s5751 + $0x60] sm:$0xff]
        %v6766 = vld [vmem:[%s5751 + $0x68] sm:$0xff]
        %v6767 = vld [vmem:[%s5751 + $0x78] sm:$0xff]
        %v6768 = vld [vmem:[%s5751 + $0x80] sm:$0xff]
        %v6769 = vld [vmem:[%s5751 + $0x90] sm:$0xff]
        %v6770 = vld [vmem:[%s5751 + $0x98] sm:$0xff]
        %v6771 = vld [vmem:[%s5751 + $0xa8] sm:$0xff]
        %v6772 = vld [vmem:[%s5751 + $0xb0] sm:$0xff]
        %v6773 = vld [vmem:[%s5751 + $0xc0] sm:$0xff]
        %v6774 = vld [vmem:[%s5751 + $0xc8] sm:$0xff]
        %v6775 = vld [vmem:[%s5751 + $0xd8] sm:$0xff]
        %v6776 = vld [vmem:[%s5751 + $0xe0] sm:$0xff]
        %v6777 = vld [vmem:[%s5751 + $0xf0] sm:$0xff]
        %v6778 = vld [vmem:[%s5751 + $0xf8] sm:$0xff]
        %v6779 = vld [vmem:[%s5751 + $0x108] sm:$0xff]
        %v6780 = vld [vmem:[%s5751 + $0x110] sm:$0xff]
        %v6781 = vld [vmem:[%s5751 + $0x120] sm:$0xff]
        %v6782 = vld [vmem:[%s5751 + $0x128] sm:$0xff]
        %v6783 = vld [vmem:[%s5751 + $0x138] sm:$0xff]
        %v6784 = vld [vmem:[%s5751 + $0x140] sm:$0xff]
        %v6785 = vld [vmem:[%s5751 + $0x150] sm:$0xff]
        %v6786 = vld [vmem:[%s5751 + $0x158] sm:$0xff]
        %v6787 = vld [vmem:[%s5751 + $0x168] sm:$0xff]
        %v6788 = vld [vmem:[%s5751 + $0x170] sm:$0xff]
        %v6789 = vpack.c.bf16 %v6757, %v6757
        %v6790 = vpack.c.bf16 %v6758, %v6758
        %v6791 = vpack.c.bf16 %v6759, %v6759
        %v6792 = vpack.c.bf16 %v6760, %v6760
        %v6793 = vpack.c.bf16 %v6761, %v6761
        %v6794 = vpack.c.bf16 %v6762, %v6762
        %v6795 = vpack.c.bf16 %v6763, %v6763
        %v6796 = vpack.c.bf16 %v6764, %v6764
        %v6797 = vpack.c.bf16 %v6765, %v6765
        %v6798 = vpack.c.bf16 %v6766, %v6766
        %v6799 = vpack.c.bf16 %v6767, %v6767
        %v6800 = vpack.c.bf16 %v6768, %v6768
        %v6801 = vpack.c.bf16 %v6769, %v6769
        %v6802 = vpack.c.bf16 %v6770, %v6770
        %v6803 = vpack.c.bf16 %v6771, %v6771
        %v6804 = vpack.c.bf16 %v6772, %v6772
        %v6805 = vpack.c.bf16 %v6773, %v6773
        %v6806 = vpack.c.bf16 %v6774, %v6774
        %v6807 = vpack.c.bf16 %v6775, %v6775
        %v6808 = vpack.c.bf16 %v6776, %v6776
        %v6809 = vpack.c.bf16 %v6777, %v6777
        %v6810 = vpack.c.bf16 %v6778, %v6778
        %v6811 = vpack.c.bf16 %v6779, %v6779
        %v6812 = vpack.c.bf16 %v6780, %v6780
        %v6813 = vpack.c.bf16 %v6781, %v6781
        %v6814 = vpack.c.bf16 %v6782, %v6782
        %v6815 = vpack.c.bf16 %v6783, %v6783
        %v6816 = vpack.c.bf16 %v6784, %v6784
        %v6817 = vpack.c.bf16 %v6785, %v6785
        %v6818 = vpack.c.bf16 %v6786, %v6786
        %v6819 = vpack.c.bf16 %v6787, %v6787
        %v6820 = vpack.c.bf16 %v6788, %v6788
        %s6821 = scalar_lea.vmem %s12, 192
        %v6822 = vld [vmem:[%s6821] sm:$0xf]
        %v6823 = vld [vmem:[%s6821 + $0x4] sm:$0xf]
        %v6824 = vld [vmem:[%s6821 + $0x8] sm:$0xf]
        %v6825 = vld [vmem:[%s6821 + $0xc] sm:$0xf]
        %v6826 = vld [vmem:[%s6821 + $0x10] sm:$0xf]
        %v6827 = vld [vmem:[%s6821 + $0x14] sm:$0xf]
        %v6828 = vld [vmem:[%s6821 + $0x18] sm:$0xf]
        %v6829 = vld [vmem:[%s6821 + $0x1c] sm:$0xf]
        %v6830 = vld [vmem:[%s6821 + $0x20] sm:$0xf]
        %v6831 = vld [vmem:[%s6821 + $0x24] sm:$0xf]
        %v6832 = vld [vmem:[%s6821 + $0x28] sm:$0xf]
        %v6833 = vld [vmem:[%s6821 + $0x2c] sm:$0xf]
        %v6834 = vld [vmem:[%s6821 + $0x30] sm:$0xf]
        %v6835 = vld [vmem:[%s6821 + $0x34] sm:$0xf]
        %v6836 = vld [vmem:[%s6821 + $0x38] sm:$0xf]
        %v6837 = vld [vmem:[%s6821 + $0x3c] sm:$0xf]
        %v6870 = vunpack.c.l.b16 %v6789
        %v6871 = vunpack.c.l.b16 %v6790
        %v6872 = vunpack.c.l.b16 %v6791
        %v6873 = vunpack.c.l.b16 %v6792
        %v6874 = vunpack.c.l.b16 %v6793
        %v6875 = vunpack.c.l.b16 %v6794
        %v6876 = vunpack.c.l.b16 %v6795
        %v6877 = vunpack.c.l.b16 %v6796
        %v6878 = vunpack.c.l.b16 %v6797
        %v6879 = vunpack.c.l.b16 %v6798
        %v6880 = vunpack.c.l.b16 %v6799
        %v6881 = vunpack.c.l.b16 %v6800
        %v6882 = vunpack.c.l.b16 %v6801
        %v6883 = vunpack.c.l.b16 %v6802
        %v6884 = vunpack.c.l.b16 %v6803
        %v6885 = vunpack.c.l.b16 %v6804
        %v6886 = vunpack.c.l.b16 %v6805
        %v6887 = vunpack.c.l.b16 %v6806
        %v6888 = vunpack.c.l.b16 %v6807
        %v6889 = vunpack.c.l.b16 %v6808
        %v6890 = vunpack.c.l.b16 %v6809
        %v6891 = vunpack.c.l.b16 %v6810
        %v6892 = vunpack.c.l.b16 %v6811
        %v6893 = vunpack.c.l.b16 %v6812
        %v6894 = vunpack.c.l.b16 %v6813
        %v6895 = vunpack.c.l.b16 %v6814
        %v6896 = vunpack.c.l.b16 %v6815
        %v6897 = vunpack.c.l.b16 %v6816
        %v6898 = vunpack.c.l.b16 %v6817
        %v6899 = vunpack.c.l.b16 %v6818
        %v6900 = vunpack.c.l.b16 %v6819
        %v6901 = vunpack.c.l.b16 %v6820
        %v6902 = vpack.c.b16 %v6871, %v6870
        %v6903 = vpack.c.b16 %v6873, %v6872
        %v6904 = vpack.c.b16 %v6875, %v6874
        %v6905 = vpack.c.b16 %v6877, %v6876
        %v6906 = vpack.c.b16 %v6879, %v6878
        %v6907 = vpack.c.b16 %v6881, %v6880
        %v6908 = vpack.c.b16 %v6883, %v6882
        %v6909 = vpack.c.b16 %v6885, %v6884
        %v6910 = vpack.c.b16 %v6887, %v6886
        %v6911 = vpack.c.b16 %v6889, %v6888
        %v6912 = vpack.c.b16 %v6891, %v6890
        %v6913 = vpack.c.b16 %v6893, %v6892
        %v6914 = vpack.c.b16 %v6895, %v6894
        %v6915 = vpack.c.b16 %v6897, %v6896
        %v6916 = vpack.c.b16 %v6899, %v6898
        %v6917 = vpack.c.b16 %v6901, %v6900
        %v6950 = vunpack.c.l.b16 %v6822
        %v6951 = vunpack.c.l.b16 %v6823
        %v6952 = vunpack.c.l.b16 %v6824
        %v6953 = vunpack.c.l.b16 %v6825
        %v6954 = vunpack.c.l.b16 %v6826
        %v6955 = vunpack.c.l.b16 %v6827
        %v6956 = vunpack.c.l.b16 %v6828
        %v6957 = vunpack.c.l.b16 %v6829
        %v6958 = vunpack.c.l.b16 %v6830
        %v6959 = vunpack.c.l.b16 %v6831
        %v6960 = vunpack.c.l.b16 %v6832
        %v6961 = vunpack.c.l.b16 %v6833
        %v6962 = vunpack.c.l.b16 %v6834
        %v6963 = vunpack.c.l.b16 %v6835
        %v6964 = vunpack.c.l.b16 %v6836
        %v6965 = vunpack.c.l.b16 %v6837
        %v6966 = vpack.c.b16 %v6951, %v6950
        %v6967 = vpack.c.b16 %v6953, %v6952
        %v6968 = vpack.c.b16 %v6955, %v6954
        %v6969 = vpack.c.b16 %v6957, %v6956
        %v6970 = vpack.c.b16 %v6959, %v6958
        %v6971 = vpack.c.b16 %v6961, %v6960
        %v6972 = vpack.c.b16 %v6963, %v6962
        %v6973 = vpack.c.b16 %v6965, %v6964
        %6982 = vmatpush.bf16.msra.mxu0 %v6973
        %6983 = vmatpush.bf16.msra.mxu0 %v6972
        %6984 = vmatpush.bf16.msra.mxu0 %v6971
        %6985 = vmatpush.bf16.msra.mxu0 %v6970
        %6986 = vmatpush.bf16.msra.mxu0 %v6969
        %6987 = vmatpush.bf16.msra.mxu0 %v6968
        %6988 = vmatpush.bf16.msra.mxu0 %v6967
        %6989 = vmatpush.bf16.msra.mxu0 %v6966
        %6990 = vmatmul.bf16.gmra.mxu0 %v6902
        %v6991 = vpop.f32.mrf.mxu0
        %v6992 = vadd.f32 0.0, %v6991
        %v6993 = vpop.f32.mrf.mxu0
        %v6994 = vadd.f32 0.0, %v6993
        %6995 = vmatmul.bf16.gmra.mxu0 %v6903
        %v6996 = vpop.f32.mrf.mxu0
        %v6997 = vadd.f32 0.0, %v6996
        %v6998 = vpop.f32.mrf.mxu0
        %v6999 = vadd.f32 0.0, %v6998
        %7000 = vmatmul.bf16.gmra.mxu0 %v6904
        %v7001 = vpop.f32.mrf.mxu0
        %v7002 = vadd.f32 0.0, %v7001
        %v7003 = vpop.f32.mrf.mxu0
        %v7004 = vadd.f32 0.0, %v7003
        %7005 = vmatmul.bf16.gmra.mxu0 %v6905
        %v7006 = vpop.f32.mrf.mxu0
        %v7007 = vadd.f32 0.0, %v7006
        %v7008 = vpop.f32.mrf.mxu0
        %v7009 = vadd.f32 0.0, %v7008
        %7010 = vmatmul.bf16.gmra.mxu0 %v6906
        %v7011 = vpop.f32.mrf.mxu0
        %v7012 = vadd.f32 0.0, %v7011
        %v7013 = vpop.f32.mrf.mxu0
        %v7014 = vadd.f32 0.0, %v7013
        %7015 = vmatmul.bf16.gmra.mxu0 %v6907
        %v7016 = vpop.f32.mrf.mxu0
        %v7017 = vadd.f32 0.0, %v7016
        %v7018 = vpop.f32.mrf.mxu0
        %v7019 = vadd.f32 0.0, %v7018
        %7020 = vmatmul.bf16.gmra.mxu0 %v6908
        %v7021 = vpop.f32.mrf.mxu0
        %v7022 = vadd.f32 0.0, %v7021
        %v7023 = vpop.f32.mrf.mxu0
        %v7024 = vadd.f32 0.0, %v7023
        %7025 = vmatmul.bf16.gmra.mxu0 %v6909
        %v7026 = vpop.f32.mrf.mxu0
        %v7027 = vadd.f32 0.0, %v7026
        %v7028 = vpop.f32.mrf.mxu0
        %v7029 = vadd.f32 0.0, %v7028
        %7030 = vmatmul.bf16.gmra.mxu0 %v6910
        %v7031 = vpop.f32.mrf.mxu0
        %v7032 = vadd.f32 0.0, %v7031
        %v7033 = vpop.f32.mrf.mxu0
        %v7034 = vadd.f32 0.0, %v7033
        %7035 = vmatmul.bf16.gmra.mxu0 %v6911
        %v7036 = vpop.f32.mrf.mxu0
        %v7037 = vadd.f32 0.0, %v7036
        %v7038 = vpop.f32.mrf.mxu0
        %v7039 = vadd.f32 0.0, %v7038
        %7040 = vmatmul.bf16.gmra.mxu0 %v6912
        %v7041 = vpop.f32.mrf.mxu0
        %v7042 = vadd.f32 0.0, %v7041
        %v7043 = vpop.f32.mrf.mxu0
        %v7044 = vadd.f32 0.0, %v7043
        %7045 = vmatmul.bf16.gmra.mxu0 %v6913
        %v7046 = vpop.f32.mrf.mxu0
        %v7047 = vadd.f32 0.0, %v7046
        %v7048 = vpop.f32.mrf.mxu0
        %v7049 = vadd.f32 0.0, %v7048
        %7050 = vmatmul.bf16.gmra.mxu0 %v6914
        %v7051 = vpop.f32.mrf.mxu0
        %v7052 = vadd.f32 0.0, %v7051
        %v7053 = vpop.f32.mrf.mxu0
        %v7054 = vadd.f32 0.0, %v7053
        %7055 = vmatmul.bf16.gmra.mxu0 %v6915
        %v7056 = vpop.f32.mrf.mxu0
        %v7057 = vadd.f32 0.0, %v7056
        %v7058 = vpop.f32.mrf.mxu0
        %v7059 = vadd.f32 0.0, %v7058
        %7060 = vmatmul.bf16.gmra.mxu0 %v6916
        %v7061 = vpop.f32.mrf.mxu0
        %v7062 = vadd.f32 0.0, %v7061
        %v7063 = vpop.f32.mrf.mxu0
        %v7064 = vadd.f32 0.0, %v7063
        %7065 = vmatmul.bf16.gmra.mxu0 %v6917
        %v7066 = vpop.f32.mrf.mxu0
        %v7067 = vadd.f32 0.0, %v7066
        %v7068 = vpop.f32.mrf.mxu0
        %v7069 = vadd.f32 0.0, %v7068
        %7070 = vdwg.mxu0
        %v7071 = vadd.f32 %v6725, %v6992
        %v7072 = vadd.f32 %v6726, %v6994
        %v7073 = vadd.f32 %v6727, %v6997
        %v7074 = vadd.f32 %v6728, %v6999
        %v7075 = vadd.f32 %v6729, %v7002
        %v7076 = vadd.f32 %v6730, %v7004
        %v7077 = vadd.f32 %v6731, %v7007
        %v7078 = vadd.f32 %v6732, %v7009
        %v7079 = vadd.f32 %v6733, %v7012
        %v7080 = vadd.f32 %v6734, %v7014
        %v7081 = vadd.f32 %v6735, %v7017
        %v7082 = vadd.f32 %v6736, %v7019
        %v7083 = vadd.f32 %v6737, %v7022
        %v7084 = vadd.f32 %v6738, %v7024
        %v7085 = vadd.f32 %v6739, %v7027
        %v7086 = vadd.f32 %v6740, %v7029
        %v7087 = vadd.f32 %v6741, %v7032
        %v7088 = vadd.f32 %v6742, %v7034
        %v7089 = vadd.f32 %v6743, %v7037
        %v7090 = vadd.f32 %v6744, %v7039
        %v7091 = vadd.f32 %v6745, %v7042
        %v7092 = vadd.f32 %v6746, %v7044
        %v7093 = vadd.f32 %v6747, %v7047
        %v7094 = vadd.f32 %v6748, %v7049
        %v7095 = vadd.f32 %v6749, %v7052
        %v7096 = vadd.f32 %v6750, %v7054
        %v7097 = vadd.f32 %v6751, %v7057
        %v7098 = vadd.f32 %v6752, %v7059
        %v7099 = vadd.f32 %v6753, %v7062
        %v7100 = vadd.f32 %v6754, %v7064
        %v7101 = vadd.f32 %v6755, %v7067
        %v7102 = vadd.f32 %v6756, %v7069
        %v7103 = vld [vmem:[%s5751 + $0x1] sm:$0xff]
        %v7104 = vld [vmem:[%s5751 + $0x9] sm:$0xff]
        %v7105 = vld [vmem:[%s5751 + $0x19] sm:$0xff]
        %v7106 = vld [vmem:[%s5751 + $0x21] sm:$0xff]
        %v7107 = vld [vmem:[%s5751 + $0x31] sm:$0xff]
        %v7108 = vld [vmem:[%s5751 + $0x39] sm:$0xff]
        %v7109 = vld [vmem:[%s5751 + $0x49] sm:$0xff]
        %v7110 = vld [vmem:[%s5751 + $0x51] sm:$0xff]
        %v7111 = vld [vmem:[%s5751 + $0x61] sm:$0xff]
        %v7112 = vld [vmem:[%s5751 + $0x69] sm:$0xff]
        %v7113 = vld [vmem:[%s5751 + $0x79] sm:$0xff]
        %v7114 = vld [vmem:[%s5751 + $0x81] sm:$0xff]
        %v7115 = vld [vmem:[%s5751 + $0x91] sm:$0xff]
        %v7116 = vld [vmem:[%s5751 + $0x99] sm:$0xff]
        %v7117 = vld [vmem:[%s5751 + $0xa9] sm:$0xff]
        %v7118 = vld [vmem:[%s5751 + $0xb1] sm:$0xff]
        %v7119 = vld [vmem:[%s5751 + $0xc1] sm:$0xff]
        %v7120 = vld [vmem:[%s5751 + $0xc9] sm:$0xff]
        %v7121 = vld [vmem:[%s5751 + $0xd9] sm:$0xff]
        %v7122 = vld [vmem:[%s5751 + $0xe1] sm:$0xff]
        %v7123 = vld [vmem:[%s5751 + $0xf1] sm:$0xff]
        %v7124 = vld [vmem:[%s5751 + $0xf9] sm:$0xff]
        %v7125 = vld [vmem:[%s5751 + $0x109] sm:$0xff]
        %v7126 = vld [vmem:[%s5751 + $0x111] sm:$0xff]
        %v7127 = vld [vmem:[%s5751 + $0x121] sm:$0xff]
        %v7128 = vld [vmem:[%s5751 + $0x129] sm:$0xff]
        %v7129 = vld [vmem:[%s5751 + $0x139] sm:$0xff]
        %v7130 = vld [vmem:[%s5751 + $0x141] sm:$0xff]
        %v7131 = vld [vmem:[%s5751 + $0x151] sm:$0xff]
        %v7132 = vld [vmem:[%s5751 + $0x159] sm:$0xff]
        %v7133 = vld [vmem:[%s5751 + $0x169] sm:$0xff]
        %v7134 = vld [vmem:[%s5751 + $0x171] sm:$0xff]
        %v7135 = vpack.c.bf16 %v7103, %v7103
        %v7136 = vpack.c.bf16 %v7104, %v7104
        %v7137 = vpack.c.bf16 %v7105, %v7105
        %v7138 = vpack.c.bf16 %v7106, %v7106
        %v7139 = vpack.c.bf16 %v7107, %v7107
        %v7140 = vpack.c.bf16 %v7108, %v7108
        %v7141 = vpack.c.bf16 %v7109, %v7109
        %v7142 = vpack.c.bf16 %v7110, %v7110
        %v7143 = vpack.c.bf16 %v7111, %v7111
        %v7144 = vpack.c.bf16 %v7112, %v7112
        %v7145 = vpack.c.bf16 %v7113, %v7113
        %v7146 = vpack.c.bf16 %v7114, %v7114
        %v7147 = vpack.c.bf16 %v7115, %v7115
        %v7148 = vpack.c.bf16 %v7116, %v7116
        %v7149 = vpack.c.bf16 %v7117, %v7117
        %v7150 = vpack.c.bf16 %v7118, %v7118
        %v7151 = vpack.c.bf16 %v7119, %v7119
        %v7152 = vpack.c.bf16 %v7120, %v7120
        %v7153 = vpack.c.bf16 %v7121, %v7121
        %v7154 = vpack.c.bf16 %v7122, %v7122
        %v7155 = vpack.c.bf16 %v7123, %v7123
        %v7156 = vpack.c.bf16 %v7124, %v7124
        %v7157 = vpack.c.bf16 %v7125, %v7125
        %v7158 = vpack.c.bf16 %v7126, %v7126
        %v7159 = vpack.c.bf16 %v7127, %v7127
        %v7160 = vpack.c.bf16 %v7128, %v7128
        %v7161 = vpack.c.bf16 %v7129, %v7129
        %v7162 = vpack.c.bf16 %v7130, %v7130
        %v7163 = vpack.c.bf16 %v7131, %v7131
        %v7164 = vpack.c.bf16 %v7132, %v7132
        %v7165 = vpack.c.bf16 %v7133, %v7133
        %v7166 = vpack.c.bf16 %v7134, %v7134
        %s7167 = scalar_lea.vmem %s12, 256
        %v7168 = vld [vmem:[%s7167] sm:$0xf]
        %v7169 = vld [vmem:[%s7167 + $0x4] sm:$0xf]
        %v7170 = vld [vmem:[%s7167 + $0x8] sm:$0xf]
        %v7171 = vld [vmem:[%s7167 + $0xc] sm:$0xf]
        %v7172 = vld [vmem:[%s7167 + $0x10] sm:$0xf]
        %v7173 = vld [vmem:[%s7167 + $0x14] sm:$0xf]
        %v7174 = vld [vmem:[%s7167 + $0x18] sm:$0xf]
        %v7175 = vld [vmem:[%s7167 + $0x1c] sm:$0xf]
        %v7176 = vld [vmem:[%s7167 + $0x20] sm:$0xf]
        %v7177 = vld [vmem:[%s7167 + $0x24] sm:$0xf]
        %v7178 = vld [vmem:[%s7167 + $0x28] sm:$0xf]
        %v7179 = vld [vmem:[%s7167 + $0x2c] sm:$0xf]
        %v7180 = vld [vmem:[%s7167 + $0x30] sm:$0xf]
        %v7181 = vld [vmem:[%s7167 + $0x34] sm:$0xf]
        %v7182 = vld [vmem:[%s7167 + $0x38] sm:$0xf]
        %v7183 = vld [vmem:[%s7167 + $0x3c] sm:$0xf]
        %v7216 = vunpack.c.l.b16 %v7135
        %v7217 = vunpack.c.l.b16 %v7136
        %v7218 = vunpack.c.l.b16 %v7137
        %v7219 = vunpack.c.l.b16 %v7138
        %v7220 = vunpack.c.l.b16 %v7139
        %v7221 = vunpack.c.l.b16 %v7140
        %v7222 = vunpack.c.l.b16 %v7141
        %v7223 = vunpack.c.l.b16 %v7142
        %v7224 = vunpack.c.l.b16 %v7143
        %v7225 = vunpack.c.l.b16 %v7144
        %v7226 = vunpack.c.l.b16 %v7145
        %v7227 = vunpack.c.l.b16 %v7146
        %v7228 = vunpack.c.l.b16 %v7147
        %v7229 = vunpack.c.l.b16 %v7148
        %v7230 = vunpack.c.l.b16 %v7149
        %v7231 = vunpack.c.l.b16 %v7150
        %v7232 = vunpack.c.l.b16 %v7151
        %v7233 = vunpack.c.l.b16 %v7152
        %v7234 = vunpack.c.l.b16 %v7153
        %v7235 = vunpack.c.l.b16 %v7154
        %v7236 = vunpack.c.l.b16 %v7155
        %v7237 = vunpack.c.l.b16 %v7156
        %v7238 = vunpack.c.l.b16 %v7157
        %v7239 = vunpack.c.l.b16 %v7158
        %v7240 = vunpack.c.l.b16 %v7159
        %v7241 = vunpack.c.l.b16 %v7160
        %v7242 = vunpack.c.l.b16 %v7161
        %v7243 = vunpack.c.l.b16 %v7162
        %v7244 = vunpack.c.l.b16 %v7163
        %v7245 = vunpack.c.l.b16 %v7164
        %v7246 = vunpack.c.l.b16 %v7165
        %v7247 = vunpack.c.l.b16 %v7166
        %v7248 = vpack.c.b16 %v7217, %v7216
        %v7249 = vpack.c.b16 %v7219, %v7218
        %v7250 = vpack.c.b16 %v7221, %v7220
        %v7251 = vpack.c.b16 %v7223, %v7222
        %v7252 = vpack.c.b16 %v7225, %v7224
        %v7253 = vpack.c.b16 %v7227, %v7226
        %v7254 = vpack.c.b16 %v7229, %v7228
        %v7255 = vpack.c.b16 %v7231, %v7230
        %v7256 = vpack.c.b16 %v7233, %v7232
        %v7257 = vpack.c.b16 %v7235, %v7234
        %v7258 = vpack.c.b16 %v7237, %v7236
        %v7259 = vpack.c.b16 %v7239, %v7238
        %v7260 = vpack.c.b16 %v7241, %v7240
        %v7261 = vpack.c.b16 %v7243, %v7242
        %v7262 = vpack.c.b16 %v7245, %v7244
        %v7263 = vpack.c.b16 %v7247, %v7246
        %v7296 = vunpack.c.l.b16 %v7168
        %v7297 = vunpack.c.l.b16 %v7169
        %v7298 = vunpack.c.l.b16 %v7170
        %v7299 = vunpack.c.l.b16 %v7171
        %v7300 = vunpack.c.l.b16 %v7172
        %v7301 = vunpack.c.l.b16 %v7173
        %v7302 = vunpack.c.l.b16 %v7174
        %v7303 = vunpack.c.l.b16 %v7175
        %v7304 = vunpack.c.l.b16 %v7176
        %v7305 = vunpack.c.l.b16 %v7177
        %v7306 = vunpack.c.l.b16 %v7178
        %v7307 = vunpack.c.l.b16 %v7179
        %v7308 = vunpack.c.l.b16 %v7180
        %v7309 = vunpack.c.l.b16 %v7181
        %v7310 = vunpack.c.l.b16 %v7182
        %v7311 = vunpack.c.l.b16 %v7183
        %v7312 = vpack.c.b16 %v7297, %v7296
        %v7313 = vpack.c.b16 %v7299, %v7298
        %v7314 = vpack.c.b16 %v7301, %v7300
        %v7315 = vpack.c.b16 %v7303, %v7302
        %v7316 = vpack.c.b16 %v7305, %v7304
        %v7317 = vpack.c.b16 %v7307, %v7306
        %v7318 = vpack.c.b16 %v7309, %v7308
        %v7319 = vpack.c.b16 %v7311, %v7310
        %7328 = vmatpush.bf16.msra.mxu0 %v7319
        %7329 = vmatpush.bf16.msra.mxu0 %v7318
        %7330 = vmatpush.bf16.msra.mxu0 %v7317
        %7331 = vmatpush.bf16.msra.mxu0 %v7316
        %7332 = vmatpush.bf16.msra.mxu0 %v7315
        %7333 = vmatpush.bf16.msra.mxu0 %v7314
        %7334 = vmatpush.bf16.msra.mxu0 %v7313
        %7335 = vmatpush.bf16.msra.mxu0 %v7312
        %7336 = vmatmul.bf16.gmra.mxu0 %v7248
        %v7337 = vpop.f32.mrf.mxu0
        %v7338 = vadd.f32 0.0, %v7337
        %v7339 = vpop.f32.mrf.mxu0
        %v7340 = vadd.f32 0.0, %v7339
        %7341 = vmatmul.bf16.gmra.mxu0 %v7249
        %v7342 = vpop.f32.mrf.mxu0
        %v7343 = vadd.f32 0.0, %v7342
        %v7344 = vpop.f32.mrf.mxu0
        %v7345 = vadd.f32 0.0, %v7344
        %7346 = vmatmul.bf16.gmra.mxu0 %v7250
        %v7347 = vpop.f32.mrf.mxu0
        %v7348 = vadd.f32 0.0, %v7347
        %v7349 = vpop.f32.mrf.mxu0
        %v7350 = vadd.f32 0.0, %v7349
        %7351 = vmatmul.bf16.gmra.mxu0 %v7251
        %v7352 = vpop.f32.mrf.mxu0
        %v7353 = vadd.f32 0.0, %v7352
        %v7354 = vpop.f32.mrf.mxu0
        %v7355 = vadd.f32 0.0, %v7354
        %7356 = vmatmul.bf16.gmra.mxu0 %v7252
        %v7357 = vpop.f32.mrf.mxu0
        %v7358 = vadd.f32 0.0, %v7357
        %v7359 = vpop.f32.mrf.mxu0
        %v7360 = vadd.f32 0.0, %v7359
        %7361 = vmatmul.bf16.gmra.mxu0 %v7253
        %v7362 = vpop.f32.mrf.mxu0
        %v7363 = vadd.f32 0.0, %v7362
        %v7364 = vpop.f32.mrf.mxu0
        %v7365 = vadd.f32 0.0, %v7364
        %7366 = vmatmul.bf16.gmra.mxu0 %v7254
        %v7367 = vpop.f32.mrf.mxu0
        %v7368 = vadd.f32 0.0, %v7367
        %v7369 = vpop.f32.mrf.mxu0
        %v7370 = vadd.f32 0.0, %v7369
        %7371 = vmatmul.bf16.gmra.mxu0 %v7255
        %v7372 = vpop.f32.mrf.mxu0
        %v7373 = vadd.f32 0.0, %v7372
        %v7374 = vpop.f32.mrf.mxu0
        %v7375 = vadd.f32 0.0, %v7374
        %7376 = vmatmul.bf16.gmra.mxu0 %v7256
        %v7377 = vpop.f32.mrf.mxu0
        %v7378 = vadd.f32 0.0, %v7377
        %v7379 = vpop.f32.mrf.mxu0
        %v7380 = vadd.f32 0.0, %v7379
        %7381 = vmatmul.bf16.gmra.mxu0 %v7257
        %v7382 = vpop.f32.mrf.mxu0
        %v7383 = vadd.f32 0.0, %v7382
        %v7384 = vpop.f32.mrf.mxu0
        %v7385 = vadd.f32 0.0, %v7384
        %7386 = vmatmul.bf16.gmra.mxu0 %v7258
        %v7387 = vpop.f32.mrf.mxu0
        %v7388 = vadd.f32 0.0, %v7387
        %v7389 = vpop.f32.mrf.mxu0
        %v7390 = vadd.f32 0.0, %v7389
        %7391 = vmatmul.bf16.gmra.mxu0 %v7259
        %v7392 = vpop.f32.mrf.mxu0
        %v7393 = vadd.f32 0.0, %v7392
        %v7394 = vpop.f32.mrf.mxu0
        %v7395 = vadd.f32 0.0, %v7394
        %7396 = vmatmul.bf16.gmra.mxu0 %v7260
        %v7397 = vpop.f32.mrf.mxu0
        %v7398 = vadd.f32 0.0, %v7397
        %v7399 = vpop.f32.mrf.mxu0
        %v7400 = vadd.f32 0.0, %v7399
        %7401 = vmatmul.bf16.gmra.mxu0 %v7261
        %v7402 = vpop.f32.mrf.mxu0
        %v7403 = vadd.f32 0.0, %v7402
        %v7404 = vpop.f32.mrf.mxu0
        %v7405 = vadd.f32 0.0, %v7404
        %7406 = vmatmul.bf16.gmra.mxu0 %v7262
        %v7407 = vpop.f32.mrf.mxu0
        %v7408 = vadd.f32 0.0, %v7407
        %v7409 = vpop.f32.mrf.mxu0
        %v7410 = vadd.f32 0.0, %v7409
        %7411 = vmatmul.bf16.gmra.mxu0 %v7263
        %v7412 = vpop.f32.mrf.mxu0
        %v7413 = vadd.f32 0.0, %v7412
        %v7414 = vpop.f32.mrf.mxu0
        %v7415 = vadd.f32 0.0, %v7414
        %7416 = vdwg.mxu0
        %v7417 = vadd.f32 %v7071, %v7338
        %v7418 = vadd.f32 %v7072, %v7340
        %v7419 = vadd.f32 %v7073, %v7343
        %v7420 = vadd.f32 %v7074, %v7345
        %v7421 = vadd.f32 %v7075, %v7348
        %v7422 = vadd.f32 %v7076, %v7350
        %v7423 = vadd.f32 %v7077, %v7353
        %v7424 = vadd.f32 %v7078, %v7355
        %v7425 = vadd.f32 %v7079, %v7358
        %v7426 = vadd.f32 %v7080, %v7360
        %v7427 = vadd.f32 %v7081, %v7363
        %v7428 = vadd.f32 %v7082, %v7365
        %v7429 = vadd.f32 %v7083, %v7368
        %v7430 = vadd.f32 %v7084, %v7370
        %v7431 = vadd.f32 %v7085, %v7373
        %v7432 = vadd.f32 %v7086, %v7375
        %v7433 = vadd.f32 %v7087, %v7378
        %v7434 = vadd.f32 %v7088, %v7380
        %v7435 = vadd.f32 %v7089, %v7383
        %v7436 = vadd.f32 %v7090, %v7385
        %v7437 = vadd.f32 %v7091, %v7388
        %v7438 = vadd.f32 %v7092, %v7390
        %v7439 = vadd.f32 %v7093, %v7393
        %v7440 = vadd.f32 %v7094, %v7395
        %v7441 = vadd.f32 %v7095, %v7398
        %v7442 = vadd.f32 %v7096, %v7400
        %v7443 = vadd.f32 %v7097, %v7403
        %v7444 = vadd.f32 %v7098, %v7405
        %v7445 = vadd.f32 %v7099, %v7408
        %v7446 = vadd.f32 %v7100, %v7410
        %v7447 = vadd.f32 %v7101, %v7413
        %v7448 = vadd.f32 %v7102, %v7415
        %v7449 = vld [vmem:[%s5751 + $0x2] sm:$0xff]
        %v7450 = vld [vmem:[%s5751 + $0xa] sm:$0xff]
        %v7451 = vld [vmem:[%s5751 + $0x1a] sm:$0xff]
        %v7452 = vld [vmem:[%s5751 + $0x22] sm:$0xff]
        %v7453 = vld [vmem:[%s5751 + $0x32] sm:$0xff]
        %v7454 = vld [vmem:[%s5751 + $0x3a] sm:$0xff]
        %v7455 = vld [vmem:[%s5751 + $0x4a] sm:$0xff]
        %v7456 = vld [vmem:[%s5751 + $0x52] sm:$0xff]
        %v7457 = vld [vmem:[%s5751 + $0x62] sm:$0xff]
        %v7458 = vld [vmem:[%s5751 + $0x6a] sm:$0xff]
        %v7459 = vld [vmem:[%s5751 + $0x7a] sm:$0xff]
        %v7460 = vld [vmem:[%s5751 + $0x82] sm:$0xff]
        %v7461 = vld [vmem:[%s5751 + $0x92] sm:$0xff]
        %v7462 = vld [vmem:[%s5751 + $0x9a] sm:$0xff]
        %v7463 = vld [vmem:[%s5751 + $0xaa] sm:$0xff]
        %v7464 = vld [vmem:[%s5751 + $0xb2] sm:$0xff]
        %v7465 = vld [vmem:[%s5751 + $0xc2] sm:$0xff]
        %v7466 = vld [vmem:[%s5751 + $0xca] sm:$0xff]
        %v7467 = vld [vmem:[%s5751 + $0xda] sm:$0xff]
        %v7468 = vld [vmem:[%s5751 + $0xe2] sm:$0xff]
        %v7469 = vld [vmem:[%s5751 + $0xf2] sm:$0xff]
        %v7470 = vld [vmem:[%s5751 + $0xfa] sm:$0xff]
        %v7471 = vld [vmem:[%s5751 + $0x10a] sm:$0xff]
        %v7472 = vld [vmem:[%s5751 + $0x112] sm:$0xff]
        %v7473 = vld [vmem:[%s5751 + $0x122] sm:$0xff]
        %v7474 = vld [vmem:[%s5751 + $0x12a] sm:$0xff]
        %v7475 = vld [vmem:[%s5751 + $0x13a] sm:$0xff]
        %v7476 = vld [vmem:[%s5751 + $0x142] sm:$0xff]
        %v7477 = vld [vmem:[%s5751 + $0x152] sm:$0xff]
        %v7478 = vld [vmem:[%s5751 + $0x15a] sm:$0xff]
        %v7479 = vld [vmem:[%s5751 + $0x16a] sm:$0xff]
        %v7480 = vld [vmem:[%s5751 + $0x172] sm:$0xff]
        %v7481 = vpack.c.bf16 %v7449, %v7449
        %v7482 = vpack.c.bf16 %v7450, %v7450
        %v7483 = vpack.c.bf16 %v7451, %v7451
        %v7484 = vpack.c.bf16 %v7452, %v7452
        %v7485 = vpack.c.bf16 %v7453, %v7453
        %v7486 = vpack.c.bf16 %v7454, %v7454
        %v7487 = vpack.c.bf16 %v7455, %v7455
        %v7488 = vpack.c.bf16 %v7456, %v7456
        %v7489 = vpack.c.bf16 %v7457, %v7457
        %v7490 = vpack.c.bf16 %v7458, %v7458
        %v7491 = vpack.c.bf16 %v7459, %v7459
        %v7492 = vpack.c.bf16 %v7460, %v7460
        %v7493 = vpack.c.bf16 %v7461, %v7461
        %v7494 = vpack.c.bf16 %v7462, %v7462
        %v7495 = vpack.c.bf16 %v7463, %v7463
        %v7496 = vpack.c.bf16 %v7464, %v7464
        %v7497 = vpack.c.bf16 %v7465, %v7465
        %v7498 = vpack.c.bf16 %v7466, %v7466
        %v7499 = vpack.c.bf16 %v7467, %v7467
        %v7500 = vpack.c.bf16 %v7468, %v7468
        %v7501 = vpack.c.bf16 %v7469, %v7469
        %v7502 = vpack.c.bf16 %v7470, %v7470
        %v7503 = vpack.c.bf16 %v7471, %v7471
        %v7504 = vpack.c.bf16 %v7472, %v7472
        %v7505 = vpack.c.bf16 %v7473, %v7473
        %v7506 = vpack.c.bf16 %v7474, %v7474
        %v7507 = vpack.c.bf16 %v7475, %v7475
        %v7508 = vpack.c.bf16 %v7476, %v7476
        %v7509 = vpack.c.bf16 %v7477, %v7477
        %v7510 = vpack.c.bf16 %v7478, %v7478
        %v7511 = vpack.c.bf16 %v7479, %v7479
        %v7512 = vpack.c.bf16 %v7480, %v7480
        %s7513 = scalar_lea.vmem %s12, 320
        %v7514 = vld [vmem:[%s7513] sm:$0xf]
        %v7515 = vld [vmem:[%s7513 + $0x4] sm:$0xf]
        %v7516 = vld [vmem:[%s7513 + $0x8] sm:$0xf]
        %v7517 = vld [vmem:[%s7513 + $0xc] sm:$0xf]
        %v7518 = vld [vmem:[%s7513 + $0x10] sm:$0xf]
        %v7519 = vld [vmem:[%s7513 + $0x14] sm:$0xf]
        %v7520 = vld [vmem:[%s7513 + $0x18] sm:$0xf]
        %v7521 = vld [vmem:[%s7513 + $0x1c] sm:$0xf]
        %v7522 = vld [vmem:[%s7513 + $0x20] sm:$0xf]
        %v7523 = vld [vmem:[%s7513 + $0x24] sm:$0xf]
        %v7524 = vld [vmem:[%s7513 + $0x28] sm:$0xf]
        %v7525 = vld [vmem:[%s7513 + $0x2c] sm:$0xf]
        %v7526 = vld [vmem:[%s7513 + $0x30] sm:$0xf]
        %v7527 = vld [vmem:[%s7513 + $0x34] sm:$0xf]
        %v7528 = vld [vmem:[%s7513 + $0x38] sm:$0xf]
        %v7529 = vld [vmem:[%s7513 + $0x3c] sm:$0xf]
        %v7562 = vunpack.c.l.b16 %v7481
        %v7563 = vunpack.c.l.b16 %v7482
        %v7564 = vunpack.c.l.b16 %v7483
        %v7565 = vunpack.c.l.b16 %v7484
        %v7566 = vunpack.c.l.b16 %v7485
        %v7567 = vunpack.c.l.b16 %v7486
        %v7568 = vunpack.c.l.b16 %v7487
        %v7569 = vunpack.c.l.b16 %v7488
        %v7570 = vunpack.c.l.b16 %v7489
        %v7571 = vunpack.c.l.b16 %v7490
        %v7572 = vunpack.c.l.b16 %v7491
        %v7573 = vunpack.c.l.b16 %v7492
        %v7574 = vunpack.c.l.b16 %v7493
        %v7575 = vunpack.c.l.b16 %v7494
        %v7576 = vunpack.c.l.b16 %v7495
        %v7577 = vunpack.c.l.b16 %v7496
        %v7578 = vunpack.c.l.b16 %v7497
        %v7579 = vunpack.c.l.b16 %v7498
        %v7580 = vunpack.c.l.b16 %v7499
        %v7581 = vunpack.c.l.b16 %v7500
        %v7582 = vunpack.c.l.b16 %v7501
        %v7583 = vunpack.c.l.b16 %v7502
        %v7584 = vunpack.c.l.b16 %v7503
        %v7585 = vunpack.c.l.b16 %v7504
        %v7586 = vunpack.c.l.b16 %v7505
        %v7587 = vunpack.c.l.b16 %v7506
        %v7588 = vunpack.c.l.b16 %v7507
        %v7589 = vunpack.c.l.b16 %v7508
        %v7590 = vunpack.c.l.b16 %v7509
        %v7591 = vunpack.c.l.b16 %v7510
        %v7592 = vunpack.c.l.b16 %v7511
        %v7593 = vunpack.c.l.b16 %v7512
        %v7594 = vpack.c.b16 %v7563, %v7562
        %v7595 = vpack.c.b16 %v7565, %v7564
        %v7596 = vpack.c.b16 %v7567, %v7566
        %v7597 = vpack.c.b16 %v7569, %v7568
        %v7598 = vpack.c.b16 %v7571, %v7570
        %v7599 = vpack.c.b16 %v7573, %v7572
        %v7600 = vpack.c.b16 %v7575, %v7574
        %v7601 = vpack.c.b16 %v7577, %v7576
        %v7602 = vpack.c.b16 %v7579, %v7578
        %v7603 = vpack.c.b16 %v7581, %v7580
        %v7604 = vpack.c.b16 %v7583, %v7582
        %v7605 = vpack.c.b16 %v7585, %v7584
        %v7606 = vpack.c.b16 %v7587, %v7586
        %v7607 = vpack.c.b16 %v7589, %v7588
        %v7608 = vpack.c.b16 %v7591, %v7590
        %v7609 = vpack.c.b16 %v7593, %v7592
        %v7642 = vunpack.c.l.b16 %v7514
        %v7643 = vunpack.c.l.b16 %v7515
        %v7644 = vunpack.c.l.b16 %v7516
        %v7645 = vunpack.c.l.b16 %v7517
        %v7646 = vunpack.c.l.b16 %v7518
        %v7647 = vunpack.c.l.b16 %v7519
        %v7648 = vunpack.c.l.b16 %v7520
        %v7649 = vunpack.c.l.b16 %v7521
        %v7650 = vunpack.c.l.b16 %v7522
        %v7651 = vunpack.c.l.b16 %v7523
        %v7652 = vunpack.c.l.b16 %v7524
        %v7653 = vunpack.c.l.b16 %v7525
        %v7654 = vunpack.c.l.b16 %v7526
        %v7655 = vunpack.c.l.b16 %v7527
        %v7656 = vunpack.c.l.b16 %v7528
        %v7657 = vunpack.c.l.b16 %v7529
        %v7658 = vpack.c.b16 %v7643, %v7642
        %v7659 = vpack.c.b16 %v7645, %v7644
        %v7660 = vpack.c.b16 %v7647, %v7646
        %v7661 = vpack.c.b16 %v7649, %v7648
        %v7662 = vpack.c.b16 %v7651, %v7650
        %v7663 = vpack.c.b16 %v7653, %v7652
        %v7664 = vpack.c.b16 %v7655, %v7654
        %v7665 = vpack.c.b16 %v7657, %v7656
        %7674 = vmatpush.bf16.msra.mxu0 %v7665
        %7675 = vmatpush.bf16.msra.mxu0 %v7664
        %7676 = vmatpush.bf16.msra.mxu0 %v7663
        %7677 = vmatpush.bf16.msra.mxu0 %v7662
        %7678 = vmatpush.bf16.msra.mxu0 %v7661
        %7679 = vmatpush.bf16.msra.mxu0 %v7660
        %7680 = vmatpush.bf16.msra.mxu0 %v7659
        %7681 = vmatpush.bf16.msra.mxu0 %v7658
        %7682 = vmatmul.bf16.gmra.mxu0 %v7594
        %v7683 = vpop.f32.mrf.mxu0
        %v7684 = vadd.f32 0.0, %v7683
        %v7685 = vpop.f32.mrf.mxu0
        %v7686 = vadd.f32 0.0, %v7685
        %7687 = vmatmul.bf16.gmra.mxu0 %v7595
        %v7688 = vpop.f32.mrf.mxu0
        %v7689 = vadd.f32 0.0, %v7688
        %v7690 = vpop.f32.mrf.mxu0
        %v7691 = vadd.f32 0.0, %v7690
        %7692 = vmatmul.bf16.gmra.mxu0 %v7596
        %v7693 = vpop.f32.mrf.mxu0
        %v7694 = vadd.f32 0.0, %v7693
        %v7695 = vpop.f32.mrf.mxu0
        %v7696 = vadd.f32 0.0, %v7695
        %7697 = vmatmul.bf16.gmra.mxu0 %v7597
        %v7698 = vpop.f32.mrf.mxu0
        %v7699 = vadd.f32 0.0, %v7698
        %v7700 = vpop.f32.mrf.mxu0
        %v7701 = vadd.f32 0.0, %v7700
        %7702 = vmatmul.bf16.gmra.mxu0 %v7598
        %v7703 = vpop.f32.mrf.mxu0
        %v7704 = vadd.f32 0.0, %v7703
        %v7705 = vpop.f32.mrf.mxu0
        %v7706 = vadd.f32 0.0, %v7705
        %7707 = vmatmul.bf16.gmra.mxu0 %v7599
        %v7708 = vpop.f32.mrf.mxu0
        %v7709 = vadd.f32 0.0, %v7708
        %v7710 = vpop.f32.mrf.mxu0
        %v7711 = vadd.f32 0.0, %v7710
        %7712 = vmatmul.bf16.gmra.mxu0 %v7600
        %v7713 = vpop.f32.mrf.mxu0
        %v7714 = vadd.f32 0.0, %v7713
        %v7715 = vpop.f32.mrf.mxu0
        %v7716 = vadd.f32 0.0, %v7715
        %7717 = vmatmul.bf16.gmra.mxu0 %v7601
        %v7718 = vpop.f32.mrf.mxu0
        %v7719 = vadd.f32 0.0, %v7718
        %v7720 = vpop.f32.mrf.mxu0
        %v7721 = vadd.f32 0.0, %v7720
        %7722 = vmatmul.bf16.gmra.mxu0 %v7602
        %v7723 = vpop.f32.mrf.mxu0
        %v7724 = vadd.f32 0.0, %v7723
        %v7725 = vpop.f32.mrf.mxu0
        %v7726 = vadd.f32 0.0, %v7725
        %7727 = vmatmul.bf16.gmra.mxu0 %v7603
        %v7728 = vpop.f32.mrf.mxu0
        %v7729 = vadd.f32 0.0, %v7728
        %v7730 = vpop.f32.mrf.mxu0
        %v7731 = vadd.f32 0.0, %v7730
        %7732 = vmatmul.bf16.gmra.mxu0 %v7604
        %v7733 = vpop.f32.mrf.mxu0
        %v7734 = vadd.f32 0.0, %v7733
        %v7735 = vpop.f32.mrf.mxu0
        %v7736 = vadd.f32 0.0, %v7735
        %7737 = vmatmul.bf16.gmra.mxu0 %v7605
        %v7738 = vpop.f32.mrf.mxu0
        %v7739 = vadd.f32 0.0, %v7738
        %v7740 = vpop.f32.mrf.mxu0
        %v7741 = vadd.f32 0.0, %v7740
        %7742 = vmatmul.bf16.gmra.mxu0 %v7606
        %v7743 = vpop.f32.mrf.mxu0
        %v7744 = vadd.f32 0.0, %v7743
        %v7745 = vpop.f32.mrf.mxu0
        %v7746 = vadd.f32 0.0, %v7745
        %7747 = vmatmul.bf16.gmra.mxu0 %v7607
        %v7748 = vpop.f32.mrf.mxu0
        %v7749 = vadd.f32 0.0, %v7748
        %v7750 = vpop.f32.mrf.mxu0
        %v7751 = vadd.f32 0.0, %v7750
        %7752 = vmatmul.bf16.gmra.mxu0 %v7608
        %v7753 = vpop.f32.mrf.mxu0
        %v7754 = vadd.f32 0.0, %v7753
        %v7755 = vpop.f32.mrf.mxu0
        %v7756 = vadd.f32 0.0, %v7755
        %7757 = vmatmul.bf16.gmra.mxu0 %v7609
        %v7758 = vpop.f32.mrf.mxu0
        %v7759 = vadd.f32 0.0, %v7758
        %v7760 = vpop.f32.mrf.mxu0
        %v7761 = vadd.f32 0.0, %v7760
        %7762 = vdwg.mxu0
        %v7763 = vadd.f32 %v7417, %v7684
        %v7764 = vadd.f32 %v7418, %v7686
        %v7765 = vadd.f32 %v7419, %v7689
        %v7766 = vadd.f32 %v7420, %v7691
        %v7767 = vadd.f32 %v7421, %v7694
        %v7768 = vadd.f32 %v7422, %v7696
        %v7769 = vadd.f32 %v7423, %v7699
        %v7770 = vadd.f32 %v7424, %v7701
        %v7771 = vadd.f32 %v7425, %v7704
        %v7772 = vadd.f32 %v7426, %v7706
        %v7773 = vadd.f32 %v7427, %v7709
        %v7774 = vadd.f32 %v7428, %v7711
        %v7775 = vadd.f32 %v7429, %v7714
        %v7776 = vadd.f32 %v7430, %v7716
        %v7777 = vadd.f32 %v7431, %v7719
        %v7778 = vadd.f32 %v7432, %v7721
        %v7779 = vadd.f32 %v7433, %v7724
        %v7780 = vadd.f32 %v7434, %v7726
        %v7781 = vadd.f32 %v7435, %v7729
        %v7782 = vadd.f32 %v7436, %v7731
        %v7783 = vadd.f32 %v7437, %v7734
        %v7784 = vadd.f32 %v7438, %v7736
        %v7785 = vadd.f32 %v7439, %v7739
        %v7786 = vadd.f32 %v7440, %v7741
        %v7787 = vadd.f32 %v7441, %v7744
        %v7788 = vadd.f32 %v7442, %v7746
        %v7789 = vadd.f32 %v7443, %v7749
        %v7790 = vadd.f32 %v7444, %v7751
        %v7791 = vadd.f32 %v7445, %v7754
        %v7792 = vadd.f32 %v7446, %v7756
        %v7793 = vadd.f32 %v7447, %v7759
        %v7794 = vadd.f32 %v7448, %v7761
        %s7795 = scalar_lea.vmem [#allocation3], 48
        %v7796 = vld [vmem:[%s7795] sm:$0xff]
        %v7797 = vld [vmem:[%s7795 + $0x8] sm:$0xff]
        %v7798 = vld [vmem:[%s7795 + $0x18] sm:$0xff]
        %v7799 = vld [vmem:[%s7795 + $0x20] sm:$0xff]
        %v7800 = vld [vmem:[%s7795 + $0x30] sm:$0xff]
        %v7801 = vld [vmem:[%s7795 + $0x38] sm:$0xff]
        %v7802 = vld [vmem:[%s7795 + $0x48] sm:$0xff]
        %v7803 = vld [vmem:[%s7795 + $0x50] sm:$0xff]
        %v7804 = vld [vmem:[%s7795 + $0x60] sm:$0xff]
        %v7805 = vld [vmem:[%s7795 + $0x68] sm:$0xff]
        %v7806 = vld [vmem:[%s7795 + $0x78] sm:$0xff]
        %v7807 = vld [vmem:[%s7795 + $0x80] sm:$0xff]
        %v7808 = vld [vmem:[%s7795 + $0x90] sm:$0xff]
        %v7809 = vld [vmem:[%s7795 + $0x98] sm:$0xff]
        %v7810 = vld [vmem:[%s7795 + $0xa8] sm:$0xff]
        %v7811 = vld [vmem:[%s7795 + $0xb0] sm:$0xff]
        %v7812 = vld [vmem:[%s7795 + $0xc0] sm:$0xff]
        %v7813 = vld [vmem:[%s7795 + $0xc8] sm:$0xff]
        %v7814 = vld [vmem:[%s7795 + $0xd8] sm:$0xff]
        %v7815 = vld [vmem:[%s7795 + $0xe0] sm:$0xff]
        %v7816 = vld [vmem:[%s7795 + $0xf0] sm:$0xff]
        %v7817 = vld [vmem:[%s7795 + $0xf8] sm:$0xff]
        %v7818 = vld [vmem:[%s7795 + $0x108] sm:$0xff]
        %v7819 = vld [vmem:[%s7795 + $0x110] sm:$0xff]
        %v7820 = vld [vmem:[%s7795 + $0x120] sm:$0xff]
        %v7821 = vld [vmem:[%s7795 + $0x128] sm:$0xff]
        %v7822 = vld [vmem:[%s7795 + $0x138] sm:$0xff]
        %v7823 = vld [vmem:[%s7795 + $0x140] sm:$0xff]
        %v7824 = vld [vmem:[%s7795 + $0x150] sm:$0xff]
        %v7825 = vld [vmem:[%s7795 + $0x158] sm:$0xff]
        %v7826 = vld [vmem:[%s7795 + $0x168] sm:$0xff]
        %v7827 = vld [vmem:[%s7795 + $0x170] sm:$0xff]
        %v7828 = vpack.c.bf16 %v7796, %v7796
        %v7829 = vpack.c.bf16 %v7797, %v7797
        %v7830 = vpack.c.bf16 %v7798, %v7798
        %v7831 = vpack.c.bf16 %v7799, %v7799
        %v7832 = vpack.c.bf16 %v7800, %v7800
        %v7833 = vpack.c.bf16 %v7801, %v7801
        %v7834 = vpack.c.bf16 %v7802, %v7802
        %v7835 = vpack.c.bf16 %v7803, %v7803
        %v7836 = vpack.c.bf16 %v7804, %v7804
        %v7837 = vpack.c.bf16 %v7805, %v7805
        %v7838 = vpack.c.bf16 %v7806, %v7806
        %v7839 = vpack.c.bf16 %v7807, %v7807
        %v7840 = vpack.c.bf16 %v7808, %v7808
        %v7841 = vpack.c.bf16 %v7809, %v7809
        %v7842 = vpack.c.bf16 %v7810, %v7810
        %v7843 = vpack.c.bf16 %v7811, %v7811
        %v7844 = vpack.c.bf16 %v7812, %v7812
        %v7845 = vpack.c.bf16 %v7813, %v7813
        %v7846 = vpack.c.bf16 %v7814, %v7814
        %v7847 = vpack.c.bf16 %v7815, %v7815
        %v7848 = vpack.c.bf16 %v7816, %v7816
        %v7849 = vpack.c.bf16 %v7817, %v7817
        %v7850 = vpack.c.bf16 %v7818, %v7818
        %v7851 = vpack.c.bf16 %v7819, %v7819
        %v7852 = vpack.c.bf16 %v7820, %v7820
        %v7853 = vpack.c.bf16 %v7821, %v7821
        %v7854 = vpack.c.bf16 %v7822, %v7822
        %v7855 = vpack.c.bf16 %v7823, %v7823
        %v7856 = vpack.c.bf16 %v7824, %v7824
        %v7857 = vpack.c.bf16 %v7825, %v7825
        %v7858 = vpack.c.bf16 %v7826, %v7826
        %v7859 = vpack.c.bf16 %v7827, %v7827
        %s7860 = scalar_lea.vmem %s12, 384
        %v7861 = vld [vmem:[%s7860] sm:$0xf]
        %v7862 = vld [vmem:[%s7860 + $0x4] sm:$0xf]
        %v7863 = vld [vmem:[%s7860 + $0x8] sm:$0xf]
        %v7864 = vld [vmem:[%s7860 + $0xc] sm:$0xf]
        %v7865 = vld [vmem:[%s7860 + $0x10] sm:$0xf]
        %v7866 = vld [vmem:[%s7860 + $0x14] sm:$0xf]
        %v7867 = vld [vmem:[%s7860 + $0x18] sm:$0xf]
        %v7868 = vld [vmem:[%s7860 + $0x1c] sm:$0xf]
        %v7869 = vld [vmem:[%s7860 + $0x20] sm:$0xf]
        %v7870 = vld [vmem:[%s7860 + $0x24] sm:$0xf]
        %v7871 = vld [vmem:[%s7860 + $0x28] sm:$0xf]
        %v7872 = vld [vmem:[%s7860 + $0x2c] sm:$0xf]
        %v7873 = vld [vmem:[%s7860 + $0x30] sm:$0xf]
        %v7874 = vld [vmem:[%s7860 + $0x34] sm:$0xf]
        %v7875 = vld [vmem:[%s7860 + $0x38] sm:$0xf]
        %v7876 = vld [vmem:[%s7860 + $0x3c] sm:$0xf]
        %v7909 = vunpack.c.l.b16 %v7828
        %v7910 = vunpack.c.l.b16 %v7829
        %v7911 = vunpack.c.l.b16 %v7830
        %v7912 = vunpack.c.l.b16 %v7831
        %v7913 = vunpack.c.l.b16 %v7832
        %v7914 = vunpack.c.l.b16 %v7833
        %v7915 = vunpack.c.l.b16 %v7834
        %v7916 = vunpack.c.l.b16 %v7835
        %v7917 = vunpack.c.l.b16 %v7836
        %v7918 = vunpack.c.l.b16 %v7837
        %v7919 = vunpack.c.l.b16 %v7838
        %v7920 = vunpack.c.l.b16 %v7839
        %v7921 = vunpack.c.l.b16 %v7840
        %v7922 = vunpack.c.l.b16 %v7841
        %v7923 = vunpack.c.l.b16 %v7842
        %v7924 = vunpack.c.l.b16 %v7843
        %v7925 = vunpack.c.l.b16 %v7844
        %v7926 = vunpack.c.l.b16 %v7845
        %v7927 = vunpack.c.l.b16 %v7846
        %v7928 = vunpack.c.l.b16 %v7847
        %v7929 = vunpack.c.l.b16 %v7848
        %v7930 = vunpack.c.l.b16 %v7849
        %v7931 = vunpack.c.l.b16 %v7850
        %v7932 = vunpack.c.l.b16 %v7851
        %v7933 = vunpack.c.l.b16 %v7852
        %v7934 = vunpack.c.l.b16 %v7853
        %v7935 = vunpack.c.l.b16 %v7854
        %v7936 = vunpack.c.l.b16 %v7855
        %v7937 = vunpack.c.l.b16 %v7856
        %v7938 = vunpack.c.l.b16 %v7857
        %v7939 = vunpack.c.l.b16 %v7858
        %v7940 = vunpack.c.l.b16 %v7859
        %v7941 = vpack.c.b16 %v7910, %v7909
        %v7942 = vpack.c.b16 %v7912, %v7911
        %v7943 = vpack.c.b16 %v7914, %v7913
        %v7944 = vpack.c.b16 %v7916, %v7915
        %v7945 = vpack.c.b16 %v7918, %v7917
        %v7946 = vpack.c.b16 %v7920, %v7919
        %v7947 = vpack.c.b16 %v7922, %v7921
        %v7948 = vpack.c.b16 %v7924, %v7923
        %v7949 = vpack.c.b16 %v7926, %v7925
        %v7950 = vpack.c.b16 %v7928, %v7927
        %v7951 = vpack.c.b16 %v7930, %v7929
        %v7952 = vpack.c.b16 %v7932, %v7931
        %v7953 = vpack.c.b16 %v7934, %v7933
        %v7954 = vpack.c.b16 %v7936, %v7935
        %v7955 = vpack.c.b16 %v7938, %v7937
        %v7956 = vpack.c.b16 %v7940, %v7939
        %v7989 = vunpack.c.l.b16 %v7861
        %v7990 = vunpack.c.l.b16 %v7862
        %v7991 = vunpack.c.l.b16 %v7863
        %v7992 = vunpack.c.l.b16 %v7864
        %v7993 = vunpack.c.l.b16 %v7865
        %v7994 = vunpack.c.l.b16 %v7866
        %v7995 = vunpack.c.l.b16 %v7867
        %v7996 = vunpack.c.l.b16 %v7868
        %v7997 = vunpack.c.l.b16 %v7869
        %v7998 = vunpack.c.l.b16 %v7870
        %v7999 = vunpack.c.l.b16 %v7871
        %v8000 = vunpack.c.l.b16 %v7872
        %v8001 = vunpack.c.l.b16 %v7873
        %v8002 = vunpack.c.l.b16 %v7874
        %v8003 = vunpack.c.l.b16 %v7875
        %v8004 = vunpack.c.l.b16 %v7876
        %v8005 = vpack.c.b16 %v7990, %v7989
        %v8006 = vpack.c.b16 %v7992, %v7991
        %v8007 = vpack.c.b16 %v7994, %v7993
        %v8008 = vpack.c.b16 %v7996, %v7995
        %v8009 = vpack.c.b16 %v7998, %v7997
        %v8010 = vpack.c.b16 %v8000, %v7999
        %v8011 = vpack.c.b16 %v8002, %v8001
        %v8012 = vpack.c.b16 %v8004, %v8003
        %8021 = vmatpush.bf16.msra.mxu0 %v8012
        %8022 = vmatpush.bf16.msra.mxu0 %v8011
        %8023 = vmatpush.bf16.msra.mxu0 %v8010
        %8024 = vmatpush.bf16.msra.mxu0 %v8009
        %8025 = vmatpush.bf16.msra.mxu0 %v8008
        %8026 = vmatpush.bf16.msra.mxu0 %v8007
        %8027 = vmatpush.bf16.msra.mxu0 %v8006
        %8028 = vmatpush.bf16.msra.mxu0 %v8005
        %8029 = vmatmul.bf16.gmra.mxu0 %v7941
        %v8030 = vpop.f32.mrf.mxu0
        %v8031 = vadd.f32 0.0, %v8030
        %v8032 = vpop.f32.mrf.mxu0
        %v8033 = vadd.f32 0.0, %v8032
        %8034 = vmatmul.bf16.gmra.mxu0 %v7942
        %v8035 = vpop.f32.mrf.mxu0
        %v8036 = vadd.f32 0.0, %v8035
        %v8037 = vpop.f32.mrf.mxu0
        %v8038 = vadd.f32 0.0, %v8037
        %8039 = vmatmul.bf16.gmra.mxu0 %v7943
        %v8040 = vpop.f32.mrf.mxu0
        %v8041 = vadd.f32 0.0, %v8040
        %v8042 = vpop.f32.mrf.mxu0
        %v8043 = vadd.f32 0.0, %v8042
        %8044 = vmatmul.bf16.gmra.mxu0 %v7944
        %v8045 = vpop.f32.mrf.mxu0
        %v8046 = vadd.f32 0.0, %v8045
        %v8047 = vpop.f32.mrf.mxu0
        %v8048 = vadd.f32 0.0, %v8047
        %8049 = vmatmul.bf16.gmra.mxu0 %v7945
        %v8050 = vpop.f32.mrf.mxu0
        %v8051 = vadd.f32 0.0, %v8050
        %v8052 = vpop.f32.mrf.mxu0
        %v8053 = vadd.f32 0.0, %v8052
        %8054 = vmatmul.bf16.gmra.mxu0 %v7946
        %v8055 = vpop.f32.mrf.mxu0
        %v8056 = vadd.f32 0.0, %v8055
        %v8057 = vpop.f32.mrf.mxu0
        %v8058 = vadd.f32 0.0, %v8057
        %8059 = vmatmul.bf16.gmra.mxu0 %v7947
        %v8060 = vpop.f32.mrf.mxu0
        %v8061 = vadd.f32 0.0, %v8060
        %v8062 = vpop.f32.mrf.mxu0
        %v8063 = vadd.f32 0.0, %v8062
        %8064 = vmatmul.bf16.gmra.mxu0 %v7948
        %v8065 = vpop.f32.mrf.mxu0
        %v8066 = vadd.f32 0.0, %v8065
        %v8067 = vpop.f32.mrf.mxu0
        %v8068 = vadd.f32 0.0, %v8067
        %8069 = vmatmul.bf16.gmra.mxu0 %v7949
        %v8070 = vpop.f32.mrf.mxu0
        %v8071 = vadd.f32 0.0, %v8070
        %v8072 = vpop.f32.mrf.mxu0
        %v8073 = vadd.f32 0.0, %v8072
        %8074 = vmatmul.bf16.gmra.mxu0 %v7950
        %v8075 = vpop.f32.mrf.mxu0
        %v8076 = vadd.f32 0.0, %v8075
        %v8077 = vpop.f32.mrf.mxu0
        %v8078 = vadd.f32 0.0, %v8077
        %8079 = vmatmul.bf16.gmra.mxu0 %v7951
        %v8080 = vpop.f32.mrf.mxu0
        %v8081 = vadd.f32 0.0, %v8080
        %v8082 = vpop.f32.mrf.mxu0
        %v8083 = vadd.f32 0.0, %v8082
        %8084 = vmatmul.bf16.gmra.mxu0 %v7952
        %v8085 = vpop.f32.mrf.mxu0
        %v8086 = vadd.f32 0.0, %v8085
        %v8087 = vpop.f32.mrf.mxu0
        %v8088 = vadd.f32 0.0, %v8087
        %8089 = vmatmul.bf16.gmra.mxu0 %v7953
        %v8090 = vpop.f32.mrf.mxu0
        %v8091 = vadd.f32 0.0, %v8090
        %v8092 = vpop.f32.mrf.mxu0
        %v8093 = vadd.f32 0.0, %v8092
        %8094 = vmatmul.bf16.gmra.mxu0 %v7954
        %v8095 = vpop.f32.mrf.mxu0
        %v8096 = vadd.f32 0.0, %v8095
        %v8097 = vpop.f32.mrf.mxu0
        %v8098 = vadd.f32 0.0, %v8097
        %8099 = vmatmul.bf16.gmra.mxu0 %v7955
        %v8100 = vpop.f32.mrf.mxu0
        %v8101 = vadd.f32 0.0, %v8100
        %v8102 = vpop.f32.mrf.mxu0
        %v8103 = vadd.f32 0.0, %v8102
        %8104 = vmatmul.bf16.gmra.mxu0 %v7956
        %v8105 = vpop.f32.mrf.mxu0
        %v8106 = vadd.f32 0.0, %v8105
        %v8107 = vpop.f32.mrf.mxu0
        %v8108 = vadd.f32 0.0, %v8107
        %8109 = vdwg.mxu0
        %v8110 = vadd.f32 %v7763, %v8031
        %v8111 = vadd.f32 %v7764, %v8033
        %v8112 = vadd.f32 %v7765, %v8036
        %v8113 = vadd.f32 %v7766, %v8038
        %v8114 = vadd.f32 %v7767, %v8041
        %v8115 = vadd.f32 %v7768, %v8043
        %v8116 = vadd.f32 %v7769, %v8046
        %v8117 = vadd.f32 %v7770, %v8048
        %v8118 = vadd.f32 %v7771, %v8051
        %v8119 = vadd.f32 %v7772, %v8053
        %v8120 = vadd.f32 %v7773, %v8056
        %v8121 = vadd.f32 %v7774, %v8058
        %v8122 = vadd.f32 %v7775, %v8061
        %v8123 = vadd.f32 %v7776, %v8063
        %v8124 = vadd.f32 %v7777, %v8066
        %v8125 = vadd.f32 %v7778, %v8068
        %v8126 = vadd.f32 %v7779, %v8071
        %v8127 = vadd.f32 %v7780, %v8073
        %v8128 = vadd.f32 %v7781, %v8076
        %v8129 = vadd.f32 %v7782, %v8078
        %v8130 = vadd.f32 %v7783, %v8081
        %v8131 = vadd.f32 %v7784, %v8083
        %v8132 = vadd.f32 %v7785, %v8086
        %v8133 = vadd.f32 %v7786, %v8088
        %v8134 = vadd.f32 %v7787, %v8091
        %v8135 = vadd.f32 %v7788, %v8093
        %v8136 = vadd.f32 %v7789, %v8096
        %v8137 = vadd.f32 %v7790, %v8098
        %v8138 = vadd.f32 %v7791, %v8101
        %v8139 = vadd.f32 %v7792, %v8103
        %v8140 = vadd.f32 %v7793, %v8106
        %v8141 = vadd.f32 %v7794, %v8108
        %v8142 = vld [vmem:[%s7795 + $0x1] sm:$0xff]
        %v8143 = vld [vmem:[%s7795 + $0x9] sm:$0xff]
        %v8144 = vld [vmem:[%s7795 + $0x19] sm:$0xff]
        %v8145 = vld [vmem:[%s7795 + $0x21] sm:$0xff]
        %v8146 = vld [vmem:[%s7795 + $0x31] sm:$0xff]
        %v8147 = vld [vmem:[%s7795 + $0x39] sm:$0xff]
        %v8148 = vld [vmem:[%s7795 + $0x49] sm:$0xff]
        %v8149 = vld [vmem:[%s7795 + $0x51] sm:$0xff]
        %v8150 = vld [vmem:[%s7795 + $0x61] sm:$0xff]
        %v8151 = vld [vmem:[%s7795 + $0x69] sm:$0xff]
        %v8152 = vld [vmem:[%s7795 + $0x79] sm:$0xff]
        %v8153 = vld [vmem:[%s7795 + $0x81] sm:$0xff]
        %v8154 = vld [vmem:[%s7795 + $0x91] sm:$0xff]
        %v8155 = vld [vmem:[%s7795 + $0x99] sm:$0xff]
        %v8156 = vld [vmem:[%s7795 + $0xa9] sm:$0xff]
        %v8157 = vld [vmem:[%s7795 + $0xb1] sm:$0xff]
        %v8158 = vld [vmem:[%s7795 + $0xc1] sm:$0xff]
        %v8159 = vld [vmem:[%s7795 + $0xc9] sm:$0xff]
        %v8160 = vld [vmem:[%s7795 + $0xd9] sm:$0xff]
        %v8161 = vld [vmem:[%s7795 + $0xe1] sm:$0xff]
        %v8162 = vld [vmem:[%s7795 + $0xf1] sm:$0xff]
        %v8163 = vld [vmem:[%s7795 + $0xf9] sm:$0xff]
        %v8164 = vld [vmem:[%s7795 + $0x109] sm:$0xff]
        %v8165 = vld [vmem:[%s7795 + $0x111] sm:$0xff]
        %v8166 = vld [vmem:[%s7795 + $0x121] sm:$0xff]
        %v8167 = vld [vmem:[%s7795 + $0x129] sm:$0xff]
        %v8168 = vld [vmem:[%s7795 + $0x139] sm:$0xff]
        %v8169 = vld [vmem:[%s7795 + $0x141] sm:$0xff]
        %v8170 = vld [vmem:[%s7795 + $0x151] sm:$0xff]
        %v8171 = vld [vmem:[%s7795 + $0x159] sm:$0xff]
        %v8172 = vld [vmem:[%s7795 + $0x169] sm:$0xff]
        %v8173 = vld [vmem:[%s7795 + $0x171] sm:$0xff]
        %v8174 = vpack.c.bf16 %v8142, %v8142
        %v8175 = vpack.c.bf16 %v8143, %v8143
        %v8176 = vpack.c.bf16 %v8144, %v8144
        %v8177 = vpack.c.bf16 %v8145, %v8145
        %v8178 = vpack.c.bf16 %v8146, %v8146
        %v8179 = vpack.c.bf16 %v8147, %v8147
        %v8180 = vpack.c.bf16 %v8148, %v8148
        %v8181 = vpack.c.bf16 %v8149, %v8149
        %v8182 = vpack.c.bf16 %v8150, %v8150
        %v8183 = vpack.c.bf16 %v8151, %v8151
        %v8184 = vpack.c.bf16 %v8152, %v8152
        %v8185 = vpack.c.bf16 %v8153, %v8153
        %v8186 = vpack.c.bf16 %v8154, %v8154
        %v8187 = vpack.c.bf16 %v8155, %v8155
        %v8188 = vpack.c.bf16 %v8156, %v8156
        %v8189 = vpack.c.bf16 %v8157, %v8157
        %v8190 = vpack.c.bf16 %v8158, %v8158
        %v8191 = vpack.c.bf16 %v8159, %v8159
        %v8192 = vpack.c.bf16 %v8160, %v8160
        %v8193 = vpack.c.bf16 %v8161, %v8161
        %v8194 = vpack.c.bf16 %v8162, %v8162
        %v8195 = vpack.c.bf16 %v8163, %v8163
        %v8196 = vpack.c.bf16 %v8164, %v8164
        %v8197 = vpack.c.bf16 %v8165, %v8165
        %v8198 = vpack.c.bf16 %v8166, %v8166
        %v8199 = vpack.c.bf16 %v8167, %v8167
        %v8200 = vpack.c.bf16 %v8168, %v8168
        %v8201 = vpack.c.bf16 %v8169, %v8169
        %v8202 = vpack.c.bf16 %v8170, %v8170
        %v8203 = vpack.c.bf16 %v8171, %v8171
        %v8204 = vpack.c.bf16 %v8172, %v8172
        %v8205 = vpack.c.bf16 %v8173, %v8173
        %s8206 = scalar_lea.vmem %s12, 448
        %v8207 = vld [vmem:[%s8206] sm:$0xf]
        %v8208 = vld [vmem:[%s8206 + $0x4] sm:$0xf]
        %v8209 = vld [vmem:[%s8206 + $0x8] sm:$0xf]
        %v8210 = vld [vmem:[%s8206 + $0xc] sm:$0xf]
        %v8211 = vld [vmem:[%s8206 + $0x10] sm:$0xf]
        %v8212 = vld [vmem:[%s8206 + $0x14] sm:$0xf]
        %v8213 = vld [vmem:[%s8206 + $0x18] sm:$0xf]
        %v8214 = vld [vmem:[%s8206 + $0x1c] sm:$0xf]
        %v8215 = vld [vmem:[%s8206 + $0x20] sm:$0xf]
        %v8216 = vld [vmem:[%s8206 + $0x24] sm:$0xf]
        %v8217 = vld [vmem:[%s8206 + $0x28] sm:$0xf]
        %v8218 = vld [vmem:[%s8206 + $0x2c] sm:$0xf]
        %v8219 = vld [vmem:[%s8206 + $0x30] sm:$0xf]
        %v8220 = vld [vmem:[%s8206 + $0x34] sm:$0xf]
        %v8221 = vld [vmem:[%s8206 + $0x38] sm:$0xf]
        %v8222 = vld [vmem:[%s8206 + $0x3c] sm:$0xf]
        %v8255 = vunpack.c.l.b16 %v8174
        %v8256 = vunpack.c.l.b16 %v8175
        %v8257 = vunpack.c.l.b16 %v8176
        %v8258 = vunpack.c.l.b16 %v8177
        %v8259 = vunpack.c.l.b16 %v8178
        %v8260 = vunpack.c.l.b16 %v8179
        %v8261 = vunpack.c.l.b16 %v8180
        %v8262 = vunpack.c.l.b16 %v8181
        %v8263 = vunpack.c.l.b16 %v8182
        %v8264 = vunpack.c.l.b16 %v8183
        %v8265 = vunpack.c.l.b16 %v8184
        %v8266 = vunpack.c.l.b16 %v8185
        %v8267 = vunpack.c.l.b16 %v8186
        %v8268 = vunpack.c.l.b16 %v8187
        %v8269 = vunpack.c.l.b16 %v8188
        %v8270 = vunpack.c.l.b16 %v8189
        %v8271 = vunpack.c.l.b16 %v8190
        %v8272 = vunpack.c.l.b16 %v8191
        %v8273 = vunpack.c.l.b16 %v8192
        %v8274 = vunpack.c.l.b16 %v8193
        %v8275 = vunpack.c.l.b16 %v8194
        %v8276 = vunpack.c.l.b16 %v8195
        %v8277 = vunpack.c.l.b16 %v8196
        %v8278 = vunpack.c.l.b16 %v8197
        %v8279 = vunpack.c.l.b16 %v8198
        %v8280 = vunpack.c.l.b16 %v8199
        %v8281 = vunpack.c.l.b16 %v8200
        %v8282 = vunpack.c.l.b16 %v8201
        %v8283 = vunpack.c.l.b16 %v8202
        %v8284 = vunpack.c.l.b16 %v8203
        %v8285 = vunpack.c.l.b16 %v8204
        %v8286 = vunpack.c.l.b16 %v8205
        %v8287 = vpack.c.b16 %v8256, %v8255
        %v8288 = vpack.c.b16 %v8258, %v8257
        %v8289 = vpack.c.b16 %v8260, %v8259
        %v8290 = vpack.c.b16 %v8262, %v8261
        %v8291 = vpack.c.b16 %v8264, %v8263
        %v8292 = vpack.c.b16 %v8266, %v8265
        %v8293 = vpack.c.b16 %v8268, %v8267
        %v8294 = vpack.c.b16 %v8270, %v8269
        %v8295 = vpack.c.b16 %v8272, %v8271
        %v8296 = vpack.c.b16 %v8274, %v8273
        %v8297 = vpack.c.b16 %v8276, %v8275
        %v8298 = vpack.c.b16 %v8278, %v8277
        %v8299 = vpack.c.b16 %v8280, %v8279
        %v8300 = vpack.c.b16 %v8282, %v8281
        %v8301 = vpack.c.b16 %v8284, %v8283
        %v8302 = vpack.c.b16 %v8286, %v8285
        %v8335 = vunpack.c.l.b16 %v8207
        %v8336 = vunpack.c.l.b16 %v8208
        %v8337 = vunpack.c.l.b16 %v8209
        %v8338 = vunpack.c.l.b16 %v8210
        %v8339 = vunpack.c.l.b16 %v8211
        %v8340 = vunpack.c.l.b16 %v8212
        %v8341 = vunpack.c.l.b16 %v8213
        %v8342 = vunpack.c.l.b16 %v8214
        %v8343 = vunpack.c.l.b16 %v8215
        %v8344 = vunpack.c.l.b16 %v8216
        %v8345 = vunpack.c.l.b16 %v8217
        %v8346 = vunpack.c.l.b16 %v8218
        %v8347 = vunpack.c.l.b16 %v8219
        %v8348 = vunpack.c.l.b16 %v8220
        %v8349 = vunpack.c.l.b16 %v8221
        %v8350 = vunpack.c.l.b16 %v8222
        %v8351 = vpack.c.b16 %v8336, %v8335
        %v8352 = vpack.c.b16 %v8338, %v8337
        %v8353 = vpack.c.b16 %v8340, %v8339
        %v8354 = vpack.c.b16 %v8342, %v8341
        %v8355 = vpack.c.b16 %v8344, %v8343
        %v8356 = vpack.c.b16 %v8346, %v8345
        %v8357 = vpack.c.b16 %v8348, %v8347
        %v8358 = vpack.c.b16 %v8350, %v8349
        %8367 = vmatpush.bf16.msra.mxu0 %v8358
        %8368 = vmatpush.bf16.msra.mxu0 %v8357
        %8369 = vmatpush.bf16.msra.mxu0 %v8356
        %8370 = vmatpush.bf16.msra.mxu0 %v8355
        %8371 = vmatpush.bf16.msra.mxu0 %v8354
        %8372 = vmatpush.bf16.msra.mxu0 %v8353
        %8373 = vmatpush.bf16.msra.mxu0 %v8352
        %8374 = vmatpush.bf16.msra.mxu0 %v8351
        %8375 = vmatmul.bf16.gmra.mxu0 %v8287
        %v8376 = vpop.f32.mrf.mxu0
        %v8377 = vadd.f32 0.0, %v8376
        %v8378 = vpop.f32.mrf.mxu0
        %v8379 = vadd.f32 0.0, %v8378
        %8380 = vmatmul.bf16.gmra.mxu0 %v8288
        %v8381 = vpop.f32.mrf.mxu0
        %v8382 = vadd.f32 0.0, %v8381
        %v8383 = vpop.f32.mrf.mxu0
        %v8384 = vadd.f32 0.0, %v8383
        %8385 = vmatmul.bf16.gmra.mxu0 %v8289
        %v8386 = vpop.f32.mrf.mxu0
        %v8387 = vadd.f32 0.0, %v8386
        %v8388 = vpop.f32.mrf.mxu0
        %v8389 = vadd.f32 0.0, %v8388
        %8390 = vmatmul.bf16.gmra.mxu0 %v8290
        %v8391 = vpop.f32.mrf.mxu0
        %v8392 = vadd.f32 0.0, %v8391
        %v8393 = vpop.f32.mrf.mxu0
        %v8394 = vadd.f32 0.0, %v8393
        %8395 = vmatmul.bf16.gmra.mxu0 %v8291
        %v8396 = vpop.f32.mrf.mxu0
        %v8397 = vadd.f32 0.0, %v8396
        %v8398 = vpop.f32.mrf.mxu0
        %v8399 = vadd.f32 0.0, %v8398
        %8400 = vmatmul.bf16.gmra.mxu0 %v8292
        %v8401 = vpop.f32.mrf.mxu0
        %v8402 = vadd.f32 0.0, %v8401
        %v8403 = vpop.f32.mrf.mxu0
        %v8404 = vadd.f32 0.0, %v8403
        %8405 = vmatmul.bf16.gmra.mxu0 %v8293
        %v8406 = vpop.f32.mrf.mxu0
        %v8407 = vadd.f32 0.0, %v8406
        %v8408 = vpop.f32.mrf.mxu0
        %v8409 = vadd.f32 0.0, %v8408
        %8410 = vmatmul.bf16.gmra.mxu0 %v8294
        %v8411 = vpop.f32.mrf.mxu0
        %v8412 = vadd.f32 0.0, %v8411
        %v8413 = vpop.f32.mrf.mxu0
        %v8414 = vadd.f32 0.0, %v8413
        %8415 = vmatmul.bf16.gmra.mxu0 %v8295
        %v8416 = vpop.f32.mrf.mxu0
        %v8417 = vadd.f32 0.0, %v8416
        %v8418 = vpop.f32.mrf.mxu0
        %v8419 = vadd.f32 0.0, %v8418
        %8420 = vmatmul.bf16.gmra.mxu0 %v8296
        %v8421 = vpop.f32.mrf.mxu0
        %v8422 = vadd.f32 0.0, %v8421
        %v8423 = vpop.f32.mrf.mxu0
        %v8424 = vadd.f32 0.0, %v8423
        %8425 = vmatmul.bf16.gmra.mxu0 %v8297
        %v8426 = vpop.f32.mrf.mxu0
        %v8427 = vadd.f32 0.0, %v8426
        %v8428 = vpop.f32.mrf.mxu0
        %v8429 = vadd.f32 0.0, %v8428
        %8430 = vmatmul.bf16.gmra.mxu0 %v8298
        %v8431 = vpop.f32.mrf.mxu0
        %v8432 = vadd.f32 0.0, %v8431
        %v8433 = vpop.f32.mrf.mxu0
        %v8434 = vadd.f32 0.0, %v8433
        %8435 = vmatmul.bf16.gmra.mxu0 %v8299
        %v8436 = vpop.f32.mrf.mxu0
        %v8437 = vadd.f32 0.0, %v8436
        %v8438 = vpop.f32.mrf.mxu0
        %v8439 = vadd.f32 0.0, %v8438
        %8440 = vmatmul.bf16.gmra.mxu0 %v8300
        %v8441 = vpop.f32.mrf.mxu0
        %v8442 = vadd.f32 0.0, %v8441
        %v8443 = vpop.f32.mrf.mxu0
        %v8444 = vadd.f32 0.0, %v8443
        %8445 = vmatmul.bf16.gmra.mxu0 %v8301
        %v8446 = vpop.f32.mrf.mxu0
        %v8447 = vadd.f32 0.0, %v8446
        %v8448 = vpop.f32.mrf.mxu0
        %v8449 = vadd.f32 0.0, %v8448
        %8450 = vmatmul.bf16.gmra.mxu0 %v8302
        %v8451 = vpop.f32.mrf.mxu0
        %v8452 = vadd.f32 0.0, %v8451
        %v8453 = vpop.f32.mrf.mxu0
        %v8454 = vadd.f32 0.0, %v8453
        %8455 = vdwg.mxu0
        %v8456 = vadd.f32 %v8110, %v8377
        %v8457 = vadd.f32 %v8111, %v8379
        %v8458 = vadd.f32 %v8112, %v8382
        %v8459 = vadd.f32 %v8113, %v8384
        %v8460 = vadd.f32 %v8114, %v8387
        %v8461 = vadd.f32 %v8115, %v8389
        %v8462 = vadd.f32 %v8116, %v8392
        %v8463 = vadd.f32 %v8117, %v8394
        %v8464 = vadd.f32 %v8118, %v8397
        %v8465 = vadd.f32 %v8119, %v8399
        %v8466 = vadd.f32 %v8120, %v8402
        %v8467 = vadd.f32 %v8121, %v8404
        %v8468 = vadd.f32 %v8122, %v8407
        %v8469 = vadd.f32 %v8123, %v8409
        %v8470 = vadd.f32 %v8124, %v8412
        %v8471 = vadd.f32 %v8125, %v8414
        %v8472 = vadd.f32 %v8126, %v8417
        %v8473 = vadd.f32 %v8127, %v8419
        %v8474 = vadd.f32 %v8128, %v8422
        %v8475 = vadd.f32 %v8129, %v8424
        %v8476 = vadd.f32 %v8130, %v8427
        %v8477 = vadd.f32 %v8131, %v8429
        %v8478 = vadd.f32 %v8132, %v8432
        %v8479 = vadd.f32 %v8133, %v8434
        %v8480 = vadd.f32 %v8134, %v8437
        %v8481 = vadd.f32 %v8135, %v8439
        %v8482 = vadd.f32 %v8136, %v8442
        %v8483 = vadd.f32 %v8137, %v8444
        %v8484 = vadd.f32 %v8138, %v8447
        %v8485 = vadd.f32 %v8139, %v8449
        %v8486 = vadd.f32 %v8140, %v8452
        %v8487 = vadd.f32 %v8141, %v8454
        %v8488 = vld [vmem:[%s7795 + $0x2] sm:$0xff]
        %v8489 = vld [vmem:[%s7795 + $0xa] sm:$0xff]
        %v8490 = vld [vmem:[%s7795 + $0x1a] sm:$0xff]
        %v8491 = vld [vmem:[%s7795 + $0x22] sm:$0xff]
        %v8492 = vld [vmem:[%s7795 + $0x32] sm:$0xff]
        %v8493 = vld [vmem:[%s7795 + $0x3a] sm:$0xff]
        %v8494 = vld [vmem:[%s7795 + $0x4a] sm:$0xff]
        %v8495 = vld [vmem:[%s7795 + $0x52] sm:$0xff]
        %v8496 = vld [vmem:[%s7795 + $0x62] sm:$0xff]
        %v8497 = vld [vmem:[%s7795 + $0x6a] sm:$0xff]
        %v8498 = vld [vmem:[%s7795 + $0x7a] sm:$0xff]
        %v8499 = vld [vmem:[%s7795 + $0x82] sm:$0xff]
        %v8500 = vld [vmem:[%s7795 + $0x92] sm:$0xff]
        %v8501 = vld [vmem:[%s7795 + $0x9a] sm:$0xff]
        %v8502 = vld [vmem:[%s7795 + $0xaa] sm:$0xff]
        %v8503 = vld [vmem:[%s7795 + $0xb2] sm:$0xff]
        %v8504 = vld [vmem:[%s7795 + $0xc2] sm:$0xff]
        %v8505 = vld [vmem:[%s7795 + $0xca] sm:$0xff]
        %v8506 = vld [vmem:[%s7795 + $0xda] sm:$0xff]
        %v8507 = vld [vmem:[%s7795 + $0xe2] sm:$0xff]
        %v8508 = vld [vmem:[%s7795 + $0xf2] sm:$0xff]
        %v8509 = vld [vmem:[%s7795 + $0xfa] sm:$0xff]
        %v8510 = vld [vmem:[%s7795 + $0x10a] sm:$0xff]
        %v8511 = vld [vmem:[%s7795 + $0x112] sm:$0xff]
        %v8512 = vld [vmem:[%s7795 + $0x122] sm:$0xff]
        %v8513 = vld [vmem:[%s7795 + $0x12a] sm:$0xff]
        %v8514 = vld [vmem:[%s7795 + $0x13a] sm:$0xff]
        %v8515 = vld [vmem:[%s7795 + $0x142] sm:$0xff]
        %v8516 = vld [vmem:[%s7795 + $0x152] sm:$0xff]
        %v8517 = vld [vmem:[%s7795 + $0x15a] sm:$0xff]
        %v8518 = vld [vmem:[%s7795 + $0x16a] sm:$0xff]
        %v8519 = vld [vmem:[%s7795 + $0x172] sm:$0xff]
        %v8520 = vpack.c.bf16 %v8488, %v8488
        %v8521 = vpack.c.bf16 %v8489, %v8489
        %v8522 = vpack.c.bf16 %v8490, %v8490
        %v8523 = vpack.c.bf16 %v8491, %v8491
        %v8524 = vpack.c.bf16 %v8492, %v8492
        %v8525 = vpack.c.bf16 %v8493, %v8493
        %v8526 = vpack.c.bf16 %v8494, %v8494
        %v8527 = vpack.c.bf16 %v8495, %v8495
        %v8528 = vpack.c.bf16 %v8496, %v8496
        %v8529 = vpack.c.bf16 %v8497, %v8497
        %v8530 = vpack.c.bf16 %v8498, %v8498
        %v8531 = vpack.c.bf16 %v8499, %v8499
        %v8532 = vpack.c.bf16 %v8500, %v8500
        %v8533 = vpack.c.bf16 %v8501, %v8501
        %v8534 = vpack.c.bf16 %v8502, %v8502
        %v8535 = vpack.c.bf16 %v8503, %v8503
        %v8536 = vpack.c.bf16 %v8504, %v8504
        %v8537 = vpack.c.bf16 %v8505, %v8505
        %v8538 = vpack.c.bf16 %v8506, %v8506
        %v8539 = vpack.c.bf16 %v8507, %v8507
        %v8540 = vpack.c.bf16 %v8508, %v8508
        %v8541 = vpack.c.bf16 %v8509, %v8509
        %v8542 = vpack.c.bf16 %v8510, %v8510
        %v8543 = vpack.c.bf16 %v8511, %v8511
        %v8544 = vpack.c.bf16 %v8512, %v8512
        %v8545 = vpack.c.bf16 %v8513, %v8513
        %v8546 = vpack.c.bf16 %v8514, %v8514
        %v8547 = vpack.c.bf16 %v8515, %v8515
        %v8548 = vpack.c.bf16 %v8516, %v8516
        %v8549 = vpack.c.bf16 %v8517, %v8517
        %v8550 = vpack.c.bf16 %v8518, %v8518
        %v8551 = vpack.c.bf16 %v8519, %v8519
        %s8552 = scalar_lea.vmem %s12, 512
        %v8553 = vld [vmem:[%s8552] sm:$0xf]
        %v8554 = vld [vmem:[%s8552 + $0x4] sm:$0xf]
        %v8555 = vld [vmem:[%s8552 + $0x8] sm:$0xf]
        %v8556 = vld [vmem:[%s8552 + $0xc] sm:$0xf]
        %v8557 = vld [vmem:[%s8552 + $0x10] sm:$0xf]
        %v8558 = vld [vmem:[%s8552 + $0x14] sm:$0xf]
        %v8559 = vld [vmem:[%s8552 + $0x18] sm:$0xf]
        %v8560 = vld [vmem:[%s8552 + $0x1c] sm:$0xf]
        %v8561 = vld [vmem:[%s8552 + $0x20] sm:$0xf]
        %v8562 = vld [vmem:[%s8552 + $0x24] sm:$0xf]
        %v8563 = vld [vmem:[%s8552 + $0x28] sm:$0xf]
        %v8564 = vld [vmem:[%s8552 + $0x2c] sm:$0xf]
        %v8565 = vld [vmem:[%s8552 + $0x30] sm:$0xf]
        %v8566 = vld [vmem:[%s8552 + $0x34] sm:$0xf]
        %v8567 = vld [vmem:[%s8552 + $0x38] sm:$0xf]
        %v8568 = vld [vmem:[%s8552 + $0x3c] sm:$0xf]
        %v8601 = vunpack.c.l.b16 %v8520
        %v8602 = vunpack.c.l.b16 %v8521
        %v8603 = vunpack.c.l.b16 %v8522
        %v8604 = vunpack.c.l.b16 %v8523
        %v8605 = vunpack.c.l.b16 %v8524
        %v8606 = vunpack.c.l.b16 %v8525
        %v8607 = vunpack.c.l.b16 %v8526
        %v8608 = vunpack.c.l.b16 %v8527
        %v8609 = vunpack.c.l.b16 %v8528
        %v8610 = vunpack.c.l.b16 %v8529
        %v8611 = vunpack.c.l.b16 %v8530
        %v8612 = vunpack.c.l.b16 %v8531
        %v8613 = vunpack.c.l.b16 %v8532
        %v8614 = vunpack.c.l.b16 %v8533
        %v8615 = vunpack.c.l.b16 %v8534
        %v8616 = vunpack.c.l.b16 %v8535
        %v8617 = vunpack.c.l.b16 %v8536
        %v8618 = vunpack.c.l.b16 %v8537
        %v8619 = vunpack.c.l.b16 %v8538
        %v8620 = vunpack.c.l.b16 %v8539
        %v8621 = vunpack.c.l.b16 %v8540
        %v8622 = vunpack.c.l.b16 %v8541
        %v8623 = vunpack.c.l.b16 %v8542
        %v8624 = vunpack.c.l.b16 %v8543
        %v8625 = vunpack.c.l.b16 %v8544
        %v8626 = vunpack.c.l.b16 %v8545
        %v8627 = vunpack.c.l.b16 %v8546
        %v8628 = vunpack.c.l.b16 %v8547
        %v8629 = vunpack.c.l.b16 %v8548
        %v8630 = vunpack.c.l.b16 %v8549
        %v8631 = vunpack.c.l.b16 %v8550
        %v8632 = vunpack.c.l.b16 %v8551
        %v8633 = vpack.c.b16 %v8602, %v8601
        %v8634 = vpack.c.b16 %v8604, %v8603
        %v8635 = vpack.c.b16 %v8606, %v8605
        %v8636 = vpack.c.b16 %v8608, %v8607
        %v8637 = vpack.c.b16 %v8610, %v8609
        %v8638 = vpack.c.b16 %v8612, %v8611
        %v8639 = vpack.c.b16 %v8614, %v8613
        %v8640 = vpack.c.b16 %v8616, %v8615
        %v8641 = vpack.c.b16 %v8618, %v8617
        %v8642 = vpack.c.b16 %v8620, %v8619
        %v8643 = vpack.c.b16 %v8622, %v8621
        %v8644 = vpack.c.b16 %v8624, %v8623
        %v8645 = vpack.c.b16 %v8626, %v8625
        %v8646 = vpack.c.b16 %v8628, %v8627
        %v8647 = vpack.c.b16 %v8630, %v8629
        %v8648 = vpack.c.b16 %v8632, %v8631
        %v8681 = vunpack.c.l.b16 %v8553
        %v8682 = vunpack.c.l.b16 %v8554
        %v8683 = vunpack.c.l.b16 %v8555
        %v8684 = vunpack.c.l.b16 %v8556
        %v8685 = vunpack.c.l.b16 %v8557
        %v8686 = vunpack.c.l.b16 %v8558
        %v8687 = vunpack.c.l.b16 %v8559
        %v8688 = vunpack.c.l.b16 %v8560
        %v8689 = vunpack.c.l.b16 %v8561
        %v8690 = vunpack.c.l.b16 %v8562
        %v8691 = vunpack.c.l.b16 %v8563
        %v8692 = vunpack.c.l.b16 %v8564
        %v8693 = vunpack.c.l.b16 %v8565
        %v8694 = vunpack.c.l.b16 %v8566
        %v8695 = vunpack.c.l.b16 %v8567
        %v8696 = vunpack.c.l.b16 %v8568
        %v8697 = vpack.c.b16 %v8682, %v8681
        %v8698 = vpack.c.b16 %v8684, %v8683
        %v8699 = vpack.c.b16 %v8686, %v8685
        %v8700 = vpack.c.b16 %v8688, %v8687
        %v8701 = vpack.c.b16 %v8690, %v8689
        %v8702 = vpack.c.b16 %v8692, %v8691
        %v8703 = vpack.c.b16 %v8694, %v8693
        %v8704 = vpack.c.b16 %v8696, %v8695
        %8713 = vmatpush.bf16.msra.mxu0 %v8704
        %8714 = vmatpush.bf16.msra.mxu0 %v8703
        %8715 = vmatpush.bf16.msra.mxu0 %v8702
        %8716 = vmatpush.bf16.msra.mxu0 %v8701
        %8717 = vmatpush.bf16.msra.mxu0 %v8700
        %8718 = vmatpush.bf16.msra.mxu0 %v8699
        %8719 = vmatpush.bf16.msra.mxu0 %v8698
        %8720 = vmatpush.bf16.msra.mxu0 %v8697
        %8721 = vmatmul.bf16.gmra.mxu0 %v8633
        %v8722 = vpop.f32.mrf.mxu0
        %v8723 = vadd.f32 0.0, %v8722
        %v8724 = vpop.f32.mrf.mxu0
        %v8725 = vadd.f32 0.0, %v8724
        %8726 = vmatmul.bf16.gmra.mxu0 %v8634
        %v8727 = vpop.f32.mrf.mxu0
        %v8728 = vadd.f32 0.0, %v8727
        %v8729 = vpop.f32.mrf.mxu0
        %v8730 = vadd.f32 0.0, %v8729
        %8731 = vmatmul.bf16.gmra.mxu0 %v8635
        %v8732 = vpop.f32.mrf.mxu0
        %v8733 = vadd.f32 0.0, %v8732
        %v8734 = vpop.f32.mrf.mxu0
        %v8735 = vadd.f32 0.0, %v8734
        %8736 = vmatmul.bf16.gmra.mxu0 %v8636
        %v8737 = vpop.f32.mrf.mxu0
        %v8738 = vadd.f32 0.0, %v8737
        %v8739 = vpop.f32.mrf.mxu0
        %v8740 = vadd.f32 0.0, %v8739
        %8741 = vmatmul.bf16.gmra.mxu0 %v8637
        %v8742 = vpop.f32.mrf.mxu0
        %v8743 = vadd.f32 0.0, %v8742
        %v8744 = vpop.f32.mrf.mxu0
        %v8745 = vadd.f32 0.0, %v8744
        %8746 = vmatmul.bf16.gmra.mxu0 %v8638
        %v8747 = vpop.f32.mrf.mxu0
        %v8748 = vadd.f32 0.0, %v8747
        %v8749 = vpop.f32.mrf.mxu0
        %v8750 = vadd.f32 0.0, %v8749
        %8751 = vmatmul.bf16.gmra.mxu0 %v8639
        %v8752 = vpop.f32.mrf.mxu0
        %v8753 = vadd.f32 0.0, %v8752
        %v8754 = vpop.f32.mrf.mxu0
        %v8755 = vadd.f32 0.0, %v8754
        %8756 = vmatmul.bf16.gmra.mxu0 %v8640
        %v8757 = vpop.f32.mrf.mxu0
        %v8758 = vadd.f32 0.0, %v8757
        %v8759 = vpop.f32.mrf.mxu0
        %v8760 = vadd.f32 0.0, %v8759
        %8761 = vmatmul.bf16.gmra.mxu0 %v8641
        %v8762 = vpop.f32.mrf.mxu0
        %v8763 = vadd.f32 0.0, %v8762
        %v8764 = vpop.f32.mrf.mxu0
        %v8765 = vadd.f32 0.0, %v8764
        %8766 = vmatmul.bf16.gmra.mxu0 %v8642
        %v8767 = vpop.f32.mrf.mxu0
        %v8768 = vadd.f32 0.0, %v8767
        %v8769 = vpop.f32.mrf.mxu0
        %v8770 = vadd.f32 0.0, %v8769
        %8771 = vmatmul.bf16.gmra.mxu0 %v8643
        %v8772 = vpop.f32.mrf.mxu0
        %v8773 = vadd.f32 0.0, %v8772
        %v8774 = vpop.f32.mrf.mxu0
        %v8775 = vadd.f32 0.0, %v8774
        %8776 = vmatmul.bf16.gmra.mxu0 %v8644
        %v8777 = vpop.f32.mrf.mxu0
        %v8778 = vadd.f32 0.0, %v8777
        %v8779 = vpop.f32.mrf.mxu0
        %v8780 = vadd.f32 0.0, %v8779
        %8781 = vmatmul.bf16.gmra.mxu0 %v8645
        %v8782 = vpop.f32.mrf.mxu0
        %v8783 = vadd.f32 0.0, %v8782
        %v8784 = vpop.f32.mrf.mxu0
        %v8785 = vadd.f32 0.0, %v8784
        %8786 = vmatmul.bf16.gmra.mxu0 %v8646
        %v8787 = vpop.f32.mrf.mxu0
        %v8788 = vadd.f32 0.0, %v8787
        %v8789 = vpop.f32.mrf.mxu0
        %v8790 = vadd.f32 0.0, %v8789
        %8791 = vmatmul.bf16.gmra.mxu0 %v8647
        %v8792 = vpop.f32.mrf.mxu0
        %v8793 = vadd.f32 0.0, %v8792
        %v8794 = vpop.f32.mrf.mxu0
        %v8795 = vadd.f32 0.0, %v8794
        %8796 = vmatmul.bf16.gmra.mxu0 %v8648
        %v8797 = vpop.f32.mrf.mxu0
        %v8798 = vadd.f32 0.0, %v8797
        %v8799 = vpop.f32.mrf.mxu0
        %v8800 = vadd.f32 0.0, %v8799
        %8801 = vdwg.mxu0
        %v8802 = vadd.f32 %v8456, %v8723
        %v8803 = vadd.f32 %v8457, %v8725
        %v8804 = vadd.f32 %v8458, %v8728
        %v8805 = vadd.f32 %v8459, %v8730
        %v8806 = vadd.f32 %v8460, %v8733
        %v8807 = vadd.f32 %v8461, %v8735
        %v8808 = vadd.f32 %v8462, %v8738
        %v8809 = vadd.f32 %v8463, %v8740
        %v8810 = vadd.f32 %v8464, %v8743
        %v8811 = vadd.f32 %v8465, %v8745
        %v8812 = vadd.f32 %v8466, %v8748
        %v8813 = vadd.f32 %v8467, %v8750
        %v8814 = vadd.f32 %v8468, %v8753
        %v8815 = vadd.f32 %v8469, %v8755
        %v8816 = vadd.f32 %v8470, %v8758
        %v8817 = vadd.f32 %v8471, %v8760
        %v8818 = vadd.f32 %v8472, %v8763
        %v8819 = vadd.f32 %v8473, %v8765
        %v8820 = vadd.f32 %v8474, %v8768
        %v8821 = vadd.f32 %v8475, %v8770
        %v8822 = vadd.f32 %v8476, %v8773
        %v8823 = vadd.f32 %v8477, %v8775
        %v8824 = vadd.f32 %v8478, %v8778
        %v8825 = vadd.f32 %v8479, %v8780
        %v8826 = vadd.f32 %v8480, %v8783
        %v8827 = vadd.f32 %v8481, %v8785
        %v8828 = vadd.f32 %v8482, %v8788
        %v8829 = vadd.f32 %v8483, %v8790
        %v8830 = vadd.f32 %v8484, %v8793
        %v8831 = vadd.f32 %v8485, %v8795
        %v8832 = vadd.f32 %v8486, %v8798
        %v8833 = vadd.f32 %v8487, %v8800
        %v8834 = vld [vmem:[%s13] sm:$0x1]
        %v8836 = vperm.slane %v8834, 0
        %v8838 = vadd.f32 %v8802, %v8836
        %v8839 = vadd.f32 %v8803, %v8836
        %v8840 = vadd.f32 %v8804, %v8836
        %v8841 = vadd.f32 %v8805, %v8836
        %v8842 = vadd.f32 %v8806, %v8836
        %v8843 = vadd.f32 %v8807, %v8836
        %v8844 = vadd.f32 %v8808, %v8836
        %v8845 = vadd.f32 %v8809, %v8836
        %v8846 = vadd.f32 %v8810, %v8836
        %v8847 = vadd.f32 %v8811, %v8836
        %v8848 = vadd.f32 %v8812, %v8836
        %v8849 = vadd.f32 %v8813, %v8836
        %v8850 = vadd.f32 %v8814, %v8836
        %v8851 = vadd.f32 %v8815, %v8836
        %v8852 = vadd.f32 %v8816, %v8836
        %v8853 = vadd.f32 %v8817, %v8836
        %v8854 = vadd.f32 %v8818, %v8836
        %v8855 = vadd.f32 %v8819, %v8836
        %v8856 = vadd.f32 %v8820, %v8836
        %v8857 = vadd.f32 %v8821, %v8836
        %v8858 = vadd.f32 %v8822, %v8836
        %v8859 = vadd.f32 %v8823, %v8836
        %v8860 = vadd.f32 %v8824, %v8836
        %v8861 = vadd.f32 %v8825, %v8836
        %v8862 = vadd.f32 %v8826, %v8836
        %v8863 = vadd.f32 %v8827, %v8836
        %v8864 = vadd.f32 %v8828, %v8836
        %v8865 = vadd.f32 %v8829, %v8836
        %v8866 = vadd.f32 %v8830, %v8836
        %v8867 = vadd.f32 %v8831, %v8836
        %v8868 = vadd.f32 %v8832, %v8836
        %v8869 = vadd.f32 %v8833, %v8836
        %v8870 = vadd.f32 %v8838, %v481
        %v8871 = vadd.f32 %v8839, %v482
        %v8872 = vadd.f32 %v8840, %v483
        %v8873 = vadd.f32 %v8841, %v484
        %v8874 = vadd.f32 %v8842, %v485
        %v8875 = vadd.f32 %v8843, %v486
        %v8876 = vadd.f32 %v8844, %v487
        %v8877 = vadd.f32 %v8845, %v488
        %v8878 = vadd.f32 %v8846, %v489
        %v8879 = vadd.f32 %v8847, %v490
        %v8880 = vadd.f32 %v8848, %v491
        %v8881 = vadd.f32 %v8849, %v492
        %v8882 = vadd.f32 %v8850, %v493
        %v8883 = vadd.f32 %v8851, %v494
        %v8884 = vadd.f32 %v8852, %v495
        %v8885 = vadd.f32 %v8853, %v496
        %v8886 = vadd.f32 %v8854, %v497
        %v8887 = vadd.f32 %v8855, %v498
        %v8888 = vadd.f32 %v8856, %v499
        %v8889 = vadd.f32 %v8857, %v500
        %v8890 = vadd.f32 %v8858, %v501
        %v8891 = vadd.f32 %v8859, %v502
        %v8892 = vadd.f32 %v8860, %v503
        %v8893 = vadd.f32 %v8861, %v504
        %v8894 = vadd.f32 %v8862, %v505
        %v8895 = vadd.f32 %v8863, %v506
        %v8896 = vadd.f32 %v8864, %v507
        %v8897 = vadd.f32 %v8865, %v508
        %v8898 = vadd.f32 %v8866, %v509
        %v8899 = vadd.f32 %v8867, %v510
        %v8900 = vadd.f32 %v8868, %v511
        %v8901 = vadd.f32 %v8869, %v512
        %8902 = vst [vmem:[%s471] sm:$0xff] %v8870
        %8903 = vst [vmem:[%s471 + $0x8] sm:$0xff] %v8871
        %8904 = vst [vmem:[%s471 + $0x10] sm:$0xff] %v8872
        %8905 = vst [vmem:[%s471 + $0x18] sm:$0xff] %v8873
        %8906 = vst [vmem:[%s471 + $0x20] sm:$0xff] %v8874
        %8907 = vst [vmem:[%s471 + $0x28] sm:$0xff] %v8875
        %8908 = vst [vmem:[%s471 + $0x30] sm:$0xff] %v8876
        %8909 = vst [vmem:[%s471 + $0x38] sm:$0xff] %v8877
        %8910 = vst [vmem:[%s471 + $0x40] sm:$0xff] %v8878
        %8911 = vst [vmem:[%s471 + $0x48] sm:$0xff] %v8879
        %8912 = vst [vmem:[%s471 + $0x50] sm:$0xff] %v8880
        %8913 = vst [vmem:[%s471 + $0x58] sm:$0xff] %v8881
        %8914 = vst [vmem:[%s471 + $0x60] sm:$0xff] %v8882
        %8915 = vst [vmem:[%s471 + $0x68] sm:$0xff] %v8883
        %8916 = vst [vmem:[%s471 + $0x70] sm:$0xff] %v8884
        %8917 = vst [vmem:[%s471 + $0x78] sm:$0xff] %v8885
        %8918 = vst [vmem:[%s471 + $0x80] sm:$0xff] %v8886
        %8919 = vst [vmem:[%s471 + $0x88] sm:$0xff] %v8887
        %8920 = vst [vmem:[%s471 + $0x90] sm:$0xff] %v8888
        %8921 = vst [vmem:[%s471 + $0x98] sm:$0xff] %v8889
        %8922 = vst [vmem:[%s471 + $0xa0] sm:$0xff] %v8890
        %8923 = vst [vmem:[%s471 + $0xa8] sm:$0xff] %v8891
        %8924 = vst [vmem:[%s471 + $0xb0] sm:$0xff] %v8892
        %8925 = vst [vmem:[%s471 + $0xb8] sm:$0xff] %v8893
        %8926 = vst [vmem:[%s471 + $0xc0] sm:$0xff] %v8894
        %8927 = vst [vmem:[%s471 + $0xc8] sm:$0xff] %v8895
        %8928 = vst [vmem:[%s471 + $0xd0] sm:$0xff] %v8896
        %8929 = vst [vmem:[%s471 + $0xd8] sm:$0xff] %v8897
        %8930 = vst [vmem:[%s471 + $0xe0] sm:$0xff] %v8898
        %8931 = vst [vmem:[%s471 + $0xe8] sm:$0xff] %v8899
        %8932 = vst [vmem:[%s471 + $0xf0] sm:$0xff] %v8900
        %8933 = vst [vmem:[%s471 + $0xf8] sm:$0xff] %v8901
        %s8934 = sand.u32 %s340, 1
        %s8935 = scalar_lea.sflag [#allocation5], %s8934
        %s8936 = sand.u32 %s340, 1
        %s8937 = smul.addr %s8936, 256
        %s8938 = scalar_lea.vmem [#allocation4], %s8937
        // Predicated region
        $region77: #{resnet_block_forward.1} parent=75 // pred_check
          %p8939 = pneg %p350
        $region78: #{resnet_block_forward.1} parent=75 // pred_check_branch
          %8941 = sbr.rel (%p8939) target = $region80
        $region79: #{resnet_block_forward.1} parent=75 // pred_region
          %8943 = vsyncadd %s8935, 0
          %s8944 = smul.addr %s28, 32
          %s8945 = smul.addr %s8944, 8
          %s8946 = scalar_lea.hbm %s14, %s8945
          %s8947 = sshll.u32 %s8938, 4
          %s8948 = int_to_ptr.vmem [resolvable:$true] %s8947
          %s8949 = sshll.u32 %s8946, 4
          %s8950 = int_to_ptr.hbm [resolvable:$true] %s8949
          %8955 = dma.vmem_to_hbm [thread:$0]  %s8948, 4096, %s8950, %s8935, 128, 128, 8
        $region80: #{resnet_block_forward.1} parent=75 // pred_fallthru
          _
      $region76: #{resnet_block_forward.1} parent=5 // pred_fallthru
        _
      %p8956 = scmp.le.s32.totalorder 2, %s23
      // Predicated region
      $region81: #{resnet_block_forward.1} parent=5 // pred_check
        %p8957 = pneg %p8956
      $region82: #{resnet_block_forward.1} parent=5 // pred_check_branch
        %8959 = sbr.rel (%p8957) target = $region84
      $region83: #{resnet_block_forward.1} parent=5 // pred_region
        %s8960 = ssub.s32 %s23, 2
        // Predicated region
        $region85: #{resnet_block_forward.1} parent=83 // pred_check
          %p8961 = pneg %p356
        $region86: #{resnet_block_forward.1} parent=83 // pred_check_branch
          %8963 = sbr.rel (%p8961) target = $region88
        $region87: #{resnet_block_forward.1} parent=83 // pred_region
          %s8964 = sand.u32 %s341, 1
          %s8965 = scalar_lea.sflag [#allocation5], %s8964
          %s8966 = sand.u32 %s341, 1
          %s8967 = smul.addr %s8966, 256
          %s8968 = scalar_lea.vmem [#allocation4], %s8967
          %8970 = dma.done %s8965, 4096
        $region88: #{resnet_block_forward.1} parent=83 // pred_fallthru
          _
      $region84: #{resnet_block_forward.1} parent=5 // pred_fallthru
        _
    $region6: #{resnet_block_forward.1} parent=1 // loop_footer
      %s27 = sadd.s32 1, %s23
    $region7: #{resnet_block_forward.1} parent=1 // loop_footer_branch
      %22 = sbr.rel target = $region3
    $region8: #{resnet_block_forward.1} parent=1 // loop_exit
      _
    %8971 = vsyncpa [#allocation5], 1
    %s8972 = scalar_lea.sflag [#allocation5], 1
    %8973 = vsyncpa %s8972, 1

</llo_original>
